<compile_context>
chip_gen: v5e
topology: v5e:2x2
jax: 0.10.0
libtpu: 0.0.40
codegen_flags: <defaults>
</compile_context>

<pallas_src>
import math
from functools import partial

import jax
import jax.numpy as jnp
from jax.experimental import pallas as pl
from jax.experimental.pallas import tpu as pltpu


# ----------------------------------------------------------------------------
# Time-block chooser: largest t that divides T, is a multiple of 8 (or == T, which
# satisfies the (8,128) block constraint by the full-dim exemption) and fits budget.
# ----------------------------------------------------------------------------
def _pick_time_block(T, per_step_bytes, budget_bytes, max_steps=None):
    cap = max(1, budget_bytes // max(1, per_step_bytes))
    if max_steps is not None:
        cap = min(cap, max_steps)
    if T <= cap:
        return T
    best = 0
    for d in range(8, cap + 1, 8):
        if T % d == 0:
            best = d
    return best if best else T   # rare fallback (e.g. large prime T): whole T


# ----------------------------------------------------------------------------
# Kernel 1: per-time-block class proportions + layer-0 input projection
# ----------------------------------------------------------------------------
def _prop_gates_kernel(c_pad, inv_p, x_ref, w_ref, b_ref, o_ref):
    # x_ref: (B, TB, HW) int   w_ref: (c_pad, 4H) f32 = padded, gate-reordered W_ih0.T
    # b_ref: (1, 4H) f32 = gate-reordered (b_ih0 + b_hh0)
    # o_ref: (B, TB, 4H) f32 = proportions @ W_ih0.T + bias0   (batch-major gates)
    nb, tb, hw = x_ref.shape
    four_h = o_ref.shape[-1]

    pix = x_ref[...].astype(jnp.int32)                               # (B, TB, HW)
    cls = jax.lax.broadcasted_iota(jnp.int32, (1, 1, 1, c_pad), 3)   # classes on lanes
    onehot = (pix[:, :, :, None] == cls).astype(jnp.float32)         # (B, TB, HW, c_pad)
    props = jnp.sum(onehot, axis=2) * inv_p                          # (B, TB, c_pad)

    gates = (jnp.dot(props.reshape(nb * tb, c_pad), w_ref[...],
                     preferred_element_type=jnp.float32)
             + b_ref[...])                                           # (B*TB, 4H)
    o_ref[...] = gates.reshape(nb, tb, four_h)


def prop_gates_pallas(pixel_flat, w_ih0_pad, b0_row, t_block):
    # pixel_flat: (B, T, HW) int -- read directly, NO wrapper transpose.
    B, T, HW = pixel_flat.shape
    c_pad, four_h = w_ih0_pad.shape
    inv_p = 1.0 / float(HW)
    return pl.pallas_call(
        partial(_prop_gates_kernel, c_pad, inv_p),
        out_shape=jax.ShapeDtypeStruct((B, T, four_h), jnp.float32),
        grid=(T // t_block,),
        in_specs=[
            pl.BlockSpec((B, t_block, HW), lambda tb: (0, tb, 0)),
            pl.BlockSpec((c_pad, four_h), lambda tb: (0, 0)),   # resident weights
            pl.BlockSpec((1, four_h), lambda tb: (0, 0)),
        ],
        out_specs=pl.BlockSpec((B, t_block, four_h), lambda tb: (0, tb, 0)),
        compiler_params=pltpu.CompilerParams(
            dimension_semantics=("parallel",),          # megacore sharding on v7x
            vmem_limit_bytes=48 * 1024 * 1024,          # safe on v5e/v6e/v7x (64 MiB)
        ),
    )(pixel_flat, w_ih0_pad, b0_row)


# ----------------------------------------------------------------------------
# Kernel 2: multi-layer LSTM recurrence (streamed g0) + final Linear
# ----------------------------------------------------------------------------
def _lstm_fc_kernel(num_layers, hidden, t_chunk, *refs):
    # refs = [g0(B,T_CHUNK,4H), w_hh0(H,4H),
    #         (w_ih(H,4H), w_hh(H,4H), b(1,4H)) * (num_layers-1),
    #         fc_w(H,O), fc_b(1,O),          <- inputs
    #         out(B,O),                      <- output
    #         h_scr(L,B,H), c_scr(L,B,H)]    <- scratch (persists across grid steps)
    n_up = num_layers - 1
    g0_ref = refs[0]
    w_hh0_ref = refs[1]
    up_refs = refs[2:2 + 3 * n_up]
    fc_w_ref = refs[2 + 3 * n_up]
    fc_b_ref = refs[3 + 3 * n_up]
    out_ref = refs[4 + 3 * n_up]
    h_ref = refs[5 + 3 * n_up]
    c_ref = refs[6 + 3 * n_up]

    H = hidden

    @pl.when(pl.program_id(0) == 0)
    def _init():
        h_ref[...] = jnp.zeros_like(h_ref)
        c_ref[...] = jnp.zeros_like(c_ref)

    def cell(gates, c_prev):
        # gates layout [i, f, o, g] (reordered in the wrapper):
        #   one tanh over 3H for the sigmoids + one tanh over H for the g-gate.
        sg = 0.5 * jnp.tanh(0.5 * gates[:, :3 * H]) + 0.5   # sigmoid(i,f,o), 1 EUP op
        g_g = jnp.tanh(gates[:, 3 * H:])
        c_new = sg[:, H:2 * H] * c_prev + sg[:, :H] * g_g
        h_new = sg[:, 2 * H:] * jnp.tanh(c_new)
        return h_new, c_new

    # Carry h/c in values (vregs) within the chunk; scratch only at chunk boundaries.
    hs = [h_ref[l] for l in range(num_layers)]
    cs = [c_ref[l] for l in range(num_layers)]

    for t in range(t_chunk):                        # static unroll within the chunk
        # Layer 0: input projection was precomputed in kernel 1 -> only the
        # recurrent dot is on the critical path; the g0 slice is independent of state.
        gates0 = g0_ref[:, t, :] + jnp.dot(hs[0], w_hh0_ref[...],
                                           preferred_element_type=jnp.float32)
        hs[0], cs[0] = cell(gates0, cs[0])
        x = hs[0]
        for l in range(1, num_layers):              # static layer loop
            w_ih = up_refs[3 * (l - 1)]
            w_hh = up_refs[3 * (l - 1) + 1]
            b = up_refs[3 * (l - 1) + 2]
            gl = (jnp.dot(x, w_ih[...], preferred_element_type=jnp.float32)
                  + jnp.dot(hs[l], w_hh[...], preferred_element_type=jnp.float32)
                  + b[...])                         # two dots, no per-step concat
            hs[l], cs[l] = cell(gl, cs[l])
            x = hs[l]

    for l in range(num_layers):                     # persist state for next chunk
        h_ref[l] = hs[l]
        c_ref[l] = cs[l]

    @pl.when(pl.program_id(0) == pl.num_programs(0) - 1)
    def _finish():
        # fc(out[:, -1, :]) -> last-timestep hidden of the top layer
        out_ref[...] = (jnp.dot(hs[num_layers - 1], fc_w_ref[...],
                                preferred_element_type=jnp.float32)
                        + fc_b_ref[...])


def lstm_fc_pallas(g0, w_hh0_t, upper_flat, fc_w_t, fc_b_row, hidden, num_layers,
                   t_chunk):
    B, T, four_h = g0.shape
    out_size = fc_w_t.shape[1]
    weights = [w_hh0_t] + list(upper_flat) + [fc_w_t, fc_b_row]

    in_specs = [pl.BlockSpec((B, t_chunk, four_h), lambda c: (0, c, 0))]
    in_specs += [pl.BlockSpec(w.shape, lambda c: (0, 0)) for w in weights]  # resident

    return pl.pallas_call(
        partial(_lstm_fc_kernel, num_layers, hidden, t_chunk),
        out_shape=jax.ShapeDtypeStruct((B, out_size), jnp.float32),
        grid=(T // t_chunk,),
        in_specs=in_specs,
        out_specs=pl.BlockSpec((B, out_size), lambda c: (0, 0)),
        scratch_shapes=[pltpu.VMEM((num_layers, B, hidden), jnp.float32),
                        pltpu.VMEM((num_layers, B, hidden), jnp.float32)],
        compiler_params=pltpu.CompilerParams(
            dimension_semantics=("arbitrary",),         # sequential recurrence
            vmem_limit_bytes=32 * 1024 * 1024,
        ),
    )(g0, *weights)


# ----------------------------------------------------------------------------
# Full model forward (weight prep in plain JAX; jitted end-to-end)
# ----------------------------------------------------------------------------
@partial(jax.jit, static_argnames=("input_size", "hidden", "num_layers"))
def proportions_lstm_forward(pixel, params, *, input_size, hidden, num_layers):
    B, T, Hs, Ws = pixel.shape
    HW = Hs * Ws
    pixel_flat = pixel.reshape(B, T, HW)              # contiguous reshape: free
    c_pad = ((input_size + 127) // 128) * 128         # lane-align the class dim
    H = hidden

    def reorder(w):
        # PyTorch gate order [i, f, g, o] -> [i, f, o, g] so the kernel runs sigmoid
        # on one contiguous 3H block and tanh only on the trailing H block.
        return jnp.concatenate([w[:H], w[H:2 * H], w[3 * H:4 * H], w[2 * H:3 * H]],
                               axis=0)

    # Layer 0: reorder + transpose + zero-pad W_ih so padded proportion lanes add 0.
    w_ih0, w_hh0, b_ih0, b_hh0 = params["lstm"][0]
    w_ih0_pad = (jnp.zeros((c_pad, 4 * H), jnp.float32)
                 .at[:input_size].set(reorder(w_ih0).T))
    b0_row = reorder(b_ih0 + b_hh0)[None, :]
    w_hh0_t = reorder(w_hh0).T                         # (H, 4H)

    # Upper layers: separate (H,4H) input/recurrent matrices (no concat in-kernel).
    upper_flat = []
    for l in range(1, num_layers):
        w_ih, w_hh, b_ih, b_hh = params["lstm"][l]
        upper_flat += [reorder(w_ih).T, reorder(w_hh).T, reorder(b_ih + b_hh)[None, :]]

    fc_w, fc_b = params["fc"]

    # Kernel 1 time block: cap the (B, t, HW, c_pad) one-hot temporary at ~6 MiB
    # (keeps total VMEM well inside v7x's 64 MiB with double-buffered blocks).
    t_block = _pick_time_block(T, per_step_bytes=B * HW * c_pad * 4,
                               budget_bytes=6 << 20)
    g0 = prop_gates_pallas(pixel_flat, w_ih0_pad, b0_row, t_block)   # (B, T, 4H)

    # Kernel 2 time chunk: stream g0; the chunk is also the recurrence unroll factor.
    t_chunk = _pick_time_block(T, per_step_bytes=B * 4 * H * 4,
                               budget_bytes=1 << 20, max_steps=32)
    return lstm_fc_pallas(g0, w_hh0_t, upper_flat, fc_w.T, fc_b[None, :],
                          H, num_layers, t_chunk)                    # (B, O)


# ----------------------------------------------------------------------------
# Pure-JAX reference (mirrors the PyTorch forward exactly, original gate order)
# ----------------------------------------------------------------------------
def reference_forward(pixel, params, *, input_size, hidden, num_layers):
    B, T, _, _ = pixel.shape
    one_hot = jax.nn.one_hot(pixel, input_size, dtype=jnp.float32)  # (B,T,H,W,C)
    x = one_hot.mean(axis=(-3, -2))                                 # (B,T,C)
    h = [jnp.zeros((B, hidden), jnp.float32) for _ in range(num_layers)]
    c = [jnp.zeros((B, hidden), jnp.float32) for _ in range(num_layers)]
    for t in range(T):
        inp = x[:, t, :]
        for l in range(num_layers):
            w_ih, w_hh, b_ih, b_hh = params["lstm"][l]
            gates = inp @ w_ih.T + h[l] @ w_hh.T + b_ih + b_hh
            i_g = jax.nn.sigmoid(gates[:, 0 * hidden:1 * hidden])
            f_g = jax.nn.sigmoid(gates[:, 1 * hidden:2 * hidden])
            g_g = jnp.tanh(gates[:, 2 * hidden:3 * hidden])
            o_g = jax.nn.sigmoid(gates[:, 3 * hidden:4 * hidden])
            c[l] = f_g * c[l] + i_g * g_g
            h[l] = o_g * jnp.tanh(c[l])
            inp = h[l]
    fc_w, fc_b = params["fc"]
    return h[num_layers - 1] @ fc_w.T + fc_b


# ----------------------------------------------------------------------------
# Deterministic parameter init (PyTorch-style uniform)
# ----------------------------------------------------------------------------
def init_params(key, input_size, output_size, hidden, num_layers):
    bound = 1.0 / math.sqrt(hidden)
    lstm_params = []
    for l in range(num_layers):
        in_l = input_size if l == 0 else hidden
        key, k1, k2, k3, k4 = jax.random.split(key, 5)
        w_ih = jax.random.uniform(k1, (4 * hidden, in_l), jnp.float32, -bound, bound)
        w_hh = jax.random.uniform(k2, (4 * hidden, hidden), jnp.float32, -bound, bound)
        b_ih = jax.random.uniform(k3, (4 * hidden,), jnp.float32, -bound, bound)
        b_hh = jax.random.uniform(k4, (4 * hidden,), jnp.float32, -bound, bound)
        lstm_params.append((w_ih, w_hh, b_ih, b_hh))
    key, k1, k2 = jax.random.split(key, 3)
    fc_w = jax.random.uniform(k1, (output_size, hidden), jnp.float32, -bound, bound)
    fc_b = jax.random.uniform(k2, (output_size,), jnp.float32, -bound, bound)
    return {"lstm": lstm_params, "fc": (fc_w, fc_b)}


if __name__ == "__main__":
    # Small, forward-consistent shapes
    B, T, Hs, Ws = 2, 8, 16, 16
    INPUT_SIZE = 10      # input CategoricalData.category_count
    OUTPUT_SIZE = 6      # output CategoricalData.category_count
    HIDDEN = 32
    NUM_LAYERS = 2
    # TODO(synk): nn.LSTM dropout=0.1 is training-only (between layers); inference
    # forward has no dropout, so it is intentionally not implemented here.

    key = jax.random.PRNGKey(0)
    key, kp = jax.random.split(key)
    pixel_input = jax.random.randint(kp, (B, T, Hs, Ws), 0, INPUT_SIZE, dtype=jnp.int32)
    params = init_params(key, INPUT_SIZE, OUTPUT_SIZE, HIDDEN, NUM_LAYERS)

    out = proportions_lstm_forward(pixel_input, params,
                                   input_size=INPUT_SIZE, hidden=HIDDEN,
                                   num_layers=NUM_LAYERS)
    out = jax.block_until_ready(out)

    ref = reference_forward(pixel_input, params,
                            input_size=INPUT_SIZE, hidden=HIDDEN,
                            num_layers=NUM_LAYERS)
    ref = jax.block_until_ready(ref)

    assert out.shape == (B, OUTPUT_SIZE)
    assert jnp.allclose(out, ref, rtol=1e-4, atol=1e-4), (out, ref)
    print("KERNEL_OK")
</pallas_src>

<mosaic_0001>
module attributes {stable_mosaic.version = 11 : i64} {
  func.func @_prop_gates_kernel(%arg0: i32, %arg1: memref<2x8x256xi32, #tpu.memory_space<vmem>>, %arg2: memref<128x128xf32, #tpu.memory_space<vmem>>, %arg3: memref<1x128xf32, #tpu.memory_space<vmem>>, %arg4: memref<2x8x128xf32, #tpu.memory_space<vmem>>) attributes {dimension_semantics = [#tpu.dimension_semantics<parallel>], iteration_bounds = array<i64: 1>, scalar_prefetch = 0 : i64, scratch_operands = 0 : i64, tpu.core_type = #tpu.core_type<tc>, window_params = [{transform_indices = @transform_0, window_bounds = array<i64: 2, 8, 256>}, {pipeline_mode = #tpu.pipeline_mode<synchronous>, transform_indices = @transform_1, window_bounds = array<i64: 128, 128>}, {pipeline_mode = #tpu.pipeline_mode<synchronous>, transform_indices = @transform_2, window_bounds = array<i64: 1, 128>}, {transform_indices = @transform_3, window_bounds = array<i64: 2, 8, 128>}]} {
    %c0 = arith.constant 0 : index
    %c0_0 = arith.constant 0 : index
    %c0_1 = arith.constant 0 : index
    %0 = vector.load %arg1[%c0, %c0_0, %c0_1] : memref<2x8x256xi32, #tpu.memory_space<vmem>>, vector<2x8x256xi32>
    %1 = tpu.iota {dimensions = array<i32: 3>} : vector<1x1x1x128xi32>
    %2 = vector.shape_cast %0 : vector<2x8x256xi32> to vector<2x8x256x1xi32>
    %3 = vector.broadcast %2 : vector<2x8x256x1xi32> to vector<2x8x256x128xi32>
    %4 = vector.broadcast %1 : vector<1x1x1x128xi32> to vector<2x8x256x128xi32>
    %5 = arith.cmpi eq, %3, %4 : vector<2x8x256x128xi32>
    %6 = arith.extui %5 : vector<2x8x256x128xi1> to vector<2x8x256x128xi32>
    %7 = arith.sitofp %6 : vector<2x8x256x128xi32> to vector<2x8x256x128xf32>
    %cst = arith.constant dense<0.000000e+00> : vector<2x8x128xf32>
    %8 = vector.multi_reduction <add>, %7, %cst [2] : vector<2x8x256x128xf32> to vector<2x8x128xf32>
    %cst_2 = arith.constant 3.906250e-03 : f32
    %9 = vector.broadcast %cst_2 : f32 to vector<2x8x128xf32>
    %10 = arith.mulf %8, %9 : vector<2x8x128xf32>
    %11 = vector.shape_cast %10 : vector<2x8x128xf32> to vector<16x128xf32>
    %c0_3 = arith.constant 0 : index
    %c0_4 = arith.constant 0 : index
    %12 = vector.load %arg2[%c0_3, %c0_4] : memref<128x128xf32, #tpu.memory_space<vmem>>, vector<128x128xf32>
    %cst_5 = arith.constant dense<0.000000e+00> : vector<16x128xf32>
    %13 = tpu.matmul %11, %12, %cst_5 {dimension_numbers = #tpu.dot_dimension_numbers<[1], [0], [0], [1], [0, 0, 1, 1], [], []>} : vector<16x128xf32>, vector<128x128xf32>, vector<16x128xf32> -> vector<16x128xf32>
    %c0_6 = arith.constant 0 : index
    %c0_7 = arith.constant 0 : index
    %14 = vector.load %arg3[%c0_6, %c0_7] : memref<1x128xf32, #tpu.memory_space<vmem>>, vector<1x128xf32>
    %15 = vector.broadcast %14 : vector<1x128xf32> to vector<16x128xf32>
    %16 = arith.addf %13, %15 : vector<16x128xf32>
    %17 = vector.shape_cast %16 : vector<16x128xf32> to vector<2x8x128xf32>
    %c0_8 = arith.constant 0 : index
    %c0_9 = arith.constant 0 : index
    %c0_10 = arith.constant 0 : index
    %18 = vector.load %arg4[%c0_8, %c0_9, %c0_10] : memref<2x8x128xf32, #tpu.memory_space<vmem>>, vector<2x8x128xf32>
    tpu.vector_store %arg4[%c0_8, %c0_9, %c0_10], %17 {strides = array<i32>} : memref<2x8x128xf32, #tpu.memory_space<vmem>>, vector<2x8x128xf32>,
    return
  }
  func.func @transform_0(%arg0: i32) -> (i32, i32, i32) {
    %c0_i32 = arith.constant 0 : i32
    %c0_i32_0 = arith.constant 0 : i32
    %c0_i32_1 = arith.constant 0 : i32
    return %c0_i32, %arg0, %c0_i32_0 : i32, i32, i32
  }
  func.func @transform_1(%arg0: i32) -> (i32, i32) {
    %c0_i32 = arith.constant 0 : i32
    %c0_i32_0 = arith.constant 0 : i32
    %c0_i32_1 = arith.constant 0 : i32
    return %c0_i32, %c0_i32_0 : i32, i32
  }
  func.func @transform_2(%arg0: i32) -> (i32, i32) {
    %c0_i32 = arith.constant 0 : i32
    %c0_i32_0 = arith.constant 0 : i32
    %c0_i32_1 = arith.constant 0 : i32
    return %c0_i32, %c0_i32_0 : i32, i32
  }
  func.func @transform_3(%arg0: i32) -> (i32, i32, i32) {
    %c0_i32 = arith.constant 0 : i32
    %c0_i32_0 = arith.constant 0 : i32
    %c0_i32_1 = arith.constant 0 : i32
    return %c0_i32, %arg0, %c0_i32_0 : i32, i32, i32
  }
}

module attributes {stable_mosaic.version = 11 : i64} {
  func.func @_lstm_fc_kernel(%arg0: i32, %arg1: memref<2x8x128xf32, #tpu.memory_space<vmem>>, %arg2: memref<32x128xf32, #tpu.memory_space<vmem>>, %arg3: memref<32x128xf32, #tpu.memory_space<vmem>>, %arg4: memref<32x128xf32, #tpu.memory_space<vmem>>, %arg5: memref<1x128xf32, #tpu.memory_space<vmem>>, %arg6: memref<32x6xf32, #tpu.memory_space<vmem>>, %arg7: memref<1x6xf32, #tpu.memory_space<vmem>>, %arg8: memref<2x6xf32, #tpu.memory_space<vmem>>, %arg9: memref<2x2x32xf32, #tpu.memory_space<vmem>>, %arg10: memref<2x2x32xf32, #tpu.memory_space<vmem>>) attributes {dimension_semantics = [#tpu.dimension_semantics<arbitrary>], iteration_bounds = array<i64: 1>, scalar_prefetch = 0 : i64, scratch_operands = 2 : i64, tpu.core_type = #tpu.core_type<tc>, window_params = [{transform_indices = @transform_0, window_bounds = array<i64: 2, 8, 128>}, {pipeline_mode = #tpu.pipeline_mode<synchronous>, transform_indices = @transform_1, window_bounds = array<i64: 32, 128>}, {pipeline_mode = #tpu.pipeline_mode<synchronous>, transform_indices = @transform_2, window_bounds = array<i64: 32, 128>}, {pipeline_mode = #tpu.pipeline_mode<synchronous>, transform_indices = @transform_3, window_bounds = array<i64: 32, 128>}, {pipeline_mode = #tpu.pipeline_mode<synchronous>, transform_indices = @transform_4, window_bounds = array<i64: 1, 128>}, {pipeline_mode = #tpu.pipeline_mode<synchronous>, transform_indices = @transform_5, window_bounds = array<i64: 32, 6>}, {pipeline_mode = #tpu.pipeline_mode<synchronous>, transform_indices = @transform_6, window_bounds = array<i64: 1, 6>}, {pipeline_mode = #tpu.pipeline_mode<synchronous>, transform_indices = @transform_7, window_bounds = array<i64: 2, 6>}]} {
    %c0_i32 = arith.constant 0 : i32
    %0 = arith.cmpi eq, %arg0, %c0_i32 : i32
    %1 = arith.extui %0 : i1 to i32
    %c0_i32_0 = arith.constant 0 : i32
    %2 = arith.cmpi ne, %1, %c0_i32_0 : i32
    scf.if %2 {
      %cst_178 = arith.constant 0.000000e+00 : f32
      %418 = vector.broadcast %cst_178 : f32 to vector<2x2x32xf32>
      %c0_179 = arith.constant 0 : index
      %c0_180 = arith.constant 0 : index
      %c0_181 = arith.constant 0 : index
      %419 = vector.load %arg9[%c0_179, %c0_180, %c0_181] : memref<2x2x32xf32, #tpu.memory_space<vmem>>, vector<2x2x32xf32>
      tpu.vector_store %arg9[%c0_179, %c0_180, %c0_181], %418 {strides = array<i32>} : memref<2x2x32xf32, #tpu.memory_space<vmem>>, vector<2x2x32xf32>,
      %cst_182 = arith.constant 0.000000e+00 : f32
      %420 = vector.broadcast %cst_182 : f32 to vector<2x2x32xf32>
      %c0_183 = arith.constant 0 : index
      %c0_184 = arith.constant 0 : index
      %c0_185 = arith.constant 0 : index
      %421 = vector.load %arg10[%c0_183, %c0_184, %c0_185] : memref<2x2x32xf32, #tpu.memory_space<vmem>>, vector<2x2x32xf32>
      tpu.vector_store %arg10[%c0_183, %c0_184, %c0_185], %420 {strides = array<i32>} : memref<2x2x32xf32, #tpu.memory_space<vmem>>, vector<2x2x32xf32>,
    } else {
    }
    %c0 = arith.constant 0 : index
    %c0_1 = arith.constant 0 : index
    %c0_2 = arith.constant 0 : index
    %3 = vector.load %arg9[%c0, %c0_1, %c0_2] : memref<2x2x32xf32, #tpu.memory_space<vmem>>, vector<1x2x32xf32>
    %4 = vector.shape_cast %3 : vector<1x2x32xf32> to vector<2x32xf32>
    %c1 = arith.constant 1 : index
    %c0_3 = arith.constant 0 : index
    %c0_4 = arith.constant 0 : index
    %5 = vector.load %arg9[%c1, %c0_3, %c0_4] : memref<2x2x32xf32, #tpu.memory_space<vmem>>, vector<1x2x32xf32>
    %6 = vector.shape_cast %5 : vector<1x2x32xf32> to vector<2x32xf32>
    %c0_5 = arith.constant 0 : index
    %c0_6 = arith.constant 0 : index
    %c0_7 = arith.constant 0 : index
    %7 = vector.load %arg10[%c0_5, %c0_6, %c0_7] : memref<2x2x32xf32, #tpu.memory_space<vmem>>, vector<1x2x32xf32>
    %8 = vector.shape_cast %7 : vector<1x2x32xf32> to vector<2x32xf32>
    %c1_8 = arith.constant 1 : index
    %c0_9 = arith.constant 0 : index
    %c0_10 = arith.constant 0 : index
    %9 = vector.load %arg10[%c1_8, %c0_9, %c0_10] : memref<2x2x32xf32, #tpu.memory_space<vmem>>, vector<1x2x32xf32>
    %10 = vector.shape_cast %9 : vector<1x2x32xf32> to vector<2x32xf32>
    %c0_11 = arith.constant 0 : index
    %c0_12 = arith.constant 0 : index
    %c0_13 = arith.constant 0 : index
    %11 = vector.load %arg1[%c0_11, %c0_12, %c0_13] : memref<2x8x128xf32, #tpu.memory_space<vmem>>, vector<2x1x128xf32>
    %12 = vector.shape_cast %11 : vector<2x1x128xf32> to vector<2x128xf32>
    %c0_14 = arith.constant 0 : index
    %c0_15 = arith.constant 0 : index
    %13 = vector.load %arg2[%c0_14, %c0_15] : memref<32x128xf32, #tpu.memory_space<vmem>>, vector<32x128xf32>
    %cst = arith.constant dense<0.000000e+00> : vector<2x128xf32>
    %14 = tpu.matmul %4, %13, %cst {dimension_numbers = #tpu.dot_dimension_numbers<[1], [0], [0], [1], [0, 0, 1, 1], [], []>} : vector<2x32xf32>, vector<32x128xf32>, vector<2x128xf32> -> vector<2x128xf32>
    %15 = arith.addf %12, %14 : vector<2x128xf32>
    %16 = vector.extract_strided_slice %15 {offsets = [0, 0], sizes = [2, 96], strides = [1, 1]} : vector<2x128xf32> to vector<2x96xf32>
    %cst_16 = arith.constant 5.000000e-01 : f32
    %17 = vector.broadcast %cst_16 : f32 to vector<2x96xf32>
    %18 = arith.mulf %17, %16 : vector<2x96xf32>
    %19 = math.tanh %18 : vector<2x96xf32>
    %cst_17 = arith.constant 5.000000e-01 : f32
    %20 = vector.broadcast %cst_17 : f32 to vector<2x96xf32>
    %21 = arith.mulf %20, %19 : vector<2x96xf32>
    %cst_18 = arith.constant 5.000000e-01 : f32
    %22 = vector.broadcast %cst_18 : f32 to vector<2x96xf32>
    %23 = arith.addf %21, %22 : vector<2x96xf32>
    %24 = vector.extract_strided_slice %15 {offsets = [0, 96], sizes = [2, 32], strides = [1, 1]} : vector<2x128xf32> to vector<2x32xf32>
    %25 = math.tanh %24 : vector<2x32xf32>
    %26 = vector.extract_strided_slice %23 {offsets = [0, 32], sizes = [2, 32], strides = [1, 1]} : vector<2x96xf32> to vector<2x32xf32>
    %27 = arith.mulf %26, %8 : vector<2x32xf32>
    %28 = vector.extract_strided_slice %23 {offsets = [0, 0], sizes = [2, 32], strides = [1, 1]} : vector<2x96xf32> to vector<2x32xf32>
    %29 = arith.mulf %28, %25 : vector<2x32xf32>
    %30 = arith.addf %27, %29 : vector<2x32xf32>
    %31 = vector.extract_strided_slice %23 {offsets = [0, 64], sizes = [2, 32], strides = [1, 1]} : vector<2x96xf32> to vector<2x32xf32>
    %32 = math.tanh %30 : vector<2x32xf32>
    %33 = arith.mulf %31, %32 : vector<2x32xf32>
    %c0_19 = arith.constant 0 : index
    %c0_20 = arith.constant 0 : index
    %34 = vector.load %arg3[%c0_19, %c0_20] : memref<32x128xf32, #tpu.memory_space<vmem>>, vector<32x128xf32>
    %cst_21 = arith.constant dense<0.000000e+00> : vector<2x128xf32>
    %35 = tpu.matmul %33, %34, %cst_21 {dimension_numbers = #tpu.dot_dimension_numbers<[1], [0], [0], [1], [0, 0, 1, 1], [], []>} : vector<2x32xf32>, vector<32x128xf32>, vector<2x128xf32> -> vector<2x128xf32>
    %c0_22 = arith.constant 0 : index
    %c0_23 = arith.constant 0 : index
    %36 = vector.load %arg4[%c0_22, %c0_23] : memref<32x128xf32, #tpu.memory_space<vmem>>, vector<32x128xf32>
    %cst_24 = arith.constant dense<0.000000e+00> : vector<2x128xf32>
    %37 = tpu.matmul %6, %36, %cst_24 {dimension_numbers = #tpu.dot_dimension_numbers<[1], [0], [0], [1], [0, 0, 1, 1], [], []>} : vector<2x32xf32>, vector<32x128xf32>, vector<2x128xf32> -> vector<2x128xf32>
    %38 = arith.addf %35, %37 : vector<2x128xf32>
    %c0_25 = arith.constant 0 : index
    %c0_26 = arith.constant 0 : index
    %39 = vector.load %arg5[%c0_25, %c0_26] : memref<1x128xf32, #tpu.memory_space<vmem>>, vector<1x128xf32>
    %40 = vector.broadcast %39 : vector<1x128xf32> to vector<2x128xf32>
    %41 = arith.addf %38, %40 : vector<2x128xf32>
    %42 = vector.extract_strided_slice %41 {offsets = [0, 0], sizes = [2, 96], strides = [1, 1]} : vector<2x128xf32> to vector<2x96xf32>
    %cst_27 = arith.constant 5.000000e-01 : f32
    %43 = vector.broadcast %cst_27 : f32 to vector<2x96xf32>
    %44 = arith.mulf %43, %42 : vector<2x96xf32>
    %45 = math.tanh %44 : vector<2x96xf32>
    %cst_28 = arith.constant 5.000000e-01 : f32
    %46 = vector.broadcast %cst_28 : f32 to vector<2x96xf32>
    %47 = arith.mulf %46, %45 : vector<2x96xf32>
    %cst_29 = arith.constant 5.000000e-01 : f32
    %48 = vector.broadcast %cst_29 : f32 to vector<2x96xf32>
    %49 = arith.addf %47, %48 : vector<2x96xf32>
    %50 = vector.extract_strided_slice %41 {offsets = [0, 96], sizes = [2, 32], strides = [1, 1]} : vector<2x128xf32> to vector<2x32xf32>
    %51 = math.tanh %50 : vector<2x32xf32>
    %52 = vector.extract_strided_slice %49 {offsets = [0, 32], sizes = [2, 32], strides = [1, 1]} : vector<2x96xf32> to vector<2x32xf32>
    %53 = arith.mulf %52, %10 : vector<2x32xf32>
    %54 = vector.extract_strided_slice %49 {offsets = [0, 0], sizes = [2, 32], strides = [1, 1]} : vector<2x96xf32> to vector<2x32xf32>
    %55 = arith.mulf %54, %51 : vector<2x32xf32>
    %56 = arith.addf %53, %55 : vector<2x32xf32>
    %57 = vector.extract_strided_slice %49 {offsets = [0, 64], sizes = [2, 32], strides = [1, 1]} : vector<2x96xf32> to vector<2x32xf32>
    %58 = math.tanh %56 : vector<2x32xf32>
    %59 = arith.mulf %57, %58 : vector<2x32xf32>
    %c0_30 = arith.constant 0 : index
    %c1_31 = arith.constant 1 : index
    %c0_32 = arith.constant 0 : index
    %60 = vector.load %arg1[%c0_30, %c1_31, %c0_32] : memref<2x8x128xf32, #tpu.memory_space<vmem>>, vector<2x1x128xf32>
    %61 = vector.shape_cast %60 : vector<2x1x128xf32> to vector<2x128xf32>
    %c0_33 = arith.constant 0 : index
    %c0_34 = arith.constant 0 : index
    %62 = vector.load %arg2[%c0_33, %c0_34] : memref<32x128xf32, #tpu.memory_space<vmem>>, vector<32x128xf32>
    %cst_35 = arith.constant dense<0.000000e+00> : vector<2x128xf32>
    %63 = tpu.matmul %33, %62, %cst_35 {dimension_numbers = #tpu.dot_dimension_numbers<[1], [0], [0], [1], [0, 0, 1, 1], [], []>} : vector<2x32xf32>, vector<32x128xf32>, vector<2x128xf32> -> vector<2x128xf32>
    %64 = arith.addf %61, %63 : vector<2x128xf32>
    %65 = vector.extract_strided_slice %64 {offsets = [0, 0], sizes = [2, 96], strides = [1, 1]} : vector<2x128xf32> to vector<2x96xf32>
    %cst_36 = arith.constant 5.000000e-01 : f32
    %66 = vector.broadcast %cst_36 : f32 to vector<2x96xf32>
    %67 = arith.mulf %66, %65 : vector<2x96xf32>
    %68 = math.tanh %67 : vector<2x96xf32>
    %cst_37 = arith.constant 5.000000e-01 : f32
    %69 = vector.broadcast %cst_37 : f32 to vector<2x96xf32>
    %70 = arith.mulf %69, %68 : vector<2x96xf32>
    %cst_38 = arith.constant 5.000000e-01 : f32
    %71 = vector.broadcast %cst_38 : f32 to vector<2x96xf32>
    %72 = arith.addf %70, %71 : vector<2x96xf32>
    %73 = vector.extract_strided_slice %64 {offsets = [0, 96], sizes = [2, 32], strides = [1, 1]} : vector<2x128xf32> to vector<2x32xf32>
    %74 = math.tanh %73 : vector<2x32xf32>
    %75 = vector.extract_strided_slice %72 {offsets = [0, 32], sizes = [2, 32], strides = [1, 1]} : vector<2x96xf32> to vector<2x32xf32>
    %76 = arith.mulf %75, %30 : vector<2x32xf32>
    %77 = vector.extract_strided_slice %72 {offsets = [0, 0], sizes = [2, 32], strides = [1, 1]} : vector<2x96xf32> to vector<2x32xf32>
    %78 = arith.mulf %77, %74 : vector<2x32xf32>
    %79 = arith.addf %76, %78 : vector<2x32xf32>
    %80 = vector.extract_strided_slice %72 {offsets = [0, 64], sizes = [2, 32], strides = [1, 1]} : vector<2x96xf32> to vector<2x32xf32>
    %81 = math.tanh %79 : vector<2x32xf32>
    %82 = arith.mulf %80, %81 : vector<2x32xf32>
    %c0_39 = arith.constant 0 : index
    %c0_40 = arith.constant 0 : index
    %83 = vector.load %arg3[%c0_39, %c0_40] : memref<32x128xf32, #tpu.memory_space<vmem>>, vector<32x128xf32>
    %cst_41 = arith.constant dense<0.000000e+00> : vector<2x128xf32>
    %84 = tpu.matmul %82, %83, %cst_41 {dimension_numbers = #tpu.dot_dimension_numbers<[1], [0], [0], [1], [0, 0, 1, 1], [], []>} : vector<2x32xf32>, vector<32x128xf32>, vector<2x128xf32> -> vector<2x128xf32>
    %c0_42 = arith.constant 0 : index
    %c0_43 = arith.constant 0 : index
    %85 = vector.load %arg4[%c0_42, %c0_43] : memref<32x128xf32, #tpu.memory_space<vmem>>, vector<32x128xf32>
    %cst_44 = arith.constant dense<0.000000e+00> : vector<2x128xf32>
    %86 = tpu.matmul %59, %85, %cst_44 {dimension_numbers = #tpu.dot_dimension_numbers<[1], [0], [0], [1], [0, 0, 1, 1], [], []>} : vector<2x32xf32>, vector<32x128xf32>, vector<2x128xf32> -> vector<2x128xf32>
    %87 = arith.addf %84, %86 : vector<2x128xf32>
    %c0_45 = arith.constant 0 : index
    %c0_46 = arith.constant 0 : index
    %88 = vector.load %arg5[%c0_45, %c0_46] : memref<1x128xf32, #tpu.memory_space<vmem>>, vector<1x128xf32>
    %89 = vector.broadcast %88 : vector<1x128xf32> to vector<2x128xf32>
    %90 = arith.addf %87, %89 : vector<2x128xf32>
    %91 = vector.extract_strided_slice %90 {offsets = [0, 0], sizes = [2, 96], strides = [1, 1]} : vector<2x128xf32> to vector<2x96xf32>
    %cst_47 = arith.constant 5.000000e-01 : f32
    %92 = vector.broadcast %cst_47 : f32 to vector<2x96xf32>
    %93 = arith.mulf %92, %91 : vector<2x96xf32>
    %94 = math.tanh %93 : vector<2x96xf32>
    %cst_48 = arith.constant 5.000000e-01 : f32
    %95 = vector.broadcast %cst_48 : f32 to vector<2x96xf32>
    %96 = arith.mulf %95, %94 : vector<2x96xf32>
    %cst_49 = arith.constant 5.000000e-01 : f32
    %97 = vector.broadcast %cst_49 : f32 to vector<2x96xf32>
    %98 = arith.addf %96, %97 : vector<2x96xf32>
    %99 = vector.extract_strided_slice %90 {offsets = [0, 96], sizes = [2, 32], strides = [1, 1]} : vector<2x128xf32> to vector<2x32xf32>
    %100 = math.tanh %99 : vector<2x32xf32>
    %101 = vector.extract_strided_slice %98 {offsets = [0, 32], sizes = [2, 32], strides = [1, 1]} : vector<2x96xf32> to vector<2x32xf32>
    %102 = arith.mulf %101, %56 : vector<2x32xf32>
    %103 = vector.extract_strided_slice %98 {offsets = [0, 0], sizes = [2, 32], strides = [1, 1]} : vector<2x96xf32> to vector<2x32xf32>
    %104 = arith.mulf %103, %100 : vector<2x32xf32>
    %105 = arith.addf %102, %104 : vector<2x32xf32>
    %106 = vector.extract_strided_slice %98 {offsets = [0, 64], sizes = [2, 32], strides = [1, 1]} : vector<2x96xf32> to vector<2x32xf32>
    %107 = math.tanh %105 : vector<2x32xf32>
    %108 = arith.mulf %106, %107 : vector<2x32xf32>
    %c0_50 = arith.constant 0 : index
    %c2 = arith.constant 2 : index
    %c0_51 = arith.constant 0 : index
    %109 = vector.load %arg1[%c0_50, %c2, %c0_51] : memref<2x8x128xf32, #tpu.memory_space<vmem>>, vector<2x1x128xf32>
    %110 = vector.shape_cast %109 : vector<2x1x128xf32> to vector<2x128xf32>
    %c0_52 = arith.constant 0 : index
    %c0_53 = arith.constant 0 : index
    %111 = vector.load %arg2[%c0_52, %c0_53] : memref<32x128xf32, #tpu.memory_space<vmem>>, vector<32x128xf32>
    %cst_54 = arith.constant dense<0.000000e+00> : vector<2x128xf32>
    %112 = tpu.matmul %82, %111, %cst_54 {dimension_numbers = #tpu.dot_dimension_numbers<[1], [0], [0], [1], [0, 0, 1, 1], [], []>} : vector<2x32xf32>, vector<32x128xf32>, vector<2x128xf32> -> vector<2x128xf32>
    %113 = arith.addf %110, %112 : vector<2x128xf32>
    %114 = vector.extract_strided_slice %113 {offsets = [0, 0], sizes = [2, 96], strides = [1, 1]} : vector<2x128xf32> to vector<2x96xf32>
    %cst_55 = arith.constant 5.000000e-01 : f32
    %115 = vector.broadcast %cst_55 : f32 to vector<2x96xf32>
    %116 = arith.mulf %115, %114 : vector<2x96xf32>
    %117 = math.tanh %116 : vector<2x96xf32>
    %cst_56 = arith.constant 5.000000e-01 : f32
    %118 = vector.broadcast %cst_56 : f32 to vector<2x96xf32>
    %119 = arith.mulf %118, %117 : vector<2x96xf32>
    %cst_57 = arith.constant 5.000000e-01 : f32
    %120 = vector.broadcast %cst_57 : f32 to vector<2x96xf32>
    %121 = arith.addf %119, %120 : vector<2x96xf32>
    %122 = vector.extract_strided_slice %113 {offsets = [0, 96], sizes = [2, 32], strides = [1, 1]} : vector<2x128xf32> to vector<2x32xf32>
    %123 = math.tanh %122 : vector<2x32xf32>
    %124 = vector.extract_strided_slice %121 {offsets = [0, 32], sizes = [2, 32], strides = [1, 1]} : vector<2x96xf32> to vector<2x32xf32>
    %125 = arith.mulf %124, %79 : vector<2x32xf32>
    %126 = vector.extract_strided_slice %121 {offsets = [0, 0], sizes = [2, 32], strides = [1, 1]} : vector<2x96xf32> to vector<2x32xf32>
    %127 = arith.mulf %126, %123 : vector<2x32xf32>
    %128 = arith.addf %125, %127 : vector<2x32xf32>
    %129 = vector.extract_strided_slice %121 {offsets = [0, 64], sizes = [2, 32], strides = [1, 1]} : vector<2x96xf32> to vector<2x32xf32>
    %130 = math.tanh %128 : vector<2x32xf32>
    %131 = arith.mulf %129, %130 : vector<2x32xf32>
    %c0_58 = arith.constant 0 : index
    %c0_59 = arith.constant 0 : index
    %132 = vector.load %arg3[%c0_58, %c0_59] : memref<32x128xf32, #tpu.memory_space<vmem>>, vector<32x128xf32>
    %cst_60 = arith.constant dense<0.000000e+00> : vector<2x128xf32>
    %133 = tpu.matmul %131, %132, %cst_60 {dimension_numbers = #tpu.dot_dimension_numbers<[1], [0], [0], [1], [0, 0, 1, 1], [], []>} : vector<2x32xf32>, vector<32x128xf32>, vector<2x128xf32> -> vector<2x128xf32>
    %c0_61 = arith.constant 0 : index
    %c0_62 = arith.constant 0 : index
    %134 = vector.load %arg4[%c0_61, %c0_62] : memref<32x128xf32, #tpu.memory_space<vmem>>, vector<32x128xf32>
    %cst_63 = arith.constant dense<0.000000e+00> : vector<2x128xf32>
    %135 = tpu.matmul %108, %134, %cst_63 {dimension_numbers = #tpu.dot_dimension_numbers<[1], [0], [0], [1], [0, 0, 1, 1], [], []>} : vector<2x32xf32>, vector<32x128xf32>, vector<2x128xf32> -> vector<2x128xf32>
    %136 = arith.addf %133, %135 : vector<2x128xf32>
    %c0_64 = arith.constant 0 : index
    %c0_65 = arith.constant 0 : index
    %137 = vector.load %arg5[%c0_64, %c0_65] : memref<1x128xf32, #tpu.memory_space<vmem>>, vector<1x128xf32>
    %138 = vector.broadcast %137 : vector<1x128xf32> to vector<2x128xf32>
    %139 = arith.addf %136, %138 : vector<2x128xf32>
    %140 = vector.extract_strided_slice %139 {offsets = [0, 0], sizes = [2, 96], strides = [1, 1]} : vector<2x128xf32> to vector<2x96xf32>
    %cst_66 = arith.constant 5.000000e-01 : f32
    %141 = vector.broadcast %cst_66 : f32 to vector<2x96xf32>
    %142 = arith.mulf %141, %140 : vector<2x96xf32>
    %143 = math.tanh %142 : vector<2x96xf32>
    %cst_67 = arith.constant 5.000000e-01 : f32
    %144 = vector.broadcast %cst_67 : f32 to vector<2x96xf32>
    %145 = arith.mulf %144, %143 : vector<2x96xf32>
    %cst_68 = arith.constant 5.000000e-01 : f32
    %146 = vector.broadcast %cst_68 : f32 to vector<2x96xf32>
    %147 = arith.addf %145, %146 : vector<2x96xf32>
    %148 = vector.extract_strided_slice %139 {offsets = [0, 96], sizes = [2, 32], strides = [1, 1]} : vector<2x128xf32> to vector<2x32xf32>
    %149 = math.tanh %148 : vector<2x32xf32>
    %150 = vector.extract_strided_slice %147 {offsets = [0, 32], sizes = [2, 32], strides = [1, 1]} : vector<2x96xf32> to vector<2x32xf32>
    %151 = arith.mulf %150, %105 : vector<2x32xf32>
    %152 = vector.extract_strided_slice %147 {offsets = [0, 0], sizes = [2, 32], strides = [1, 1]} : vector<2x96xf32> to vector<2x32xf32>
    %153 = arith.mulf %152, %149 : vector<2x32xf32>
    %154 = arith.addf %151, %153 : vector<2x32xf32>
    %155 = vector.extract_strided_slice %147 {offsets = [0, 64], sizes = [2, 32], strides = [1, 1]} : vector<2x96xf32> to vector<2x32xf32>
    %156 = math.tanh %154 : vector<2x32xf32>
    %157 = arith.mulf %155, %156 : vector<2x32xf32>
    %c0_69 = arith.constant 0 : index
    %c3 = arith.constant 3 : index
    %c0_70 = arith.constant 0 : index
    %158 = vector.load %arg1[%c0_69, %c3, %c0_70] : memref<2x8x128xf32, #tpu.memory_space<vmem>>, vector<2x1x128xf32>
    %159 = vector.shape_cast %158 : vector<2x1x128xf32> to vector<2x128xf32>
    %c0_71 = arith.constant 0 : index
    %c0_72 = arith.constant 0 : index
    %160 = vector.load %arg2[%c0_71, %c0_72] : memref<32x128xf32, #tpu.memory_space<vmem>>, vector<32x128xf32>
    %cst_73 = arith.constant dense<0.000000e+00> : vector<2x128xf32>
    %161 = tpu.matmul %131, %160, %cst_73 {dimension_numbers = #tpu.dot_dimension_numbers<[1], [0], [0], [1], [0, 0, 1, 1], [], []>} : vector<2x32xf32>, vector<32x128xf32>, vector<2x128xf32> -> vector<2x128xf32>
    %162 = arith.addf %159, %161 : vector<2x128xf32>
    %163 = vector.extract_strided_slice %162 {offsets = [0, 0], sizes = [2, 96], strides = [1, 1]} : vector<2x128xf32> to vector<2x96xf32>
    %cst_74 = arith.constant 5.000000e-01 : f32
    %164 = vector.broadcast %cst_74 : f32 to vector<2x96xf32>
    %165 = arith.mulf %164, %163 : vector<2x96xf32>
    %166 = math.tanh %165 : vector<2x96xf32>
    %cst_75 = arith.constant 5.000000e-01 : f32
    %167 = vector.broadcast %cst_75 : f32 to vector<2x96xf32>
    %168 = arith.mulf %167, %166 : vector<2x96xf32>
    %cst_76 = arith.constant 5.000000e-01 : f32
    %169 = vector.broadcast %cst_76 : f32 to vector<2x96xf32>
    %170 = arith.addf %168, %169 : vector<2x96xf32>
    %171 = vector.extract_strided_slice %162 {offsets = [0, 96], sizes = [2, 32], strides = [1, 1]} : vector<2x128xf32> to vector<2x32xf32>
    %172 = math.tanh %171 : vector<2x32xf32>
    %173 = vector.extract_strided_slice %170 {offsets = [0, 32], sizes = [2, 32], strides = [1, 1]} : vector<2x96xf32> to vector<2x32xf32>
    %174 = arith.mulf %173, %128 : vector<2x32xf32>
    %175 = vector.extract_strided_slice %170 {offsets = [0, 0], sizes = [2, 32], strides = [1, 1]} : vector<2x96xf32> to vector<2x32xf32>
    %176 = arith.mulf %175, %172 : vector<2x32xf32>
    %177 = arith.addf %174, %176 : vector<2x32xf32>
    %178 = vector.extract_strided_slice %170 {offsets = [0, 64], sizes = [2, 32], strides = [1, 1]} : vector<2x96xf32> to vector<2x32xf32>
    %179 = math.tanh %177 : vector<2x32xf32>
    %180 = arith.mulf %178, %179 : vector<2x32xf32>
    %c0_77 = arith.constant 0 : index
    %c0_78 = arith.constant 0 : index
    %181 = vector.load %arg3[%c0_77, %c0_78] : memref<32x128xf32, #tpu.memory_space<vmem>>, vector<32x128xf32>
    %cst_79 = arith.constant dense<0.000000e+00> : vector<2x128xf32>
    %182 = tpu.matmul %180, %181, %cst_79 {dimension_numbers = #tpu.dot_dimension_numbers<[1], [0], [0], [1], [0, 0, 1, 1], [], []>} : vector<2x32xf32>, vector<32x128xf32>, vector<2x128xf32> -> vector<2x128xf32>
    %c0_80 = arith.constant 0 : index
    %c0_81 = arith.constant 0 : index
    %183 = vector.load %arg4[%c0_80, %c0_81] : memref<32x128xf32, #tpu.memory_space<vmem>>, vector<32x128xf32>
    %cst_82 = arith.constant dense<0.000000e+00> : vector<2x128xf32>
    %184 = tpu.matmul %157, %183, %cst_82 {dimension_numbers = #tpu.dot_dimension_numbers<[1], [0], [0], [1], [0, 0, 1, 1], [], []>} : vector<2x32xf32>, vector<32x128xf32>, vector<2x128xf32> -> vector<2x128xf32>
    %185 = arith.addf %182, %184 : vector<2x128xf32>
    %c0_83 = arith.constant 0 : index
    %c0_84 = arith.constant 0 : index
    %186 = vector.load %arg5[%c0_83, %c0_84] : memref<1x128xf32, #tpu.memory_space<vmem>>, vector<1x128xf32>
    %187 = vector.broadcast %186 : vector<1x128xf32> to vector<2x128xf32>
    %188 = arith.addf %185, %187 : vector<2x128xf32>
    %189 = vector.extract_strided_slice %188 {offsets = [0, 0], sizes = [2, 96], strides = [1, 1]} : vector<2x128xf32> to vector<2x96xf32>
    %cst_85 = arith.constant 5.000000e-01 : f32
    %190 = vector.broadcast %cst_85 : f32 to vector<2x96xf32>
    %191 = arith.mulf %190, %189 : vector<2x96xf32>
    %192 = math.tanh %191 : vector<2x96xf32>
    %cst_86 = arith.constant 5.000000e-01 : f32
    %193 = vector.broadcast %cst_86 : f32 to vector<2x96xf32>
    %194 = arith.mulf %193, %192 : vector<2x96xf32>
    %cst_87 = arith.constant 5.000000e-01 : f32
    %195 = vector.broadcast %cst_87 : f32 to vector<2x96xf32>
    %196 = arith.addf %194, %195 : vector<2x96xf32>
    %197 = vector.extract_strided_slice %188 {offsets = [0, 96], sizes = [2, 32], strides = [1, 1]} : vector<2x128xf32> to vector<2x32xf32>
    %198 = math.tanh %197 : vector<2x32xf32>
    %199 = vector.extract_strided_slice %196 {offsets = [0, 32], sizes = [2, 32], strides = [1, 1]} : vector<2x96xf32> to vector<2x32xf32>
    %200 = arith.mulf %199, %154 : vector<2x32xf32>
    %201 = vector.extract_strided_slice %196 {offsets = [0, 0], sizes = [2, 32], strides = [1, 1]} : vector<2x96xf32> to vector<2x32xf32>
    %202 = arith.mulf %201, %198 : vector<2x32xf32>
    %203 = arith.addf %200, %202 : vector<2x32xf32>
    %204 = vector.extract_strided_slice %196 {offsets = [0, 64], sizes = [2, 32], strides = [1, 1]} : vector<2x96xf32> to vector<2x32xf32>
    %205 = math.tanh %203 : vector<2x32xf32>
    %206 = arith.mulf %204, %205 : vector<2x32xf32>
    %c0_88 = arith.constant 0 : index
    %c4 = arith.constant 4 : index
    %c0_89 = arith.constant 0 : index
    %207 = vector.load %arg1[%c0_88, %c4, %c0_89] : memref<2x8x128xf32, #tpu.memory_space<vmem>>, vector<2x1x128xf32>
    %208 = vector.shape_cast %207 : vector<2x1x128xf32> to vector<2x128xf32>
    %c0_90 = arith.constant 0 : index
    %c0_91 = arith.constant 0 : index
    %209 = vector.load %arg2[%c0_90, %c0_91] : memref<32x128xf32, #tpu.memory_space<vmem>>, vector<32x128xf32>
    %cst_92 = arith.constant dense<0.000000e+00> : vector<2x128xf32>
    %210 = tpu.matmul %180, %209, %cst_92 {dimension_numbers = #tpu.dot_dimension_numbers<[1], [0], [0], [1], [0, 0, 1, 1], [], []>} : vector<2x32xf32>, vector<32x128xf32>, vector<2x128xf32> -> vector<2x128xf32>
    %211 = arith.addf %208, %210 : vector<2x128xf32>
    %212 = vector.extract_strided_slice %211 {offsets = [0, 0], sizes = [2, 96], strides = [1, 1]} : vector<2x128xf32> to vector<2x96xf32>
    %cst_93 = arith.constant 5.000000e-01 : f32
    %213 = vector.broadcast %cst_93 : f32 to vector<2x96xf32>
    %214 = arith.mulf %213, %212 : vector<2x96xf32>
    %215 = math.tanh %214 : vector<2x96xf32>
    %cst_94 = arith.constant 5.000000e-01 : f32
    %216 = vector.broadcast %cst_94 : f32 to vector<2x96xf32>
    %217 = arith.mulf %216, %215 : vector<2x96xf32>
    %cst_95 = arith.constant 5.000000e-01 : f32
    %218 = vector.broadcast %cst_95 : f32 to vector<2x96xf32>
    %219 = arith.addf %217, %218 : vector<2x96xf32>
    %220 = vector.extract_strided_slice %211 {offsets = [0, 96], sizes = [2, 32], strides = [1, 1]} : vector<2x128xf32> to vector<2x32xf32>
    %221 = math.tanh %220 : vector<2x32xf32>
    %222 = vector.extract_strided_slice %219 {offsets = [0, 32], sizes = [2, 32], strides = [1, 1]} : vector<2x96xf32> to vector<2x32xf32>
    %223 = arith.mulf %222, %177 : vector<2x32xf32>
    %224 = vector.extract_strided_slice %219 {offsets = [0, 0], sizes = [2, 32], strides = [1, 1]} : vector<2x96xf32> to vector<2x32xf32>
    %225 = arith.mulf %224, %221 : vector<2x32xf32>
    %226 = arith.addf %223, %225 : vector<2x32xf32>
    %227 = vector.extract_strided_slice %219 {offsets = [0, 64], sizes = [2, 32], strides = [1, 1]} : vector<2x96xf32> to vector<2x32xf32>
    %228 = math.tanh %226 : vector<2x32xf32>
    %229 = arith.mulf %227, %228 : vector<2x32xf32>
    %c0_96 = arith.constant 0 : index
    %c0_97 = arith.constant 0 : index
    %230 = vector.load %arg3[%c0_96, %c0_97] : memref<32x128xf32, #tpu.memory_space<vmem>>, vector<32x128xf32>
    %cst_98 = arith.constant dense<0.000000e+00> : vector<2x128xf32>
    %231 = tpu.matmul %229, %230, %cst_98 {dimension_numbers = #tpu.dot_dimension_numbers<[1], [0], [0], [1], [0, 0, 1, 1], [], []>} : vector<2x32xf32>, vector<32x128xf32>, vector<2x128xf32> -> vector<2x128xf32>
    %c0_99 = arith.constant 0 : index
    %c0_100 = arith.constant 0 : index
    %232 = vector.load %arg4[%c0_99, %c0_100] : memref<32x128xf32, #tpu.memory_space<vmem>>, vector<32x128xf32>
    %cst_101 = arith.constant dense<0.000000e+00> : vector<2x128xf32>
    %233 = tpu.matmul %206, %232, %cst_101 {dimension_numbers = #tpu.dot_dimension_numbers<[1], [0], [0], [1], [0, 0, 1, 1], [], []>} : vector<2x32xf32>, vector<32x128xf32>, vector<2x128xf32> -> vector<2x128xf32>
    %234 = arith.addf %231, %233 : vector<2x128xf32>
    %c0_102 = arith.constant 0 : index
    %c0_103 = arith.constant 0 : index
    %235 = vector.load %arg5[%c0_102, %c0_103] : memref<1x128xf32, #tpu.memory_space<vmem>>, vector<1x128xf32>
    %236 = vector.broadcast %235 : vector<1x128xf32> to vector<2x128xf32>
    %237 = arith.addf %234, %236 : vector<2x128xf32>
    %238 = vector.extract_strided_slice %237 {offsets = [0, 0], sizes = [2, 96], strides = [1, 1]} : vector<2x128xf32> to vector<2x96xf32>
    %cst_104 = arith.constant 5.000000e-01 : f32
    %239 = vector.broadcast %cst_104 : f32 to vector<2x96xf32>
    %240 = arith.mulf %239, %238 : vector<2x96xf32>
    %241 = math.tanh %240 : vector<2x96xf32>
    %cst_105 = arith.constant 5.000000e-01 : f32
    %242 = vector.broadcast %cst_105 : f32 to vector<2x96xf32>
    %243 = arith.mulf %242, %241 : vector<2x96xf32>
    %cst_106 = arith.constant 5.000000e-01 : f32
    %244 = vector.broadcast %cst_106 : f32 to vector<2x96xf32>
    %245 = arith.addf %243, %244 : vector<2x96xf32>
    %246 = vector.extract_strided_slice %237 {offsets = [0, 96], sizes = [2, 32], strides = [1, 1]} : vector<2x128xf32> to vector<2x32xf32>
    %247 = math.tanh %246 : vector<2x32xf32>
    %248 = vector.extract_strided_slice %245 {offsets = [0, 32], sizes = [2, 32], strides = [1, 1]} : vector<2x96xf32> to vector<2x32xf32>
    %249 = arith.mulf %248, %203 : vector<2x32xf32>
    %250 = vector.extract_strided_slice %245 {offsets = [0, 0], sizes = [2, 32], strides = [1, 1]} : vector<2x96xf32> to vector<2x32xf32>
    %251 = arith.mulf %250, %247 : vector<2x32xf32>
    %252 = arith.addf %249, %251 : vector<2x32xf32>
    %253 = vector.extract_strided_slice %245 {offsets = [0, 64], sizes = [2, 32], strides = [1, 1]} : vector<2x96xf32> to vector<2x32xf32>
    %254 = math.tanh %252 : vector<2x32xf32>
    %255 = arith.mulf %253, %254 : vector<2x32xf32>
    %c0_107 = arith.constant 0 : index
    %c5 = arith.constant 5 : index
    %c0_108 = arith.constant 0 : index
    %256 = vector.load %arg1[%c0_107, %c5, %c0_108] : memref<2x8x128xf32, #tpu.memory_space<vmem>>, vector<2x1x128xf32>
    %257 = vector.shape_cast %256 : vector<2x1x128xf32> to vector<2x128xf32>
    %c0_109 = arith.constant 0 : index
    %c0_110 = arith.constant 0 : index
    %258 = vector.load %arg2[%c0_109, %c0_110] : memref<32x128xf32, #tpu.memory_space<vmem>>, vector<32x128xf32>
    %cst_111 = arith.constant dense<0.000000e+00> : vector<2x128xf32>
    %259 = tpu.matmul %229, %258, %cst_111 {dimension_numbers = #tpu.dot_dimension_numbers<[1], [0], [0], [1], [0, 0, 1, 1], [], []>} : vector<2x32xf32>, vector<32x128xf32>, vector<2x128xf32> -> vector<2x128xf32>
    %260 = arith.addf %257, %259 : vector<2x128xf32>
    %261 = vector.extract_strided_slice %260 {offsets = [0, 0], sizes = [2, 96], strides = [1, 1]} : vector<2x128xf32> to vector<2x96xf32>
    %cst_112 = arith.constant 5.000000e-01 : f32
    %262 = vector.broadcast %cst_112 : f32 to vector<2x96xf32>
    %263 = arith.mulf %262, %261 : vector<2x96xf32>
    %264 = math.tanh %263 : vector<2x96xf32>
    %cst_113 = arith.constant 5.000000e-01 : f32
    %265 = vector.broadcast %cst_113 : f32 to vector<2x96xf32>
    %266 = arith.mulf %265, %264 : vector<2x96xf32>
    %cst_114 = arith.constant 5.000000e-01 : f32
    %267 = vector.broadcast %cst_114 : f32 to vector<2x96xf32>
    %268 = arith.addf %266, %267 : vector<2x96xf32>
    %269 = vector.extract_strided_slice %260 {offsets = [0, 96], sizes = [2, 32], strides = [1, 1]} : vector<2x128xf32> to vector<2x32xf32>
    %270 = math.tanh %269 : vector<2x32xf32>
    %271 = vector.extract_strided_slice %268 {offsets = [0, 32], sizes = [2, 32], strides = [1, 1]} : vector<2x96xf32> to vector<2x32xf32>
    %272 = arith.mulf %271, %226 : vector<2x32xf32>
    %273 = vector.extract_strided_slice %268 {offsets = [0, 0], sizes = [2, 32], strides = [1, 1]} : vector<2x96xf32> to vector<2x32xf32>
    %274 = arith.mulf %273, %270 : vector<2x32xf32>
    %275 = arith.addf %272, %274 : vector<2x32xf32>
    %276 = vector.extract_strided_slice %268 {offsets = [0, 64], sizes = [2, 32], strides = [1, 1]} : vector<2x96xf32> to vector<2x32xf32>
    %277 = math.tanh %275 : vector<2x32xf32>
    %278 = arith.mulf %276, %277 : vector<2x32xf32>
    %c0_115 = arith.constant 0 : index
    %c0_116 = arith.constant 0 : index
    %279 = vector.load %arg3[%c0_115, %c0_116] : memref<32x128xf32, #tpu.memory_space<vmem>>, vector<32x128xf32>
    %cst_117 = arith.constant dense<0.000000e+00> : vector<2x128xf32>
    %280 = tpu.matmul %278, %279, %cst_117 {dimension_numbers = #tpu.dot_dimension_numbers<[1], [0], [0], [1], [0, 0, 1, 1], [], []>} : vector<2x32xf32>, vector<32x128xf32>, vector<2x128xf32> -> vector<2x128xf32>
    %c0_118 = arith.constant 0 : index
    %c0_119 = arith.constant 0 : index
    %281 = vector.load %arg4[%c0_118, %c0_119] : memref<32x128xf32, #tpu.memory_space<vmem>>, vector<32x128xf32>
    %cst_120 = arith.constant dense<0.000000e+00> : vector<2x128xf32>
    %282 = tpu.matmul %255, %281, %cst_120 {dimension_numbers = #tpu.dot_dimension_numbers<[1], [0], [0], [1], [0, 0, 1, 1], [], []>} : vector<2x32xf32>, vector<32x128xf32>, vector<2x128xf32> -> vector<2x128xf32>
    %283 = arith.addf %280, %282 : vector<2x128xf32>
    %c0_121 = arith.constant 0 : index
    %c0_122 = arith.constant 0 : index
    %284 = vector.load %arg5[%c0_121, %c0_122] : memref<1x128xf32, #tpu.memory_space<vmem>>, vector<1x128xf32>
    %285 = vector.broadcast %284 : vector<1x128xf32> to vector<2x128xf32>
    %286 = arith.addf %283, %285 : vector<2x128xf32>
    %287 = vector.extract_strided_slice %286 {offsets = [0, 0], sizes = [2, 96], strides = [1, 1]} : vector<2x128xf32> to vector<2x96xf32>
    %cst_123 = arith.constant 5.000000e-01 : f32
    %288 = vector.broadcast %cst_123 : f32 to vector<2x96xf32>
    %289 = arith.mulf %288, %287 : vector<2x96xf32>
    %290 = math.tanh %289 : vector<2x96xf32>
    %cst_124 = arith.constant 5.000000e-01 : f32
    %291 = vector.broadcast %cst_124 : f32 to vector<2x96xf32>
    %292 = arith.mulf %291, %290 : vector<2x96xf32>
    %cst_125 = arith.constant 5.000000e-01 : f32
    %293 = vector.broadcast %cst_125 : f32 to vector<2x96xf32>
    %294 = arith.addf %292, %293 : vector<2x96xf32>
    %295 = vector.extract_strided_slice %286 {offsets = [0, 96], sizes = [2, 32], strides = [1, 1]} : vector<2x128xf32> to vector<2x32xf32>
    %296 = math.tanh %295 : vector<2x32xf32>
    %297 = vector.extract_strided_slice %294 {offsets = [0, 32], sizes = [2, 32], strides = [1, 1]} : vector<2x96xf32> to vector<2x32xf32>
    %298 = arith.mulf %297, %252 : vector<2x32xf32>
    %299 = vector.extract_strided_slice %294 {offsets = [0, 0], sizes = [2, 32], strides = [1, 1]} : vector<2x96xf32> to vector<2x32xf32>
    %300 = arith.mulf %299, %296 : vector<2x32xf32>
    %301 = arith.addf %298, %300 : vector<2x32xf32>
    %302 = vector.extract_strided_slice %294 {offsets = [0, 64], sizes = [2, 32], strides = [1, 1]} : vector<2x96xf32> to vector<2x32xf32>
    %303 = math.tanh %301 : vector<2x32xf32>
    %304 = arith.mulf %302, %303 : vector<2x32xf32>
    %c0_126 = arith.constant 0 : index
    %c6 = arith.constant 6 : index
    %c0_127 = arith.constant 0 : index
    %305 = vector.load %arg1[%c0_126, %c6, %c0_127] : memref<2x8x128xf32, #tpu.memory_space<vmem>>, vector<2x1x128xf32>
    %306 = vector.shape_cast %305 : vector<2x1x128xf32> to vector<2x128xf32>
    %c0_128 = arith.constant 0 : index
    %c0_129 = arith.constant 0 : index
    %307 = vector.load %arg2[%c0_128, %c0_129] : memref<32x128xf32, #tpu.memory_space<vmem>>, vector<32x128xf32>
    %cst_130 = arith.constant dense<0.000000e+00> : vector<2x128xf32>
    %308 = tpu.matmul %278, %307, %cst_130 {dimension_numbers = #tpu.dot_dimension_numbers<[1], [0], [0], [1], [0, 0, 1, 1], [], []>} : vector<2x32xf32>, vector<32x128xf32>, vector<2x128xf32> -> vector<2x128xf32>
    %309 = arith.addf %306, %308 : vector<2x128xf32>
    %310 = vector.extract_strided_slice %309 {offsets = [0, 0], sizes = [2, 96], strides = [1, 1]} : vector<2x128xf32> to vector<2x96xf32>
    %cst_131 = arith.constant 5.000000e-01 : f32
    %311 = vector.broadcast %cst_131 : f32 to vector<2x96xf32>
    %312 = arith.mulf %311, %310 : vector<2x96xf32>
    %313 = math.tanh %312 : vector<2x96xf32>
    %cst_132 = arith.constant 5.000000e-01 : f32
    %314 = vector.broadcast %cst_132 : f32 to vector<2x96xf32>
    %315 = arith.mulf %314, %313 : vector<2x96xf32>
    %cst_133 = arith.constant 5.000000e-01 : f32
    %316 = vector.broadcast %cst_133 : f32 to vector<2x96xf32>
    %317 = arith.addf %315, %316 : vector<2x96xf32>
    %318 = vector.extract_strided_slice %309 {offsets = [0, 96], sizes = [2, 32], strides = [1, 1]} : vector<2x128xf32> to vector<2x32xf32>
    %319 = math.tanh %318 : vector<2x32xf32>
    %320 = vector.extract_strided_slice %317 {offsets = [0, 32], sizes = [2, 32], strides = [1, 1]} : vector<2x96xf32> to vector<2x32xf32>
    %321 = arith.mulf %320, %275 : vector<2x32xf32>
    %322 = vector.extract_strided_slice %317 {offsets = [0, 0], sizes = [2, 32], strides = [1, 1]} : vector<2x96xf32> to vector<2x32xf32>
    %323 = arith.mulf %322, %319 : vector<2x32xf32>
    %324 = arith.addf %321, %323 : vector<2x32xf32>
    %325 = vector.extract_strided_slice %317 {offsets = [0, 64], sizes = [2, 32], strides = [1, 1]} : vector<2x96xf32> to vector<2x32xf32>
    %326 = math.tanh %324 : vector<2x32xf32>
    %327 = arith.mulf %325, %326 : vector<2x32xf32>
    %c0_134 = arith.constant 0 : index
    %c0_135 = arith.constant 0 : index
    %328 = vector.load %arg3[%c0_134, %c0_135] : memref<32x128xf32, #tpu.memory_space<vmem>>, vector<32x128xf32>
    %cst_136 = arith.constant dense<0.000000e+00> : vector<2x128xf32>
    %329 = tpu.matmul %327, %328, %cst_136 {dimension_numbers = #tpu.dot_dimension_numbers<[1], [0], [0], [1], [0, 0, 1, 1], [], []>} : vector<2x32xf32>, vector<32x128xf32>, vector<2x128xf32> -> vector<2x128xf32>
    %c0_137 = arith.constant 0 : index
    %c0_138 = arith.constant 0 : index
    %330 = vector.load %arg4[%c0_137, %c0_138] : memref<32x128xf32, #tpu.memory_space<vmem>>, vector<32x128xf32>
    %cst_139 = arith.constant dense<0.000000e+00> : vector<2x128xf32>
    %331 = tpu.matmul %304, %330, %cst_139 {dimension_numbers = #tpu.dot_dimension_numbers<[1], [0], [0], [1], [0, 0, 1, 1], [], []>} : vector<2x32xf32>, vector<32x128xf32>, vector<2x128xf32> -> vector<2x128xf32>
    %332 = arith.addf %329, %331 : vector<2x128xf32>
    %c0_140 = arith.constant 0 : index
    %c0_141 = arith.constant 0 : index
    %333 = vector.load %arg5[%c0_140, %c0_141] : memref<1x128xf32, #tpu.memory_space<vmem>>, vector<1x128xf32>
    %334 = vector.broadcast %333 : vector<1x128xf32> to vector<2x128xf32>
    %335 = arith.addf %332, %334 : vector<2x128xf32>
    %336 = vector.extract_strided_slice %335 {offsets = [0, 0], sizes = [2, 96], strides = [1, 1]} : vector<2x128xf32> to vector<2x96xf32>
    %cst_142 = arith.constant 5.000000e-01 : f32
    %337 = vector.broadcast %cst_142 : f32 to vector<2x96xf32>
    %338 = arith.mulf %337, %336 : vector<2x96xf32>
    %339 = math.tanh %338 : vector<2x96xf32>
    %cst_143 = arith.constant 5.000000e-01 : f32
    %340 = vector.broadcast %cst_143 : f32 to vector<2x96xf32>
    %341 = arith.mulf %340, %339 : vector<2x96xf32>
    %cst_144 = arith.constant 5.000000e-01 : f32
    %342 = vector.broadcast %cst_144 : f32 to vector<2x96xf32>
    %343 = arith.addf %341, %342 : vector<2x96xf32>
    %344 = vector.extract_strided_slice %335 {offsets = [0, 96], sizes = [2, 32], strides = [1, 1]} : vector<2x128xf32> to vector<2x32xf32>
    %345 = math.tanh %344 : vector<2x32xf32>
    %346 = vector.extract_strided_slice %343 {offsets = [0, 32], sizes = [2, 32], strides = [1, 1]} : vector<2x96xf32> to vector<2x32xf32>
    %347 = arith.mulf %346, %301 : vector<2x32xf32>
    %348 = vector.extract_strided_slice %343 {offsets = [0, 0], sizes = [2, 32], strides = [1, 1]} : vector<2x96xf32> to vector<2x32xf32>
    %349 = arith.mulf %348, %345 : vector<2x32xf32>
    %350 = arith.addf %347, %349 : vector<2x32xf32>
    %351 = vector.extract_strided_slice %343 {offsets = [0, 64], sizes = [2, 32], strides = [1, 1]} : vector<2x96xf32> to vector<2x32xf32>
    %352 = math.tanh %350 : vector<2x32xf32>
    %353 = arith.mulf %351, %352 : vector<2x32xf32>
    %c0_145 = arith.constant 0 : index
    %c7 = arith.constant 7 : index
    %c0_146 = arith.constant 0 : index
    %354 = vector.load %arg1[%c0_145, %c7, %c0_146] : memref<2x8x128xf32, #tpu.memory_space<vmem>>, vector<2x1x128xf32>
    %355 = vector.shape_cast %354 : vector<2x1x128xf32> to vector<2x128xf32>
    %c0_147 = arith.constant 0 : index
    %c0_148 = arith.constant 0 : index
    %356 = vector.load %arg2[%c0_147, %c0_148] : memref<32x128xf32, #tpu.memory_space<vmem>>, vector<32x128xf32>
    %cst_149 = arith.constant dense<0.000000e+00> : vector<2x128xf32>
    %357 = tpu.matmul %327, %356, %cst_149 {dimension_numbers = #tpu.dot_dimension_numbers<[1], [0], [0], [1], [0, 0, 1, 1], [], []>} : vector<2x32xf32>, vector<32x128xf32>, vector<2x128xf32> -> vector<2x128xf32>
    %358 = arith.addf %355, %357 : vector<2x128xf32>
    %359 = vector.extract_strided_slice %358 {offsets = [0, 0], sizes = [2, 96], strides = [1, 1]} : vector<2x128xf32> to vector<2x96xf32>
    %cst_150 = arith.constant 5.000000e-01 : f32
    %360 = vector.broadcast %cst_150 : f32 to vector<2x96xf32>
    %361 = arith.mulf %360, %359 : vector<2x96xf32>
    %362 = math.tanh %361 : vector<2x96xf32>
    %cst_151 = arith.constant 5.000000e-01 : f32
    %363 = vector.broadcast %cst_151 : f32 to vector<2x96xf32>
    %364 = arith.mulf %363, %362 : vector<2x96xf32>
    %cst_152 = arith.constant 5.000000e-01 : f32
    %365 = vector.broadcast %cst_152 : f32 to vector<2x96xf32>
    %366 = arith.addf %364, %365 : vector<2x96xf32>
    %367 = vector.extract_strided_slice %358 {offsets = [0, 96], sizes = [2, 32], strides = [1, 1]} : vector<2x128xf32> to vector<2x32xf32>
    %368 = math.tanh %367 : vector<2x32xf32>
    %369 = vector.extract_strided_slice %366 {offsets = [0, 32], sizes = [2, 32], strides = [1, 1]} : vector<2x96xf32> to vector<2x32xf32>
    %370 = arith.mulf %369, %324 : vector<2x32xf32>
    %371 = vector.extract_strided_slice %366 {offsets = [0, 0], sizes = [2, 32], strides = [1, 1]} : vector<2x96xf32> to vector<2x32xf32>
    %372 = arith.mulf %371, %368 : vector<2x32xf32>
    %373 = arith.addf %370, %372 : vector<2x32xf32>
    %374 = vector.extract_strided_slice %366 {offsets = [0, 64], sizes = [2, 32], strides = [1, 1]} : vector<2x96xf32> to vector<2x32xf32>
    %375 = math.tanh %373 : vector<2x32xf32>
    %376 = arith.mulf %374, %375 : vector<2x32xf32>
    %c0_153 = arith.constant 0 : index
    %c0_154 = arith.constant 0 : index
    %377 = vector.load %arg3[%c0_153, %c0_154] : memref<32x128xf32, #tpu.memory_space<vmem>>, vector<32x128xf32>
    %cst_155 = arith.constant dense<0.000000e+00> : vector<2x128xf32>
    %378 = tpu.matmul %376, %377, %cst_155 {dimension_numbers = #tpu.dot_dimension_numbers<[1], [0], [0], [1], [0, 0, 1, 1], [], []>} : vector<2x32xf32>, vector<32x128xf32>, vector<2x128xf32> -> vector<2x128xf32>
    %c0_156 = arith.constant 0 : index
    %c0_157 = arith.constant 0 : index
    %379 = vector.load %arg4[%c0_156, %c0_157] : memref<32x128xf32, #tpu.memory_space<vmem>>, vector<32x128xf32>
    %cst_158 = arith.constant dense<0.000000e+00> : vector<2x128xf32>
    %380 = tpu.matmul %353, %379, %cst_158 {dimension_numbers = #tpu.dot_dimension_numbers<[1], [0], [0], [1], [0, 0, 1, 1], [], []>} : vector<2x32xf32>, vector<32x128xf32>, vector<2x128xf32> -> vector<2x128xf32>
    %381 = arith.addf %378, %380 : vector<2x128xf32>
    %c0_159 = arith.constant 0 : index
    %c0_160 = arith.constant 0 : index
    %382 = vector.load %arg5[%c0_159, %c0_160] : memref<1x128xf32, #tpu.memory_space<vmem>>, vector<1x128xf32>
    %383 = vector.broadcast %382 : vector<1x128xf32> to vector<2x128xf32>
    %384 = arith.addf %381, %383 : vector<2x128xf32>
    %385 = vector.extract_strided_slice %384 {offsets = [0, 0], sizes = [2, 96], strides = [1, 1]} : vector<2x128xf32> to vector<2x96xf32>
    %cst_161 = arith.constant 5.000000e-01 : f32
    %386 = vector.broadcast %cst_161 : f32 to vector<2x96xf32>
    %387 = arith.mulf %386, %385 : vector<2x96xf32>
    %388 = math.tanh %387 : vector<2x96xf32>
    %cst_162 = arith.constant 5.000000e-01 : f32
    %389 = vector.broadcast %cst_162 : f32 to vector<2x96xf32>
    %390 = arith.mulf %389, %388 : vector<2x96xf32>
    %cst_163 = arith.constant 5.000000e-01 : f32
    %391 = vector.broadcast %cst_163 : f32 to vector<2x96xf32>
    %392 = arith.addf %390, %391 : vector<2x96xf32>
    %393 = vector.extract_strided_slice %384 {offsets = [0, 96], sizes = [2, 32], strides = [1, 1]} : vector<2x128xf32> to vector<2x32xf32>
    %394 = math.tanh %393 : vector<2x32xf32>
    %395 = vector.extract_strided_slice %392 {offsets = [0, 32], sizes = [2, 32], strides = [1, 1]} : vector<2x96xf32> to vector<2x32xf32>
    %396 = arith.mulf %395, %350 : vector<2x32xf32>
    %397 = vector.extract_strided_slice %392 {offsets = [0, 0], sizes = [2, 32], strides = [1, 1]} : vector<2x96xf32> to vector<2x32xf32>
    %398 = arith.mulf %397, %394 : vector<2x32xf32>
    %399 = arith.addf %396, %398 : vector<2x32xf32>
    %400 = vector.extract_strided_slice %392 {offsets = [0, 64], sizes = [2, 32], strides = [1, 1]} : vector<2x96xf32> to vector<2x32xf32>
    %401 = math.tanh %399 : vector<2x32xf32>
    %402 = arith.mulf %400, %401 : vector<2x32xf32>
    %c0_164 = arith.constant 0 : index
    %c0_165 = arith.constant 0 : index
    %c0_166 = arith.constant 0 : index
    %403 = vector.load %arg9[%c0_164, %c0_165, %c0_166] : memref<2x2x32xf32, #tpu.memory_space<vmem>>, vector<1x2x32xf32>
    %404 = vector.shape_cast %403 : vector<1x2x32xf32> to vector<2x32xf32>
    %405 = vector.shape_cast %376 : vector<2x32xf32> to vector<1x2x32xf32>
    tpu.vector_store %arg9[%c0_164, %c0_165, %c0_166], %405 {strides = array<i32>} : memref<2x2x32xf32, #tpu.memory_space<vmem>>, vector<1x2x32xf32>,
    %c0_167 = arith.constant 0 : index
    %c0_168 = arith.constant 0 : index
    %c0_169 = arith.constant 0 : index
    %406 = vector.load %arg10[%c0_167, %c0_168, %c0_169] : memref<2x2x32xf32, #tpu.memory_space<vmem>>, vector<1x2x32xf32>
    %407 = vector.shape_cast %406 : vector<1x2x32xf32> to vector<2x32xf32>
    %408 = vector.shape_cast %373 : vector<2x32xf32> to vector<1x2x32xf32>
    tpu.vector_store %arg10[%c0_167, %c0_168, %c0_169], %408 {strides = array<i32>} : memref<2x2x32xf32, #tpu.memory_space<vmem>>, vector<1x2x32xf32>,
    %c1_170 = arith.constant 1 : index
    %c0_171 = arith.constant 0 : index
    %c0_172 = arith.constant 0 : index
    %409 = vector.load %arg9[%c1_170, %c0_171, %c0_172] : memref<2x2x32xf32, #tpu.memory_space<vmem>>, vector<1x2x32xf32>
    %410 = vector.shape_cast %409 : vector<1x2x32xf32> to vector<2x32xf32>
    %411 = vector.shape_cast %402 : vector<2x32xf32> to vector<1x2x32xf32>
    tpu.vector_store %arg9[%c1_170, %c0_171, %c0_172], %411 {strides = array<i32>} : memref<2x2x32xf32, #tpu.memory_space<vmem>>, vector<1x2x32xf32>,
    %c1_173 = arith.constant 1 : index
    %c0_174 = arith.constant 0 : index
    %c0_175 = arith.constant 0 : index
    %412 = vector.load %arg10[%c1_173, %c0_174, %c0_175] : memref<2x2x32xf32, #tpu.memory_space<vmem>>, vector<1x2x32xf32>
    %413 = vector.shape_cast %412 : vector<1x2x32xf32> to vector<2x32xf32>
    %414 = vector.shape_cast %399 : vector<2x32xf32> to vector<1x2x32xf32>
    tpu.vector_store %arg10[%c1_173, %c0_174, %c0_175], %414 {strides = array<i32>} : memref<2x2x32xf32, #tpu.memory_space<vmem>>, vector<1x2x32xf32>,
    %c0_i32_176 = arith.constant 0 : i32
    %415 = arith.cmpi eq, %arg0, %c0_i32_176 : i32
    %416 = arith.extui %415 : i1 to i32
    %c0_i32_177 = arith.constant 0 : i32
    %417 = arith.cmpi ne, %416, %c0_i32_177 : i32
    scf.if %417 {
      %c0_178 = arith.constant 0 : index
      %c0_179 = arith.constant 0 : index
      %418 = vector.load %arg6[%c0_178, %c0_179] : memref<32x6xf32, #tpu.memory_space<vmem>>, vector<32x6xf32>
      %cst_180 = arith.constant dense<0.000000e+00> : vector<2x6xf32>
      %419 = tpu.matmul %402, %418, %cst_180 {dimension_numbers = #tpu.dot_dimension_numbers<[1], [0], [0], [1], [0, 0, 1, 1], [], []>} : vector<2x32xf32>, vector<32x6xf32>, vector<2x6xf32> -> vector<2x6xf32>
      %c0_181 = arith.constant 0 : index
      %c0_182 = arith.constant 0 : index
      %420 = vector.load %arg7[%c0_181, %c0_182] : memref<1x6xf32, #tpu.memory_space<vmem>>, vector<1x6xf32>
      %421 = vector.broadcast %420 : vector<1x6xf32> to vector<2x6xf32>
      %422 = arith.addf %419, %421 : vector<2x6xf32>
      %c0_183 = arith.constant 0 : index
      %c0_184 = arith.constant 0 : index
      %423 = vector.load %arg8[%c0_183, %c0_184] : memref<2x6xf32, #tpu.memory_space<vmem>>, vector<2x6xf32>
      tpu.vector_store %arg8[%c0_183, %c0_184], %422 {strides = array<i32>} : memref<2x6xf32, #tpu.memory_space<vmem>>, vector<2x6xf32>,
    } else {
    }
    return
  }
  func.func @transform_0(%arg0: i32) -> (i32, i32, i32) {
    %c0_i32 = arith.constant 0 : i32
    %c0_i32_0 = arith.constant 0 : i32
    %c0_i32_1 = arith.constant 0 : i32
    return %c0_i32, %arg0, %c0_i32_0 : i32, i32, i32
  }
  func.func @transform_1(%arg0: i32) -> (i32, i32) {
    %c0_i32 = arith.constant 0 : i32
    %c0_i32_0 = arith.constant 0 : i32
    %c0_i32_1 = arith.constant 0 : i32
    return %c0_i32, %c0_i32_0 : i32, i32
  }
  func.func @transform_2(%arg0: i32) -> (i32, i32) {
    %c0_i32 = arith.constant 0 : i32
    %c0_i32_0 = arith.constant 0 : i32
    %c0_i32_1 = arith.constant 0 : i32
    return %c0_i32, %c0_i32_0 : i32, i32
  }
  func.func @transform_3(%arg0: i32) -> (i32, i32) {
    %c0_i32 = arith.constant 0 : i32
    %c0_i32_0 = arith.constant 0 : i32
    %c0_i32_1 = arith.constant 0 : i32
    return %c0_i32, %c0_i32_0 : i32, i32
  }
  func.func @transform_4(%arg0: i32) -> (i32, i32) {
    %c0_i32 = arith.constant 0 : i32
    %c0_i32_0 = arith.constant 0 : i32
    %c0_i32_1 = arith.constant 0 : i32
    return %c0_i32, %c0_i32_0 : i32, i32
  }
  func.func @transform_5(%arg0: i32) -> (i32, i32) {
    %c0_i32 = arith.constant 0 : i32
    %c0_i32_0 = arith.constant 0 : i32
    %c0_i32_1 = arith.constant 0 : i32
    return %c0_i32, %c0_i32_0 : i32, i32
  }
  func.func @transform_6(%arg0: i32) -> (i32, i32) {
    %c0_i32 = arith.constant 0 : i32
    %c0_i32_0 = arith.constant 0 : i32
    %c0_i32_1 = arith.constant 0 : i32
    return %c0_i32, %c0_i32_0 : i32, i32
  }
  func.func @transform_7(%arg0: i32) -> (i32, i32) {
    %c0_i32 = arith.constant 0 : i32
    %c0_i32_0 = arith.constant 0 : i32
    %c0_i32_1 = arith.constant 0 : i32
    return %c0_i32, %c0_i32_0 : i32, i32
  }
}

</mosaic_0001>

<llo_original>
// kernel: proportions_lstm_forward.3
$region0: #{proportions_lstm_forward.3}
  #allocation0 [shape = 'u32[]', space=smem, size = 0x4, offset = 0x4, fixed_abs, tag = 'smem constant byte address 0x4 - core index']
  #allocation1 [shape = 'u32[72,128]{1,0:T(1,128)}', space=vmem, size = 0x9000, scoped, tag = 'internal scratch']
  #allocation2 [shape = 'f32[2,2,32]{2,1,0:T(2,128)}', space=vmem, size = 0x800, scoped, tag = 'scratch operand']
  #allocation3 [shape = 'f32[2,2,32]{2,1,0:T(2,128)}', space=vmem, size = 0x800, scoped, tag = 'scratch operand']
  %s0 = inlined_call_operand.vmem [shape: f32[2,8,128], index: 0, kind: input, shape index: {}]
  %s1 = inlined_call_operand.vmem [shape: f32[32,128], index: 1, kind: input, shape index: {}]
  %s2 = inlined_call_operand.vmem [shape: f32[32,128], index: 2, kind: input, shape index: {}]
  %s3 = inlined_call_operand.vmem [shape: f32[32,128], index: 3, kind: input, shape index: {}]
  %s4 = inlined_call_operand.vmem [shape: f32[1,128], index: 4, kind: input, shape index: {}]
  %s5 = inlined_call_operand.vmem [shape: f32[32,6], index: 5, kind: input, shape index: {}]
  %s6 = inlined_call_operand.vmem [shape: f32[1,6], index: 6, kind: input, shape index: {}]
  %s7 = inlined_call_operand.hbm [shape: f32[2,6], index: 7, kind: output, shape index: {}]
  %s8 = sld [smem:[#allocation0]]
  $region46: #{proportions_lstm_forward.3} parent=0
    _
  %s10 = ssub.s32 1, %s8
  %s11 = scalar_select 0, %s10, %s8
  $region1: #{proportions_lstm_forward.3} parent=0
    #allocation4 [shape = 'u8[1024]{0}', space=vmem, size = 0x400, scoped, tag = 'output window, operand 0, single buffered']
    #allocation5 [shape = 's32[1]{0}', space=sflag, size = 0x4, scoped, tag = 'scoped memory for proportions_lstm_forward.3']
    %12 = vsyncpa [#allocation5], 0
    // Predicated region
    $region2: #{proportions_lstm_forward.3} parent=1 // pred_check
      _
    $region3: #{proportions_lstm_forward.3} parent=1 // pred_check_branch
      %14 = sbr.rel (0) target = $region5
    $region4: #{proportions_lstm_forward.3} parent=1 // pred_region
      _
    $region5: #{proportions_lstm_forward.3} parent=1 // pred_fallthru
      _
    // Predicated region
    $region6: #{proportions_lstm_forward.3} parent=1 // pred_check
      _
    $region7: #{proportions_lstm_forward.3} parent=1 // pred_check_branch
      %16 = sbr.rel (0) target = $region9
    $region8: #{proportions_lstm_forward.3} parent=1 // pred_region
      _
    $region9: #{proportions_lstm_forward.3} parent=1 // pred_fallthru
      _
    // Predicated region
    $region10: #{proportions_lstm_forward.3} parent=1 // pred_check
      _
    $region11: #{proportions_lstm_forward.3} parent=1 // pred_check_branch
      %18 = sbr.rel (0) target = $region13
    $region12: #{proportions_lstm_forward.3} parent=1 // pred_region
      _
    $region13: #{proportions_lstm_forward.3} parent=1 // pred_fallthru
      _
    // Predicated region
    $region14: #{proportions_lstm_forward.3} parent=1 // pred_check
      _
    $region15: #{proportions_lstm_forward.3} parent=1 // pred_check_branch
      %20 = sbr.rel (0) target = $region17
    $region16: #{proportions_lstm_forward.3} parent=1 // pred_region
      _
    $region17: #{proportions_lstm_forward.3} parent=1 // pred_fallthru
      _
    // Predicated region
    $region18: #{proportions_lstm_forward.3} parent=1 // pred_check
      _
    $region19: #{proportions_lstm_forward.3} parent=1 // pred_check_branch
      %22 = sbr.rel (0) target = $region21
    $region20: #{proportions_lstm_forward.3} parent=1 // pred_region
      _
    $region21: #{proportions_lstm_forward.3} parent=1 // pred_fallthru
      _
    // Predicated region
    $region22: #{proportions_lstm_forward.3} parent=1 // pred_check
      _
    $region23: #{proportions_lstm_forward.3} parent=1 // pred_check_branch
      %24 = sbr.rel (0) target = $region25
    $region24: #{proportions_lstm_forward.3} parent=1 // pred_region
      _
    $region25: #{proportions_lstm_forward.3} parent=1 // pred_fallthru
      _
    // Predicated region
    $region26: #{proportions_lstm_forward.3} parent=1 // pred_check
      _
    $region27: #{proportions_lstm_forward.3} parent=1 // pred_check_branch
      %26 = sbr.rel (0) target = $region29
    $region28: #{proportions_lstm_forward.3} parent=1 // pred_region
      _
    $region29: #{proportions_lstm_forward.3} parent=1 // pred_fallthru
      _
    %p27 = scmp.eq.s32.totalorder 0, 0
    // Predicated region
    $region30: #{proportions_lstm_forward.3} parent=1 // pred_check
      %p28 = pneg %p27
    $region31: #{proportions_lstm_forward.3} parent=1 // pred_check_branch
      %30 = sbr.rel (%p28) target = $region33
    $region32: #{proportions_lstm_forward.3} parent=1 // pred_region
      %vm31 = vcmask 254976
      %32 = vst.msk [vmem:[#allocation2] sm:$0x3] %vm31, 0.0
      %33 = vst.msk [vmem:[#allocation2 + $0x2] sm:$0x3] %vm31, 0.0
      %34 = vst.msk [vmem:[#allocation3] sm:$0x3] %vm31, 0.0
      %35 = vst.msk [vmem:[#allocation3 + $0x2] sm:$0x3] %vm31, 0.0
    $region33: #{proportions_lstm_forward.3} parent=1 // pred_fallthru
      _
    %v36 = vld [vmem:[#allocation2] sm:$0x3]
    %s37 = scalar_lea.vmem [#allocation2], 2
    %v38 = vld [vmem:[%s37] sm:$0x3]
    %v39 = vld [vmem:[#allocation3] sm:$0x3]
    %s40 = scalar_lea.vmem [#allocation3], 2
    %v41 = vld [vmem:[%s40] sm:$0x3]
    %v42 = vld [vmem:[%s0] sm:$0x1]
    %v43 = vld [vmem:[%s0 + $0x8] sm:$0x1]
    %v44 = vld [vmem:[%s1] sm:$0xff]
    %v45 = vld [vmem:[%s1 + $0x8] sm:$0xff]
    %v46 = vld [vmem:[%s1 + $0x10] sm:$0xff]
    %v47 = vld [vmem:[%s1 + $0x18] sm:$0xff]
    %vm48 = vcmask 261120
    %v50 = vsel %vm48, %v36, 0
    %52 = vmatpush.msra.mxu0 0.0
    %53 = vmatpush.msra.mxu0 0.0
    %54 = vmatpush.msra.mxu0 0.0
    %55 = vmatpush.msra.mxu0 0.0
    %56 = vmatpush.msra.mxu0 0.0
    %57 = vmatpush.msra.mxu0 0.0
    %58 = vmatpush.msra.mxu0 0.0
    %59 = vmatpush.msra.mxu0 0.0
    %60 = vmatpush.msra.mxu0 0.0
    %61 = vmatpush.msra.mxu0 0.0
    %62 = vmatpush.msra.mxu0 0.0
    %63 = vmatpush.msra.mxu0 0.0
    %64 = vmatpush.msra.mxu0 %v47
    %65 = vmatpush.msra.mxu0 %v46
    %66 = vmatpush.msra.mxu0 %v45
    %67 = vmatpush.msra.mxu0 %v44
    %68 = vmatmul.f32.gmra.mxu0 %v50
    %v69 = vpop.f32.mrf.mxu0
    %v70 = vadd.f32 0.0, %v69
    %71 = vdwg.mxu0
    %v73 = vrot.slane %v70, 1
    %v76 = vadd.f32 %v42, %v70
    %v77 = vadd.f32 %v43, %v73
    %v78 = vmul.f32 %v76, 0.5
    %v79 = vmul.f32 %v77, 0.5
    %v80 = vtanh.pop %v78
    %v81 = vtanh.pop %v79
    %v82 = vmul.f32 %v80, 0.5
    %v83 = vmul.f32 %v81, 0.5
    %v84 = vadd.f32 %v82, 0.5
    %v85 = vadd.f32 %v83, 0.5
    %v86 = vtanh.pop %v76
    %v87 = vtanh.pop %v77
    %v89 = vrot.slane %v39, 1
    %90 = vrot.lane.b32.xlu0 %v39, 32
    %v91 = vpop.permute.xlu0 %90
    %92 = vrot.lane.b32.xlu0 %v89, 32
    %v93 = vpop.permute.xlu0 %92
    %v96 = vmul.f32 %v84, %v91
    %v97 = vmul.f32 %v85, %v93
    %100 = vrot.lane.b32.xlu0 %v86, 32
    %v101 = vpop.permute.xlu0 %100
    %102 = vrot.lane.b32.xlu0 %v87, 32
    %v103 = vpop.permute.xlu0 %102
    %v106 = vmul.f32 %v84, %v101
    %v107 = vmul.f32 %v85, %v103
    %110 = vrot.lane.b32.xlu0 %v106, 32
    %v111 = vpop.permute.xlu0 %110
    %112 = vrot.lane.b32.xlu0 %v107, 32
    %v113 = vpop.permute.xlu0 %112
    %v116 = vadd.f32 %v96, %v111
    %v117 = vadd.f32 %v97, %v113
    %v118 = vtanh.pop %v116
    %v119 = vtanh.pop %v117
    %122 = vrot.lane.b32.xlu0 %v118, 32
    %v123 = vpop.permute.xlu0 %122
    %124 = vrot.lane.b32.xlu0 %v119, 32
    %v125 = vpop.permute.xlu0 %124
    %v128 = vmul.f32 %v84, %v123
    %v129 = vmul.f32 %v85, %v125
    %v130 = vld [vmem:[%s2] sm:$0xff]
    %v131 = vld [vmem:[%s2 + $0x8] sm:$0xff]
    %v132 = vld [vmem:[%s2 + $0x10] sm:$0xff]
    %v133 = vld [vmem:[%s2 + $0x18] sm:$0xff]
    %v134 = vld [vmem:[%s3] sm:$0xff]
    %v135 = vld [vmem:[%s3 + $0x8] sm:$0xff]
    %v136 = vld [vmem:[%s3 + $0x10] sm:$0xff]
    %v137 = vld [vmem:[%s3 + $0x18] sm:$0xff]
    %v139 = vsel %vm48, %v38, 0
    %141 = vmatpush.msra.mxu0 0.0
    %142 = vmatpush.msra.mxu0 0.0
    %143 = vmatpush.msra.mxu0 0.0
    %144 = vmatpush.msra.mxu0 0.0
    %145 = vmatpush.msra.mxu0 0.0
    %146 = vmatpush.msra.mxu0 0.0
    %147 = vmatpush.msra.mxu0 0.0
    %148 = vmatpush.msra.mxu0 0.0
    %149 = vmatpush.msra.mxu0 0.0
    %150 = vmatpush.msra.mxu0 0.0
    %151 = vmatpush.msra.mxu0 0.0
    %152 = vmatpush.msra.mxu0 0.0
    %153 = vmatpush.msra.mxu0 %v137
    %154 = vmatpush.msra.mxu0 %v136
    %155 = vmatpush.msra.mxu0 %v135
    %156 = vmatpush.msra.mxu0 %v134
    %157 = vmatmul.f32.gmra.mxu0 %v139
    %v158 = vpop.f32.mrf.mxu0
    %v159 = vadd.f32 0.0, %v158
    %160 = vdwg.mxu0
    %v163 = vrot.slane %v129, 7
    %vm164 = vcmask 1041409
    %v165 = vsel %vm164, %v163, %v128
    %166 = vrot.lane.b32.xlu0 %v165, 64
    %v167 = vpop.permute.xlu0 %166
    %v168 = vsel %vm48, %v167, 0
    %170 = vmatpush.msra.mxu0 0.0
    %171 = vmatpush.msra.mxu0 0.0
    %172 = vmatpush.msra.mxu0 0.0
    %173 = vmatpush.msra.mxu0 0.0
    %174 = vmatpush.msra.mxu0 0.0
    %175 = vmatpush.msra.mxu0 0.0
    %176 = vmatpush.msra.mxu0 0.0
    %177 = vmatpush.msra.mxu0 0.0
    %178 = vmatpush.msra.mxu0 0.0
    %179 = vmatpush.msra.mxu0 0.0
    %180 = vmatpush.msra.mxu0 0.0
    %181 = vmatpush.msra.mxu0 0.0
    %182 = vmatpush.msra.mxu0 %v133
    %183 = vmatpush.msra.mxu0 %v132
    %184 = vmatpush.msra.mxu0 %v131
    %185 = vmatpush.msra.mxu0 %v130
    %186 = vmatmul.f32.gmra.mxu0 %v168
    %v187 = vpop.f32.mrf.mxu0
    %v188 = vadd.f32 %v159, %v187
    %189 = vdwg.mxu0
    %v190 = vld [vmem:[%s4] sm:$0x1]
    %v192 = vperm.slane %v190, 0
    %v194 = vadd.f32 %v188, %v192
    %v195 = vmul.f32 %v194, 0.5
    %v196 = vtanh.pop %v195
    %v197 = vmul.f32 %v196, 0.5
    %v198 = vadd.f32 %v197, 0.5
    %v199 = vtanh.pop %v194
    %201 = vrot.lane.b32.xlu0 %v41, 32
    %v202 = vpop.permute.xlu0 %201
    %v204 = vmul.f32 %v198, %v202
    %206 = vrot.lane.b32.xlu0 %v199, 32
    %v207 = vpop.permute.xlu0 %206
    %v209 = vmul.f32 %v198, %v207
    %211 = vrot.lane.b32.xlu0 %v209, 32
    %v212 = vpop.permute.xlu0 %211
    %v214 = vadd.f32 %v204, %v212
    %v215 = vtanh.pop %v214
    %217 = vrot.lane.b32.xlu0 %v215, 32
    %v218 = vpop.permute.xlu0 %217
    %v220 = vmul.f32 %v198, %v218
    %v221 = vld [vmem:[%s0 + $0x1] sm:$0x1]
    %v222 = vld [vmem:[%s0 + $0x9] sm:$0x1]
    %223 = vmatpush.msra.mxu0 0.0
    %224 = vmatpush.msra.mxu0 0.0
    %225 = vmatpush.msra.mxu0 0.0
    %226 = vmatpush.msra.mxu0 0.0
    %227 = vmatpush.msra.mxu0 0.0
    %228 = vmatpush.msra.mxu0 0.0
    %229 = vmatpush.msra.mxu0 0.0
    %230 = vmatpush.msra.mxu0 0.0
    %231 = vmatpush.msra.mxu0 0.0
    %232 = vmatpush.msra.mxu0 0.0
    %233 = vmatpush.msra.mxu0 0.0
    %234 = vmatpush.msra.mxu0 0.0
    %235 = vmatpush.msra.mxu0 %v47
    %236 = vmatpush.msra.mxu0 %v46
    %237 = vmatpush.msra.mxu0 %v45
    %238 = vmatpush.msra.mxu0 %v44
    %239 = vmatmul.f32.gmra.mxu0 %v168
    %v240 = vpop.f32.mrf.mxu0
    %v241 = vadd.f32 0.0, %v240
    %242 = vdwg.mxu0
    %v244 = vrot.slane %v241, 1
    %v247 = vadd.f32 %v221, %v241
    %v248 = vadd.f32 %v222, %v244
    %v249 = vmul.f32 %v247, 0.5
    %v250 = vmul.f32 %v248, 0.5
    %v251 = vtanh.pop %v249
    %v252 = vtanh.pop %v250
    %v253 = vmul.f32 %v251, 0.5
    %v254 = vmul.f32 %v252, 0.5
    %v255 = vadd.f32 %v253, 0.5
    %v256 = vadd.f32 %v254, 0.5
    %v257 = vtanh.pop %v247
    %v258 = vtanh.pop %v248
    %v259 = vmul.f32 %v255, %v116
    %v260 = vmul.f32 %v256, %v117
    %263 = vrot.lane.b32.xlu0 %v257, 32
    %v264 = vpop.permute.xlu0 %263
    %265 = vrot.lane.b32.xlu0 %v258, 32
    %v266 = vpop.permute.xlu0 %265
    %v269 = vmul.f32 %v255, %v264
    %v270 = vmul.f32 %v256, %v266
    %273 = vrot.lane.b32.xlu0 %v269, 32
    %v274 = vpop.permute.xlu0 %273
    %275 = vrot.lane.b32.xlu0 %v270, 32
    %v276 = vpop.permute.xlu0 %275
    %v279 = vadd.f32 %v259, %v274
    %v280 = vadd.f32 %v260, %v276
    %v281 = vtanh.pop %v279
    %v282 = vtanh.pop %v280
    %285 = vrot.lane.b32.xlu0 %v281, 32
    %v286 = vpop.permute.xlu0 %285
    %287 = vrot.lane.b32.xlu0 %v282, 32
    %v288 = vpop.permute.xlu0 %287
    %v291 = vmul.f32 %v255, %v286
    %v292 = vmul.f32 %v256, %v288
    %294 = vrot.lane.b32.xlu0 %v220, 64
    %v295 = vpop.permute.xlu0 %294
    %v296 = vsel %vm48, %v295, 0
    %298 = vmatpush.msra.mxu0 0.0
    %299 = vmatpush.msra.mxu0 0.0
    %300 = vmatpush.msra.mxu0 0.0
    %301 = vmatpush.msra.mxu0 0.0
    %302 = vmatpush.msra.mxu0 0.0
    %303 = vmatpush.msra.mxu0 0.0
    %304 = vmatpush.msra.mxu0 0.0
    %305 = vmatpush.msra.mxu0 0.0
    %306 = vmatpush.msra.mxu0 0.0
    %307 = vmatpush.msra.mxu0 0.0
    %308 = vmatpush.msra.mxu0 0.0
    %309 = vmatpush.msra.mxu0 0.0
    %310 = vmatpush.msra.mxu0 %v137
    %311 = vmatpush.msra.mxu0 %v136
    %312 = vmatpush.msra.mxu0 %v135
    %313 = vmatpush.msra.mxu0 %v134
    %314 = vmatmul.f32.gmra.mxu0 %v296
    %v315 = vpop.f32.mrf.mxu0
    %v316 = vadd.f32 0.0, %v315
    %317 = vdwg.mxu0
    %v320 = vrot.slane %v292, 7
    %v321 = vsel %vm164, %v320, %v291
    %322 = vrot.lane.b32.xlu0 %v321, 64
    %v323 = vpop.permute.xlu0 %322
    %v324 = vsel %vm48, %v323, 0
    %326 = vmatpush.msra.mxu0 0.0
    %327 = vmatpush.msra.mxu0 0.0
    %328 = vmatpush.msra.mxu0 0.0
    %329 = vmatpush.msra.mxu0 0.0
    %330 = vmatpush.msra.mxu0 0.0
    %331 = vmatpush.msra.mxu0 0.0
    %332 = vmatpush.msra.mxu0 0.0
    %333 = vmatpush.msra.mxu0 0.0
    %334 = vmatpush.msra.mxu0 0.0
    %335 = vmatpush.msra.mxu0 0.0
    %336 = vmatpush.msra.mxu0 0.0
    %337 = vmatpush.msra.mxu0 0.0
    %338 = vmatpush.msra.mxu0 %v133
    %339 = vmatpush.msra.mxu0 %v132
    %340 = vmatpush.msra.mxu0 %v131
    %341 = vmatpush.msra.mxu0 %v130
    %342 = vmatmul.f32.gmra.mxu0 %v324
    %v343 = vpop.f32.mrf.mxu0
    %v344 = vadd.f32 %v316, %v343
    %345 = vdwg.mxu0
    %v346 = vadd.f32 %v344, %v192
    %v347 = vmul.f32 %v346, 0.5
    %v348 = vtanh.pop %v347
    %v349 = vmul.f32 %v348, 0.5
    %v350 = vadd.f32 %v349, 0.5
    %v351 = vtanh.pop %v346
    %v352 = vmul.f32 %v350, %v214
    %354 = vrot.lane.b32.xlu0 %v351, 32
    %v355 = vpop.permute.xlu0 %354
    %v357 = vmul.f32 %v350, %v355
    %359 = vrot.lane.b32.xlu0 %v357, 32
    %v360 = vpop.permute.xlu0 %359
    %v362 = vadd.f32 %v352, %v360
    %v363 = vtanh.pop %v362
    %365 = vrot.lane.b32.xlu0 %v363, 32
    %v366 = vpop.permute.xlu0 %365
    %v368 = vmul.f32 %v350, %v366
    %v369 = vld [vmem:[%s0 + $0x2] sm:$0x1]
    %v370 = vld [vmem:[%s0 + $0xa] sm:$0x1]
    %371 = vmatpush.msra.mxu0 0.0
    %372 = vmatpush.msra.mxu0 0.0
    %373 = vmatpush.msra.mxu0 0.0
    %374 = vmatpush.msra.mxu0 0.0
    %375 = vmatpush.msra.mxu0 0.0
    %376 = vmatpush.msra.mxu0 0.0
    %377 = vmatpush.msra.mxu0 0.0
    %378 = vmatpush.msra.mxu0 0.0
    %379 = vmatpush.msra.mxu0 0.0
    %380 = vmatpush.msra.mxu0 0.0
    %381 = vmatpush.msra.mxu0 0.0
    %382 = vmatpush.msra.mxu0 0.0
    %383 = vmatpush.msra.mxu0 %v47
    %384 = vmatpush.msra.mxu0 %v46
    %385 = vmatpush.msra.mxu0 %v45
    %386 = vmatpush.msra.mxu0 %v44
    %387 = vmatmul.f32.gmra.mxu0 %v324
    %v388 = vpop.f32.mrf.mxu0
    %v389 = vadd.f32 0.0, %v388
    %390 = vdwg.mxu0
    %v392 = vrot.slane %v389, 1
    %v395 = vadd.f32 %v369, %v389
    %v396 = vadd.f32 %v370, %v392
    %v397 = vmul.f32 %v395, 0.5
    %v398 = vmul.f32 %v396, 0.5
    %v399 = vtanh.pop %v397
    %v400 = vtanh.pop %v398
    %v401 = vmul.f32 %v399, 0.5
    %v402 = vmul.f32 %v400, 0.5
    %v403 = vadd.f32 %v401, 0.5
    %v404 = vadd.f32 %v402, 0.5
    %v405 = vtanh.pop %v395
    %v406 = vtanh.pop %v396
    %v407 = vmul.f32 %v403, %v279
    %v408 = vmul.f32 %v404, %v280
    %411 = vrot.lane.b32.xlu0 %v405, 32
    %v412 = vpop.permute.xlu0 %411
    %413 = vrot.lane.b32.xlu0 %v406, 32
    %v414 = vpop.permute.xlu0 %413
    %v417 = vmul.f32 %v403, %v412
    %v418 = vmul.f32 %v404, %v414
    %421 = vrot.lane.b32.xlu0 %v417, 32
    %v422 = vpop.permute.xlu0 %421
    %423 = vrot.lane.b32.xlu0 %v418, 32
    %v424 = vpop.permute.xlu0 %423
    %v427 = vadd.f32 %v407, %v422
    %v428 = vadd.f32 %v408, %v424
    %v429 = vtanh.pop %v427
    %v430 = vtanh.pop %v428
    %433 = vrot.lane.b32.xlu0 %v429, 32
    %v434 = vpop.permute.xlu0 %433
    %435 = vrot.lane.b32.xlu0 %v430, 32
    %v436 = vpop.permute.xlu0 %435
    %v439 = vmul.f32 %v403, %v434
    %v440 = vmul.f32 %v404, %v436
    %442 = vrot.lane.b32.xlu0 %v368, 64
    %v443 = vpop.permute.xlu0 %442
    %v444 = vsel %vm48, %v443, 0
    %446 = vmatpush.msra.mxu0 0.0
    %447 = vmatpush.msra.mxu0 0.0
    %448 = vmatpush.msra.mxu0 0.0
    %449 = vmatpush.msra.mxu0 0.0
    %450 = vmatpush.msra.mxu0 0.0
    %451 = vmatpush.msra.mxu0 0.0
    %452 = vmatpush.msra.mxu0 0.0
    %453 = vmatpush.msra.mxu0 0.0
    %454 = vmatpush.msra.mxu0 0.0
    %455 = vmatpush.msra.mxu0 0.0
    %456 = vmatpush.msra.mxu0 0.0
    %457 = vmatpush.msra.mxu0 0.0
    %458 = vmatpush.msra.mxu0 %v137
    %459 = vmatpush.msra.mxu0 %v136
    %460 = vmatpush.msra.mxu0 %v135
    %461 = vmatpush.msra.mxu0 %v134
    %462 = vmatmul.f32.gmra.mxu0 %v444
    %v463 = vpop.f32.mrf.mxu0
    %v464 = vadd.f32 0.0, %v463
    %465 = vdwg.mxu0
    %v468 = vrot.slane %v440, 7
    %v469 = vsel %vm164, %v468, %v439
    %470 = vrot.lane.b32.xlu0 %v469, 64
    %v471 = vpop.permute.xlu0 %470
    %v472 = vsel %vm48, %v471, 0
    %474 = vmatpush.msra.mxu0 0.0
    %475 = vmatpush.msra.mxu0 0.0
    %476 = vmatpush.msra.mxu0 0.0
    %477 = vmatpush.msra.mxu0 0.0
    %478 = vmatpush.msra.mxu0 0.0
    %479 = vmatpush.msra.mxu0 0.0
    %480 = vmatpush.msra.mxu0 0.0
    %481 = vmatpush.msra.mxu0 0.0
    %482 = vmatpush.msra.mxu0 0.0
    %483 = vmatpush.msra.mxu0 0.0
    %484 = vmatpush.msra.mxu0 0.0
    %485 = vmatpush.msra.mxu0 0.0
    %486 = vmatpush.msra.mxu0 %v133
    %487 = vmatpush.msra.mxu0 %v132
    %488 = vmatpush.msra.mxu0 %v131
    %489 = vmatpush.msra.mxu0 %v130
    %490 = vmatmul.f32.gmra.mxu0 %v472
    %v491 = vpop.f32.mrf.mxu0
    %v492 = vadd.f32 %v464, %v491
    %493 = vdwg.mxu0
    %v494 = vadd.f32 %v492, %v192
    %v495 = vmul.f32 %v494, 0.5
    %v496 = vtanh.pop %v495
    %v497 = vmul.f32 %v496, 0.5
    %v498 = vadd.f32 %v497, 0.5
    %v499 = vtanh.pop %v494
    %v500 = vmul.f32 %v498, %v362
    %502 = vrot.lane.b32.xlu0 %v499, 32
    %v503 = vpop.permute.xlu0 %502
    %v505 = vmul.f32 %v498, %v503
    %507 = vrot.lane.b32.xlu0 %v505, 32
    %v508 = vpop.permute.xlu0 %507
    %v510 = vadd.f32 %v500, %v508
    %v511 = vtanh.pop %v510
    %513 = vrot.lane.b32.xlu0 %v511, 32
    %v514 = vpop.permute.xlu0 %513
    %v516 = vmul.f32 %v498, %v514
    %v517 = vld [vmem:[%s0 + $0x3] sm:$0x1]
    %v518 = vld [vmem:[%s0 + $0xb] sm:$0x1]
    %519 = vmatpush.msra.mxu0 0.0
    %520 = vmatpush.msra.mxu0 0.0
    %521 = vmatpush.msra.mxu0 0.0
    %522 = vmatpush.msra.mxu0 0.0
    %523 = vmatpush.msra.mxu0 0.0
    %524 = vmatpush.msra.mxu0 0.0
    %525 = vmatpush.msra.mxu0 0.0
    %526 = vmatpush.msra.mxu0 0.0
    %527 = vmatpush.msra.mxu0 0.0
    %528 = vmatpush.msra.mxu0 0.0
    %529 = vmatpush.msra.mxu0 0.0
    %530 = vmatpush.msra.mxu0 0.0
    %531 = vmatpush.msra.mxu0 %v47
    %532 = vmatpush.msra.mxu0 %v46
    %533 = vmatpush.msra.mxu0 %v45
    %534 = vmatpush.msra.mxu0 %v44
    %535 = vmatmul.f32.gmra.mxu0 %v472
    %v536 = vpop.f32.mrf.mxu0
    %v537 = vadd.f32 0.0, %v536
    %538 = vdwg.mxu0
    %v540 = vrot.slane %v537, 1
    %v543 = vadd.f32 %v517, %v537
    %v544 = vadd.f32 %v518, %v540
    %v545 = vmul.f32 %v543, 0.5
    %v546 = vmul.f32 %v544, 0.5
    %v547 = vtanh.pop %v545
    %v548 = vtanh.pop %v546
    %v549 = vmul.f32 %v547, 0.5
    %v550 = vmul.f32 %v548, 0.5
    %v551 = vadd.f32 %v549, 0.5
    %v552 = vadd.f32 %v550, 0.5
    %v553 = vtanh.pop %v543
    %v554 = vtanh.pop %v544
    %v555 = vmul.f32 %v551, %v427
    %v556 = vmul.f32 %v552, %v428
    %559 = vrot.lane.b32.xlu0 %v553, 32
    %v560 = vpop.permute.xlu0 %559
    %561 = vrot.lane.b32.xlu0 %v554, 32
    %v562 = vpop.permute.xlu0 %561
    %v565 = vmul.f32 %v551, %v560
    %v566 = vmul.f32 %v552, %v562
    %569 = vrot.lane.b32.xlu0 %v565, 32
    %v570 = vpop.permute.xlu0 %569
    %571 = vrot.lane.b32.xlu0 %v566, 32
    %v572 = vpop.permute.xlu0 %571
    %v575 = vadd.f32 %v555, %v570
    %v576 = vadd.f32 %v556, %v572
    %v577 = vtanh.pop %v575
    %v578 = vtanh.pop %v576
    %581 = vrot.lane.b32.xlu0 %v577, 32
    %v582 = vpop.permute.xlu0 %581
    %583 = vrot.lane.b32.xlu0 %v578, 32
    %v584 = vpop.permute.xlu0 %583
    %v587 = vmul.f32 %v551, %v582
    %v588 = vmul.f32 %v552, %v584
    %590 = vrot.lane.b32.xlu0 %v516, 64
    %v591 = vpop.permute.xlu0 %590
    %v592 = vsel %vm48, %v591, 0
    %594 = vmatpush.msra.mxu0 0.0
    %595 = vmatpush.msra.mxu0 0.0
    %596 = vmatpush.msra.mxu0 0.0
    %597 = vmatpush.msra.mxu0 0.0
    %598 = vmatpush.msra.mxu0 0.0
    %599 = vmatpush.msra.mxu0 0.0
    %600 = vmatpush.msra.mxu0 0.0
    %601 = vmatpush.msra.mxu0 0.0
    %602 = vmatpush.msra.mxu0 0.0
    %603 = vmatpush.msra.mxu0 0.0
    %604 = vmatpush.msra.mxu0 0.0
    %605 = vmatpush.msra.mxu0 0.0
    %606 = vmatpush.msra.mxu0 %v137
    %607 = vmatpush.msra.mxu0 %v136
    %608 = vmatpush.msra.mxu0 %v135
    %609 = vmatpush.msra.mxu0 %v134
    %610 = vmatmul.f32.gmra.mxu0 %v592
    %v611 = vpop.f32.mrf.mxu0
    %v612 = vadd.f32 0.0, %v611
    %613 = vdwg.mxu0
    %v616 = vrot.slane %v588, 7
    %v617 = vsel %vm164, %v616, %v587
    %618 = vrot.lane.b32.xlu0 %v617, 64
    %v619 = vpop.permute.xlu0 %618
    %v620 = vsel %vm48, %v619, 0
    %622 = vmatpush.msra.mxu0 0.0
    %623 = vmatpush.msra.mxu0 0.0
    %624 = vmatpush.msra.mxu0 0.0
    %625 = vmatpush.msra.mxu0 0.0
    %626 = vmatpush.msra.mxu0 0.0
    %627 = vmatpush.msra.mxu0 0.0
    %628 = vmatpush.msra.mxu0 0.0
    %629 = vmatpush.msra.mxu0 0.0
    %630 = vmatpush.msra.mxu0 0.0
    %631 = vmatpush.msra.mxu0 0.0
    %632 = vmatpush.msra.mxu0 0.0
    %633 = vmatpush.msra.mxu0 0.0
    %634 = vmatpush.msra.mxu0 %v133
    %635 = vmatpush.msra.mxu0 %v132
    %636 = vmatpush.msra.mxu0 %v131
    %637 = vmatpush.msra.mxu0 %v130
    %638 = vmatmul.f32.gmra.mxu0 %v620
    %v639 = vpop.f32.mrf.mxu0
    %v640 = vadd.f32 %v612, %v639
    %641 = vdwg.mxu0
    %v642 = vadd.f32 %v640, %v192
    %v643 = vmul.f32 %v642, 0.5
    %v644 = vtanh.pop %v643
    %v645 = vmul.f32 %v644, 0.5
    %v646 = vadd.f32 %v645, 0.5
    %v647 = vtanh.pop %v642
    %v648 = vmul.f32 %v646, %v510
    %650 = vrot.lane.b32.xlu0 %v647, 32
    %v651 = vpop.permute.xlu0 %650
    %v653 = vmul.f32 %v646, %v651
    %655 = vrot.lane.b32.xlu0 %v653, 32
    %v656 = vpop.permute.xlu0 %655
    %v658 = vadd.f32 %v648, %v656
    %v659 = vtanh.pop %v658
    %661 = vrot.lane.b32.xlu0 %v659, 32
    %v662 = vpop.permute.xlu0 %661
    %v664 = vmul.f32 %v646, %v662
    %v665 = vld [vmem:[%s0 + $0x4] sm:$0x1]
    %v666 = vld [vmem:[%s0 + $0xc] sm:$0x1]
    %667 = vmatpush.msra.mxu0 0.0
    %668 = vmatpush.msra.mxu0 0.0
    %669 = vmatpush.msra.mxu0 0.0
    %670 = vmatpush.msra.mxu0 0.0
    %671 = vmatpush.msra.mxu0 0.0
    %672 = vmatpush.msra.mxu0 0.0
    %673 = vmatpush.msra.mxu0 0.0
    %674 = vmatpush.msra.mxu0 0.0
    %675 = vmatpush.msra.mxu0 0.0
    %676 = vmatpush.msra.mxu0 0.0
    %677 = vmatpush.msra.mxu0 0.0
    %678 = vmatpush.msra.mxu0 0.0
    %679 = vmatpush.msra.mxu0 %v47
    %680 = vmatpush.msra.mxu0 %v46
    %681 = vmatpush.msra.mxu0 %v45
    %682 = vmatpush.msra.mxu0 %v44
    %683 = vmatmul.f32.gmra.mxu0 %v620
    %v684 = vpop.f32.mrf.mxu0
    %v685 = vadd.f32 0.0, %v684
    %686 = vdwg.mxu0
    %v688 = vrot.slane %v685, 1
    %v691 = vadd.f32 %v665, %v685
    %v692 = vadd.f32 %v666, %v688
    %v693 = vmul.f32 %v691, 0.5
    %v694 = vmul.f32 %v692, 0.5
    %v695 = vtanh.pop %v693
    %v696 = vtanh.pop %v694
    %v697 = vmul.f32 %v695, 0.5
    %v698 = vmul.f32 %v696, 0.5
    %v699 = vadd.f32 %v697, 0.5
    %v700 = vadd.f32 %v698, 0.5
    %v701 = vtanh.pop %v691
    %v702 = vtanh.pop %v692
    %v703 = vmul.f32 %v699, %v575
    %v704 = vmul.f32 %v700, %v576
    %707 = vrot.lane.b32.xlu0 %v701, 32
    %v708 = vpop.permute.xlu0 %707
    %709 = vrot.lane.b32.xlu0 %v702, 32
    %v710 = vpop.permute.xlu0 %709
    %v713 = vmul.f32 %v699, %v708
    %v714 = vmul.f32 %v700, %v710
    %717 = vrot.lane.b32.xlu0 %v713, 32
    %v718 = vpop.permute.xlu0 %717
    %719 = vrot.lane.b32.xlu0 %v714, 32
    %v720 = vpop.permute.xlu0 %719
    %v723 = vadd.f32 %v703, %v718
    %v724 = vadd.f32 %v704, %v720
    %v725 = vtanh.pop %v723
    %v726 = vtanh.pop %v724
    %729 = vrot.lane.b32.xlu0 %v725, 32
    %v730 = vpop.permute.xlu0 %729
    %731 = vrot.lane.b32.xlu0 %v726, 32
    %v732 = vpop.permute.xlu0 %731
    %v735 = vmul.f32 %v699, %v730
    %v736 = vmul.f32 %v700, %v732
    %738 = vrot.lane.b32.xlu0 %v664, 64
    %v739 = vpop.permute.xlu0 %738
    %v740 = vsel %vm48, %v739, 0
    %742 = vmatpush.msra.mxu0 0.0
    %743 = vmatpush.msra.mxu0 0.0
    %744 = vmatpush.msra.mxu0 0.0
    %745 = vmatpush.msra.mxu0 0.0
    %746 = vmatpush.msra.mxu0 0.0
    %747 = vmatpush.msra.mxu0 0.0
    %748 = vmatpush.msra.mxu0 0.0
    %749 = vmatpush.msra.mxu0 0.0
    %750 = vmatpush.msra.mxu0 0.0
    %751 = vmatpush.msra.mxu0 0.0
    %752 = vmatpush.msra.mxu0 0.0
    %753 = vmatpush.msra.mxu0 0.0
    %754 = vmatpush.msra.mxu0 %v137
    %755 = vmatpush.msra.mxu0 %v136
    %756 = vmatpush.msra.mxu0 %v135
    %757 = vmatpush.msra.mxu0 %v134
    %758 = vmatmul.f32.gmra.mxu0 %v740
    %v759 = vpop.f32.mrf.mxu0
    %v760 = vadd.f32 0.0, %v759
    %761 = vdwg.mxu0
    %v764 = vrot.slane %v736, 7
    %v765 = vsel %vm164, %v764, %v735
    %766 = vrot.lane.b32.xlu0 %v765, 64
    %v767 = vpop.permute.xlu0 %766
    %v768 = vsel %vm48, %v767, 0
    %770 = vmatpush.msra.mxu0 0.0
    %771 = vmatpush.msra.mxu0 0.0
    %772 = vmatpush.msra.mxu0 0.0
    %773 = vmatpush.msra.mxu0 0.0
    %774 = vmatpush.msra.mxu0 0.0
    %775 = vmatpush.msra.mxu0 0.0
    %776 = vmatpush.msra.mxu0 0.0
    %777 = vmatpush.msra.mxu0 0.0
    %778 = vmatpush.msra.mxu0 0.0
    %779 = vmatpush.msra.mxu0 0.0
    %780 = vmatpush.msra.mxu0 0.0
    %781 = vmatpush.msra.mxu0 0.0
    %782 = vmatpush.msra.mxu0 %v133
    %783 = vmatpush.msra.mxu0 %v132
    %784 = vmatpush.msra.mxu0 %v131
    %785 = vmatpush.msra.mxu0 %v130
    %786 = vmatmul.f32.gmra.mxu0 %v768
    %v787 = vpop.f32.mrf.mxu0
    %v788 = vadd.f32 %v760, %v787
    %789 = vdwg.mxu0
    %v790 = vadd.f32 %v788, %v192
    %v791 = vmul.f32 %v790, 0.5
    %v792 = vtanh.pop %v791
    %v793 = vmul.f32 %v792, 0.5
    %v794 = vadd.f32 %v793, 0.5
    %v795 = vtanh.pop %v790
    %v796 = vmul.f32 %v794, %v658
    %798 = vrot.lane.b32.xlu0 %v795, 32
    %v799 = vpop.permute.xlu0 %798
    %v801 = vmul.f32 %v794, %v799
    %803 = vrot.lane.b32.xlu0 %v801, 32
    %v804 = vpop.permute.xlu0 %803
    %v806 = vadd.f32 %v796, %v804
    %v807 = vtanh.pop %v806
    %809 = vrot.lane.b32.xlu0 %v807, 32
    %v810 = vpop.permute.xlu0 %809
    %v812 = vmul.f32 %v794, %v810
    %v813 = vld [vmem:[%s0 + $0x5] sm:$0x1]
    %v814 = vld [vmem:[%s0 + $0xd] sm:$0x1]
    %815 = vmatpush.msra.mxu0 0.0
    %816 = vmatpush.msra.mxu0 0.0
    %817 = vmatpush.msra.mxu0 0.0
    %818 = vmatpush.msra.mxu0 0.0
    %819 = vmatpush.msra.mxu0 0.0
    %820 = vmatpush.msra.mxu0 0.0
    %821 = vmatpush.msra.mxu0 0.0
    %822 = vmatpush.msra.mxu0 0.0
    %823 = vmatpush.msra.mxu0 0.0
    %824 = vmatpush.msra.mxu0 0.0
    %825 = vmatpush.msra.mxu0 0.0
    %826 = vmatpush.msra.mxu0 0.0
    %827 = vmatpush.msra.mxu0 %v47
    %828 = vmatpush.msra.mxu0 %v46
    %829 = vmatpush.msra.mxu0 %v45
    %830 = vmatpush.msra.mxu0 %v44
    %831 = vmatmul.f32.gmra.mxu0 %v768
    %v832 = vpop.f32.mrf.mxu0
    %v833 = vadd.f32 0.0, %v832
    %834 = vdwg.mxu0
    %v836 = vrot.slane %v833, 1
    %v839 = vadd.f32 %v813, %v833
    %v840 = vadd.f32 %v814, %v836
    %v841 = vmul.f32 %v839, 0.5
    %v842 = vmul.f32 %v840, 0.5
    %v843 = vtanh.pop %v841
    %v844 = vtanh.pop %v842
    %v845 = vmul.f32 %v843, 0.5
    %v846 = vmul.f32 %v844, 0.5
    %v847 = vadd.f32 %v845, 0.5
    %v848 = vadd.f32 %v846, 0.5
    %v849 = vtanh.pop %v839
    %v850 = vtanh.pop %v840
    %v851 = vmul.f32 %v847, %v723
    %v852 = vmul.f32 %v848, %v724
    %855 = vrot.lane.b32.xlu0 %v849, 32
    %v856 = vpop.permute.xlu0 %855
    %857 = vrot.lane.b32.xlu0 %v850, 32
    %v858 = vpop.permute.xlu0 %857
    %v861 = vmul.f32 %v847, %v856
    %v862 = vmul.f32 %v848, %v858
    %865 = vrot.lane.b32.xlu0 %v861, 32
    %v866 = vpop.permute.xlu0 %865
    %867 = vrot.lane.b32.xlu0 %v862, 32
    %v868 = vpop.permute.xlu0 %867
    %v871 = vadd.f32 %v851, %v866
    %v872 = vadd.f32 %v852, %v868
    %v873 = vtanh.pop %v871
    %v874 = vtanh.pop %v872
    %877 = vrot.lane.b32.xlu0 %v873, 32
    %v878 = vpop.permute.xlu0 %877
    %879 = vrot.lane.b32.xlu0 %v874, 32
    %v880 = vpop.permute.xlu0 %879
    %v883 = vmul.f32 %v847, %v878
    %v884 = vmul.f32 %v848, %v880
    %886 = vrot.lane.b32.xlu0 %v812, 64
    %v887 = vpop.permute.xlu0 %886
    %v888 = vsel %vm48, %v887, 0
    %890 = vmatpush.msra.mxu0 0.0
    %891 = vmatpush.msra.mxu0 0.0
    %892 = vmatpush.msra.mxu0 0.0
    %893 = vmatpush.msra.mxu0 0.0
    %894 = vmatpush.msra.mxu0 0.0
    %895 = vmatpush.msra.mxu0 0.0
    %896 = vmatpush.msra.mxu0 0.0
    %897 = vmatpush.msra.mxu0 0.0
    %898 = vmatpush.msra.mxu0 0.0
    %899 = vmatpush.msra.mxu0 0.0
    %900 = vmatpush.msra.mxu0 0.0
    %901 = vmatpush.msra.mxu0 0.0
    %902 = vmatpush.msra.mxu0 %v137
    %903 = vmatpush.msra.mxu0 %v136
    %904 = vmatpush.msra.mxu0 %v135
    %905 = vmatpush.msra.mxu0 %v134
    %906 = vmatmul.f32.gmra.mxu0 %v888
    %v907 = vpop.f32.mrf.mxu0
    %v908 = vadd.f32 0.0, %v907
    %909 = vdwg.mxu0
    %v912 = vrot.slane %v884, 7
    %v913 = vsel %vm164, %v912, %v883
    %914 = vrot.lane.b32.xlu0 %v913, 64
    %v915 = vpop.permute.xlu0 %914
    %v916 = vsel %vm48, %v915, 0
    %918 = vmatpush.msra.mxu0 0.0
    %919 = vmatpush.msra.mxu0 0.0
    %920 = vmatpush.msra.mxu0 0.0
    %921 = vmatpush.msra.mxu0 0.0
    %922 = vmatpush.msra.mxu0 0.0
    %923 = vmatpush.msra.mxu0 0.0
    %924 = vmatpush.msra.mxu0 0.0
    %925 = vmatpush.msra.mxu0 0.0
    %926 = vmatpush.msra.mxu0 0.0
    %927 = vmatpush.msra.mxu0 0.0
    %928 = vmatpush.msra.mxu0 0.0
    %929 = vmatpush.msra.mxu0 0.0
    %930 = vmatpush.msra.mxu0 %v133
    %931 = vmatpush.msra.mxu0 %v132
    %932 = vmatpush.msra.mxu0 %v131
    %933 = vmatpush.msra.mxu0 %v130
    %934 = vmatmul.f32.gmra.mxu0 %v916
    %v935 = vpop.f32.mrf.mxu0
    %v936 = vadd.f32 %v908, %v935
    %937 = vdwg.mxu0
    %v938 = vadd.f32 %v936, %v192
    %v939 = vmul.f32 %v938, 0.5
    %v940 = vtanh.pop %v939
    %v941 = vmul.f32 %v940, 0.5
    %v942 = vadd.f32 %v941, 0.5
    %v943 = vtanh.pop %v938
    %v944 = vmul.f32 %v942, %v806
    %946 = vrot.lane.b32.xlu0 %v943, 32
    %v947 = vpop.permute.xlu0 %946
    %v949 = vmul.f32 %v942, %v947
    %951 = vrot.lane.b32.xlu0 %v949, 32
    %v952 = vpop.permute.xlu0 %951
    %v954 = vadd.f32 %v944, %v952
    %v955 = vtanh.pop %v954
    %957 = vrot.lane.b32.xlu0 %v955, 32
    %v958 = vpop.permute.xlu0 %957
    %v960 = vmul.f32 %v942, %v958
    %v961 = vld [vmem:[%s0 + $0x6] sm:$0x1]
    %v962 = vld [vmem:[%s0 + $0xe] sm:$0x1]
    %963 = vmatpush.msra.mxu0 0.0
    %964 = vmatpush.msra.mxu0 0.0
    %965 = vmatpush.msra.mxu0 0.0
    %966 = vmatpush.msra.mxu0 0.0
    %967 = vmatpush.msra.mxu0 0.0
    %968 = vmatpush.msra.mxu0 0.0
    %969 = vmatpush.msra.mxu0 0.0
    %970 = vmatpush.msra.mxu0 0.0
    %971 = vmatpush.msra.mxu0 0.0
    %972 = vmatpush.msra.mxu0 0.0
    %973 = vmatpush.msra.mxu0 0.0
    %974 = vmatpush.msra.mxu0 0.0
    %975 = vmatpush.msra.mxu0 %v47
    %976 = vmatpush.msra.mxu0 %v46
    %977 = vmatpush.msra.mxu0 %v45
    %978 = vmatpush.msra.mxu0 %v44
    %979 = vmatmul.f32.gmra.mxu0 %v916
    %v980 = vpop.f32.mrf.mxu0
    %v981 = vadd.f32 0.0, %v980
    %982 = vdwg.mxu0
    %v984 = vrot.slane %v981, 1
    %v987 = vadd.f32 %v961, %v981
    %v988 = vadd.f32 %v962, %v984
    %v989 = vmul.f32 %v987, 0.5
    %v990 = vmul.f32 %v988, 0.5
    %v991 = vtanh.pop %v989
    %v992 = vtanh.pop %v990
    %v993 = vmul.f32 %v991, 0.5
    %v994 = vmul.f32 %v992, 0.5
    %v995 = vadd.f32 %v993, 0.5
    %v996 = vadd.f32 %v994, 0.5
    %v997 = vtanh.pop %v987
    %v998 = vtanh.pop %v988
    %v999 = vmul.f32 %v995, %v871
    %v1000 = vmul.f32 %v996, %v872
    %1003 = vrot.lane.b32.xlu0 %v997, 32
    %v1004 = vpop.permute.xlu0 %1003
    %1005 = vrot.lane.b32.xlu0 %v998, 32
    %v1006 = vpop.permute.xlu0 %1005
    %v1009 = vmul.f32 %v995, %v1004
    %v1010 = vmul.f32 %v996, %v1006
    %1013 = vrot.lane.b32.xlu0 %v1009, 32
    %v1014 = vpop.permute.xlu0 %1013
    %1015 = vrot.lane.b32.xlu0 %v1010, 32
    %v1016 = vpop.permute.xlu0 %1015
    %v1019 = vadd.f32 %v999, %v1014
    %v1020 = vadd.f32 %v1000, %v1016
    %v1021 = vtanh.pop %v1019
    %v1022 = vtanh.pop %v1020
    %1025 = vrot.lane.b32.xlu0 %v1021, 32
    %v1026 = vpop.permute.xlu0 %1025
    %1027 = vrot.lane.b32.xlu0 %v1022, 32
    %v1028 = vpop.permute.xlu0 %1027
    %v1031 = vmul.f32 %v995, %v1026
    %v1032 = vmul.f32 %v996, %v1028
    %1034 = vrot.lane.b32.xlu0 %v960, 64
    %v1035 = vpop.permute.xlu0 %1034
    %v1036 = vsel %vm48, %v1035, 0
    %1038 = vmatpush.msra.mxu0 0.0
    %1039 = vmatpush.msra.mxu0 0.0
    %1040 = vmatpush.msra.mxu0 0.0
    %1041 = vmatpush.msra.mxu0 0.0
    %1042 = vmatpush.msra.mxu0 0.0
    %1043 = vmatpush.msra.mxu0 0.0
    %1044 = vmatpush.msra.mxu0 0.0
    %1045 = vmatpush.msra.mxu0 0.0
    %1046 = vmatpush.msra.mxu0 0.0
    %1047 = vmatpush.msra.mxu0 0.0
    %1048 = vmatpush.msra.mxu0 0.0
    %1049 = vmatpush.msra.mxu0 0.0
    %1050 = vmatpush.msra.mxu0 %v137
    %1051 = vmatpush.msra.mxu0 %v136
    %1052 = vmatpush.msra.mxu0 %v135
    %1053 = vmatpush.msra.mxu0 %v134
    %1054 = vmatmul.f32.gmra.mxu0 %v1036
    %v1055 = vpop.f32.mrf.mxu0
    %v1056 = vadd.f32 0.0, %v1055
    %1057 = vdwg.mxu0
    %v1060 = vrot.slane %v1032, 7
    %v1061 = vsel %vm164, %v1060, %v1031
    %1062 = vrot.lane.b32.xlu0 %v1061, 64
    %v1063 = vpop.permute.xlu0 %1062
    %v1064 = vsel %vm48, %v1063, 0
    %1066 = vmatpush.msra.mxu0 0.0
    %1067 = vmatpush.msra.mxu0 0.0
    %1068 = vmatpush.msra.mxu0 0.0
    %1069 = vmatpush.msra.mxu0 0.0
    %1070 = vmatpush.msra.mxu0 0.0
    %1071 = vmatpush.msra.mxu0 0.0
    %1072 = vmatpush.msra.mxu0 0.0
    %1073 = vmatpush.msra.mxu0 0.0
    %1074 = vmatpush.msra.mxu0 0.0
    %1075 = vmatpush.msra.mxu0 0.0
    %1076 = vmatpush.msra.mxu0 0.0
    %1077 = vmatpush.msra.mxu0 0.0
    %1078 = vmatpush.msra.mxu0 %v133
    %1079 = vmatpush.msra.mxu0 %v132
    %1080 = vmatpush.msra.mxu0 %v131
    %1081 = vmatpush.msra.mxu0 %v130
    %1082 = vmatmul.f32.gmra.mxu0 %v1064
    %v1083 = vpop.f32.mrf.mxu0
    %v1084 = vadd.f32 %v1056, %v1083
    %1085 = vdwg.mxu0
    %v1086 = vadd.f32 %v1084, %v192
    %v1087 = vmul.f32 %v1086, 0.5
    %v1088 = vtanh.pop %v1087
    %v1089 = vmul.f32 %v1088, 0.5
    %v1090 = vadd.f32 %v1089, 0.5
    %v1091 = vtanh.pop %v1086
    %v1092 = vmul.f32 %v1090, %v954
    %1094 = vrot.lane.b32.xlu0 %v1091, 32
    %v1095 = vpop.permute.xlu0 %1094
    %v1097 = vmul.f32 %v1090, %v1095
    %1099 = vrot.lane.b32.xlu0 %v1097, 32
    %v1100 = vpop.permute.xlu0 %1099
    %v1102 = vadd.f32 %v1092, %v1100
    %v1103 = vtanh.pop %v1102
    %1105 = vrot.lane.b32.xlu0 %v1103, 32
    %v1106 = vpop.permute.xlu0 %1105
    %v1108 = vmul.f32 %v1090, %v1106
    %v1109 = vld [vmem:[%s0 + $0x7] sm:$0x1]
    %v1110 = vld [vmem:[%s0 + $0xf] sm:$0x1]
    %1111 = vmatpush.msra.mxu0 0.0
    %1112 = vmatpush.msra.mxu0 0.0
    %1113 = vmatpush.msra.mxu0 0.0
    %1114 = vmatpush.msra.mxu0 0.0
    %1115 = vmatpush.msra.mxu0 0.0
    %1116 = vmatpush.msra.mxu0 0.0
    %1117 = vmatpush.msra.mxu0 0.0
    %1118 = vmatpush.msra.mxu0 0.0
    %1119 = vmatpush.msra.mxu0 0.0
    %1120 = vmatpush.msra.mxu0 0.0
    %1121 = vmatpush.msra.mxu0 0.0
    %1122 = vmatpush.msra.mxu0 0.0
    %1123 = vmatpush.msra.mxu0 %v47
    %1124 = vmatpush.msra.mxu0 %v46
    %1125 = vmatpush.msra.mxu0 %v45
    %1126 = vmatpush.msra.mxu0 %v44
    %1127 = vmatmul.f32.gmra.mxu0 %v1064
    %v1128 = vpop.f32.mrf.mxu0
    %v1129 = vadd.f32 0.0, %v1128
    %1130 = vdwg.mxu0
    %v1132 = vrot.slane %v1129, 1
    %v1135 = vadd.f32 %v1109, %v1129
    %v1136 = vadd.f32 %v1110, %v1132
    %v1137 = vmul.f32 %v1135, 0.5
    %v1138 = vmul.f32 %v1136, 0.5
    %v1139 = vtanh.pop %v1137
    %v1140 = vtanh.pop %v1138
    %v1141 = vmul.f32 %v1139, 0.5
    %v1142 = vmul.f32 %v1140, 0.5
    %v1143 = vadd.f32 %v1141, 0.5
    %v1144 = vadd.f32 %v1142, 0.5
    %v1145 = vtanh.pop %v1135
    %v1146 = vtanh.pop %v1136
    %v1147 = vmul.f32 %v1143, %v1019
    %v1148 = vmul.f32 %v1144, %v1020
    %1151 = vrot.lane.b32.xlu0 %v1145, 32
    %v1152 = vpop.permute.xlu0 %1151
    %1153 = vrot.lane.b32.xlu0 %v1146, 32
    %v1154 = vpop.permute.xlu0 %1153
    %v1157 = vmul.f32 %v1143, %v1152
    %v1158 = vmul.f32 %v1144, %v1154
    %1161 = vrot.lane.b32.xlu0 %v1157, 32
    %v1162 = vpop.permute.xlu0 %1161
    %1163 = vrot.lane.b32.xlu0 %v1158, 32
    %v1164 = vpop.permute.xlu0 %1163
    %v1167 = vadd.f32 %v1147, %v1162
    %v1168 = vadd.f32 %v1148, %v1164
    %v1169 = vtanh.pop %v1167
    %v1170 = vtanh.pop %v1168
    %1173 = vrot.lane.b32.xlu0 %v1169, 32
    %v1174 = vpop.permute.xlu0 %1173
    %1175 = vrot.lane.b32.xlu0 %v1170, 32
    %v1176 = vpop.permute.xlu0 %1175
    %v1179 = vmul.f32 %v1143, %v1174
    %v1180 = vmul.f32 %v1144, %v1176
    %1182 = vrot.lane.b32.xlu0 %v1108, 64
    %v1183 = vpop.permute.xlu0 %1182
    %v1184 = vsel %vm48, %v1183, 0
    %1186 = vmatpush.msra.mxu0 0.0
    %1187 = vmatpush.msra.mxu0 0.0
    %1188 = vmatpush.msra.mxu0 0.0
    %1189 = vmatpush.msra.mxu0 0.0
    %1190 = vmatpush.msra.mxu0 0.0
    %1191 = vmatpush.msra.mxu0 0.0
    %1192 = vmatpush.msra.mxu0 0.0
    %1193 = vmatpush.msra.mxu0 0.0
    %1194 = vmatpush.msra.mxu0 0.0
    %1195 = vmatpush.msra.mxu0 0.0
    %1196 = vmatpush.msra.mxu0 0.0
    %1197 = vmatpush.msra.mxu0 0.0
    %1198 = vmatpush.msra.mxu0 %v137
    %1199 = vmatpush.msra.mxu0 %v136
    %1200 = vmatpush.msra.mxu0 %v135
    %1201 = vmatpush.msra.mxu0 %v134
    %1202 = vmatmul.f32.gmra.mxu0 %v1184
    %v1203 = vpop.f32.mrf.mxu0
    %v1204 = vadd.f32 0.0, %v1203
    %1205 = vdwg.mxu0
    %v1208 = vrot.slane %v1180, 7
    %v1209 = vsel %vm164, %v1208, %v1179
    %1210 = vrot.lane.b32.xlu0 %v1209, 64
    %v1211 = vpop.permute.xlu0 %1210
    %v1212 = vsel %vm48, %v1211, 0
    %1214 = vmatpush.msra.mxu0 0.0
    %1215 = vmatpush.msra.mxu0 0.0
    %1216 = vmatpush.msra.mxu0 0.0
    %1217 = vmatpush.msra.mxu0 0.0
    %1218 = vmatpush.msra.mxu0 0.0
    %1219 = vmatpush.msra.mxu0 0.0
    %1220 = vmatpush.msra.mxu0 0.0
    %1221 = vmatpush.msra.mxu0 0.0
    %1222 = vmatpush.msra.mxu0 0.0
    %1223 = vmatpush.msra.mxu0 0.0
    %1224 = vmatpush.msra.mxu0 0.0
    %1225 = vmatpush.msra.mxu0 0.0
    %1226 = vmatpush.msra.mxu0 %v133
    %1227 = vmatpush.msra.mxu0 %v132
    %1228 = vmatpush.msra.mxu0 %v131
    %1229 = vmatpush.msra.mxu0 %v130
    %1230 = vmatmul.f32.gmra.mxu0 %v1212
    %v1231 = vpop.f32.mrf.mxu0
    %v1232 = vadd.f32 %v1204, %v1231
    %1233 = vdwg.mxu0
    %v1234 = vadd.f32 %v1232, %v192
    %v1235 = vmul.f32 %v1234, 0.5
    %v1236 = vtanh.pop %v1235
    %v1237 = vmul.f32 %v1236, 0.5
    %v1238 = vadd.f32 %v1237, 0.5
    %v1239 = vtanh.pop %v1234
    %v1240 = vmul.f32 %v1238, %v1102
    %1242 = vrot.lane.b32.xlu0 %v1239, 32
    %v1243 = vpop.permute.xlu0 %1242
    %v1245 = vmul.f32 %v1238, %v1243
    %1247 = vrot.lane.b32.xlu0 %v1245, 32
    %v1248 = vpop.permute.xlu0 %1247
    %v1250 = vadd.f32 %v1240, %v1248
    %v1251 = vtanh.pop %v1250
    %1253 = vrot.lane.b32.xlu0 %v1251, 32
    %v1254 = vpop.permute.xlu0 %1253
    %v1256 = vmul.f32 %v1238, %v1254
    %vm1258 = vcmask 254976
    %1259 = vst.msk [vmem:[#allocation2] sm:$0x3] %vm1258, %v1211
    %v1262 = vrot.slane %v1168, 7
    %v1263 = vsel %vm164, %v1262, %v1167
    %1264 = vrot.lane.b32.xlu0 %v1263, 96
    %v1265 = vpop.permute.xlu0 %1264
    %1267 = vst.msk [vmem:[#allocation3] sm:$0x3] %vm1258, %v1265
    %1269 = vrot.lane.b32.xlu0 %v1256, 64
    %v1270 = vpop.permute.xlu0 %1269
    %1272 = vst.msk [vmem:[%s37] sm:$0x3] %vm1258, %v1270
    %1274 = vrot.lane.b32.xlu0 %v1250, 96
    %v1275 = vpop.permute.xlu0 %1274
    %1277 = vst.msk [vmem:[%s40] sm:$0x3] %vm1258, %v1275
    // Predicated region
    $region34: #{proportions_lstm_forward.3} parent=1 // pred_check
      %p1278 = pneg %p27
    $region35: #{proportions_lstm_forward.3} parent=1 // pred_check_branch
      %1280 = sbr.rel (%p1278) target = $region37
    $region36: #{proportions_lstm_forward.3} parent=1 // pred_region
      %v1281 = vld [vmem:[%s5] sm:$0xff]
      %v1282 = vld [vmem:[%s5 + $0x8] sm:$0xff]
      %v1283 = vld [vmem:[%s5 + $0x10] sm:$0xff]
      %v1284 = vld [vmem:[%s5 + $0x18] sm:$0xff]
      %v1285 = vld [vmem:[%s6] sm:$0x1]
      %v1287 = vperm.slane %v1285, 0
      %v1289 = vsel %vm48, %v1270, 0
      %1291 = vmatpush.msra.mxu0 0.0
      %1292 = vmatpush.msra.mxu0 0.0
      %1293 = vmatpush.msra.mxu0 0.0
      %1294 = vmatpush.msra.mxu0 0.0
      %1295 = vmatpush.msra.mxu0 0.0
      %1296 = vmatpush.msra.mxu0 0.0
      %1297 = vmatpush.msra.mxu0 0.0
      %1298 = vmatpush.msra.mxu0 0.0
      %1299 = vmatpush.msra.mxu0 0.0
      %1300 = vmatpush.msra.mxu0 0.0
      %1301 = vmatpush.msra.mxu0 0.0
      %1302 = vmatpush.msra.mxu0 0.0
      %1303 = vmatpush.msra.mxu0 %v1284
      %1304 = vmatpush.msra.mxu0 %v1283
      %1305 = vmatpush.msra.mxu0 %v1282
      %1306 = vmatpush.msra.mxu0 %v1281
      %1307 = vmatmul.f32.gmra.mxu0 %v1289
      %v1308 = vpop.f32.mrf.mxu0
      %v1309 = vadd.f32 %v1287, %v1308
      %1310 = vdwg.mxu0
      %vm1311 = vcmask 41984
      %1312 = vst.msk [vmem:[#allocation4] sm:$0x3] %vm1311, %v1309
    $region37: #{proportions_lstm_forward.3} parent=1 // pred_fallthru
      _
    // Predicated region
    $region38: #{proportions_lstm_forward.3} parent=1 // pred_check
      _
    $region39: #{proportions_lstm_forward.3} parent=1 // pred_check_branch
      %1314 = sbr.rel (0) target = $region41
    $region40: #{proportions_lstm_forward.3} parent=1 // pred_region
      %1316 = vsyncadd [#allocation5], 0
      %s1318 = sshll.u32 [#allocation4], 4
      %s1319 = int_to_ptr.vmem [resolvable:$true] %s1318
      %s1320 = sshll.u32 %s7, 4
      %s1321 = int_to_ptr.hbm [resolvable:$true] %s1320
      %1323 = dma.vmem_to_hbm [thread:$0]  %s1319, 32, %s1321, [#allocation5]
    $region41: #{proportions_lstm_forward.3} parent=1 // pred_fallthru
      _
    // Predicated region
    $region42: #{proportions_lstm_forward.3} parent=1 // pred_check
      _
    $region43: #{proportions_lstm_forward.3} parent=1 // pred_check_branch
      %1325 = sbr.rel (0) target = $region45
    $region44: #{proportions_lstm_forward.3} parent=1 // pred_region
      %1327 = dma.done [#allocation5], 32
    $region45: #{proportions_lstm_forward.3} parent=1 // pred_fallthru
      _
    %1328 = vsyncpa [#allocation5], 1

// kernel: proportions_lstm_forward.2
$region0: #{proportions_lstm_forward.2}
  #allocation0 [shape = 'u32[]', space=smem, size = 0x4, offset = 0x4, fixed_abs, tag = 'smem constant byte address 0x4 - core index']
  #allocation1 [shape = 'u32[72,128]{1,0:T(1,128)}', space=vmem, size = 0x9000, scoped, tag = 'internal scratch']
  %s0 = inlined_call_operand.vmem [shape: s32[2,8,256], index: 0, kind: input, shape index: {}]
  %s1 = inlined_call_operand.vmem [shape: f32[128,128], index: 1, kind: input, shape index: {}]
  %s2 = inlined_call_operand.vmem [shape: f32[1,128], index: 2, kind: input, shape index: {}]
  %s3 = inlined_call_operand.vmem [shape: f32[2,8,128], index: 3, kind: output, shape index: {}]
  %s4 = sld [smem:[#allocation0]]
  $region22: #{proportions_lstm_forward.2} parent=0
    _
  %s6 = ssub.s32 1, %s4
  %s7 = scalar_select 0, %s6, %s4
  // Predicated region
  $region2: #{proportions_lstm_forward.2} parent=0 // pred_check
    _
  $region3: #{proportions_lstm_forward.2} parent=0 // pred_check_branch
    %9 = sbr.rel (0) target = $region5
  $region4: #{proportions_lstm_forward.2} parent=0 // pred_region
    _
  $region5: #{proportions_lstm_forward.2} parent=0 // pred_fallthru
    _
  // Predicated region
  $region6: #{proportions_lstm_forward.2} parent=0 // pred_check
    _
  $region7: #{proportions_lstm_forward.2} parent=0 // pred_check_branch
    %11 = sbr.rel (0) target = $region9
  $region8: #{proportions_lstm_forward.2} parent=0 // pred_region
    _
  $region9: #{proportions_lstm_forward.2} parent=0 // pred_fallthru
    _
  // Predicated region
  $region10: #{proportions_lstm_forward.2} parent=0 // pred_check
    _
  $region11: #{proportions_lstm_forward.2} parent=0 // pred_check_branch
    %13 = sbr.rel (0) target = $region13
  $region12: #{proportions_lstm_forward.2} parent=0 // pred_region
    _
  $region13: #{proportions_lstm_forward.2} parent=0 // pred_fallthru
    _
  %v14 = vld [vmem:[%s0] sm:$0xff]
  %v15 = vld [vmem:[%s0 + $0x8] sm:$0xff]
  %v16 = vld [vmem:[%s0 + $0x10] sm:$0xff]
  %v17 = vld [vmem:[%s0 + $0x18] sm:$0xff]
  %v18 = vlaneseq
  %v19 = vand.u32 %v18, 127
  %v20 = vperm.slane %v14, 0
  %v21 = vlaneseq
  %v22 = vshrl.u32 %v21, 7
  %24 = vset.pattern.permute.xlu0 %v22
  %25 = vperm.xlu0 %24, %v20
  %v26 = vpop.permute.xlu0 %25
  %v27 = vlaneseq
  %v28 = vshrl.u32 %v27, 7
  %v29 = vadd.s32 %v28, 8
  %30 = vset.pattern.permute.xlu0 %v29
  %31 = vperm.xlu0 %30, %v20
  %v32 = vpop.permute.xlu0 %31
  %v33 = vlaneseq
  %v34 = vshrl.u32 %v33, 7
  %v35 = vadd.s32 %v34, 16
  %36 = vset.pattern.permute.xlu0 %v35
  %37 = vperm.xlu0 %36, %v20
  %v38 = vpop.permute.xlu0 %37
  %v39 = vlaneseq
  %v40 = vshrl.u32 %v39, 7
  %v41 = vadd.s32 %v40, 24
  %42 = vset.pattern.permute.xlu0 %v41
  %43 = vperm.xlu0 %42, %v20
  %v44 = vpop.permute.xlu0 %43
  %v45 = vlaneseq
  %v46 = vshrl.u32 %v45, 7
  %v47 = vadd.s32 %v46, 32
  %48 = vset.pattern.permute.xlu0 %v47
  %49 = vperm.xlu0 %48, %v20
  %v50 = vpop.permute.xlu0 %49
  %v51 = vlaneseq
  %v52 = vshrl.u32 %v51, 7
  %v53 = vadd.s32 %v52, 40
  %54 = vset.pattern.permute.xlu0 %v53
  %55 = vperm.xlu0 %54, %v20
  %v56 = vpop.permute.xlu0 %55
  %v57 = vlaneseq
  %v58 = vshrl.u32 %v57, 7
  %v59 = vadd.s32 %v58, 48
  %60 = vset.pattern.permute.xlu0 %v59
  %61 = vperm.xlu0 %60, %v20
  %v62 = vpop.permute.xlu0 %61
  %v63 = vlaneseq
  %v64 = vshrl.u32 %v63, 7
  %v65 = vadd.s32 %v64, 56
  %66 = vset.pattern.permute.xlu0 %v65
  %67 = vperm.xlu0 %66, %v20
  %v68 = vpop.permute.xlu0 %67
  %v69 = vlaneseq
  %v70 = vshrl.u32 %v69, 7
  %v71 = vadd.s32 %v70, 64
  %72 = vset.pattern.permute.xlu0 %v71
  %73 = vperm.xlu0 %72, %v20
  %v74 = vpop.permute.xlu0 %73
  %v75 = vlaneseq
  %v76 = vshrl.u32 %v75, 7
  %v77 = vadd.s32 %v76, 72
  %78 = vset.pattern.permute.xlu0 %v77
  %79 = vperm.xlu0 %78, %v20
  %v80 = vpop.permute.xlu0 %79
  %v81 = vlaneseq
  %v82 = vshrl.u32 %v81, 7
  %v83 = vadd.s32 %v82, 80
  %84 = vset.pattern.permute.xlu0 %v83
  %85 = vperm.xlu0 %84, %v20
  %v86 = vpop.permute.xlu0 %85
  %v87 = vlaneseq
  %v88 = vshrl.u32 %v87, 7
  %v89 = vadd.s32 %v88, 88
  %90 = vset.pattern.permute.xlu0 %v89
  %91 = vperm.xlu0 %90, %v20
  %v92 = vpop.permute.xlu0 %91
  %v93 = vlaneseq
  %v94 = vshrl.u32 %v93, 7
  %v95 = vadd.s32 %v94, 96
  %96 = vset.pattern.permute.xlu0 %v95
  %97 = vperm.xlu0 %96, %v20
  %v98 = vpop.permute.xlu0 %97
  %v99 = vlaneseq
  %v100 = vshrl.u32 %v99, 7
  %v101 = vadd.s32 %v100, 104
  %102 = vset.pattern.permute.xlu0 %v101
  %103 = vperm.xlu0 %102, %v20
  %v104 = vpop.permute.xlu0 %103
  %v105 = vlaneseq
  %v106 = vshrl.u32 %v105, 7
  %v107 = vadd.s32 %v106, 112
  %108 = vset.pattern.permute.xlu0 %v107
  %109 = vperm.xlu0 %108, %v20
  %v110 = vpop.permute.xlu0 %109
  %v111 = vlaneseq
  %v112 = vshrl.u32 %v111, 7
  %v113 = vadd.s32 %v112, 120
  %114 = vset.pattern.permute.xlu0 %v113
  %115 = vperm.xlu0 %114, %v20
  %v116 = vpop.permute.xlu0 %115
  %v117 = vperm.slane %v15, 0
  %v118 = vlaneseq
  %v119 = vshrl.u32 %v118, 7
  %121 = vset.pattern.permute.xlu0 %v119
  %122 = vperm.xlu0 %121, %v117
  %v123 = vpop.permute.xlu0 %122
  %v124 = vlaneseq
  %v125 = vshrl.u32 %v124, 7
  %v126 = vadd.s32 %v125, 8
  %127 = vset.pattern.permute.xlu0 %v126
  %128 = vperm.xlu0 %127, %v117
  %v129 = vpop.permute.xlu0 %128
  %v130 = vlaneseq
  %v131 = vshrl.u32 %v130, 7
  %v132 = vadd.s32 %v131, 16
  %133 = vset.pattern.permute.xlu0 %v132
  %134 = vperm.xlu0 %133, %v117
  %v135 = vpop.permute.xlu0 %134
  %v136 = vlaneseq
  %v137 = vshrl.u32 %v136, 7
  %v138 = vadd.s32 %v137, 24
  %139 = vset.pattern.permute.xlu0 %v138
  %140 = vperm.xlu0 %139, %v117
  %v141 = vpop.permute.xlu0 %140
  %v142 = vlaneseq
  %v143 = vshrl.u32 %v142, 7
  %v144 = vadd.s32 %v143, 32
  %145 = vset.pattern.permute.xlu0 %v144
  %146 = vperm.xlu0 %145, %v117
  %v147 = vpop.permute.xlu0 %146
  %v148 = vlaneseq
  %v149 = vshrl.u32 %v148, 7
  %v150 = vadd.s32 %v149, 40
  %151 = vset.pattern.permute.xlu0 %v150
  %152 = vperm.xlu0 %151, %v117
  %v153 = vpop.permute.xlu0 %152
  %v154 = vlaneseq
  %v155 = vshrl.u32 %v154, 7
  %v156 = vadd.s32 %v155, 48
  %157 = vset.pattern.permute.xlu0 %v156
  %158 = vperm.xlu0 %157, %v117
  %v159 = vpop.permute.xlu0 %158
  %v160 = vlaneseq
  %v161 = vshrl.u32 %v160, 7
  %v162 = vadd.s32 %v161, 56
  %163 = vset.pattern.permute.xlu0 %v162
  %164 = vperm.xlu0 %163, %v117
  %v165 = vpop.permute.xlu0 %164
  %v166 = vlaneseq
  %v167 = vshrl.u32 %v166, 7
  %v168 = vadd.s32 %v167, 64
  %169 = vset.pattern.permute.xlu0 %v168
  %170 = vperm.xlu0 %169, %v117
  %v171 = vpop.permute.xlu0 %170
  %v172 = vlaneseq
  %v173 = vshrl.u32 %v172, 7
  %v174 = vadd.s32 %v173, 72
  %175 = vset.pattern.permute.xlu0 %v174
  %176 = vperm.xlu0 %175, %v117
  %v177 = vpop.permute.xlu0 %176
  %v178 = vlaneseq
  %v179 = vshrl.u32 %v178, 7
  %v180 = vadd.s32 %v179, 80
  %181 = vset.pattern.permute.xlu0 %v180
  %182 = vperm.xlu0 %181, %v117
  %v183 = vpop.permute.xlu0 %182
  %v184 = vlaneseq
  %v185 = vshrl.u32 %v184, 7
  %v186 = vadd.s32 %v185, 88
  %187 = vset.pattern.permute.xlu0 %v186
  %188 = vperm.xlu0 %187, %v117
  %v189 = vpop.permute.xlu0 %188
  %v190 = vlaneseq
  %v191 = vshrl.u32 %v190, 7
  %v192 = vadd.s32 %v191, 96
  %193 = vset.pattern.permute.xlu0 %v192
  %194 = vperm.xlu0 %193, %v117
  %v195 = vpop.permute.xlu0 %194
  %v196 = vlaneseq
  %v197 = vshrl.u32 %v196, 7
  %v198 = vadd.s32 %v197, 104
  %199 = vset.pattern.permute.xlu0 %v198
  %200 = vperm.xlu0 %199, %v117
  %v201 = vpop.permute.xlu0 %200
  %v202 = vlaneseq
  %v203 = vshrl.u32 %v202, 7
  %v204 = vadd.s32 %v203, 112
  %205 = vset.pattern.permute.xlu0 %v204
  %206 = vperm.xlu0 %205, %v117
  %v207 = vpop.permute.xlu0 %206
  %v208 = vlaneseq
  %v209 = vshrl.u32 %v208, 7
  %v210 = vadd.s32 %v209, 120
  %211 = vset.pattern.permute.xlu0 %v210
  %212 = vperm.xlu0 %211, %v117
  %v213 = vpop.permute.xlu0 %212
  %v214 = vperm.slane %v14, 1
  %v215 = vlaneseq
  %v216 = vshrl.u32 %v215, 7
  %218 = vset.pattern.permute.xlu0 %v216
  %219 = vperm.xlu0 %218, %v214
  %v220 = vpop.permute.xlu0 %219
  %v221 = vlaneseq
  %v222 = vshrl.u32 %v221, 7
  %v223 = vadd.s32 %v222, 8
  %224 = vset.pattern.permute.xlu0 %v223
  %225 = vperm.xlu0 %224, %v214
  %v226 = vpop.permute.xlu0 %225
  %v227 = vlaneseq
  %v228 = vshrl.u32 %v227, 7
  %v229 = vadd.s32 %v228, 16
  %230 = vset.pattern.permute.xlu0 %v229
  %231 = vperm.xlu0 %230, %v214
  %v232 = vpop.permute.xlu0 %231
  %v233 = vlaneseq
  %v234 = vshrl.u32 %v233, 7
  %v235 = vadd.s32 %v234, 24
  %236 = vset.pattern.permute.xlu0 %v235
  %237 = vperm.xlu0 %236, %v214
  %v238 = vpop.permute.xlu0 %237
  %v239 = vlaneseq
  %v240 = vshrl.u32 %v239, 7
  %v241 = vadd.s32 %v240, 32
  %242 = vset.pattern.permute.xlu0 %v241
  %243 = vperm.xlu0 %242, %v214
  %v244 = vpop.permute.xlu0 %243
  %v245 = vlaneseq
  %v246 = vshrl.u32 %v245, 7
  %v247 = vadd.s32 %v246, 40
  %248 = vset.pattern.permute.xlu0 %v247
  %249 = vperm.xlu0 %248, %v214
  %v250 = vpop.permute.xlu0 %249
  %v251 = vlaneseq
  %v252 = vshrl.u32 %v251, 7
  %v253 = vadd.s32 %v252, 48
  %254 = vset.pattern.permute.xlu0 %v253
  %255 = vperm.xlu0 %254, %v214
  %v256 = vpop.permute.xlu0 %255
  %v257 = vlaneseq
  %v258 = vshrl.u32 %v257, 7
  %v259 = vadd.s32 %v258, 56
  %260 = vset.pattern.permute.xlu0 %v259
  %261 = vperm.xlu0 %260, %v214
  %v262 = vpop.permute.xlu0 %261
  %v263 = vlaneseq
  %v264 = vshrl.u32 %v263, 7
  %v265 = vadd.s32 %v264, 64
  %266 = vset.pattern.permute.xlu0 %v265
  %267 = vperm.xlu0 %266, %v214
  %v268 = vpop.permute.xlu0 %267
  %v269 = vlaneseq
  %v270 = vshrl.u32 %v269, 7
  %v271 = vadd.s32 %v270, 72
  %272 = vset.pattern.permute.xlu0 %v271
  %273 = vperm.xlu0 %272, %v214
  %v274 = vpop.permute.xlu0 %273
  %v275 = vlaneseq
  %v276 = vshrl.u32 %v275, 7
  %v277 = vadd.s32 %v276, 80
  %278 = vset.pattern.permute.xlu0 %v277
  %279 = vperm.xlu0 %278, %v214
  %v280 = vpop.permute.xlu0 %279
  %v281 = vlaneseq
  %v282 = vshrl.u32 %v281, 7
  %v283 = vadd.s32 %v282, 88
  %284 = vset.pattern.permute.xlu0 %v283
  %285 = vperm.xlu0 %284, %v214
  %v286 = vpop.permute.xlu0 %285
  %v287 = vlaneseq
  %v288 = vshrl.u32 %v287, 7
  %v289 = vadd.s32 %v288, 96
  %290 = vset.pattern.permute.xlu0 %v289
  %291 = vperm.xlu0 %290, %v214
  %v292 = vpop.permute.xlu0 %291
  %v293 = vlaneseq
  %v294 = vshrl.u32 %v293, 7
  %v295 = vadd.s32 %v294, 104
  %296 = vset.pattern.permute.xlu0 %v295
  %297 = vperm.xlu0 %296, %v214
  %v298 = vpop.permute.xlu0 %297
  %v299 = vlaneseq
  %v300 = vshrl.u32 %v299, 7
  %v301 = vadd.s32 %v300, 112
  %302 = vset.pattern.permute.xlu0 %v301
  %303 = vperm.xlu0 %302, %v214
  %v304 = vpop.permute.xlu0 %303
  %v305 = vlaneseq
  %v306 = vshrl.u32 %v305, 7
  %v307 = vadd.s32 %v306, 120
  %308 = vset.pattern.permute.xlu0 %v307
  %309 = vperm.xlu0 %308, %v214
  %v310 = vpop.permute.xlu0 %309
  %v311 = vperm.slane %v15, 1
  %v312 = vlaneseq
  %v313 = vshrl.u32 %v312, 7
  %315 = vset.pattern.permute.xlu0 %v313
  %316 = vperm.xlu0 %315, %v311
  %v317 = vpop.permute.xlu0 %316
  %v318 = vlaneseq
  %v319 = vshrl.u32 %v318, 7
  %v320 = vadd.s32 %v319, 8
  %321 = vset.pattern.permute.xlu0 %v320
  %322 = vperm.xlu0 %321, %v311
  %v323 = vpop.permute.xlu0 %322
  %v324 = vlaneseq
  %v325 = vshrl.u32 %v324, 7
  %v326 = vadd.s32 %v325, 16
  %327 = vset.pattern.permute.xlu0 %v326
  %328 = vperm.xlu0 %327, %v311
  %v329 = vpop.permute.xlu0 %328
  %v330 = vlaneseq
  %v331 = vshrl.u32 %v330, 7
  %v332 = vadd.s32 %v331, 24
  %333 = vset.pattern.permute.xlu0 %v332
  %334 = vperm.xlu0 %333, %v311
  %v335 = vpop.permute.xlu0 %334
  %v336 = vlaneseq
  %v337 = vshrl.u32 %v336, 7
  %v338 = vadd.s32 %v337, 32
  %339 = vset.pattern.permute.xlu0 %v338
  %340 = vperm.xlu0 %339, %v311
  %v341 = vpop.permute.xlu0 %340
  %v342 = vlaneseq
  %v343 = vshrl.u32 %v342, 7
  %v344 = vadd.s32 %v343, 40
  %345 = vset.pattern.permute.xlu0 %v344
  %346 = vperm.xlu0 %345, %v311
  %v347 = vpop.permute.xlu0 %346
  %v348 = vlaneseq
  %v349 = vshrl.u32 %v348, 7
  %v350 = vadd.s32 %v349, 48
  %351 = vset.pattern.permute.xlu0 %v350
  %352 = vperm.xlu0 %351, %v311
  %v353 = vpop.permute.xlu0 %352
  %v354 = vlaneseq
  %v355 = vshrl.u32 %v354, 7
  %v356 = vadd.s32 %v355, 56
  %357 = vset.pattern.permute.xlu0 %v356
  %358 = vperm.xlu0 %357, %v311
  %v359 = vpop.permute.xlu0 %358
  %v360 = vlaneseq
  %v361 = vshrl.u32 %v360, 7
  %v362 = vadd.s32 %v361, 64
  %363 = vset.pattern.permute.xlu0 %v362
  %364 = vperm.xlu0 %363, %v311
  %v365 = vpop.permute.xlu0 %364
  %v366 = vlaneseq
  %v367 = vshrl.u32 %v366, 7
  %v368 = vadd.s32 %v367, 72
  %369 = vset.pattern.permute.xlu0 %v368
  %370 = vperm.xlu0 %369, %v311
  %v371 = vpop.permute.xlu0 %370
  %v372 = vlaneseq
  %v373 = vshrl.u32 %v372, 7
  %v374 = vadd.s32 %v373, 80
  %375 = vset.pattern.permute.xlu0 %v374
  %376 = vperm.xlu0 %375, %v311
  %v377 = vpop.permute.xlu0 %376
  %v378 = vlaneseq
  %v379 = vshrl.u32 %v378, 7
  %v380 = vadd.s32 %v379, 88
  %381 = vset.pattern.permute.xlu0 %v380
  %382 = vperm.xlu0 %381, %v311
  %v383 = vpop.permute.xlu0 %382
  %v384 = vlaneseq
  %v385 = vshrl.u32 %v384, 7
  %v386 = vadd.s32 %v385, 96
  %387 = vset.pattern.permute.xlu0 %v386
  %388 = vperm.xlu0 %387, %v311
  %v389 = vpop.permute.xlu0 %388
  %v390 = vlaneseq
  %v391 = vshrl.u32 %v390, 7
  %v392 = vadd.s32 %v391, 104
  %393 = vset.pattern.permute.xlu0 %v392
  %394 = vperm.xlu0 %393, %v311
  %v395 = vpop.permute.xlu0 %394
  %v396 = vlaneseq
  %v397 = vshrl.u32 %v396, 7
  %v398 = vadd.s32 %v397, 112
  %399 = vset.pattern.permute.xlu0 %v398
  %400 = vperm.xlu0 %399, %v311
  %v401 = vpop.permute.xlu0 %400
  %v402 = vlaneseq
  %v403 = vshrl.u32 %v402, 7
  %v404 = vadd.s32 %v403, 120
  %405 = vset.pattern.permute.xlu0 %v404
  %406 = vperm.xlu0 %405, %v311
  %v407 = vpop.permute.xlu0 %406
  %v408 = vperm.slane %v14, 2
  %v409 = vlaneseq
  %v410 = vshrl.u32 %v409, 7
  %412 = vset.pattern.permute.xlu0 %v410
  %413 = vperm.xlu0 %412, %v408
  %v414 = vpop.permute.xlu0 %413
  %v415 = vlaneseq
  %v416 = vshrl.u32 %v415, 7
  %v417 = vadd.s32 %v416, 8
  %418 = vset.pattern.permute.xlu0 %v417
  %419 = vperm.xlu0 %418, %v408
  %v420 = vpop.permute.xlu0 %419
  %v421 = vlaneseq
  %v422 = vshrl.u32 %v421, 7
  %v423 = vadd.s32 %v422, 16
  %424 = vset.pattern.permute.xlu0 %v423
  %425 = vperm.xlu0 %424, %v408
  %v426 = vpop.permute.xlu0 %425
  %v427 = vlaneseq
  %v428 = vshrl.u32 %v427, 7
  %v429 = vadd.s32 %v428, 24
  %430 = vset.pattern.permute.xlu0 %v429
  %431 = vperm.xlu0 %430, %v408
  %v432 = vpop.permute.xlu0 %431
  %v433 = vlaneseq
  %v434 = vshrl.u32 %v433, 7
  %v435 = vadd.s32 %v434, 32
  %436 = vset.pattern.permute.xlu0 %v435
  %437 = vperm.xlu0 %436, %v408
  %v438 = vpop.permute.xlu0 %437
  %v439 = vlaneseq
  %v440 = vshrl.u32 %v439, 7
  %v441 = vadd.s32 %v440, 40
  %442 = vset.pattern.permute.xlu0 %v441
  %443 = vperm.xlu0 %442, %v408
  %v444 = vpop.permute.xlu0 %443
  %v445 = vlaneseq
  %v446 = vshrl.u32 %v445, 7
  %v447 = vadd.s32 %v446, 48
  %448 = vset.pattern.permute.xlu0 %v447
  %449 = vperm.xlu0 %448, %v408
  %v450 = vpop.permute.xlu0 %449
  %v451 = vlaneseq
  %v452 = vshrl.u32 %v451, 7
  %v453 = vadd.s32 %v452, 56
  %454 = vset.pattern.permute.xlu0 %v453
  %455 = vperm.xlu0 %454, %v408
  %v456 = vpop.permute.xlu0 %455
  %v457 = vlaneseq
  %v458 = vshrl.u32 %v457, 7
  %v459 = vadd.s32 %v458, 64
  %460 = vset.pattern.permute.xlu0 %v459
  %461 = vperm.xlu0 %460, %v408
  %v462 = vpop.permute.xlu0 %461
  %v463 = vlaneseq
  %v464 = vshrl.u32 %v463, 7
  %v465 = vadd.s32 %v464, 72
  %466 = vset.pattern.permute.xlu0 %v465
  %467 = vperm.xlu0 %466, %v408
  %v468 = vpop.permute.xlu0 %467
  %v469 = vlaneseq
  %v470 = vshrl.u32 %v469, 7
  %v471 = vadd.s32 %v470, 80
  %472 = vset.pattern.permute.xlu0 %v471
  %473 = vperm.xlu0 %472, %v408
  %v474 = vpop.permute.xlu0 %473
  %v475 = vlaneseq
  %v476 = vshrl.u32 %v475, 7
  %v477 = vadd.s32 %v476, 88
  %478 = vset.pattern.permute.xlu0 %v477
  %479 = vperm.xlu0 %478, %v408
  %v480 = vpop.permute.xlu0 %479
  %v481 = vlaneseq
  %v482 = vshrl.u32 %v481, 7
  %v483 = vadd.s32 %v482, 96
  %484 = vset.pattern.permute.xlu0 %v483
  %485 = vperm.xlu0 %484, %v408
  %v486 = vpop.permute.xlu0 %485
  %v487 = vlaneseq
  %v488 = vshrl.u32 %v487, 7
  %v489 = vadd.s32 %v488, 104
  %490 = vset.pattern.permute.xlu0 %v489
  %491 = vperm.xlu0 %490, %v408
  %v492 = vpop.permute.xlu0 %491
  %v493 = vlaneseq
  %v494 = vshrl.u32 %v493, 7
  %v495 = vadd.s32 %v494, 112
  %496 = vset.pattern.permute.xlu0 %v495
  %497 = vperm.xlu0 %496, %v408
  %v498 = vpop.permute.xlu0 %497
  %v499 = vlaneseq
  %v500 = vshrl.u32 %v499, 7
  %v501 = vadd.s32 %v500, 120
  %502 = vset.pattern.permute.xlu0 %v501
  %503 = vperm.xlu0 %502, %v408
  %v504 = vpop.permute.xlu0 %503
  %v505 = vperm.slane %v15, 2
  %v506 = vlaneseq
  %v507 = vshrl.u32 %v506, 7
  %509 = vset.pattern.permute.xlu0 %v507
  %510 = vperm.xlu0 %509, %v505
  %v511 = vpop.permute.xlu0 %510
  %v512 = vlaneseq
  %v513 = vshrl.u32 %v512, 7
  %v514 = vadd.s32 %v513, 8
  %515 = vset.pattern.permute.xlu0 %v514
  %516 = vperm.xlu0 %515, %v505
  %v517 = vpop.permute.xlu0 %516
  %v518 = vlaneseq
  %v519 = vshrl.u32 %v518, 7
  %v520 = vadd.s32 %v519, 16
  %521 = vset.pattern.permute.xlu0 %v520
  %522 = vperm.xlu0 %521, %v505
  %v523 = vpop.permute.xlu0 %522
  %v524 = vlaneseq
  %v525 = vshrl.u32 %v524, 7
  %v526 = vadd.s32 %v525, 24
  %527 = vset.pattern.permute.xlu0 %v526
  %528 = vperm.xlu0 %527, %v505
  %v529 = vpop.permute.xlu0 %528
  %v530 = vlaneseq
  %v531 = vshrl.u32 %v530, 7
  %v532 = vadd.s32 %v531, 32
  %533 = vset.pattern.permute.xlu0 %v532
  %534 = vperm.xlu0 %533, %v505
  %v535 = vpop.permute.xlu0 %534
  %v536 = vlaneseq
  %v537 = vshrl.u32 %v536, 7
  %v538 = vadd.s32 %v537, 40
  %539 = vset.pattern.permute.xlu0 %v538
  %540 = vperm.xlu0 %539, %v505
  %v541 = vpop.permute.xlu0 %540
  %v542 = vlaneseq
  %v543 = vshrl.u32 %v542, 7
  %v544 = vadd.s32 %v543, 48
  %545 = vset.pattern.permute.xlu0 %v544
  %546 = vperm.xlu0 %545, %v505
  %v547 = vpop.permute.xlu0 %546
  %v548 = vlaneseq
  %v549 = vshrl.u32 %v548, 7
  %v550 = vadd.s32 %v549, 56
  %551 = vset.pattern.permute.xlu0 %v550
  %552 = vperm.xlu0 %551, %v505
  %v553 = vpop.permute.xlu0 %552
  %v554 = vlaneseq
  %v555 = vshrl.u32 %v554, 7
  %v556 = vadd.s32 %v555, 64
  %557 = vset.pattern.permute.xlu0 %v556
  %558 = vperm.xlu0 %557, %v505
  %v559 = vpop.permute.xlu0 %558
  %v560 = vlaneseq
  %v561 = vshrl.u32 %v560, 7
  %v562 = vadd.s32 %v561, 72
  %563 = vset.pattern.permute.xlu0 %v562
  %564 = vperm.xlu0 %563, %v505
  %v565 = vpop.permute.xlu0 %564
  %v566 = vlaneseq
  %v567 = vshrl.u32 %v566, 7
  %v568 = vadd.s32 %v567, 80
  %569 = vset.pattern.permute.xlu0 %v568
  %570 = vperm.xlu0 %569, %v505
  %v571 = vpop.permute.xlu0 %570
  %v572 = vlaneseq
  %v573 = vshrl.u32 %v572, 7
  %v574 = vadd.s32 %v573, 88
  %575 = vset.pattern.permute.xlu0 %v574
  %576 = vperm.xlu0 %575, %v505
  %v577 = vpop.permute.xlu0 %576
  %v578 = vlaneseq
  %v579 = vshrl.u32 %v578, 7
  %v580 = vadd.s32 %v579, 96
  %581 = vset.pattern.permute.xlu0 %v580
  %582 = vperm.xlu0 %581, %v505
  %v583 = vpop.permute.xlu0 %582
  %v584 = vlaneseq
  %v585 = vshrl.u32 %v584, 7
  %v586 = vadd.s32 %v585, 104
  %587 = vset.pattern.permute.xlu0 %v586
  %588 = vperm.xlu0 %587, %v505
  %v589 = vpop.permute.xlu0 %588
  %v590 = vlaneseq
  %v591 = vshrl.u32 %v590, 7
  %v592 = vadd.s32 %v591, 112
  %593 = vset.pattern.permute.xlu0 %v592
  %594 = vperm.xlu0 %593, %v505
  %v595 = vpop.permute.xlu0 %594
  %v596 = vlaneseq
  %v597 = vshrl.u32 %v596, 7
  %v598 = vadd.s32 %v597, 120
  %599 = vset.pattern.permute.xlu0 %v598
  %600 = vperm.xlu0 %599, %v505
  %v601 = vpop.permute.xlu0 %600
  %v602 = vperm.slane %v14, 3
  %v603 = vlaneseq
  %v604 = vshrl.u32 %v603, 7
  %606 = vset.pattern.permute.xlu0 %v604
  %607 = vperm.xlu0 %606, %v602
  %v608 = vpop.permute.xlu0 %607
  %v609 = vlaneseq
  %v610 = vshrl.u32 %v609, 7
  %v611 = vadd.s32 %v610, 8
  %612 = vset.pattern.permute.xlu0 %v611
  %613 = vperm.xlu0 %612, %v602
  %v614 = vpop.permute.xlu0 %613
  %v615 = vlaneseq
  %v616 = vshrl.u32 %v615, 7
  %v617 = vadd.s32 %v616, 16
  %618 = vset.pattern.permute.xlu0 %v617
  %619 = vperm.xlu0 %618, %v602
  %v620 = vpop.permute.xlu0 %619
  %v621 = vlaneseq
  %v622 = vshrl.u32 %v621, 7
  %v623 = vadd.s32 %v622, 24
  %624 = vset.pattern.permute.xlu0 %v623
  %625 = vperm.xlu0 %624, %v602
  %v626 = vpop.permute.xlu0 %625
  %v627 = vlaneseq
  %v628 = vshrl.u32 %v627, 7
  %v629 = vadd.s32 %v628, 32
  %630 = vset.pattern.permute.xlu0 %v629
  %631 = vperm.xlu0 %630, %v602
  %v632 = vpop.permute.xlu0 %631
  %v633 = vlaneseq
  %v634 = vshrl.u32 %v633, 7
  %v635 = vadd.s32 %v634, 40
  %636 = vset.pattern.permute.xlu0 %v635
  %637 = vperm.xlu0 %636, %v602
  %v638 = vpop.permute.xlu0 %637
  %v639 = vlaneseq
  %v640 = vshrl.u32 %v639, 7
  %v641 = vadd.s32 %v640, 48
  %642 = vset.pattern.permute.xlu0 %v641
  %643 = vperm.xlu0 %642, %v602
  %v644 = vpop.permute.xlu0 %643
  %v645 = vlaneseq
  %v646 = vshrl.u32 %v645, 7
  %v647 = vadd.s32 %v646, 56
  %648 = vset.pattern.permute.xlu0 %v647
  %649 = vperm.xlu0 %648, %v602
  %v650 = vpop.permute.xlu0 %649
  %v651 = vlaneseq
  %v652 = vshrl.u32 %v651, 7
  %v653 = vadd.s32 %v652, 64
  %654 = vset.pattern.permute.xlu0 %v653
  %655 = vperm.xlu0 %654, %v602
  %v656 = vpop.permute.xlu0 %655
  %v657 = vlaneseq
  %v658 = vshrl.u32 %v657, 7
  %v659 = vadd.s32 %v658, 72
  %660 = vset.pattern.permute.xlu0 %v659
  %661 = vperm.xlu0 %660, %v602
  %v662 = vpop.permute.xlu0 %661
  %v663 = vlaneseq
  %v664 = vshrl.u32 %v663, 7
  %v665 = vadd.s32 %v664, 80
  %666 = vset.pattern.permute.xlu0 %v665
  %667 = vperm.xlu0 %666, %v602
  %v668 = vpop.permute.xlu0 %667
  %v669 = vlaneseq
  %v670 = vshrl.u32 %v669, 7
  %v671 = vadd.s32 %v670, 88
  %672 = vset.pattern.permute.xlu0 %v671
  %673 = vperm.xlu0 %672, %v602
  %v674 = vpop.permute.xlu0 %673
  %v675 = vlaneseq
  %v676 = vshrl.u32 %v675, 7
  %v677 = vadd.s32 %v676, 96
  %678 = vset.pattern.permute.xlu0 %v677
  %679 = vperm.xlu0 %678, %v602
  %v680 = vpop.permute.xlu0 %679
  %v681 = vlaneseq
  %v682 = vshrl.u32 %v681, 7
  %v683 = vadd.s32 %v682, 104
  %684 = vset.pattern.permute.xlu0 %v683
  %685 = vperm.xlu0 %684, %v602
  %v686 = vpop.permute.xlu0 %685
  %v687 = vlaneseq
  %v688 = vshrl.u32 %v687, 7
  %v689 = vadd.s32 %v688, 112
  %690 = vset.pattern.permute.xlu0 %v689
  %691 = vperm.xlu0 %690, %v602
  %v692 = vpop.permute.xlu0 %691
  %v693 = vlaneseq
  %v694 = vshrl.u32 %v693, 7
  %v695 = vadd.s32 %v694, 120
  %696 = vset.pattern.permute.xlu0 %v695
  %697 = vperm.xlu0 %696, %v602
  %v698 = vpop.permute.xlu0 %697
  %v699 = vperm.slane %v15, 3
  %v700 = vlaneseq
  %v701 = vshrl.u32 %v700, 7
  %703 = vset.pattern.permute.xlu0 %v701
  %704 = vperm.xlu0 %703, %v699
  %v705 = vpop.permute.xlu0 %704
  %v706 = vlaneseq
  %v707 = vshrl.u32 %v706, 7
  %v708 = vadd.s32 %v707, 8
  %709 = vset.pattern.permute.xlu0 %v708
  %710 = vperm.xlu0 %709, %v699
  %v711 = vpop.permute.xlu0 %710
  %v712 = vlaneseq
  %v713 = vshrl.u32 %v712, 7
  %v714 = vadd.s32 %v713, 16
  %715 = vset.pattern.permute.xlu0 %v714
  %716 = vperm.xlu0 %715, %v699
  %v717 = vpop.permute.xlu0 %716
  %v718 = vlaneseq
  %v719 = vshrl.u32 %v718, 7
  %v720 = vadd.s32 %v719, 24
  %721 = vset.pattern.permute.xlu0 %v720
  %722 = vperm.xlu0 %721, %v699
  %v723 = vpop.permute.xlu0 %722
  %v724 = vlaneseq
  %v725 = vshrl.u32 %v724, 7
  %v726 = vadd.s32 %v725, 32
  %727 = vset.pattern.permute.xlu0 %v726
  %728 = vperm.xlu0 %727, %v699
  %v729 = vpop.permute.xlu0 %728
  %v730 = vlaneseq
  %v731 = vshrl.u32 %v730, 7
  %v732 = vadd.s32 %v731, 40
  %733 = vset.pattern.permute.xlu0 %v732
  %734 = vperm.xlu0 %733, %v699
  %v735 = vpop.permute.xlu0 %734
  %v736 = vlaneseq
  %v737 = vshrl.u32 %v736, 7
  %v738 = vadd.s32 %v737, 48
  %739 = vset.pattern.permute.xlu0 %v738
  %740 = vperm.xlu0 %739, %v699
  %v741 = vpop.permute.xlu0 %740
  %v742 = vlaneseq
  %v743 = vshrl.u32 %v742, 7
  %v744 = vadd.s32 %v743, 56
  %745 = vset.pattern.permute.xlu0 %v744
  %746 = vperm.xlu0 %745, %v699
  %v747 = vpop.permute.xlu0 %746
  %v748 = vlaneseq
  %v749 = vshrl.u32 %v748, 7
  %v750 = vadd.s32 %v749, 64
  %751 = vset.pattern.permute.xlu0 %v750
  %752 = vperm.xlu0 %751, %v699
  %v753 = vpop.permute.xlu0 %752
  %v754 = vlaneseq
  %v755 = vshrl.u32 %v754, 7
  %v756 = vadd.s32 %v755, 72
  %757 = vset.pattern.permute.xlu0 %v756
  %758 = vperm.xlu0 %757, %v699
  %v759 = vpop.permute.xlu0 %758
  %v760 = vlaneseq
  %v761 = vshrl.u32 %v760, 7
  %v762 = vadd.s32 %v761, 80
  %763 = vset.pattern.permute.xlu0 %v762
  %764 = vperm.xlu0 %763, %v699
  %v765 = vpop.permute.xlu0 %764
  %v766 = vlaneseq
  %v767 = vshrl.u32 %v766, 7
  %v768 = vadd.s32 %v767, 88
  %769 = vset.pattern.permute.xlu0 %v768
  %770 = vperm.xlu0 %769, %v699
  %v771 = vpop.permute.xlu0 %770
  %v772 = vlaneseq
  %v773 = vshrl.u32 %v772, 7
  %v774 = vadd.s32 %v773, 96
  %775 = vset.pattern.permute.xlu0 %v774
  %776 = vperm.xlu0 %775, %v699
  %v777 = vpop.permute.xlu0 %776
  %v778 = vlaneseq
  %v779 = vshrl.u32 %v778, 7
  %v780 = vadd.s32 %v779, 104
  %781 = vset.pattern.permute.xlu0 %v780
  %782 = vperm.xlu0 %781, %v699
  %v783 = vpop.permute.xlu0 %782
  %v784 = vlaneseq
  %v785 = vshrl.u32 %v784, 7
  %v786 = vadd.s32 %v785, 112
  %787 = vset.pattern.permute.xlu0 %v786
  %788 = vperm.xlu0 %787, %v699
  %v789 = vpop.permute.xlu0 %788
  %v790 = vlaneseq
  %v791 = vshrl.u32 %v790, 7
  %v792 = vadd.s32 %v791, 120
  %793 = vset.pattern.permute.xlu0 %v792
  %794 = vperm.xlu0 %793, %v699
  %v795 = vpop.permute.xlu0 %794
  %v796 = vperm.slane %v14, 4
  %v797 = vlaneseq
  %v798 = vshrl.u32 %v797, 7
  %800 = vset.pattern.permute.xlu0 %v798
  %801 = vperm.xlu0 %800, %v796
  %v802 = vpop.permute.xlu0 %801
  %v803 = vlaneseq
  %v804 = vshrl.u32 %v803, 7
  %v805 = vadd.s32 %v804, 8
  %806 = vset.pattern.permute.xlu0 %v805
  %807 = vperm.xlu0 %806, %v796
  %v808 = vpop.permute.xlu0 %807
  %v809 = vlaneseq
  %v810 = vshrl.u32 %v809, 7
  %v811 = vadd.s32 %v810, 16
  %812 = vset.pattern.permute.xlu0 %v811
  %813 = vperm.xlu0 %812, %v796
  %v814 = vpop.permute.xlu0 %813
  %v815 = vlaneseq
  %v816 = vshrl.u32 %v815, 7
  %v817 = vadd.s32 %v816, 24
  %818 = vset.pattern.permute.xlu0 %v817
  %819 = vperm.xlu0 %818, %v796
  %v820 = vpop.permute.xlu0 %819
  %v821 = vlaneseq
  %v822 = vshrl.u32 %v821, 7
  %v823 = vadd.s32 %v822, 32
  %824 = vset.pattern.permute.xlu0 %v823
  %825 = vperm.xlu0 %824, %v796
  %v826 = vpop.permute.xlu0 %825
  %v827 = vlaneseq
  %v828 = vshrl.u32 %v827, 7
  %v829 = vadd.s32 %v828, 40
  %830 = vset.pattern.permute.xlu0 %v829
  %831 = vperm.xlu0 %830, %v796
  %v832 = vpop.permute.xlu0 %831
  %v833 = vlaneseq
  %v834 = vshrl.u32 %v833, 7
  %v835 = vadd.s32 %v834, 48
  %836 = vset.pattern.permute.xlu0 %v835
  %837 = vperm.xlu0 %836, %v796
  %v838 = vpop.permute.xlu0 %837
  %v839 = vlaneseq
  %v840 = vshrl.u32 %v839, 7
  %v841 = vadd.s32 %v840, 56
  %842 = vset.pattern.permute.xlu0 %v841
  %843 = vperm.xlu0 %842, %v796
  %v844 = vpop.permute.xlu0 %843
  %v845 = vlaneseq
  %v846 = vshrl.u32 %v845, 7
  %v847 = vadd.s32 %v846, 64
  %848 = vset.pattern.permute.xlu0 %v847
  %849 = vperm.xlu0 %848, %v796
  %v850 = vpop.permute.xlu0 %849
  %v851 = vlaneseq
  %v852 = vshrl.u32 %v851, 7
  %v853 = vadd.s32 %v852, 72
  %854 = vset.pattern.permute.xlu0 %v853
  %855 = vperm.xlu0 %854, %v796
  %v856 = vpop.permute.xlu0 %855
  %v857 = vlaneseq
  %v858 = vshrl.u32 %v857, 7
  %v859 = vadd.s32 %v858, 80
  %860 = vset.pattern.permute.xlu0 %v859
  %861 = vperm.xlu0 %860, %v796
  %v862 = vpop.permute.xlu0 %861
  %v863 = vlaneseq
  %v864 = vshrl.u32 %v863, 7
  %v865 = vadd.s32 %v864, 88
  %866 = vset.pattern.permute.xlu0 %v865
  %867 = vperm.xlu0 %866, %v796
  %v868 = vpop.permute.xlu0 %867
  %v869 = vlaneseq
  %v870 = vshrl.u32 %v869, 7
  %v871 = vadd.s32 %v870, 96
  %872 = vset.pattern.permute.xlu0 %v871
  %873 = vperm.xlu0 %872, %v796
  %v874 = vpop.permute.xlu0 %873
  %v875 = vlaneseq
  %v876 = vshrl.u32 %v875, 7
  %v877 = vadd.s32 %v876, 104
  %878 = vset.pattern.permute.xlu0 %v877
  %879 = vperm.xlu0 %878, %v796
  %v880 = vpop.permute.xlu0 %879
  %v881 = vlaneseq
  %v882 = vshrl.u32 %v881, 7
  %v883 = vadd.s32 %v882, 112
  %884 = vset.pattern.permute.xlu0 %v883
  %885 = vperm.xlu0 %884, %v796
  %v886 = vpop.permute.xlu0 %885
  %v887 = vlaneseq
  %v888 = vshrl.u32 %v887, 7
  %v889 = vadd.s32 %v888, 120
  %890 = vset.pattern.permute.xlu0 %v889
  %891 = vperm.xlu0 %890, %v796
  %v892 = vpop.permute.xlu0 %891
  %v893 = vperm.slane %v15, 4
  %v894 = vlaneseq
  %v895 = vshrl.u32 %v894, 7
  %897 = vset.pattern.permute.xlu0 %v895
  %898 = vperm.xlu0 %897, %v893
  %v899 = vpop.permute.xlu0 %898
  %v900 = vlaneseq
  %v901 = vshrl.u32 %v900, 7
  %v902 = vadd.s32 %v901, 8
  %903 = vset.pattern.permute.xlu0 %v902
  %904 = vperm.xlu0 %903, %v893
  %v905 = vpop.permute.xlu0 %904
  %v906 = vlaneseq
  %v907 = vshrl.u32 %v906, 7
  %v908 = vadd.s32 %v907, 16
  %909 = vset.pattern.permute.xlu0 %v908
  %910 = vperm.xlu0 %909, %v893
  %v911 = vpop.permute.xlu0 %910
  %v912 = vlaneseq
  %v913 = vshrl.u32 %v912, 7
  %v914 = vadd.s32 %v913, 24
  %915 = vset.pattern.permute.xlu0 %v914
  %916 = vperm.xlu0 %915, %v893
  %v917 = vpop.permute.xlu0 %916
  %v918 = vlaneseq
  %v919 = vshrl.u32 %v918, 7
  %v920 = vadd.s32 %v919, 32
  %921 = vset.pattern.permute.xlu0 %v920
  %922 = vperm.xlu0 %921, %v893
  %v923 = vpop.permute.xlu0 %922
  %v924 = vlaneseq
  %v925 = vshrl.u32 %v924, 7
  %v926 = vadd.s32 %v925, 40
  %927 = vset.pattern.permute.xlu0 %v926
  %928 = vperm.xlu0 %927, %v893
  %v929 = vpop.permute.xlu0 %928
  %v930 = vlaneseq
  %v931 = vshrl.u32 %v930, 7
  %v932 = vadd.s32 %v931, 48
  %933 = vset.pattern.permute.xlu0 %v932
  %934 = vperm.xlu0 %933, %v893
  %v935 = vpop.permute.xlu0 %934
  %v936 = vlaneseq
  %v937 = vshrl.u32 %v936, 7
  %v938 = vadd.s32 %v937, 56
  %939 = vset.pattern.permute.xlu0 %v938
  %940 = vperm.xlu0 %939, %v893
  %v941 = vpop.permute.xlu0 %940
  %v942 = vlaneseq
  %v943 = vshrl.u32 %v942, 7
  %v944 = vadd.s32 %v943, 64
  %945 = vset.pattern.permute.xlu0 %v944
  %946 = vperm.xlu0 %945, %v893
  %v947 = vpop.permute.xlu0 %946
  %v948 = vlaneseq
  %v949 = vshrl.u32 %v948, 7
  %v950 = vadd.s32 %v949, 72
  %951 = vset.pattern.permute.xlu0 %v950
  %952 = vperm.xlu0 %951, %v893
  %v953 = vpop.permute.xlu0 %952
  %v954 = vlaneseq
  %v955 = vshrl.u32 %v954, 7
  %v956 = vadd.s32 %v955, 80
  %957 = vset.pattern.permute.xlu0 %v956
  %958 = vperm.xlu0 %957, %v893
  %v959 = vpop.permute.xlu0 %958
  %v960 = vlaneseq
  %v961 = vshrl.u32 %v960, 7
  %v962 = vadd.s32 %v961, 88
  %963 = vset.pattern.permute.xlu0 %v962
  %964 = vperm.xlu0 %963, %v893
  %v965 = vpop.permute.xlu0 %964
  %v966 = vlaneseq
  %v967 = vshrl.u32 %v966, 7
  %v968 = vadd.s32 %v967, 96
  %969 = vset.pattern.permute.xlu0 %v968
  %970 = vperm.xlu0 %969, %v893
  %v971 = vpop.permute.xlu0 %970
  %v972 = vlaneseq
  %v973 = vshrl.u32 %v972, 7
  %v974 = vadd.s32 %v973, 104
  %975 = vset.pattern.permute.xlu0 %v974
  %976 = vperm.xlu0 %975, %v893
  %v977 = vpop.permute.xlu0 %976
  %v978 = vlaneseq
  %v979 = vshrl.u32 %v978, 7
  %v980 = vadd.s32 %v979, 112
  %981 = vset.pattern.permute.xlu0 %v980
  %982 = vperm.xlu0 %981, %v893
  %v983 = vpop.permute.xlu0 %982
  %v984 = vlaneseq
  %v985 = vshrl.u32 %v984, 7
  %v986 = vadd.s32 %v985, 120
  %987 = vset.pattern.permute.xlu0 %v986
  %988 = vperm.xlu0 %987, %v893
  %v989 = vpop.permute.xlu0 %988
  %v990 = vperm.slane %v14, 5
  %v991 = vlaneseq
  %v992 = vshrl.u32 %v991, 7
  %994 = vset.pattern.permute.xlu0 %v992
  %995 = vperm.xlu0 %994, %v990
  %v996 = vpop.permute.xlu0 %995
  %v997 = vlaneseq
  %v998 = vshrl.u32 %v997, 7
  %v999 = vadd.s32 %v998, 8
  %1000 = vset.pattern.permute.xlu0 %v999
  %1001 = vperm.xlu0 %1000, %v990
  %v1002 = vpop.permute.xlu0 %1001
  %v1003 = vlaneseq
  %v1004 = vshrl.u32 %v1003, 7
  %v1005 = vadd.s32 %v1004, 16
  %1006 = vset.pattern.permute.xlu0 %v1005
  %1007 = vperm.xlu0 %1006, %v990
  %v1008 = vpop.permute.xlu0 %1007
  %v1009 = vlaneseq
  %v1010 = vshrl.u32 %v1009, 7
  %v1011 = vadd.s32 %v1010, 24
  %1012 = vset.pattern.permute.xlu0 %v1011
  %1013 = vperm.xlu0 %1012, %v990
  %v1014 = vpop.permute.xlu0 %1013
  %v1015 = vlaneseq
  %v1016 = vshrl.u32 %v1015, 7
  %v1017 = vadd.s32 %v1016, 32
  %1018 = vset.pattern.permute.xlu0 %v1017
  %1019 = vperm.xlu0 %1018, %v990
  %v1020 = vpop.permute.xlu0 %1019
  %v1021 = vlaneseq
  %v1022 = vshrl.u32 %v1021, 7
  %v1023 = vadd.s32 %v1022, 40
  %1024 = vset.pattern.permute.xlu0 %v1023
  %1025 = vperm.xlu0 %1024, %v990
  %v1026 = vpop.permute.xlu0 %1025
  %v1027 = vlaneseq
  %v1028 = vshrl.u32 %v1027, 7
  %v1029 = vadd.s32 %v1028, 48
  %1030 = vset.pattern.permute.xlu0 %v1029
  %1031 = vperm.xlu0 %1030, %v990
  %v1032 = vpop.permute.xlu0 %1031
  %v1033 = vlaneseq
  %v1034 = vshrl.u32 %v1033, 7
  %v1035 = vadd.s32 %v1034, 56
  %1036 = vset.pattern.permute.xlu0 %v1035
  %1037 = vperm.xlu0 %1036, %v990
  %v1038 = vpop.permute.xlu0 %1037
  %v1039 = vlaneseq
  %v1040 = vshrl.u32 %v1039, 7
  %v1041 = vadd.s32 %v1040, 64
  %1042 = vset.pattern.permute.xlu0 %v1041
  %1043 = vperm.xlu0 %1042, %v990
  %v1044 = vpop.permute.xlu0 %1043
  %v1045 = vlaneseq
  %v1046 = vshrl.u32 %v1045, 7
  %v1047 = vadd.s32 %v1046, 72
  %1048 = vset.pattern.permute.xlu0 %v1047
  %1049 = vperm.xlu0 %1048, %v990
  %v1050 = vpop.permute.xlu0 %1049
  %v1051 = vlaneseq
  %v1052 = vshrl.u32 %v1051, 7
  %v1053 = vadd.s32 %v1052, 80
  %1054 = vset.pattern.permute.xlu0 %v1053
  %1055 = vperm.xlu0 %1054, %v990
  %v1056 = vpop.permute.xlu0 %1055
  %v1057 = vlaneseq
  %v1058 = vshrl.u32 %v1057, 7
  %v1059 = vadd.s32 %v1058, 88
  %1060 = vset.pattern.permute.xlu0 %v1059
  %1061 = vperm.xlu0 %1060, %v990
  %v1062 = vpop.permute.xlu0 %1061
  %v1063 = vlaneseq
  %v1064 = vshrl.u32 %v1063, 7
  %v1065 = vadd.s32 %v1064, 96
  %1066 = vset.pattern.permute.xlu0 %v1065
  %1067 = vperm.xlu0 %1066, %v990
  %v1068 = vpop.permute.xlu0 %1067
  %v1069 = vlaneseq
  %v1070 = vshrl.u32 %v1069, 7
  %v1071 = vadd.s32 %v1070, 104
  %1072 = vset.pattern.permute.xlu0 %v1071
  %1073 = vperm.xlu0 %1072, %v990
  %v1074 = vpop.permute.xlu0 %1073
  %v1075 = vlaneseq
  %v1076 = vshrl.u32 %v1075, 7
  %v1077 = vadd.s32 %v1076, 112
  %1078 = vset.pattern.permute.xlu0 %v1077
  %1079 = vperm.xlu0 %1078, %v990
  %v1080 = vpop.permute.xlu0 %1079
  %v1081 = vlaneseq
  %v1082 = vshrl.u32 %v1081, 7
  %v1083 = vadd.s32 %v1082, 120
  %1084 = vset.pattern.permute.xlu0 %v1083
  %1085 = vperm.xlu0 %1084, %v990
  %v1086 = vpop.permute.xlu0 %1085
  %v1087 = vperm.slane %v15, 5
  %v1088 = vlaneseq
  %v1089 = vshrl.u32 %v1088, 7
  %1091 = vset.pattern.permute.xlu0 %v1089
  %1092 = vperm.xlu0 %1091, %v1087
  %v1093 = vpop.permute.xlu0 %1092
  %v1094 = vlaneseq
  %v1095 = vshrl.u32 %v1094, 7
  %v1096 = vadd.s32 %v1095, 8
  %1097 = vset.pattern.permute.xlu0 %v1096
  %1098 = vperm.xlu0 %1097, %v1087
  %v1099 = vpop.permute.xlu0 %1098
  %v1100 = vlaneseq
  %v1101 = vshrl.u32 %v1100, 7
  %v1102 = vadd.s32 %v1101, 16
  %1103 = vset.pattern.permute.xlu0 %v1102
  %1104 = vperm.xlu0 %1103, %v1087
  %v1105 = vpop.permute.xlu0 %1104
  %v1106 = vlaneseq
  %v1107 = vshrl.u32 %v1106, 7
  %v1108 = vadd.s32 %v1107, 24
  %1109 = vset.pattern.permute.xlu0 %v1108
  %1110 = vperm.xlu0 %1109, %v1087
  %v1111 = vpop.permute.xlu0 %1110
  %v1112 = vlaneseq
  %v1113 = vshrl.u32 %v1112, 7
  %v1114 = vadd.s32 %v1113, 32
  %1115 = vset.pattern.permute.xlu0 %v1114
  %1116 = vperm.xlu0 %1115, %v1087
  %v1117 = vpop.permute.xlu0 %1116
  %v1118 = vlaneseq
  %v1119 = vshrl.u32 %v1118, 7
  %v1120 = vadd.s32 %v1119, 40
  %1121 = vset.pattern.permute.xlu0 %v1120
  %1122 = vperm.xlu0 %1121, %v1087
  %v1123 = vpop.permute.xlu0 %1122
  %v1124 = vlaneseq
  %v1125 = vshrl.u32 %v1124, 7
  %v1126 = vadd.s32 %v1125, 48
  %1127 = vset.pattern.permute.xlu0 %v1126
  %1128 = vperm.xlu0 %1127, %v1087
  %v1129 = vpop.permute.xlu0 %1128
  %v1130 = vlaneseq
  %v1131 = vshrl.u32 %v1130, 7
  %v1132 = vadd.s32 %v1131, 56
  %1133 = vset.pattern.permute.xlu0 %v1132
  %1134 = vperm.xlu0 %1133, %v1087
  %v1135 = vpop.permute.xlu0 %1134
  %v1136 = vlaneseq
  %v1137 = vshrl.u32 %v1136, 7
  %v1138 = vadd.s32 %v1137, 64
  %1139 = vset.pattern.permute.xlu0 %v1138
  %1140 = vperm.xlu0 %1139, %v1087
  %v1141 = vpop.permute.xlu0 %1140
  %v1142 = vlaneseq
  %v1143 = vshrl.u32 %v1142, 7
  %v1144 = vadd.s32 %v1143, 72
  %1145 = vset.pattern.permute.xlu0 %v1144
  %1146 = vperm.xlu0 %1145, %v1087
  %v1147 = vpop.permute.xlu0 %1146
  %v1148 = vlaneseq
  %v1149 = vshrl.u32 %v1148, 7
  %v1150 = vadd.s32 %v1149, 80
  %1151 = vset.pattern.permute.xlu0 %v1150
  %1152 = vperm.xlu0 %1151, %v1087
  %v1153 = vpop.permute.xlu0 %1152
  %v1154 = vlaneseq
  %v1155 = vshrl.u32 %v1154, 7
  %v1156 = vadd.s32 %v1155, 88
  %1157 = vset.pattern.permute.xlu0 %v1156
  %1158 = vperm.xlu0 %1157, %v1087
  %v1159 = vpop.permute.xlu0 %1158
  %v1160 = vlaneseq
  %v1161 = vshrl.u32 %v1160, 7
  %v1162 = vadd.s32 %v1161, 96
  %1163 = vset.pattern.permute.xlu0 %v1162
  %1164 = vperm.xlu0 %1163, %v1087
  %v1165 = vpop.permute.xlu0 %1164
  %v1166 = vlaneseq
  %v1167 = vshrl.u32 %v1166, 7
  %v1168 = vadd.s32 %v1167, 104
  %1169 = vset.pattern.permute.xlu0 %v1168
  %1170 = vperm.xlu0 %1169, %v1087
  %v1171 = vpop.permute.xlu0 %1170
  %v1172 = vlaneseq
  %v1173 = vshrl.u32 %v1172, 7
  %v1174 = vadd.s32 %v1173, 112
  %1175 = vset.pattern.permute.xlu0 %v1174
  %1176 = vperm.xlu0 %1175, %v1087
  %v1177 = vpop.permute.xlu0 %1176
  %v1178 = vlaneseq
  %v1179 = vshrl.u32 %v1178, 7
  %v1180 = vadd.s32 %v1179, 120
  %1181 = vset.pattern.permute.xlu0 %v1180
  %1182 = vperm.xlu0 %1181, %v1087
  %v1183 = vpop.permute.xlu0 %1182
  %v1184 = vperm.slane %v14, 6
  %v1185 = vlaneseq
  %v1186 = vshrl.u32 %v1185, 7
  %1188 = vset.pattern.permute.xlu0 %v1186
  %1189 = vperm.xlu0 %1188, %v1184
  %v1190 = vpop.permute.xlu0 %1189
  %v1191 = vlaneseq
  %v1192 = vshrl.u32 %v1191, 7
  %v1193 = vadd.s32 %v1192, 8
  %1194 = vset.pattern.permute.xlu0 %v1193
  %1195 = vperm.xlu0 %1194, %v1184
  %v1196 = vpop.permute.xlu0 %1195
  %v1197 = vlaneseq
  %v1198 = vshrl.u32 %v1197, 7
  %v1199 = vadd.s32 %v1198, 16
  %1200 = vset.pattern.permute.xlu0 %v1199
  %1201 = vperm.xlu0 %1200, %v1184
  %v1202 = vpop.permute.xlu0 %1201
  %v1203 = vlaneseq
  %v1204 = vshrl.u32 %v1203, 7
  %v1205 = vadd.s32 %v1204, 24
  %1206 = vset.pattern.permute.xlu0 %v1205
  %1207 = vperm.xlu0 %1206, %v1184
  %v1208 = vpop.permute.xlu0 %1207
  %v1209 = vlaneseq
  %v1210 = vshrl.u32 %v1209, 7
  %v1211 = vadd.s32 %v1210, 32
  %1212 = vset.pattern.permute.xlu0 %v1211
  %1213 = vperm.xlu0 %1212, %v1184
  %v1214 = vpop.permute.xlu0 %1213
  %v1215 = vlaneseq
  %v1216 = vshrl.u32 %v1215, 7
  %v1217 = vadd.s32 %v1216, 40
  %1218 = vset.pattern.permute.xlu0 %v1217
  %1219 = vperm.xlu0 %1218, %v1184
  %v1220 = vpop.permute.xlu0 %1219
  %v1221 = vlaneseq
  %v1222 = vshrl.u32 %v1221, 7
  %v1223 = vadd.s32 %v1222, 48
  %1224 = vset.pattern.permute.xlu0 %v1223
  %1225 = vperm.xlu0 %1224, %v1184
  %v1226 = vpop.permute.xlu0 %1225
  %v1227 = vlaneseq
  %v1228 = vshrl.u32 %v1227, 7
  %v1229 = vadd.s32 %v1228, 56
  %1230 = vset.pattern.permute.xlu0 %v1229
  %1231 = vperm.xlu0 %1230, %v1184
  %v1232 = vpop.permute.xlu0 %1231
  %v1233 = vlaneseq
  %v1234 = vshrl.u32 %v1233, 7
  %v1235 = vadd.s32 %v1234, 64
  %1236 = vset.pattern.permute.xlu0 %v1235
  %1237 = vperm.xlu0 %1236, %v1184
  %v1238 = vpop.permute.xlu0 %1237
  %v1239 = vlaneseq
  %v1240 = vshrl.u32 %v1239, 7
  %v1241 = vadd.s32 %v1240, 72
  %1242 = vset.pattern.permute.xlu0 %v1241
  %1243 = vperm.xlu0 %1242, %v1184
  %v1244 = vpop.permute.xlu0 %1243
  %v1245 = vlaneseq
  %v1246 = vshrl.u32 %v1245, 7
  %v1247 = vadd.s32 %v1246, 80
  %1248 = vset.pattern.permute.xlu0 %v1247
  %1249 = vperm.xlu0 %1248, %v1184
  %v1250 = vpop.permute.xlu0 %1249
  %v1251 = vlaneseq
  %v1252 = vshrl.u32 %v1251, 7
  %v1253 = vadd.s32 %v1252, 88
  %1254 = vset.pattern.permute.xlu0 %v1253
  %1255 = vperm.xlu0 %1254, %v1184
  %v1256 = vpop.permute.xlu0 %1255
  %v1257 = vlaneseq
  %v1258 = vshrl.u32 %v1257, 7
  %v1259 = vadd.s32 %v1258, 96
  %1260 = vset.pattern.permute.xlu0 %v1259
  %1261 = vperm.xlu0 %1260, %v1184
  %v1262 = vpop.permute.xlu0 %1261
  %v1263 = vlaneseq
  %v1264 = vshrl.u32 %v1263, 7
  %v1265 = vadd.s32 %v1264, 104
  %1266 = vset.pattern.permute.xlu0 %v1265
  %1267 = vperm.xlu0 %1266, %v1184
  %v1268 = vpop.permute.xlu0 %1267
  %v1269 = vlaneseq
  %v1270 = vshrl.u32 %v1269, 7
  %v1271 = vadd.s32 %v1270, 112
  %1272 = vset.pattern.permute.xlu0 %v1271
  %1273 = vperm.xlu0 %1272, %v1184
  %v1274 = vpop.permute.xlu0 %1273
  %v1275 = vlaneseq
  %v1276 = vshrl.u32 %v1275, 7
  %v1277 = vadd.s32 %v1276, 120
  %1278 = vset.pattern.permute.xlu0 %v1277
  %1279 = vperm.xlu0 %1278, %v1184
  %v1280 = vpop.permute.xlu0 %1279
  %v1281 = vperm.slane %v15, 6
  %v1282 = vlaneseq
  %v1283 = vshrl.u32 %v1282, 7
  %1285 = vset.pattern.permute.xlu0 %v1283
  %1286 = vperm.xlu0 %1285, %v1281
  %v1287 = vpop.permute.xlu0 %1286
  %v1288 = vlaneseq
  %v1289 = vshrl.u32 %v1288, 7
  %v1290 = vadd.s32 %v1289, 8
  %1291 = vset.pattern.permute.xlu0 %v1290
  %1292 = vperm.xlu0 %1291, %v1281
  %v1293 = vpop.permute.xlu0 %1292
  %v1294 = vlaneseq
  %v1295 = vshrl.u32 %v1294, 7
  %v1296 = vadd.s32 %v1295, 16
  %1297 = vset.pattern.permute.xlu0 %v1296
  %1298 = vperm.xlu0 %1297, %v1281
  %v1299 = vpop.permute.xlu0 %1298
  %v1300 = vlaneseq
  %v1301 = vshrl.u32 %v1300, 7
  %v1302 = vadd.s32 %v1301, 24
  %1303 = vset.pattern.permute.xlu0 %v1302
  %1304 = vperm.xlu0 %1303, %v1281
  %v1305 = vpop.permute.xlu0 %1304
  %v1306 = vlaneseq
  %v1307 = vshrl.u32 %v1306, 7
  %v1308 = vadd.s32 %v1307, 32
  %1309 = vset.pattern.permute.xlu0 %v1308
  %1310 = vperm.xlu0 %1309, %v1281
  %v1311 = vpop.permute.xlu0 %1310
  %v1312 = vlaneseq
  %v1313 = vshrl.u32 %v1312, 7
  %v1314 = vadd.s32 %v1313, 40
  %1315 = vset.pattern.permute.xlu0 %v1314
  %1316 = vperm.xlu0 %1315, %v1281
  %v1317 = vpop.permute.xlu0 %1316
  %v1318 = vlaneseq
  %v1319 = vshrl.u32 %v1318, 7
  %v1320 = vadd.s32 %v1319, 48
  %1321 = vset.pattern.permute.xlu0 %v1320
  %1322 = vperm.xlu0 %1321, %v1281
  %v1323 = vpop.permute.xlu0 %1322
  %v1324 = vlaneseq
  %v1325 = vshrl.u32 %v1324, 7
  %v1326 = vadd.s32 %v1325, 56
  %1327 = vset.pattern.permute.xlu0 %v1326
  %1328 = vperm.xlu0 %1327, %v1281
  %v1329 = vpop.permute.xlu0 %1328
  %v1330 = vlaneseq
  %v1331 = vshrl.u32 %v1330, 7
  %v1332 = vadd.s32 %v1331, 64
  %1333 = vset.pattern.permute.xlu0 %v1332
  %1334 = vperm.xlu0 %1333, %v1281
  %v1335 = vpop.permute.xlu0 %1334
  %v1336 = vlaneseq
  %v1337 = vshrl.u32 %v1336, 7
  %v1338 = vadd.s32 %v1337, 72
  %1339 = vset.pattern.permute.xlu0 %v1338
  %1340 = vperm.xlu0 %1339, %v1281
  %v1341 = vpop.permute.xlu0 %1340
  %v1342 = vlaneseq
  %v1343 = vshrl.u32 %v1342, 7
  %v1344 = vadd.s32 %v1343, 80
  %1345 = vset.pattern.permute.xlu0 %v1344
  %1346 = vperm.xlu0 %1345, %v1281
  %v1347 = vpop.permute.xlu0 %1346
  %v1348 = vlaneseq
  %v1349 = vshrl.u32 %v1348, 7
  %v1350 = vadd.s32 %v1349, 88
  %1351 = vset.pattern.permute.xlu0 %v1350
  %1352 = vperm.xlu0 %1351, %v1281
  %v1353 = vpop.permute.xlu0 %1352
  %v1354 = vlaneseq
  %v1355 = vshrl.u32 %v1354, 7
  %v1356 = vadd.s32 %v1355, 96
  %1357 = vset.pattern.permute.xlu0 %v1356
  %1358 = vperm.xlu0 %1357, %v1281
  %v1359 = vpop.permute.xlu0 %1358
  %v1360 = vlaneseq
  %v1361 = vshrl.u32 %v1360, 7
  %v1362 = vadd.s32 %v1361, 104
  %1363 = vset.pattern.permute.xlu0 %v1362
  %1364 = vperm.xlu0 %1363, %v1281
  %v1365 = vpop.permute.xlu0 %1364
  %v1366 = vlaneseq
  %v1367 = vshrl.u32 %v1366, 7
  %v1368 = vadd.s32 %v1367, 112
  %1369 = vset.pattern.permute.xlu0 %v1368
  %1370 = vperm.xlu0 %1369, %v1281
  %v1371 = vpop.permute.xlu0 %1370
  %v1372 = vlaneseq
  %v1373 = vshrl.u32 %v1372, 7
  %v1374 = vadd.s32 %v1373, 120
  %1375 = vset.pattern.permute.xlu0 %v1374
  %1376 = vperm.xlu0 %1375, %v1281
  %v1377 = vpop.permute.xlu0 %1376
  %v1378 = vperm.slane %v14, 7
  %v1379 = vlaneseq
  %v1380 = vshrl.u32 %v1379, 7
  %1382 = vset.pattern.permute.xlu0 %v1380
  %1383 = vperm.xlu0 %1382, %v1378
  %v1384 = vpop.permute.xlu0 %1383
  %v1385 = vlaneseq
  %v1386 = vshrl.u32 %v1385, 7
  %v1387 = vadd.s32 %v1386, 8
  %1388 = vset.pattern.permute.xlu0 %v1387
  %1389 = vperm.xlu0 %1388, %v1378
  %v1390 = vpop.permute.xlu0 %1389
  %v1391 = vlaneseq
  %v1392 = vshrl.u32 %v1391, 7
  %v1393 = vadd.s32 %v1392, 16
  %1394 = vset.pattern.permute.xlu0 %v1393
  %1395 = vperm.xlu0 %1394, %v1378
  %v1396 = vpop.permute.xlu0 %1395
  %v1397 = vlaneseq
  %v1398 = vshrl.u32 %v1397, 7
  %v1399 = vadd.s32 %v1398, 24
  %1400 = vset.pattern.permute.xlu0 %v1399
  %1401 = vperm.xlu0 %1400, %v1378
  %v1402 = vpop.permute.xlu0 %1401
  %v1403 = vlaneseq
  %v1404 = vshrl.u32 %v1403, 7
  %v1405 = vadd.s32 %v1404, 32
  %1406 = vset.pattern.permute.xlu0 %v1405
  %1407 = vperm.xlu0 %1406, %v1378
  %v1408 = vpop.permute.xlu0 %1407
  %v1409 = vlaneseq
  %v1410 = vshrl.u32 %v1409, 7
  %v1411 = vadd.s32 %v1410, 40
  %1412 = vset.pattern.permute.xlu0 %v1411
  %1413 = vperm.xlu0 %1412, %v1378
  %v1414 = vpop.permute.xlu0 %1413
  %v1415 = vlaneseq
  %v1416 = vshrl.u32 %v1415, 7
  %v1417 = vadd.s32 %v1416, 48
  %1418 = vset.pattern.permute.xlu0 %v1417
  %1419 = vperm.xlu0 %1418, %v1378
  %v1420 = vpop.permute.xlu0 %1419
  %v1421 = vlaneseq
  %v1422 = vshrl.u32 %v1421, 7
  %v1423 = vadd.s32 %v1422, 56
  %1424 = vset.pattern.permute.xlu0 %v1423
  %1425 = vperm.xlu0 %1424, %v1378
  %v1426 = vpop.permute.xlu0 %1425
  %v1427 = vlaneseq
  %v1428 = vshrl.u32 %v1427, 7
  %v1429 = vadd.s32 %v1428, 64
  %1430 = vset.pattern.permute.xlu0 %v1429
  %1431 = vperm.xlu0 %1430, %v1378
  %v1432 = vpop.permute.xlu0 %1431
  %v1433 = vlaneseq
  %v1434 = vshrl.u32 %v1433, 7
  %v1435 = vadd.s32 %v1434, 72
  %1436 = vset.pattern.permute.xlu0 %v1435
  %1437 = vperm.xlu0 %1436, %v1378
  %v1438 = vpop.permute.xlu0 %1437
  %v1439 = vlaneseq
  %v1440 = vshrl.u32 %v1439, 7
  %v1441 = vadd.s32 %v1440, 80
  %1442 = vset.pattern.permute.xlu0 %v1441
  %1443 = vperm.xlu0 %1442, %v1378
  %v1444 = vpop.permute.xlu0 %1443
  %v1445 = vlaneseq
  %v1446 = vshrl.u32 %v1445, 7
  %v1447 = vadd.s32 %v1446, 88
  %1448 = vset.pattern.permute.xlu0 %v1447
  %1449 = vperm.xlu0 %1448, %v1378
  %v1450 = vpop.permute.xlu0 %1449
  %v1451 = vlaneseq
  %v1452 = vshrl.u32 %v1451, 7
  %v1453 = vadd.s32 %v1452, 96
  %1454 = vset.pattern.permute.xlu0 %v1453
  %1455 = vperm.xlu0 %1454, %v1378
  %v1456 = vpop.permute.xlu0 %1455
  %v1457 = vlaneseq
  %v1458 = vshrl.u32 %v1457, 7
  %v1459 = vadd.s32 %v1458, 104
  %1460 = vset.pattern.permute.xlu0 %v1459
  %1461 = vperm.xlu0 %1460, %v1378
  %v1462 = vpop.permute.xlu0 %1461
  %v1463 = vlaneseq
  %v1464 = vshrl.u32 %v1463, 7
  %v1465 = vadd.s32 %v1464, 112
  %1466 = vset.pattern.permute.xlu0 %v1465
  %1467 = vperm.xlu0 %1466, %v1378
  %v1468 = vpop.permute.xlu0 %1467
  %v1469 = vlaneseq
  %v1470 = vshrl.u32 %v1469, 7
  %v1471 = vadd.s32 %v1470, 120
  %1472 = vset.pattern.permute.xlu0 %v1471
  %1473 = vperm.xlu0 %1472, %v1378
  %v1474 = vpop.permute.xlu0 %1473
  %v1475 = vperm.slane %v15, 7
  %v1476 = vlaneseq
  %v1477 = vshrl.u32 %v1476, 7
  %1479 = vset.pattern.permute.xlu0 %v1477
  %1480 = vperm.xlu0 %1479, %v1475
  %v1481 = vpop.permute.xlu0 %1480
  %v1482 = vlaneseq
  %v1483 = vshrl.u32 %v1482, 7
  %v1484 = vadd.s32 %v1483, 8
  %1485 = vset.pattern.permute.xlu0 %v1484
  %1486 = vperm.xlu0 %1485, %v1475
  %v1487 = vpop.permute.xlu0 %1486
  %v1488 = vlaneseq
  %v1489 = vshrl.u32 %v1488, 7
  %v1490 = vadd.s32 %v1489, 16
  %1491 = vset.pattern.permute.xlu0 %v1490
  %1492 = vperm.xlu0 %1491, %v1475
  %v1493 = vpop.permute.xlu0 %1492
  %v1494 = vlaneseq
  %v1495 = vshrl.u32 %v1494, 7
  %v1496 = vadd.s32 %v1495, 24
  %1497 = vset.pattern.permute.xlu0 %v1496
  %1498 = vperm.xlu0 %1497, %v1475
  %v1499 = vpop.permute.xlu0 %1498
  %v1500 = vlaneseq
  %v1501 = vshrl.u32 %v1500, 7
  %v1502 = vadd.s32 %v1501, 32
  %1503 = vset.pattern.permute.xlu0 %v1502
  %1504 = vperm.xlu0 %1503, %v1475
  %v1505 = vpop.permute.xlu0 %1504
  %v1506 = vlaneseq
  %v1507 = vshrl.u32 %v1506, 7
  %v1508 = vadd.s32 %v1507, 40
  %1509 = vset.pattern.permute.xlu0 %v1508
  %1510 = vperm.xlu0 %1509, %v1475
  %v1511 = vpop.permute.xlu0 %1510
  %v1512 = vlaneseq
  %v1513 = vshrl.u32 %v1512, 7
  %v1514 = vadd.s32 %v1513, 48
  %1515 = vset.pattern.permute.xlu0 %v1514
  %1516 = vperm.xlu0 %1515, %v1475
  %v1517 = vpop.permute.xlu0 %1516
  %v1518 = vlaneseq
  %v1519 = vshrl.u32 %v1518, 7
  %v1520 = vadd.s32 %v1519, 56
  %1521 = vset.pattern.permute.xlu0 %v1520
  %1522 = vperm.xlu0 %1521, %v1475
  %v1523 = vpop.permute.xlu0 %1522
  %v1524 = vlaneseq
  %v1525 = vshrl.u32 %v1524, 7
  %v1526 = vadd.s32 %v1525, 64
  %1527 = vset.pattern.permute.xlu0 %v1526
  %1528 = vperm.xlu0 %1527, %v1475
  %v1529 = vpop.permute.xlu0 %1528
  %v1530 = vlaneseq
  %v1531 = vshrl.u32 %v1530, 7
  %v1532 = vadd.s32 %v1531, 72
  %1533 = vset.pattern.permute.xlu0 %v1532
  %1534 = vperm.xlu0 %1533, %v1475
  %v1535 = vpop.permute.xlu0 %1534
  %v1536 = vlaneseq
  %v1537 = vshrl.u32 %v1536, 7
  %v1538 = vadd.s32 %v1537, 80
  %1539 = vset.pattern.permute.xlu0 %v1538
  %1540 = vperm.xlu0 %1539, %v1475
  %v1541 = vpop.permute.xlu0 %1540
  %v1542 = vlaneseq
  %v1543 = vshrl.u32 %v1542, 7
  %v1544 = vadd.s32 %v1543, 88
  %1545 = vset.pattern.permute.xlu0 %v1544
  %1546 = vperm.xlu0 %1545, %v1475
  %v1547 = vpop.permute.xlu0 %1546
  %v1548 = vlaneseq
  %v1549 = vshrl.u32 %v1548, 7
  %v1550 = vadd.s32 %v1549, 96
  %1551 = vset.pattern.permute.xlu0 %v1550
  %1552 = vperm.xlu0 %1551, %v1475
  %v1553 = vpop.permute.xlu0 %1552
  %v1554 = vlaneseq
  %v1555 = vshrl.u32 %v1554, 7
  %v1556 = vadd.s32 %v1555, 104
  %1557 = vset.pattern.permute.xlu0 %v1556
  %1558 = vperm.xlu0 %1557, %v1475
  %v1559 = vpop.permute.xlu0 %1558
  %v1560 = vlaneseq
  %v1561 = vshrl.u32 %v1560, 7
  %v1562 = vadd.s32 %v1561, 112
  %1563 = vset.pattern.permute.xlu0 %v1562
  %1564 = vperm.xlu0 %1563, %v1475
  %v1565 = vpop.permute.xlu0 %1564
  %v1566 = vlaneseq
  %v1567 = vshrl.u32 %v1566, 7
  %v1568 = vadd.s32 %v1567, 120
  %1569 = vset.pattern.permute.xlu0 %v1568
  %1570 = vperm.xlu0 %1569, %v1475
  %v1571 = vpop.permute.xlu0 %1570
  %v1572 = vperm.slane %v16, 0
  %v1573 = vlaneseq
  %v1574 = vshrl.u32 %v1573, 7
  %1576 = vset.pattern.permute.xlu0 %v1574
  %1577 = vperm.xlu0 %1576, %v1572
  %v1578 = vpop.permute.xlu0 %1577
  %v1579 = vlaneseq
  %v1580 = vshrl.u32 %v1579, 7
  %v1581 = vadd.s32 %v1580, 8
  %1582 = vset.pattern.permute.xlu0 %v1581
  %1583 = vperm.xlu0 %1582, %v1572
  %v1584 = vpop.permute.xlu0 %1583
  %v1585 = vlaneseq
  %v1586 = vshrl.u32 %v1585, 7
  %v1587 = vadd.s32 %v1586, 16
  %1588 = vset.pattern.permute.xlu0 %v1587
  %1589 = vperm.xlu0 %1588, %v1572
  %v1590 = vpop.permute.xlu0 %1589
  %v1591 = vlaneseq
  %v1592 = vshrl.u32 %v1591, 7
  %v1593 = vadd.s32 %v1592, 24
  %1594 = vset.pattern.permute.xlu0 %v1593
  %1595 = vperm.xlu0 %1594, %v1572
  %v1596 = vpop.permute.xlu0 %1595
  %v1597 = vlaneseq
  %v1598 = vshrl.u32 %v1597, 7
  %v1599 = vadd.s32 %v1598, 32
  %1600 = vset.pattern.permute.xlu0 %v1599
  %1601 = vperm.xlu0 %1600, %v1572
  %v1602 = vpop.permute.xlu0 %1601
  %v1603 = vlaneseq
  %v1604 = vshrl.u32 %v1603, 7
  %v1605 = vadd.s32 %v1604, 40
  %1606 = vset.pattern.permute.xlu0 %v1605
  %1607 = vperm.xlu0 %1606, %v1572
  %v1608 = vpop.permute.xlu0 %1607
  %v1609 = vlaneseq
  %v1610 = vshrl.u32 %v1609, 7
  %v1611 = vadd.s32 %v1610, 48
  %1612 = vset.pattern.permute.xlu0 %v1611
  %1613 = vperm.xlu0 %1612, %v1572
  %v1614 = vpop.permute.xlu0 %1613
  %v1615 = vlaneseq
  %v1616 = vshrl.u32 %v1615, 7
  %v1617 = vadd.s32 %v1616, 56
  %1618 = vset.pattern.permute.xlu0 %v1617
  %1619 = vperm.xlu0 %1618, %v1572
  %v1620 = vpop.permute.xlu0 %1619
  %v1621 = vlaneseq
  %v1622 = vshrl.u32 %v1621, 7
  %v1623 = vadd.s32 %v1622, 64
  %1624 = vset.pattern.permute.xlu0 %v1623
  %1625 = vperm.xlu0 %1624, %v1572
  %v1626 = vpop.permute.xlu0 %1625
  %v1627 = vlaneseq
  %v1628 = vshrl.u32 %v1627, 7
  %v1629 = vadd.s32 %v1628, 72
  %1630 = vset.pattern.permute.xlu0 %v1629
  %1631 = vperm.xlu0 %1630, %v1572
  %v1632 = vpop.permute.xlu0 %1631
  %v1633 = vlaneseq
  %v1634 = vshrl.u32 %v1633, 7
  %v1635 = vadd.s32 %v1634, 80
  %1636 = vset.pattern.permute.xlu0 %v1635
  %1637 = vperm.xlu0 %1636, %v1572
  %v1638 = vpop.permute.xlu0 %1637
  %v1639 = vlaneseq
  %v1640 = vshrl.u32 %v1639, 7
  %v1641 = vadd.s32 %v1640, 88
  %1642 = vset.pattern.permute.xlu0 %v1641
  %1643 = vperm.xlu0 %1642, %v1572
  %v1644 = vpop.permute.xlu0 %1643
  %v1645 = vlaneseq
  %v1646 = vshrl.u32 %v1645, 7
  %v1647 = vadd.s32 %v1646, 96
  %1648 = vset.pattern.permute.xlu0 %v1647
  %1649 = vperm.xlu0 %1648, %v1572
  %v1650 = vpop.permute.xlu0 %1649
  %v1651 = vlaneseq
  %v1652 = vshrl.u32 %v1651, 7
  %v1653 = vadd.s32 %v1652, 104
  %1654 = vset.pattern.permute.xlu0 %v1653
  %1655 = vperm.xlu0 %1654, %v1572
  %v1656 = vpop.permute.xlu0 %1655
  %v1657 = vlaneseq
  %v1658 = vshrl.u32 %v1657, 7
  %v1659 = vadd.s32 %v1658, 112
  %1660 = vset.pattern.permute.xlu0 %v1659
  %1661 = vperm.xlu0 %1660, %v1572
  %v1662 = vpop.permute.xlu0 %1661
  %v1663 = vlaneseq
  %v1664 = vshrl.u32 %v1663, 7
  %v1665 = vadd.s32 %v1664, 120
  %1666 = vset.pattern.permute.xlu0 %v1665
  %1667 = vperm.xlu0 %1666, %v1572
  %v1668 = vpop.permute.xlu0 %1667
  %v1669 = vperm.slane %v17, 0
  %v1670 = vlaneseq
  %v1671 = vshrl.u32 %v1670, 7
  %1673 = vset.pattern.permute.xlu0 %v1671
  %1674 = vperm.xlu0 %1673, %v1669
  %v1675 = vpop.permute.xlu0 %1674
  %v1676 = vlaneseq
  %v1677 = vshrl.u32 %v1676, 7
  %v1678 = vadd.s32 %v1677, 8
  %1679 = vset.pattern.permute.xlu0 %v1678
  %1680 = vperm.xlu0 %1679, %v1669
  %v1681 = vpop.permute.xlu0 %1680
  %v1682 = vlaneseq
  %v1683 = vshrl.u32 %v1682, 7
  %v1684 = vadd.s32 %v1683, 16
  %1685 = vset.pattern.permute.xlu0 %v1684
  %1686 = vperm.xlu0 %1685, %v1669
  %v1687 = vpop.permute.xlu0 %1686
  %v1688 = vlaneseq
  %v1689 = vshrl.u32 %v1688, 7
  %v1690 = vadd.s32 %v1689, 24
  %1691 = vset.pattern.permute.xlu0 %v1690
  %1692 = vperm.xlu0 %1691, %v1669
  %v1693 = vpop.permute.xlu0 %1692
  %v1694 = vlaneseq
  %v1695 = vshrl.u32 %v1694, 7
  %v1696 = vadd.s32 %v1695, 32
  %1697 = vset.pattern.permute.xlu0 %v1696
  %1698 = vperm.xlu0 %1697, %v1669
  %v1699 = vpop.permute.xlu0 %1698
  %v1700 = vlaneseq
  %v1701 = vshrl.u32 %v1700, 7
  %v1702 = vadd.s32 %v1701, 40
  %1703 = vset.pattern.permute.xlu0 %v1702
  %1704 = vperm.xlu0 %1703, %v1669
  %v1705 = vpop.permute.xlu0 %1704
  %v1706 = vlaneseq
  %v1707 = vshrl.u32 %v1706, 7
  %v1708 = vadd.s32 %v1707, 48
  %1709 = vset.pattern.permute.xlu0 %v1708
  %1710 = vperm.xlu0 %1709, %v1669
  %v1711 = vpop.permute.xlu0 %1710
  %v1712 = vlaneseq
  %v1713 = vshrl.u32 %v1712, 7
  %v1714 = vadd.s32 %v1713, 56
  %1715 = vset.pattern.permute.xlu0 %v1714
  %1716 = vperm.xlu0 %1715, %v1669
  %v1717 = vpop.permute.xlu0 %1716
  %v1718 = vlaneseq
  %v1719 = vshrl.u32 %v1718, 7
  %v1720 = vadd.s32 %v1719, 64
  %1721 = vset.pattern.permute.xlu0 %v1720
  %1722 = vperm.xlu0 %1721, %v1669
  %v1723 = vpop.permute.xlu0 %1722
  %v1724 = vlaneseq
  %v1725 = vshrl.u32 %v1724, 7
  %v1726 = vadd.s32 %v1725, 72
  %1727 = vset.pattern.permute.xlu0 %v1726
  %1728 = vperm.xlu0 %1727, %v1669
  %v1729 = vpop.permute.xlu0 %1728
  %v1730 = vlaneseq
  %v1731 = vshrl.u32 %v1730, 7
  %v1732 = vadd.s32 %v1731, 80
  %1733 = vset.pattern.permute.xlu0 %v1732
  %1734 = vperm.xlu0 %1733, %v1669
  %v1735 = vpop.permute.xlu0 %1734
  %v1736 = vlaneseq
  %v1737 = vshrl.u32 %v1736, 7
  %v1738 = vadd.s32 %v1737, 88
  %1739 = vset.pattern.permute.xlu0 %v1738
  %1740 = vperm.xlu0 %1739, %v1669
  %v1741 = vpop.permute.xlu0 %1740
  %v1742 = vlaneseq
  %v1743 = vshrl.u32 %v1742, 7
  %v1744 = vadd.s32 %v1743, 96
  %1745 = vset.pattern.permute.xlu0 %v1744
  %1746 = vperm.xlu0 %1745, %v1669
  %v1747 = vpop.permute.xlu0 %1746
  %v1748 = vlaneseq
  %v1749 = vshrl.u32 %v1748, 7
  %v1750 = vadd.s32 %v1749, 104
  %1751 = vset.pattern.permute.xlu0 %v1750
  %1752 = vperm.xlu0 %1751, %v1669
  %v1753 = vpop.permute.xlu0 %1752
  %v1754 = vlaneseq
  %v1755 = vshrl.u32 %v1754, 7
  %v1756 = vadd.s32 %v1755, 112
  %1757 = vset.pattern.permute.xlu0 %v1756
  %1758 = vperm.xlu0 %1757, %v1669
  %v1759 = vpop.permute.xlu0 %1758
  %v1760 = vlaneseq
  %v1761 = vshrl.u32 %v1760, 7
  %v1762 = vadd.s32 %v1761, 120
  %1763 = vset.pattern.permute.xlu0 %v1762
  %1764 = vperm.xlu0 %1763, %v1669
  %v1765 = vpop.permute.xlu0 %1764
  %v1766 = vperm.slane %v16, 1
  %v1767 = vlaneseq
  %v1768 = vshrl.u32 %v1767, 7
  %1770 = vset.pattern.permute.xlu0 %v1768
  %1771 = vperm.xlu0 %1770, %v1766
  %v1772 = vpop.permute.xlu0 %1771
  %v1773 = vlaneseq
  %v1774 = vshrl.u32 %v1773, 7
  %v1775 = vadd.s32 %v1774, 8
  %1776 = vset.pattern.permute.xlu0 %v1775
  %1777 = vperm.xlu0 %1776, %v1766
  %v1778 = vpop.permute.xlu0 %1777
  %v1779 = vlaneseq
  %v1780 = vshrl.u32 %v1779, 7
  %v1781 = vadd.s32 %v1780, 16
  %1782 = vset.pattern.permute.xlu0 %v1781
  %1783 = vperm.xlu0 %1782, %v1766
  %v1784 = vpop.permute.xlu0 %1783
  %v1785 = vlaneseq
  %v1786 = vshrl.u32 %v1785, 7
  %v1787 = vadd.s32 %v1786, 24
  %1788 = vset.pattern.permute.xlu0 %v1787
  %1789 = vperm.xlu0 %1788, %v1766
  %v1790 = vpop.permute.xlu0 %1789
  %v1791 = vlaneseq
  %v1792 = vshrl.u32 %v1791, 7
  %v1793 = vadd.s32 %v1792, 32
  %1794 = vset.pattern.permute.xlu0 %v1793
  %1795 = vperm.xlu0 %1794, %v1766
  %v1796 = vpop.permute.xlu0 %1795
  %v1797 = vlaneseq
  %v1798 = vshrl.u32 %v1797, 7
  %v1799 = vadd.s32 %v1798, 40
  %1800 = vset.pattern.permute.xlu0 %v1799
  %1801 = vperm.xlu0 %1800, %v1766
  %v1802 = vpop.permute.xlu0 %1801
  %v1803 = vlaneseq
  %v1804 = vshrl.u32 %v1803, 7
  %v1805 = vadd.s32 %v1804, 48
  %1806 = vset.pattern.permute.xlu0 %v1805
  %1807 = vperm.xlu0 %1806, %v1766
  %v1808 = vpop.permute.xlu0 %1807
  %v1809 = vlaneseq
  %v1810 = vshrl.u32 %v1809, 7
  %v1811 = vadd.s32 %v1810, 56
  %1812 = vset.pattern.permute.xlu0 %v1811
  %1813 = vperm.xlu0 %1812, %v1766
  %v1814 = vpop.permute.xlu0 %1813
  %v1815 = vlaneseq
  %v1816 = vshrl.u32 %v1815, 7
  %v1817 = vadd.s32 %v1816, 64
  %1818 = vset.pattern.permute.xlu0 %v1817
  %1819 = vperm.xlu0 %1818, %v1766
  %v1820 = vpop.permute.xlu0 %1819
  %v1821 = vlaneseq
  %v1822 = vshrl.u32 %v1821, 7
  %v1823 = vadd.s32 %v1822, 72
  %1824 = vset.pattern.permute.xlu0 %v1823
  %1825 = vperm.xlu0 %1824, %v1766
  %v1826 = vpop.permute.xlu0 %1825
  %v1827 = vlaneseq
  %v1828 = vshrl.u32 %v1827, 7
  %v1829 = vadd.s32 %v1828, 80
  %1830 = vset.pattern.permute.xlu0 %v1829
  %1831 = vperm.xlu0 %1830, %v1766
  %v1832 = vpop.permute.xlu0 %1831
  %v1833 = vlaneseq
  %v1834 = vshrl.u32 %v1833, 7
  %v1835 = vadd.s32 %v1834, 88
  %1836 = vset.pattern.permute.xlu0 %v1835
  %1837 = vperm.xlu0 %1836, %v1766
  %v1838 = vpop.permute.xlu0 %1837
  %v1839 = vlaneseq
  %v1840 = vshrl.u32 %v1839, 7
  %v1841 = vadd.s32 %v1840, 96
  %1842 = vset.pattern.permute.xlu0 %v1841
  %1843 = vperm.xlu0 %1842, %v1766
  %v1844 = vpop.permute.xlu0 %1843
  %v1845 = vlaneseq
  %v1846 = vshrl.u32 %v1845, 7
  %v1847 = vadd.s32 %v1846, 104
  %1848 = vset.pattern.permute.xlu0 %v1847
  %1849 = vperm.xlu0 %1848, %v1766
  %v1850 = vpop.permute.xlu0 %1849
  %v1851 = vlaneseq
  %v1852 = vshrl.u32 %v1851, 7
  %v1853 = vadd.s32 %v1852, 112
  %1854 = vset.pattern.permute.xlu0 %v1853
  %1855 = vperm.xlu0 %1854, %v1766
  %v1856 = vpop.permute.xlu0 %1855
  %v1857 = vlaneseq
  %v1858 = vshrl.u32 %v1857, 7
  %v1859 = vadd.s32 %v1858, 120
  %1860 = vset.pattern.permute.xlu0 %v1859
  %1861 = vperm.xlu0 %1860, %v1766
  %v1862 = vpop.permute.xlu0 %1861
  %v1863 = vperm.slane %v17, 1
  %v1864 = vlaneseq
  %v1865 = vshrl.u32 %v1864, 7
  %1867 = vset.pattern.permute.xlu0 %v1865
  %1868 = vperm.xlu0 %1867, %v1863
  %v1869 = vpop.permute.xlu0 %1868
  %v1870 = vlaneseq
  %v1871 = vshrl.u32 %v1870, 7
  %v1872 = vadd.s32 %v1871, 8
  %1873 = vset.pattern.permute.xlu0 %v1872
  %1874 = vperm.xlu0 %1873, %v1863
  %v1875 = vpop.permute.xlu0 %1874
  %v1876 = vlaneseq
  %v1877 = vshrl.u32 %v1876, 7
  %v1878 = vadd.s32 %v1877, 16
  %1879 = vset.pattern.permute.xlu0 %v1878
  %1880 = vperm.xlu0 %1879, %v1863
  %v1881 = vpop.permute.xlu0 %1880
  %v1882 = vlaneseq
  %v1883 = vshrl.u32 %v1882, 7
  %v1884 = vadd.s32 %v1883, 24
  %1885 = vset.pattern.permute.xlu0 %v1884
  %1886 = vperm.xlu0 %1885, %v1863
  %v1887 = vpop.permute.xlu0 %1886
  %v1888 = vlaneseq
  %v1889 = vshrl.u32 %v1888, 7
  %v1890 = vadd.s32 %v1889, 32
  %1891 = vset.pattern.permute.xlu0 %v1890
  %1892 = vperm.xlu0 %1891, %v1863
  %v1893 = vpop.permute.xlu0 %1892
  %v1894 = vlaneseq
  %v1895 = vshrl.u32 %v1894, 7
  %v1896 = vadd.s32 %v1895, 40
  %1897 = vset.pattern.permute.xlu0 %v1896
  %1898 = vperm.xlu0 %1897, %v1863
  %v1899 = vpop.permute.xlu0 %1898
  %v1900 = vlaneseq
  %v1901 = vshrl.u32 %v1900, 7
  %v1902 = vadd.s32 %v1901, 48
  %1903 = vset.pattern.permute.xlu0 %v1902
  %1904 = vperm.xlu0 %1903, %v1863
  %v1905 = vpop.permute.xlu0 %1904
  %v1906 = vlaneseq
  %v1907 = vshrl.u32 %v1906, 7
  %v1908 = vadd.s32 %v1907, 56
  %1909 = vset.pattern.permute.xlu0 %v1908
  %1910 = vperm.xlu0 %1909, %v1863
  %v1911 = vpop.permute.xlu0 %1910
  %v1912 = vlaneseq
  %v1913 = vshrl.u32 %v1912, 7
  %v1914 = vadd.s32 %v1913, 64
  %1915 = vset.pattern.permute.xlu0 %v1914
  %1916 = vperm.xlu0 %1915, %v1863
  %v1917 = vpop.permute.xlu0 %1916
  %v1918 = vlaneseq
  %v1919 = vshrl.u32 %v1918, 7
  %v1920 = vadd.s32 %v1919, 72
  %1921 = vset.pattern.permute.xlu0 %v1920
  %1922 = vperm.xlu0 %1921, %v1863
  %v1923 = vpop.permute.xlu0 %1922
  %v1924 = vlaneseq
  %v1925 = vshrl.u32 %v1924, 7
  %v1926 = vadd.s32 %v1925, 80
  %1927 = vset.pattern.permute.xlu0 %v1926
  %1928 = vperm.xlu0 %1927, %v1863
  %v1929 = vpop.permute.xlu0 %1928
  %v1930 = vlaneseq
  %v1931 = vshrl.u32 %v1930, 7
  %v1932 = vadd.s32 %v1931, 88
  %1933 = vset.pattern.permute.xlu0 %v1932
  %1934 = vperm.xlu0 %1933, %v1863
  %v1935 = vpop.permute.xlu0 %1934
  %v1936 = vlaneseq
  %v1937 = vshrl.u32 %v1936, 7
  %v1938 = vadd.s32 %v1937, 96
  %1939 = vset.pattern.permute.xlu0 %v1938
  %1940 = vperm.xlu0 %1939, %v1863
  %v1941 = vpop.permute.xlu0 %1940
  %v1942 = vlaneseq
  %v1943 = vshrl.u32 %v1942, 7
  %v1944 = vadd.s32 %v1943, 104
  %1945 = vset.pattern.permute.xlu0 %v1944
  %1946 = vperm.xlu0 %1945, %v1863
  %v1947 = vpop.permute.xlu0 %1946
  %v1948 = vlaneseq
  %v1949 = vshrl.u32 %v1948, 7
  %v1950 = vadd.s32 %v1949, 112
  %1951 = vset.pattern.permute.xlu0 %v1950
  %1952 = vperm.xlu0 %1951, %v1863
  %v1953 = vpop.permute.xlu0 %1952
  %v1954 = vlaneseq
  %v1955 = vshrl.u32 %v1954, 7
  %v1956 = vadd.s32 %v1955, 120
  %1957 = vset.pattern.permute.xlu0 %v1956
  %1958 = vperm.xlu0 %1957, %v1863
  %v1959 = vpop.permute.xlu0 %1958
  %v1960 = vperm.slane %v16, 2
  %v1961 = vlaneseq
  %v1962 = vshrl.u32 %v1961, 7
  %1964 = vset.pattern.permute.xlu0 %v1962
  %1965 = vperm.xlu0 %1964, %v1960
  %v1966 = vpop.permute.xlu0 %1965
  %v1967 = vlaneseq
  %v1968 = vshrl.u32 %v1967, 7
  %v1969 = vadd.s32 %v1968, 8
  %1970 = vset.pattern.permute.xlu0 %v1969
  %1971 = vperm.xlu0 %1970, %v1960
  %v1972 = vpop.permute.xlu0 %1971
  %v1973 = vlaneseq
  %v1974 = vshrl.u32 %v1973, 7
  %v1975 = vadd.s32 %v1974, 16
  %1976 = vset.pattern.permute.xlu0 %v1975
  %1977 = vperm.xlu0 %1976, %v1960
  %v1978 = vpop.permute.xlu0 %1977
  %v1979 = vlaneseq
  %v1980 = vshrl.u32 %v1979, 7
  %v1981 = vadd.s32 %v1980, 24
  %1982 = vset.pattern.permute.xlu0 %v1981
  %1983 = vperm.xlu0 %1982, %v1960
  %v1984 = vpop.permute.xlu0 %1983
  %v1985 = vlaneseq
  %v1986 = vshrl.u32 %v1985, 7
  %v1987 = vadd.s32 %v1986, 32
  %1988 = vset.pattern.permute.xlu0 %v1987
  %1989 = vperm.xlu0 %1988, %v1960
  %v1990 = vpop.permute.xlu0 %1989
  %v1991 = vlaneseq
  %v1992 = vshrl.u32 %v1991, 7
  %v1993 = vadd.s32 %v1992, 40
  %1994 = vset.pattern.permute.xlu0 %v1993
  %1995 = vperm.xlu0 %1994, %v1960
  %v1996 = vpop.permute.xlu0 %1995
  %v1997 = vlaneseq
  %v1998 = vshrl.u32 %v1997, 7
  %v1999 = vadd.s32 %v1998, 48
  %2000 = vset.pattern.permute.xlu0 %v1999
  %2001 = vperm.xlu0 %2000, %v1960
  %v2002 = vpop.permute.xlu0 %2001
  %v2003 = vlaneseq
  %v2004 = vshrl.u32 %v2003, 7
  %v2005 = vadd.s32 %v2004, 56
  %2006 = vset.pattern.permute.xlu0 %v2005
  %2007 = vperm.xlu0 %2006, %v1960
  %v2008 = vpop.permute.xlu0 %2007
  %v2009 = vlaneseq
  %v2010 = vshrl.u32 %v2009, 7
  %v2011 = vadd.s32 %v2010, 64
  %2012 = vset.pattern.permute.xlu0 %v2011
  %2013 = vperm.xlu0 %2012, %v1960
  %v2014 = vpop.permute.xlu0 %2013
  %v2015 = vlaneseq
  %v2016 = vshrl.u32 %v2015, 7
  %v2017 = vadd.s32 %v2016, 72
  %2018 = vset.pattern.permute.xlu0 %v2017
  %2019 = vperm.xlu0 %2018, %v1960
  %v2020 = vpop.permute.xlu0 %2019
  %v2021 = vlaneseq
  %v2022 = vshrl.u32 %v2021, 7
  %v2023 = vadd.s32 %v2022, 80
  %2024 = vset.pattern.permute.xlu0 %v2023
  %2025 = vperm.xlu0 %2024, %v1960
  %v2026 = vpop.permute.xlu0 %2025
  %v2027 = vlaneseq
  %v2028 = vshrl.u32 %v2027, 7
  %v2029 = vadd.s32 %v2028, 88
  %2030 = vset.pattern.permute.xlu0 %v2029
  %2031 = vperm.xlu0 %2030, %v1960
  %v2032 = vpop.permute.xlu0 %2031
  %v2033 = vlaneseq
  %v2034 = vshrl.u32 %v2033, 7
  %v2035 = vadd.s32 %v2034, 96
  %2036 = vset.pattern.permute.xlu0 %v2035
  %2037 = vperm.xlu0 %2036, %v1960
  %v2038 = vpop.permute.xlu0 %2037
  %v2039 = vlaneseq
  %v2040 = vshrl.u32 %v2039, 7
  %v2041 = vadd.s32 %v2040, 104
  %2042 = vset.pattern.permute.xlu0 %v2041
  %2043 = vperm.xlu0 %2042, %v1960
  %v2044 = vpop.permute.xlu0 %2043
  %v2045 = vlaneseq
  %v2046 = vshrl.u32 %v2045, 7
  %v2047 = vadd.s32 %v2046, 112
  %2048 = vset.pattern.permute.xlu0 %v2047
  %2049 = vperm.xlu0 %2048, %v1960
  %v2050 = vpop.permute.xlu0 %2049
  %v2051 = vlaneseq
  %v2052 = vshrl.u32 %v2051, 7
  %v2053 = vadd.s32 %v2052, 120
  %2054 = vset.pattern.permute.xlu0 %v2053
  %2055 = vperm.xlu0 %2054, %v1960
  %v2056 = vpop.permute.xlu0 %2055
  %v2057 = vperm.slane %v17, 2
  %v2058 = vlaneseq
  %v2059 = vshrl.u32 %v2058, 7
  %2061 = vset.pattern.permute.xlu0 %v2059
  %2062 = vperm.xlu0 %2061, %v2057
  %v2063 = vpop.permute.xlu0 %2062
  %v2064 = vlaneseq
  %v2065 = vshrl.u32 %v2064, 7
  %v2066 = vadd.s32 %v2065, 8
  %2067 = vset.pattern.permute.xlu0 %v2066
  %2068 = vperm.xlu0 %2067, %v2057
  %v2069 = vpop.permute.xlu0 %2068
  %v2070 = vlaneseq
  %v2071 = vshrl.u32 %v2070, 7
  %v2072 = vadd.s32 %v2071, 16
  %2073 = vset.pattern.permute.xlu0 %v2072
  %2074 = vperm.xlu0 %2073, %v2057
  %v2075 = vpop.permute.xlu0 %2074
  %v2076 = vlaneseq
  %v2077 = vshrl.u32 %v2076, 7
  %v2078 = vadd.s32 %v2077, 24
  %2079 = vset.pattern.permute.xlu0 %v2078
  %2080 = vperm.xlu0 %2079, %v2057
  %v2081 = vpop.permute.xlu0 %2080
  %v2082 = vlaneseq
  %v2083 = vshrl.u32 %v2082, 7
  %v2084 = vadd.s32 %v2083, 32
  %2085 = vset.pattern.permute.xlu0 %v2084
  %2086 = vperm.xlu0 %2085, %v2057
  %v2087 = vpop.permute.xlu0 %2086
  %v2088 = vlaneseq
  %v2089 = vshrl.u32 %v2088, 7
  %v2090 = vadd.s32 %v2089, 40
  %2091 = vset.pattern.permute.xlu0 %v2090
  %2092 = vperm.xlu0 %2091, %v2057
  %v2093 = vpop.permute.xlu0 %2092
  %v2094 = vlaneseq
  %v2095 = vshrl.u32 %v2094, 7
  %v2096 = vadd.s32 %v2095, 48
  %2097 = vset.pattern.permute.xlu0 %v2096
  %2098 = vperm.xlu0 %2097, %v2057
  %v2099 = vpop.permute.xlu0 %2098
  %v2100 = vlaneseq
  %v2101 = vshrl.u32 %v2100, 7
  %v2102 = vadd.s32 %v2101, 56
  %2103 = vset.pattern.permute.xlu0 %v2102
  %2104 = vperm.xlu0 %2103, %v2057
  %v2105 = vpop.permute.xlu0 %2104
  %v2106 = vlaneseq
  %v2107 = vshrl.u32 %v2106, 7
  %v2108 = vadd.s32 %v2107, 64
  %2109 = vset.pattern.permute.xlu0 %v2108
  %2110 = vperm.xlu0 %2109, %v2057
  %v2111 = vpop.permute.xlu0 %2110
  %v2112 = vlaneseq
  %v2113 = vshrl.u32 %v2112, 7
  %v2114 = vadd.s32 %v2113, 72
  %2115 = vset.pattern.permute.xlu0 %v2114
  %2116 = vperm.xlu0 %2115, %v2057
  %v2117 = vpop.permute.xlu0 %2116
  %v2118 = vlaneseq
  %v2119 = vshrl.u32 %v2118, 7
  %v2120 = vadd.s32 %v2119, 80
  %2121 = vset.pattern.permute.xlu0 %v2120
  %2122 = vperm.xlu0 %2121, %v2057
  %v2123 = vpop.permute.xlu0 %2122
  %v2124 = vlaneseq
  %v2125 = vshrl.u32 %v2124, 7
  %v2126 = vadd.s32 %v2125, 88
  %2127 = vset.pattern.permute.xlu0 %v2126
  %2128 = vperm.xlu0 %2127, %v2057
  %v2129 = vpop.permute.xlu0 %2128
  %v2130 = vlaneseq
  %v2131 = vshrl.u32 %v2130, 7
  %v2132 = vadd.s32 %v2131, 96
  %2133 = vset.pattern.permute.xlu0 %v2132
  %2134 = vperm.xlu0 %2133, %v2057
  %v2135 = vpop.permute.xlu0 %2134
  %v2136 = vlaneseq
  %v2137 = vshrl.u32 %v2136, 7
  %v2138 = vadd.s32 %v2137, 104
  %2139 = vset.pattern.permute.xlu0 %v2138
  %2140 = vperm.xlu0 %2139, %v2057
  %v2141 = vpop.permute.xlu0 %2140
  %v2142 = vlaneseq
  %v2143 = vshrl.u32 %v2142, 7
  %v2144 = vadd.s32 %v2143, 112
  %2145 = vset.pattern.permute.xlu0 %v2144
  %2146 = vperm.xlu0 %2145, %v2057
  %v2147 = vpop.permute.xlu0 %2146
  %v2148 = vlaneseq
  %v2149 = vshrl.u32 %v2148, 7
  %v2150 = vadd.s32 %v2149, 120
  %2151 = vset.pattern.permute.xlu0 %v2150
  %2152 = vperm.xlu0 %2151, %v2057
  %v2153 = vpop.permute.xlu0 %2152
  %v2154 = vperm.slane %v16, 3
  %v2155 = vlaneseq
  %v2156 = vshrl.u32 %v2155, 7
  %2158 = vset.pattern.permute.xlu0 %v2156
  %2159 = vperm.xlu0 %2158, %v2154
  %v2160 = vpop.permute.xlu0 %2159
  %v2161 = vlaneseq
  %v2162 = vshrl.u32 %v2161, 7
  %v2163 = vadd.s32 %v2162, 8
  %2164 = vset.pattern.permute.xlu0 %v2163
  %2165 = vperm.xlu0 %2164, %v2154
  %v2166 = vpop.permute.xlu0 %2165
  %v2167 = vlaneseq
  %v2168 = vshrl.u32 %v2167, 7
  %v2169 = vadd.s32 %v2168, 16
  %2170 = vset.pattern.permute.xlu0 %v2169
  %2171 = vperm.xlu0 %2170, %v2154
  %v2172 = vpop.permute.xlu0 %2171
  %v2173 = vlaneseq
  %v2174 = vshrl.u32 %v2173, 7
  %v2175 = vadd.s32 %v2174, 24
  %2176 = vset.pattern.permute.xlu0 %v2175
  %2177 = vperm.xlu0 %2176, %v2154
  %v2178 = vpop.permute.xlu0 %2177
  %v2179 = vlaneseq
  %v2180 = vshrl.u32 %v2179, 7
  %v2181 = vadd.s32 %v2180, 32
  %2182 = vset.pattern.permute.xlu0 %v2181
  %2183 = vperm.xlu0 %2182, %v2154
  %v2184 = vpop.permute.xlu0 %2183
  %v2185 = vlaneseq
  %v2186 = vshrl.u32 %v2185, 7
  %v2187 = vadd.s32 %v2186, 40
  %2188 = vset.pattern.permute.xlu0 %v2187
  %2189 = vperm.xlu0 %2188, %v2154
  %v2190 = vpop.permute.xlu0 %2189
  %v2191 = vlaneseq
  %v2192 = vshrl.u32 %v2191, 7
  %v2193 = vadd.s32 %v2192, 48
  %2194 = vset.pattern.permute.xlu0 %v2193
  %2195 = vperm.xlu0 %2194, %v2154
  %v2196 = vpop.permute.xlu0 %2195
  %v2197 = vlaneseq
  %v2198 = vshrl.u32 %v2197, 7
  %v2199 = vadd.s32 %v2198, 56
  %2200 = vset.pattern.permute.xlu0 %v2199
  %2201 = vperm.xlu0 %2200, %v2154
  %v2202 = vpop.permute.xlu0 %2201
  %v2203 = vlaneseq
  %v2204 = vshrl.u32 %v2203, 7
  %v2205 = vadd.s32 %v2204, 64
  %2206 = vset.pattern.permute.xlu0 %v2205
  %2207 = vperm.xlu0 %2206, %v2154
  %v2208 = vpop.permute.xlu0 %2207
  %v2209 = vlaneseq
  %v2210 = vshrl.u32 %v2209, 7
  %v2211 = vadd.s32 %v2210, 72
  %2212 = vset.pattern.permute.xlu0 %v2211
  %2213 = vperm.xlu0 %2212, %v2154
  %v2214 = vpop.permute.xlu0 %2213
  %v2215 = vlaneseq
  %v2216 = vshrl.u32 %v2215, 7
  %v2217 = vadd.s32 %v2216, 80
  %2218 = vset.pattern.permute.xlu0 %v2217
  %2219 = vperm.xlu0 %2218, %v2154
  %v2220 = vpop.permute.xlu0 %2219
  %v2221 = vlaneseq
  %v2222 = vshrl.u32 %v2221, 7
  %v2223 = vadd.s32 %v2222, 88
  %2224 = vset.pattern.permute.xlu0 %v2223
  %2225 = vperm.xlu0 %2224, %v2154
  %v2226 = vpop.permute.xlu0 %2225
  %v2227 = vlaneseq
  %v2228 = vshrl.u32 %v2227, 7
  %v2229 = vadd.s32 %v2228, 96
  %2230 = vset.pattern.permute.xlu0 %v2229
  %2231 = vperm.xlu0 %2230, %v2154
  %v2232 = vpop.permute.xlu0 %2231
  %v2233 = vlaneseq
  %v2234 = vshrl.u32 %v2233, 7
  %v2235 = vadd.s32 %v2234, 104
  %2236 = vset.pattern.permute.xlu0 %v2235
  %2237 = vperm.xlu0 %2236, %v2154
  %v2238 = vpop.permute.xlu0 %2237
  %v2239 = vlaneseq
  %v2240 = vshrl.u32 %v2239, 7
  %v2241 = vadd.s32 %v2240, 112
  %2242 = vset.pattern.permute.xlu0 %v2241
  %2243 = vperm.xlu0 %2242, %v2154
  %v2244 = vpop.permute.xlu0 %2243
  %v2245 = vlaneseq
  %v2246 = vshrl.u32 %v2245, 7
  %v2247 = vadd.s32 %v2246, 120
  %2248 = vset.pattern.permute.xlu0 %v2247
  %2249 = vperm.xlu0 %2248, %v2154
  %v2250 = vpop.permute.xlu0 %2249
  %v2251 = vperm.slane %v17, 3
  %v2252 = vlaneseq
  %v2253 = vshrl.u32 %v2252, 7
  %2255 = vset.pattern.permute.xlu0 %v2253
  %2256 = vperm.xlu0 %2255, %v2251
  %v2257 = vpop.permute.xlu0 %2256
  %v2258 = vlaneseq
  %v2259 = vshrl.u32 %v2258, 7
  %v2260 = vadd.s32 %v2259, 8
  %2261 = vset.pattern.permute.xlu0 %v2260
  %2262 = vperm.xlu0 %2261, %v2251
  %v2263 = vpop.permute.xlu0 %2262
  %v2264 = vlaneseq
  %v2265 = vshrl.u32 %v2264, 7
  %v2266 = vadd.s32 %v2265, 16
  %2267 = vset.pattern.permute.xlu0 %v2266
  %2268 = vperm.xlu0 %2267, %v2251
  %v2269 = vpop.permute.xlu0 %2268
  %v2270 = vlaneseq
  %v2271 = vshrl.u32 %v2270, 7
  %v2272 = vadd.s32 %v2271, 24
  %2273 = vset.pattern.permute.xlu0 %v2272
  %2274 = vperm.xlu0 %2273, %v2251
  %v2275 = vpop.permute.xlu0 %2274
  %v2276 = vlaneseq
  %v2277 = vshrl.u32 %v2276, 7
  %v2278 = vadd.s32 %v2277, 32
  %2279 = vset.pattern.permute.xlu0 %v2278
  %2280 = vperm.xlu0 %2279, %v2251
  %v2281 = vpop.permute.xlu0 %2280
  %v2282 = vlaneseq
  %v2283 = vshrl.u32 %v2282, 7
  %v2284 = vadd.s32 %v2283, 40
  %2285 = vset.pattern.permute.xlu0 %v2284
  %2286 = vperm.xlu0 %2285, %v2251
  %v2287 = vpop.permute.xlu0 %2286
  %v2288 = vlaneseq
  %v2289 = vshrl.u32 %v2288, 7
  %v2290 = vadd.s32 %v2289, 48
  %2291 = vset.pattern.permute.xlu0 %v2290
  %2292 = vperm.xlu0 %2291, %v2251
  %v2293 = vpop.permute.xlu0 %2292
  %v2294 = vlaneseq
  %v2295 = vshrl.u32 %v2294, 7
  %v2296 = vadd.s32 %v2295, 56
  %2297 = vset.pattern.permute.xlu0 %v2296
  %2298 = vperm.xlu0 %2297, %v2251
  %v2299 = vpop.permute.xlu0 %2298
  %v2300 = vlaneseq
  %v2301 = vshrl.u32 %v2300, 7
  %v2302 = vadd.s32 %v2301, 64
  %2303 = vset.pattern.permute.xlu0 %v2302
  %2304 = vperm.xlu0 %2303, %v2251
  %v2305 = vpop.permute.xlu0 %2304
  %v2306 = vlaneseq
  %v2307 = vshrl.u32 %v2306, 7
  %v2308 = vadd.s32 %v2307, 72
  %2309 = vset.pattern.permute.xlu0 %v2308
  %2310 = vperm.xlu0 %2309, %v2251
  %v2311 = vpop.permute.xlu0 %2310
  %v2312 = vlaneseq
  %v2313 = vshrl.u32 %v2312, 7
  %v2314 = vadd.s32 %v2313, 80
  %2315 = vset.pattern.permute.xlu0 %v2314
  %2316 = vperm.xlu0 %2315, %v2251
  %v2317 = vpop.permute.xlu0 %2316
  %v2318 = vlaneseq
  %v2319 = vshrl.u32 %v2318, 7
  %v2320 = vadd.s32 %v2319, 88
  %2321 = vset.pattern.permute.xlu0 %v2320
  %2322 = vperm.xlu0 %2321, %v2251
  %v2323 = vpop.permute.xlu0 %2322
  %v2324 = vlaneseq
  %v2325 = vshrl.u32 %v2324, 7
  %v2326 = vadd.s32 %v2325, 96
  %2327 = vset.pattern.permute.xlu0 %v2326
  %2328 = vperm.xlu0 %2327, %v2251
  %v2329 = vpop.permute.xlu0 %2328
  %v2330 = vlaneseq
  %v2331 = vshrl.u32 %v2330, 7
  %v2332 = vadd.s32 %v2331, 104
  %2333 = vset.pattern.permute.xlu0 %v2332
  %2334 = vperm.xlu0 %2333, %v2251
  %v2335 = vpop.permute.xlu0 %2334
  %v2336 = vlaneseq
  %v2337 = vshrl.u32 %v2336, 7
  %v2338 = vadd.s32 %v2337, 112
  %2339 = vset.pattern.permute.xlu0 %v2338
  %2340 = vperm.xlu0 %2339, %v2251
  %v2341 = vpop.permute.xlu0 %2340
  %v2342 = vlaneseq
  %v2343 = vshrl.u32 %v2342, 7
  %v2344 = vadd.s32 %v2343, 120
  %2345 = vset.pattern.permute.xlu0 %v2344
  %2346 = vperm.xlu0 %2345, %v2251
  %v2347 = vpop.permute.xlu0 %2346
  %v2348 = vperm.slane %v16, 4
  %v2349 = vlaneseq
  %v2350 = vshrl.u32 %v2349, 7
  %2352 = vset.pattern.permute.xlu0 %v2350
  %2353 = vperm.xlu0 %2352, %v2348
  %v2354 = vpop.permute.xlu0 %2353
  %v2355 = vlaneseq
  %v2356 = vshrl.u32 %v2355, 7
  %v2357 = vadd.s32 %v2356, 8
  %2358 = vset.pattern.permute.xlu0 %v2357
  %2359 = vperm.xlu0 %2358, %v2348
  %v2360 = vpop.permute.xlu0 %2359
  %v2361 = vlaneseq
  %v2362 = vshrl.u32 %v2361, 7
  %v2363 = vadd.s32 %v2362, 16
  %2364 = vset.pattern.permute.xlu0 %v2363
  %2365 = vperm.xlu0 %2364, %v2348
  %v2366 = vpop.permute.xlu0 %2365
  %v2367 = vlaneseq
  %v2368 = vshrl.u32 %v2367, 7
  %v2369 = vadd.s32 %v2368, 24
  %2370 = vset.pattern.permute.xlu0 %v2369
  %2371 = vperm.xlu0 %2370, %v2348
  %v2372 = vpop.permute.xlu0 %2371
  %v2373 = vlaneseq
  %v2374 = vshrl.u32 %v2373, 7
  %v2375 = vadd.s32 %v2374, 32
  %2376 = vset.pattern.permute.xlu0 %v2375
  %2377 = vperm.xlu0 %2376, %v2348
  %v2378 = vpop.permute.xlu0 %2377
  %v2379 = vlaneseq
  %v2380 = vshrl.u32 %v2379, 7
  %v2381 = vadd.s32 %v2380, 40
  %2382 = vset.pattern.permute.xlu0 %v2381
  %2383 = vperm.xlu0 %2382, %v2348
  %v2384 = vpop.permute.xlu0 %2383
  %v2385 = vlaneseq
  %v2386 = vshrl.u32 %v2385, 7
  %v2387 = vadd.s32 %v2386, 48
  %2388 = vset.pattern.permute.xlu0 %v2387
  %2389 = vperm.xlu0 %2388, %v2348
  %v2390 = vpop.permute.xlu0 %2389
  %v2391 = vlaneseq
  %v2392 = vshrl.u32 %v2391, 7
  %v2393 = vadd.s32 %v2392, 56
  %2394 = vset.pattern.permute.xlu0 %v2393
  %2395 = vperm.xlu0 %2394, %v2348
  %v2396 = vpop.permute.xlu0 %2395
  %v2397 = vlaneseq
  %v2398 = vshrl.u32 %v2397, 7
  %v2399 = vadd.s32 %v2398, 64
  %2400 = vset.pattern.permute.xlu0 %v2399
  %2401 = vperm.xlu0 %2400, %v2348
  %v2402 = vpop.permute.xlu0 %2401
  %v2403 = vlaneseq
  %v2404 = vshrl.u32 %v2403, 7
  %v2405 = vadd.s32 %v2404, 72
  %2406 = vset.pattern.permute.xlu0 %v2405
  %2407 = vperm.xlu0 %2406, %v2348
  %v2408 = vpop.permute.xlu0 %2407
  %v2409 = vlaneseq
  %v2410 = vshrl.u32 %v2409, 7
  %v2411 = vadd.s32 %v2410, 80
  %2412 = vset.pattern.permute.xlu0 %v2411
  %2413 = vperm.xlu0 %2412, %v2348
  %v2414 = vpop.permute.xlu0 %2413
  %v2415 = vlaneseq
  %v2416 = vshrl.u32 %v2415, 7
  %v2417 = vadd.s32 %v2416, 88
  %2418 = vset.pattern.permute.xlu0 %v2417
  %2419 = vperm.xlu0 %2418, %v2348
  %v2420 = vpop.permute.xlu0 %2419
  %v2421 = vlaneseq
  %v2422 = vshrl.u32 %v2421, 7
  %v2423 = vadd.s32 %v2422, 96
  %2424 = vset.pattern.permute.xlu0 %v2423
  %2425 = vperm.xlu0 %2424, %v2348
  %v2426 = vpop.permute.xlu0 %2425
  %v2427 = vlaneseq
  %v2428 = vshrl.u32 %v2427, 7
  %v2429 = vadd.s32 %v2428, 104
  %2430 = vset.pattern.permute.xlu0 %v2429
  %2431 = vperm.xlu0 %2430, %v2348
  %v2432 = vpop.permute.xlu0 %2431
  %v2433 = vlaneseq
  %v2434 = vshrl.u32 %v2433, 7
  %v2435 = vadd.s32 %v2434, 112
  %2436 = vset.pattern.permute.xlu0 %v2435
  %2437 = vperm.xlu0 %2436, %v2348
  %v2438 = vpop.permute.xlu0 %2437
  %v2439 = vlaneseq
  %v2440 = vshrl.u32 %v2439, 7
  %v2441 = vadd.s32 %v2440, 120
  %2442 = vset.pattern.permute.xlu0 %v2441
  %2443 = vperm.xlu0 %2442, %v2348
  %v2444 = vpop.permute.xlu0 %2443
  %v2445 = vperm.slane %v17, 4
  %v2446 = vlaneseq
  %v2447 = vshrl.u32 %v2446, 7
  %2449 = vset.pattern.permute.xlu0 %v2447
  %2450 = vperm.xlu0 %2449, %v2445
  %v2451 = vpop.permute.xlu0 %2450
  %v2452 = vlaneseq
  %v2453 = vshrl.u32 %v2452, 7
  %v2454 = vadd.s32 %v2453, 8
  %2455 = vset.pattern.permute.xlu0 %v2454
  %2456 = vperm.xlu0 %2455, %v2445
  %v2457 = vpop.permute.xlu0 %2456
  %v2458 = vlaneseq
  %v2459 = vshrl.u32 %v2458, 7
  %v2460 = vadd.s32 %v2459, 16
  %2461 = vset.pattern.permute.xlu0 %v2460
  %2462 = vperm.xlu0 %2461, %v2445
  %v2463 = vpop.permute.xlu0 %2462
  %v2464 = vlaneseq
  %v2465 = vshrl.u32 %v2464, 7
  %v2466 = vadd.s32 %v2465, 24
  %2467 = vset.pattern.permute.xlu0 %v2466
  %2468 = vperm.xlu0 %2467, %v2445
  %v2469 = vpop.permute.xlu0 %2468
  %v2470 = vlaneseq
  %v2471 = vshrl.u32 %v2470, 7
  %v2472 = vadd.s32 %v2471, 32
  %2473 = vset.pattern.permute.xlu0 %v2472
  %2474 = vperm.xlu0 %2473, %v2445
  %v2475 = vpop.permute.xlu0 %2474
  %v2476 = vlaneseq
  %v2477 = vshrl.u32 %v2476, 7
  %v2478 = vadd.s32 %v2477, 40
  %2479 = vset.pattern.permute.xlu0 %v2478
  %2480 = vperm.xlu0 %2479, %v2445
  %v2481 = vpop.permute.xlu0 %2480
  %v2482 = vlaneseq
  %v2483 = vshrl.u32 %v2482, 7
  %v2484 = vadd.s32 %v2483, 48
  %2485 = vset.pattern.permute.xlu0 %v2484
  %2486 = vperm.xlu0 %2485, %v2445
  %v2487 = vpop.permute.xlu0 %2486
  %v2488 = vlaneseq
  %v2489 = vshrl.u32 %v2488, 7
  %v2490 = vadd.s32 %v2489, 56
  %2491 = vset.pattern.permute.xlu0 %v2490
  %2492 = vperm.xlu0 %2491, %v2445
  %v2493 = vpop.permute.xlu0 %2492
  %v2494 = vlaneseq
  %v2495 = vshrl.u32 %v2494, 7
  %v2496 = vadd.s32 %v2495, 64
  %2497 = vset.pattern.permute.xlu0 %v2496
  %2498 = vperm.xlu0 %2497, %v2445
  %v2499 = vpop.permute.xlu0 %2498
  %v2500 = vlaneseq
  %v2501 = vshrl.u32 %v2500, 7
  %v2502 = vadd.s32 %v2501, 72
  %2503 = vset.pattern.permute.xlu0 %v2502
  %2504 = vperm.xlu0 %2503, %v2445
  %v2505 = vpop.permute.xlu0 %2504
  %v2506 = vlaneseq
  %v2507 = vshrl.u32 %v2506, 7
  %v2508 = vadd.s32 %v2507, 80
  %2509 = vset.pattern.permute.xlu0 %v2508
  %2510 = vperm.xlu0 %2509, %v2445
  %v2511 = vpop.permute.xlu0 %2510
  %v2512 = vlaneseq
  %v2513 = vshrl.u32 %v2512, 7
  %v2514 = vadd.s32 %v2513, 88
  %2515 = vset.pattern.permute.xlu0 %v2514
  %2516 = vperm.xlu0 %2515, %v2445
  %v2517 = vpop.permute.xlu0 %2516
  %v2518 = vlaneseq
  %v2519 = vshrl.u32 %v2518, 7
  %v2520 = vadd.s32 %v2519, 96
  %2521 = vset.pattern.permute.xlu0 %v2520
  %2522 = vperm.xlu0 %2521, %v2445
  %v2523 = vpop.permute.xlu0 %2522
  %v2524 = vlaneseq
  %v2525 = vshrl.u32 %v2524, 7
  %v2526 = vadd.s32 %v2525, 104
  %2527 = vset.pattern.permute.xlu0 %v2526
  %2528 = vperm.xlu0 %2527, %v2445
  %v2529 = vpop.permute.xlu0 %2528
  %v2530 = vlaneseq
  %v2531 = vshrl.u32 %v2530, 7
  %v2532 = vadd.s32 %v2531, 112
  %2533 = vset.pattern.permute.xlu0 %v2532
  %2534 = vperm.xlu0 %2533, %v2445
  %v2535 = vpop.permute.xlu0 %2534
  %v2536 = vlaneseq
  %v2537 = vshrl.u32 %v2536, 7
  %v2538 = vadd.s32 %v2537, 120
  %2539 = vset.pattern.permute.xlu0 %v2538
  %2540 = vperm.xlu0 %2539, %v2445
  %v2541 = vpop.permute.xlu0 %2540
  %v2542 = vperm.slane %v16, 5
  %v2543 = vlaneseq
  %v2544 = vshrl.u32 %v2543, 7
  %2546 = vset.pattern.permute.xlu0 %v2544
  %2547 = vperm.xlu0 %2546, %v2542
  %v2548 = vpop.permute.xlu0 %2547
  %v2549 = vlaneseq
  %v2550 = vshrl.u32 %v2549, 7
  %v2551 = vadd.s32 %v2550, 8
  %2552 = vset.pattern.permute.xlu0 %v2551
  %2553 = vperm.xlu0 %2552, %v2542
  %v2554 = vpop.permute.xlu0 %2553
  %v2555 = vlaneseq
  %v2556 = vshrl.u32 %v2555, 7
  %v2557 = vadd.s32 %v2556, 16
  %2558 = vset.pattern.permute.xlu0 %v2557
  %2559 = vperm.xlu0 %2558, %v2542
  %v2560 = vpop.permute.xlu0 %2559
  %v2561 = vlaneseq
  %v2562 = vshrl.u32 %v2561, 7
  %v2563 = vadd.s32 %v2562, 24
  %2564 = vset.pattern.permute.xlu0 %v2563
  %2565 = vperm.xlu0 %2564, %v2542
  %v2566 = vpop.permute.xlu0 %2565
  %v2567 = vlaneseq
  %v2568 = vshrl.u32 %v2567, 7
  %v2569 = vadd.s32 %v2568, 32
  %2570 = vset.pattern.permute.xlu0 %v2569
  %2571 = vperm.xlu0 %2570, %v2542
  %v2572 = vpop.permute.xlu0 %2571
  %v2573 = vlaneseq
  %v2574 = vshrl.u32 %v2573, 7
  %v2575 = vadd.s32 %v2574, 40
  %2576 = vset.pattern.permute.xlu0 %v2575
  %2577 = vperm.xlu0 %2576, %v2542
  %v2578 = vpop.permute.xlu0 %2577
  %v2579 = vlaneseq
  %v2580 = vshrl.u32 %v2579, 7
  %v2581 = vadd.s32 %v2580, 48
  %2582 = vset.pattern.permute.xlu0 %v2581
  %2583 = vperm.xlu0 %2582, %v2542
  %v2584 = vpop.permute.xlu0 %2583
  %v2585 = vlaneseq
  %v2586 = vshrl.u32 %v2585, 7
  %v2587 = vadd.s32 %v2586, 56
  %2588 = vset.pattern.permute.xlu0 %v2587
  %2589 = vperm.xlu0 %2588, %v2542
  %v2590 = vpop.permute.xlu0 %2589
  %v2591 = vlaneseq
  %v2592 = vshrl.u32 %v2591, 7
  %v2593 = vadd.s32 %v2592, 64
  %2594 = vset.pattern.permute.xlu0 %v2593
  %2595 = vperm.xlu0 %2594, %v2542
  %v2596 = vpop.permute.xlu0 %2595
  %v2597 = vlaneseq
  %v2598 = vshrl.u32 %v2597, 7
  %v2599 = vadd.s32 %v2598, 72
  %2600 = vset.pattern.permute.xlu0 %v2599
  %2601 = vperm.xlu0 %2600, %v2542
  %v2602 = vpop.permute.xlu0 %2601
  %v2603 = vlaneseq
  %v2604 = vshrl.u32 %v2603, 7
  %v2605 = vadd.s32 %v2604, 80
  %2606 = vset.pattern.permute.xlu0 %v2605
  %2607 = vperm.xlu0 %2606, %v2542
  %v2608 = vpop.permute.xlu0 %2607
  %v2609 = vlaneseq
  %v2610 = vshrl.u32 %v2609, 7
  %v2611 = vadd.s32 %v2610, 88
  %2612 = vset.pattern.permute.xlu0 %v2611
  %2613 = vperm.xlu0 %2612, %v2542
  %v2614 = vpop.permute.xlu0 %2613
  %v2615 = vlaneseq
  %v2616 = vshrl.u32 %v2615, 7
  %v2617 = vadd.s32 %v2616, 96
  %2618 = vset.pattern.permute.xlu0 %v2617
  %2619 = vperm.xlu0 %2618, %v2542
  %v2620 = vpop.permute.xlu0 %2619
  %v2621 = vlaneseq
  %v2622 = vshrl.u32 %v2621, 7
  %v2623 = vadd.s32 %v2622, 104
  %2624 = vset.pattern.permute.xlu0 %v2623
  %2625 = vperm.xlu0 %2624, %v2542
  %v2626 = vpop.permute.xlu0 %2625
  %v2627 = vlaneseq
  %v2628 = vshrl.u32 %v2627, 7
  %v2629 = vadd.s32 %v2628, 112
  %2630 = vset.pattern.permute.xlu0 %v2629
  %2631 = vperm.xlu0 %2630, %v2542
  %v2632 = vpop.permute.xlu0 %2631
  %v2633 = vlaneseq
  %v2634 = vshrl.u32 %v2633, 7
  %v2635 = vadd.s32 %v2634, 120
  %2636 = vset.pattern.permute.xlu0 %v2635
  %2637 = vperm.xlu0 %2636, %v2542
  %v2638 = vpop.permute.xlu0 %2637
  %v2639 = vperm.slane %v17, 5
  %v2640 = vlaneseq
  %v2641 = vshrl.u32 %v2640, 7
  %2643 = vset.pattern.permute.xlu0 %v2641
  %2644 = vperm.xlu0 %2643, %v2639
  %v2645 = vpop.permute.xlu0 %2644
  %v2646 = vlaneseq
  %v2647 = vshrl.u32 %v2646, 7
  %v2648 = vadd.s32 %v2647, 8
  %2649 = vset.pattern.permute.xlu0 %v2648
  %2650 = vperm.xlu0 %2649, %v2639
  %v2651 = vpop.permute.xlu0 %2650
  %v2652 = vlaneseq
  %v2653 = vshrl.u32 %v2652, 7
  %v2654 = vadd.s32 %v2653, 16
  %2655 = vset.pattern.permute.xlu0 %v2654
  %2656 = vperm.xlu0 %2655, %v2639
  %v2657 = vpop.permute.xlu0 %2656
  %v2658 = vlaneseq
  %v2659 = vshrl.u32 %v2658, 7
  %v2660 = vadd.s32 %v2659, 24
  %2661 = vset.pattern.permute.xlu0 %v2660
  %2662 = vperm.xlu0 %2661, %v2639
  %v2663 = vpop.permute.xlu0 %2662
  %v2664 = vlaneseq
  %v2665 = vshrl.u32 %v2664, 7
  %v2666 = vadd.s32 %v2665, 32
  %2667 = vset.pattern.permute.xlu0 %v2666
  %2668 = vperm.xlu0 %2667, %v2639
  %v2669 = vpop.permute.xlu0 %2668
  %v2670 = vlaneseq
  %v2671 = vshrl.u32 %v2670, 7
  %v2672 = vadd.s32 %v2671, 40
  %2673 = vset.pattern.permute.xlu0 %v2672
  %2674 = vperm.xlu0 %2673, %v2639
  %v2675 = vpop.permute.xlu0 %2674
  %v2676 = vlaneseq
  %v2677 = vshrl.u32 %v2676, 7
  %v2678 = vadd.s32 %v2677, 48
  %2679 = vset.pattern.permute.xlu0 %v2678
  %2680 = vperm.xlu0 %2679, %v2639
  %v2681 = vpop.permute.xlu0 %2680
  %v2682 = vlaneseq
  %v2683 = vshrl.u32 %v2682, 7
  %v2684 = vadd.s32 %v2683, 56
  %2685 = vset.pattern.permute.xlu0 %v2684
  %2686 = vperm.xlu0 %2685, %v2639
  %v2687 = vpop.permute.xlu0 %2686
  %v2688 = vlaneseq
  %v2689 = vshrl.u32 %v2688, 7
  %v2690 = vadd.s32 %v2689, 64
  %2691 = vset.pattern.permute.xlu0 %v2690
  %2692 = vperm.xlu0 %2691, %v2639
  %v2693 = vpop.permute.xlu0 %2692
  %v2694 = vlaneseq
  %v2695 = vshrl.u32 %v2694, 7
  %v2696 = vadd.s32 %v2695, 72
  %2697 = vset.pattern.permute.xlu0 %v2696
  %2698 = vperm.xlu0 %2697, %v2639
  %v2699 = vpop.permute.xlu0 %2698
  %v2700 = vlaneseq
  %v2701 = vshrl.u32 %v2700, 7
  %v2702 = vadd.s32 %v2701, 80
  %2703 = vset.pattern.permute.xlu0 %v2702
  %2704 = vperm.xlu0 %2703, %v2639
  %v2705 = vpop.permute.xlu0 %2704
  %v2706 = vlaneseq
  %v2707 = vshrl.u32 %v2706, 7
  %v2708 = vadd.s32 %v2707, 88
  %2709 = vset.pattern.permute.xlu0 %v2708
  %2710 = vperm.xlu0 %2709, %v2639
  %v2711 = vpop.permute.xlu0 %2710
  %v2712 = vlaneseq
  %v2713 = vshrl.u32 %v2712, 7
  %v2714 = vadd.s32 %v2713, 96
  %2715 = vset.pattern.permute.xlu0 %v2714
  %2716 = vperm.xlu0 %2715, %v2639
  %v2717 = vpop.permute.xlu0 %2716
  %v2718 = vlaneseq
  %v2719 = vshrl.u32 %v2718, 7
  %v2720 = vadd.s32 %v2719, 104
  %2721 = vset.pattern.permute.xlu0 %v2720
  %2722 = vperm.xlu0 %2721, %v2639
  %v2723 = vpop.permute.xlu0 %2722
  %v2724 = vlaneseq
  %v2725 = vshrl.u32 %v2724, 7
  %v2726 = vadd.s32 %v2725, 112
  %2727 = vset.pattern.permute.xlu0 %v2726
  %2728 = vperm.xlu0 %2727, %v2639
  %v2729 = vpop.permute.xlu0 %2728
  %v2730 = vlaneseq
  %v2731 = vshrl.u32 %v2730, 7
  %v2732 = vadd.s32 %v2731, 120
  %2733 = vset.pattern.permute.xlu0 %v2732
  %2734 = vperm.xlu0 %2733, %v2639
  %v2735 = vpop.permute.xlu0 %2734
  %v2736 = vperm.slane %v16, 6
  %v2737 = vlaneseq
  %v2738 = vshrl.u32 %v2737, 7
  %2740 = vset.pattern.permute.xlu0 %v2738
  %2741 = vperm.xlu0 %2740, %v2736
  %v2742 = vpop.permute.xlu0 %2741
  %v2743 = vlaneseq
  %v2744 = vshrl.u32 %v2743, 7
  %v2745 = vadd.s32 %v2744, 8
  %2746 = vset.pattern.permute.xlu0 %v2745
  %2747 = vperm.xlu0 %2746, %v2736
  %v2748 = vpop.permute.xlu0 %2747
  %v2749 = vlaneseq
  %v2750 = vshrl.u32 %v2749, 7
  %v2751 = vadd.s32 %v2750, 16
  %2752 = vset.pattern.permute.xlu0 %v2751
  %2753 = vperm.xlu0 %2752, %v2736
  %v2754 = vpop.permute.xlu0 %2753
  %v2755 = vlaneseq
  %v2756 = vshrl.u32 %v2755, 7
  %v2757 = vadd.s32 %v2756, 24
  %2758 = vset.pattern.permute.xlu0 %v2757
  %2759 = vperm.xlu0 %2758, %v2736
  %v2760 = vpop.permute.xlu0 %2759
  %v2761 = vlaneseq
  %v2762 = vshrl.u32 %v2761, 7
  %v2763 = vadd.s32 %v2762, 32
  %2764 = vset.pattern.permute.xlu0 %v2763
  %2765 = vperm.xlu0 %2764, %v2736
  %v2766 = vpop.permute.xlu0 %2765
  %v2767 = vlaneseq
  %v2768 = vshrl.u32 %v2767, 7
  %v2769 = vadd.s32 %v2768, 40
  %2770 = vset.pattern.permute.xlu0 %v2769
  %2771 = vperm.xlu0 %2770, %v2736
  %v2772 = vpop.permute.xlu0 %2771
  %v2773 = vlaneseq
  %v2774 = vshrl.u32 %v2773, 7
  %v2775 = vadd.s32 %v2774, 48
  %2776 = vset.pattern.permute.xlu0 %v2775
  %2777 = vperm.xlu0 %2776, %v2736
  %v2778 = vpop.permute.xlu0 %2777
  %v2779 = vlaneseq
  %v2780 = vshrl.u32 %v2779, 7
  %v2781 = vadd.s32 %v2780, 56
  %2782 = vset.pattern.permute.xlu0 %v2781
  %2783 = vperm.xlu0 %2782, %v2736
  %v2784 = vpop.permute.xlu0 %2783
  %v2785 = vlaneseq
  %v2786 = vshrl.u32 %v2785, 7
  %v2787 = vadd.s32 %v2786, 64
  %2788 = vset.pattern.permute.xlu0 %v2787
  %2789 = vperm.xlu0 %2788, %v2736
  %v2790 = vpop.permute.xlu0 %2789
  %v2791 = vlaneseq
  %v2792 = vshrl.u32 %v2791, 7
  %v2793 = vadd.s32 %v2792, 72
  %2794 = vset.pattern.permute.xlu0 %v2793
  %2795 = vperm.xlu0 %2794, %v2736
  %v2796 = vpop.permute.xlu0 %2795
  %v2797 = vlaneseq
  %v2798 = vshrl.u32 %v2797, 7
  %v2799 = vadd.s32 %v2798, 80
  %2800 = vset.pattern.permute.xlu0 %v2799
  %2801 = vperm.xlu0 %2800, %v2736
  %v2802 = vpop.permute.xlu0 %2801
  %v2803 = vlaneseq
  %v2804 = vshrl.u32 %v2803, 7
  %v2805 = vadd.s32 %v2804, 88
  %2806 = vset.pattern.permute.xlu0 %v2805
  %2807 = vperm.xlu0 %2806, %v2736
  %v2808 = vpop.permute.xlu0 %2807
  %v2809 = vlaneseq
  %v2810 = vshrl.u32 %v2809, 7
  %v2811 = vadd.s32 %v2810, 96
  %2812 = vset.pattern.permute.xlu0 %v2811
  %2813 = vperm.xlu0 %2812, %v2736
  %v2814 = vpop.permute.xlu0 %2813
  %v2815 = vlaneseq
  %v2816 = vshrl.u32 %v2815, 7
  %v2817 = vadd.s32 %v2816, 104
  %2818 = vset.pattern.permute.xlu0 %v2817
  %2819 = vperm.xlu0 %2818, %v2736
  %v2820 = vpop.permute.xlu0 %2819
  %v2821 = vlaneseq
  %v2822 = vshrl.u32 %v2821, 7
  %v2823 = vadd.s32 %v2822, 112
  %2824 = vset.pattern.permute.xlu0 %v2823
  %2825 = vperm.xlu0 %2824, %v2736
  %v2826 = vpop.permute.xlu0 %2825
  %v2827 = vlaneseq
  %v2828 = vshrl.u32 %v2827, 7
  %v2829 = vadd.s32 %v2828, 120
  %2830 = vset.pattern.permute.xlu0 %v2829
  %2831 = vperm.xlu0 %2830, %v2736
  %v2832 = vpop.permute.xlu0 %2831
  %v2833 = vperm.slane %v17, 6
  %v2834 = vlaneseq
  %v2835 = vshrl.u32 %v2834, 7
  %2837 = vset.pattern.permute.xlu0 %v2835
  %2838 = vperm.xlu0 %2837, %v2833
  %v2839 = vpop.permute.xlu0 %2838
  %v2840 = vlaneseq
  %v2841 = vshrl.u32 %v2840, 7
  %v2842 = vadd.s32 %v2841, 8
  %2843 = vset.pattern.permute.xlu0 %v2842
  %2844 = vperm.xlu0 %2843, %v2833
  %v2845 = vpop.permute.xlu0 %2844
  %v2846 = vlaneseq
  %v2847 = vshrl.u32 %v2846, 7
  %v2848 = vadd.s32 %v2847, 16
  %2849 = vset.pattern.permute.xlu0 %v2848
  %2850 = vperm.xlu0 %2849, %v2833
  %v2851 = vpop.permute.xlu0 %2850
  %v2852 = vlaneseq
  %v2853 = vshrl.u32 %v2852, 7
  %v2854 = vadd.s32 %v2853, 24
  %2855 = vset.pattern.permute.xlu0 %v2854
  %2856 = vperm.xlu0 %2855, %v2833
  %v2857 = vpop.permute.xlu0 %2856
  %v2858 = vlaneseq
  %v2859 = vshrl.u32 %v2858, 7
  %v2860 = vadd.s32 %v2859, 32
  %2861 = vset.pattern.permute.xlu0 %v2860
  %2862 = vperm.xlu0 %2861, %v2833
  %v2863 = vpop.permute.xlu0 %2862
  %v2864 = vlaneseq
  %v2865 = vshrl.u32 %v2864, 7
  %v2866 = vadd.s32 %v2865, 40
  %2867 = vset.pattern.permute.xlu0 %v2866
  %2868 = vperm.xlu0 %2867, %v2833
  %v2869 = vpop.permute.xlu0 %2868
  %v2870 = vlaneseq
  %v2871 = vshrl.u32 %v2870, 7
  %v2872 = vadd.s32 %v2871, 48
  %2873 = vset.pattern.permute.xlu0 %v2872
  %2874 = vperm.xlu0 %2873, %v2833
  %v2875 = vpop.permute.xlu0 %2874
  %v2876 = vlaneseq
  %v2877 = vshrl.u32 %v2876, 7
  %v2878 = vadd.s32 %v2877, 56
  %2879 = vset.pattern.permute.xlu0 %v2878
  %2880 = vperm.xlu0 %2879, %v2833
  %v2881 = vpop.permute.xlu0 %2880
  %v2882 = vlaneseq
  %v2883 = vshrl.u32 %v2882, 7
  %v2884 = vadd.s32 %v2883, 64
  %2885 = vset.pattern.permute.xlu0 %v2884
  %2886 = vperm.xlu0 %2885, %v2833
  %v2887 = vpop.permute.xlu0 %2886
  %v2888 = vlaneseq
  %v2889 = vshrl.u32 %v2888, 7
  %v2890 = vadd.s32 %v2889, 72
  %2891 = vset.pattern.permute.xlu0 %v2890
  %2892 = vperm.xlu0 %2891, %v2833
  %v2893 = vpop.permute.xlu0 %2892
  %v2894 = vlaneseq
  %v2895 = vshrl.u32 %v2894, 7
  %v2896 = vadd.s32 %v2895, 80
  %2897 = vset.pattern.permute.xlu0 %v2896
  %2898 = vperm.xlu0 %2897, %v2833
  %v2899 = vpop.permute.xlu0 %2898
  %v2900 = vlaneseq
  %v2901 = vshrl.u32 %v2900, 7
  %v2902 = vadd.s32 %v2901, 88
  %2903 = vset.pattern.permute.xlu0 %v2902
  %2904 = vperm.xlu0 %2903, %v2833
  %v2905 = vpop.permute.xlu0 %2904
  %v2906 = vlaneseq
  %v2907 = vshrl.u32 %v2906, 7
  %v2908 = vadd.s32 %v2907, 96
  %2909 = vset.pattern.permute.xlu0 %v2908
  %2910 = vperm.xlu0 %2909, %v2833
  %v2911 = vpop.permute.xlu0 %2910
  %v2912 = vlaneseq
  %v2913 = vshrl.u32 %v2912, 7
  %v2914 = vadd.s32 %v2913, 104
  %2915 = vset.pattern.permute.xlu0 %v2914
  %2916 = vperm.xlu0 %2915, %v2833
  %v2917 = vpop.permute.xlu0 %2916
  %v2918 = vlaneseq
  %v2919 = vshrl.u32 %v2918, 7
  %v2920 = vadd.s32 %v2919, 112
  %2921 = vset.pattern.permute.xlu0 %v2920
  %2922 = vperm.xlu0 %2921, %v2833
  %v2923 = vpop.permute.xlu0 %2922
  %v2924 = vlaneseq
  %v2925 = vshrl.u32 %v2924, 7
  %v2926 = vadd.s32 %v2925, 120
  %2927 = vset.pattern.permute.xlu0 %v2926
  %2928 = vperm.xlu0 %2927, %v2833
  %v2929 = vpop.permute.xlu0 %2928
  %v2930 = vperm.slane %v16, 7
  %v2931 = vlaneseq
  %v2932 = vshrl.u32 %v2931, 7
  %2934 = vset.pattern.permute.xlu0 %v2932
  %2935 = vperm.xlu0 %2934, %v2930
  %v2936 = vpop.permute.xlu0 %2935
  %v2937 = vlaneseq
  %v2938 = vshrl.u32 %v2937, 7
  %v2939 = vadd.s32 %v2938, 8
  %2940 = vset.pattern.permute.xlu0 %v2939
  %2941 = vperm.xlu0 %2940, %v2930
  %v2942 = vpop.permute.xlu0 %2941
  %v2943 = vlaneseq
  %v2944 = vshrl.u32 %v2943, 7
  %v2945 = vadd.s32 %v2944, 16
  %2946 = vset.pattern.permute.xlu0 %v2945
  %2947 = vperm.xlu0 %2946, %v2930
  %v2948 = vpop.permute.xlu0 %2947
  %v2949 = vlaneseq
  %v2950 = vshrl.u32 %v2949, 7
  %v2951 = vadd.s32 %v2950, 24
  %2952 = vset.pattern.permute.xlu0 %v2951
  %2953 = vperm.xlu0 %2952, %v2930
  %v2954 = vpop.permute.xlu0 %2953
  %v2955 = vlaneseq
  %v2956 = vshrl.u32 %v2955, 7
  %v2957 = vadd.s32 %v2956, 32
  %2958 = vset.pattern.permute.xlu0 %v2957
  %2959 = vperm.xlu0 %2958, %v2930
  %v2960 = vpop.permute.xlu0 %2959
  %v2961 = vlaneseq
  %v2962 = vshrl.u32 %v2961, 7
  %v2963 = vadd.s32 %v2962, 40
  %2964 = vset.pattern.permute.xlu0 %v2963
  %2965 = vperm.xlu0 %2964, %v2930
  %v2966 = vpop.permute.xlu0 %2965
  %v2967 = vlaneseq
  %v2968 = vshrl.u32 %v2967, 7
  %v2969 = vadd.s32 %v2968, 48
  %2970 = vset.pattern.permute.xlu0 %v2969
  %2971 = vperm.xlu0 %2970, %v2930
  %v2972 = vpop.permute.xlu0 %2971
  %v2973 = vlaneseq
  %v2974 = vshrl.u32 %v2973, 7
  %v2975 = vadd.s32 %v2974, 56
  %2976 = vset.pattern.permute.xlu0 %v2975
  %2977 = vperm.xlu0 %2976, %v2930
  %v2978 = vpop.permute.xlu0 %2977
  %v2979 = vlaneseq
  %v2980 = vshrl.u32 %v2979, 7
  %v2981 = vadd.s32 %v2980, 64
  %2982 = vset.pattern.permute.xlu0 %v2981
  %2983 = vperm.xlu0 %2982, %v2930
  %v2984 = vpop.permute.xlu0 %2983
  %v2985 = vlaneseq
  %v2986 = vshrl.u32 %v2985, 7
  %v2987 = vadd.s32 %v2986, 72
  %2988 = vset.pattern.permute.xlu0 %v2987
  %2989 = vperm.xlu0 %2988, %v2930
  %v2990 = vpop.permute.xlu0 %2989
  %v2991 = vlaneseq
  %v2992 = vshrl.u32 %v2991, 7
  %v2993 = vadd.s32 %v2992, 80
  %2994 = vset.pattern.permute.xlu0 %v2993
  %2995 = vperm.xlu0 %2994, %v2930
  %v2996 = vpop.permute.xlu0 %2995
  %v2997 = vlaneseq
  %v2998 = vshrl.u32 %v2997, 7
  %v2999 = vadd.s32 %v2998, 88
  %3000 = vset.pattern.permute.xlu0 %v2999
  %3001 = vperm.xlu0 %3000, %v2930
  %v3002 = vpop.permute.xlu0 %3001
  %v3003 = vlaneseq
  %v3004 = vshrl.u32 %v3003, 7
  %v3005 = vadd.s32 %v3004, 96
  %3006 = vset.pattern.permute.xlu0 %v3005
  %3007 = vperm.xlu0 %3006, %v2930
  %v3008 = vpop.permute.xlu0 %3007
  %v3009 = vlaneseq
  %v3010 = vshrl.u32 %v3009, 7
  %v3011 = vadd.s32 %v3010, 104
  %3012 = vset.pattern.permute.xlu0 %v3011
  %3013 = vperm.xlu0 %3012, %v2930
  %v3014 = vpop.permute.xlu0 %3013
  %v3015 = vlaneseq
  %v3016 = vshrl.u32 %v3015, 7
  %v3017 = vadd.s32 %v3016, 112
  %3018 = vset.pattern.permute.xlu0 %v3017
  %3019 = vperm.xlu0 %3018, %v2930
  %v3020 = vpop.permute.xlu0 %3019
  %v3021 = vlaneseq
  %v3022 = vshrl.u32 %v3021, 7
  %v3023 = vadd.s32 %v3022, 120
  %3024 = vset.pattern.permute.xlu0 %v3023
  %3025 = vperm.xlu0 %3024, %v2930
  %v3026 = vpop.permute.xlu0 %3025
  %v3027 = vperm.slane %v17, 7
  %v3028 = vlaneseq
  %v3029 = vshrl.u32 %v3028, 7
  %3031 = vset.pattern.permute.xlu0 %v3029
  %3032 = vperm.xlu0 %3031, %v3027
  %v3033 = vpop.permute.xlu0 %3032
  %v3034 = vlaneseq
  %v3035 = vshrl.u32 %v3034, 7
  %v3036 = vadd.s32 %v3035, 8
  %3037 = vset.pattern.permute.xlu0 %v3036
  %3038 = vperm.xlu0 %3037, %v3027
  %v3039 = vpop.permute.xlu0 %3038
  %v3040 = vlaneseq
  %v3041 = vshrl.u32 %v3040, 7
  %v3042 = vadd.s32 %v3041, 16
  %3043 = vset.pattern.permute.xlu0 %v3042
  %3044 = vperm.xlu0 %3043, %v3027
  %v3045 = vpop.permute.xlu0 %3044
  %v3046 = vlaneseq
  %v3047 = vshrl.u32 %v3046, 7
  %v3048 = vadd.s32 %v3047, 24
  %3049 = vset.pattern.permute.xlu0 %v3048
  %3050 = vperm.xlu0 %3049, %v3027
  %v3051 = vpop.permute.xlu0 %3050
  %v3052 = vlaneseq
  %v3053 = vshrl.u32 %v3052, 7
  %v3054 = vadd.s32 %v3053, 32
  %3055 = vset.pattern.permute.xlu0 %v3054
  %3056 = vperm.xlu0 %3055, %v3027
  %v3057 = vpop.permute.xlu0 %3056
  %v3058 = vlaneseq
  %v3059 = vshrl.u32 %v3058, 7
  %v3060 = vadd.s32 %v3059, 40
  %3061 = vset.pattern.permute.xlu0 %v3060
  %3062 = vperm.xlu0 %3061, %v3027
  %v3063 = vpop.permute.xlu0 %3062
  %v3064 = vlaneseq
  %v3065 = vshrl.u32 %v3064, 7
  %v3066 = vadd.s32 %v3065, 48
  %3067 = vset.pattern.permute.xlu0 %v3066
  %3068 = vperm.xlu0 %3067, %v3027
  %v3069 = vpop.permute.xlu0 %3068
  %v3070 = vlaneseq
  %v3071 = vshrl.u32 %v3070, 7
  %v3072 = vadd.s32 %v3071, 56
  %3073 = vset.pattern.permute.xlu0 %v3072
  %3074 = vperm.xlu0 %3073, %v3027
  %v3075 = vpop.permute.xlu0 %3074
  %v3076 = vlaneseq
  %v3077 = vshrl.u32 %v3076, 7
  %v3078 = vadd.s32 %v3077, 64
  %3079 = vset.pattern.permute.xlu0 %v3078
  %3080 = vperm.xlu0 %3079, %v3027
  %v3081 = vpop.permute.xlu0 %3080
  %v3082 = vlaneseq
  %v3083 = vshrl.u32 %v3082, 7
  %v3084 = vadd.s32 %v3083, 72
  %3085 = vset.pattern.permute.xlu0 %v3084
  %3086 = vperm.xlu0 %3085, %v3027
  %v3087 = vpop.permute.xlu0 %3086
  %v3088 = vlaneseq
  %v3089 = vshrl.u32 %v3088, 7
  %v3090 = vadd.s32 %v3089, 80
  %3091 = vset.pattern.permute.xlu0 %v3090
  %3092 = vperm.xlu0 %3091, %v3027
  %v3093 = vpop.permute.xlu0 %3092
  %v3094 = vlaneseq
  %v3095 = vshrl.u32 %v3094, 7
  %v3096 = vadd.s32 %v3095, 88
  %3097 = vset.pattern.permute.xlu0 %v3096
  %3098 = vperm.xlu0 %3097, %v3027
  %v3099 = vpop.permute.xlu0 %3098
  %v3100 = vlaneseq
  %v3101 = vshrl.u32 %v3100, 7
  %v3102 = vadd.s32 %v3101, 96
  %3103 = vset.pattern.permute.xlu0 %v3102
  %3104 = vperm.xlu0 %3103, %v3027
  %v3105 = vpop.permute.xlu0 %3104
  %v3106 = vlaneseq
  %v3107 = vshrl.u32 %v3106, 7
  %v3108 = vadd.s32 %v3107, 104
  %3109 = vset.pattern.permute.xlu0 %v3108
  %3110 = vperm.xlu0 %3109, %v3027
  %v3111 = vpop.permute.xlu0 %3110
  %v3112 = vlaneseq
  %v3113 = vshrl.u32 %v3112, 7
  %v3114 = vadd.s32 %v3113, 112
  %3115 = vset.pattern.permute.xlu0 %v3114
  %3116 = vperm.xlu0 %3115, %v3027
  %v3117 = vpop.permute.xlu0 %3116
  %v3118 = vlaneseq
  %v3119 = vshrl.u32 %v3118, 7
  %v3120 = vadd.s32 %v3119, 120
  %3121 = vset.pattern.permute.xlu0 %v3120
  %3122 = vperm.xlu0 %3121, %v3027
  %v3123 = vpop.permute.xlu0 %3122
  %vm3124 = vcmp.eq.s32.totalorder %v26, %v19
  %vm3125 = vcmp.eq.s32.totalorder %v32, %v19
  %vm3126 = vcmp.eq.s32.totalorder %v38, %v19
  %vm3127 = vcmp.eq.s32.totalorder %v44, %v19
  %vm3128 = vcmp.eq.s32.totalorder %v50, %v19
  %vm3129 = vcmp.eq.s32.totalorder %v56, %v19
  %vm3130 = vcmp.eq.s32.totalorder %v62, %v19
  %vm3131 = vcmp.eq.s32.totalorder %v68, %v19
  %vm3132 = vcmp.eq.s32.totalorder %v74, %v19
  %vm3133 = vcmp.eq.s32.totalorder %v80, %v19
  %vm3134 = vcmp.eq.s32.totalorder %v86, %v19
  %vm3135 = vcmp.eq.s32.totalorder %v92, %v19
  %vm3136 = vcmp.eq.s32.totalorder %v98, %v19
  %vm3137 = vcmp.eq.s32.totalorder %v104, %v19
  %vm3138 = vcmp.eq.s32.totalorder %v110, %v19
  %vm3139 = vcmp.eq.s32.totalorder %v116, %v19
  %vm3140 = vcmp.eq.s32.totalorder %v123, %v19
  %vm3141 = vcmp.eq.s32.totalorder %v129, %v19
  %vm3142 = vcmp.eq.s32.totalorder %v135, %v19
  %vm3143 = vcmp.eq.s32.totalorder %v141, %v19
  %vm3144 = vcmp.eq.s32.totalorder %v147, %v19
  %vm3145 = vcmp.eq.s32.totalorder %v153, %v19
  %vm3146 = vcmp.eq.s32.totalorder %v159, %v19
  %vm3147 = vcmp.eq.s32.totalorder %v165, %v19
  %vm3148 = vcmp.eq.s32.totalorder %v171, %v19
  %vm3149 = vcmp.eq.s32.totalorder %v177, %v19
  %vm3150 = vcmp.eq.s32.totalorder %v183, %v19
  %vm3151 = vcmp.eq.s32.totalorder %v189, %v19
  %vm3152 = vcmp.eq.s32.totalorder %v195, %v19
  %vm3153 = vcmp.eq.s32.totalorder %v201, %v19
  %vm3154 = vcmp.eq.s32.totalorder %v207, %v19
  %vm3155 = vcmp.eq.s32.totalorder %v213, %v19
  %vm3156 = vcmp.eq.s32.totalorder %v220, %v19
  %vm3157 = vcmp.eq.s32.totalorder %v226, %v19
  %vm3158 = vcmp.eq.s32.totalorder %v232, %v19
  %vm3159 = vcmp.eq.s32.totalorder %v238, %v19
  %vm3160 = vcmp.eq.s32.totalorder %v244, %v19
  %vm3161 = vcmp.eq.s32.totalorder %v250, %v19
  %vm3162 = vcmp.eq.s32.totalorder %v256, %v19
  %vm3163 = vcmp.eq.s32.totalorder %v262, %v19
  %vm3164 = vcmp.eq.s32.totalorder %v268, %v19
  %vm3165 = vcmp.eq.s32.totalorder %v274, %v19
  %vm3166 = vcmp.eq.s32.totalorder %v280, %v19
  %vm3167 = vcmp.eq.s32.totalorder %v286, %v19
  %vm3168 = vcmp.eq.s32.totalorder %v292, %v19
  %vm3169 = vcmp.eq.s32.totalorder %v298, %v19
  %vm3170 = vcmp.eq.s32.totalorder %v304, %v19
  %vm3171 = vcmp.eq.s32.totalorder %v310, %v19
  %vm3172 = vcmp.eq.s32.totalorder %v317, %v19
  %vm3173 = vcmp.eq.s32.totalorder %v323, %v19
  %vm3174 = vcmp.eq.s32.totalorder %v329, %v19
  %vm3175 = vcmp.eq.s32.totalorder %v335, %v19
  %vm3176 = vcmp.eq.s32.totalorder %v341, %v19
  %vm3177 = vcmp.eq.s32.totalorder %v347, %v19
  %vm3178 = vcmp.eq.s32.totalorder %v353, %v19
  %vm3179 = vcmp.eq.s32.totalorder %v359, %v19
  %vm3180 = vcmp.eq.s32.totalorder %v365, %v19
  %vm3181 = vcmp.eq.s32.totalorder %v371, %v19
  %vm3182 = vcmp.eq.s32.totalorder %v377, %v19
  %vm3183 = vcmp.eq.s32.totalorder %v383, %v19
  %vm3184 = vcmp.eq.s32.totalorder %v389, %v19
  %vm3185 = vcmp.eq.s32.totalorder %v395, %v19
  %vm3186 = vcmp.eq.s32.totalorder %v401, %v19
  %vm3187 = vcmp.eq.s32.totalorder %v407, %v19
  %vm3188 = vcmp.eq.s32.totalorder %v414, %v19
  %vm3189 = vcmp.eq.s32.totalorder %v420, %v19
  %vm3190 = vcmp.eq.s32.totalorder %v426, %v19
  %vm3191 = vcmp.eq.s32.totalorder %v432, %v19
  %vm3192 = vcmp.eq.s32.totalorder %v438, %v19
  %vm3193 = vcmp.eq.s32.totalorder %v444, %v19
  %vm3194 = vcmp.eq.s32.totalorder %v450, %v19
  %vm3195 = vcmp.eq.s32.totalorder %v456, %v19
  %vm3196 = vcmp.eq.s32.totalorder %v462, %v19
  %vm3197 = vcmp.eq.s32.totalorder %v468, %v19
  %vm3198 = vcmp.eq.s32.totalorder %v474, %v19
  %vm3199 = vcmp.eq.s32.totalorder %v480, %v19
  %vm3200 = vcmp.eq.s32.totalorder %v486, %v19
  %vm3201 = vcmp.eq.s32.totalorder %v492, %v19
  %vm3202 = vcmp.eq.s32.totalorder %v498, %v19
  %vm3203 = vcmp.eq.s32.totalorder %v504, %v19
  %vm3204 = vcmp.eq.s32.totalorder %v511, %v19
  %vm3205 = vcmp.eq.s32.totalorder %v517, %v19
  %vm3206 = vcmp.eq.s32.totalorder %v523, %v19
  %vm3207 = vcmp.eq.s32.totalorder %v529, %v19
  %vm3208 = vcmp.eq.s32.totalorder %v535, %v19
  %vm3209 = vcmp.eq.s32.totalorder %v541, %v19
  %vm3210 = vcmp.eq.s32.totalorder %v547, %v19
  %vm3211 = vcmp.eq.s32.totalorder %v553, %v19
  %vm3212 = vcmp.eq.s32.totalorder %v559, %v19
  %vm3213 = vcmp.eq.s32.totalorder %v565, %v19
  %vm3214 = vcmp.eq.s32.totalorder %v571, %v19
  %vm3215 = vcmp.eq.s32.totalorder %v577, %v19
  %vm3216 = vcmp.eq.s32.totalorder %v583, %v19
  %vm3217 = vcmp.eq.s32.totalorder %v589, %v19
  %vm3218 = vcmp.eq.s32.totalorder %v595, %v19
  %vm3219 = vcmp.eq.s32.totalorder %v601, %v19
  %vm3220 = vcmp.eq.s32.totalorder %v608, %v19
  %vm3221 = vcmp.eq.s32.totalorder %v614, %v19
  %vm3222 = vcmp.eq.s32.totalorder %v620, %v19
  %vm3223 = vcmp.eq.s32.totalorder %v626, %v19
  %vm3224 = vcmp.eq.s32.totalorder %v632, %v19
  %vm3225 = vcmp.eq.s32.totalorder %v638, %v19
  %vm3226 = vcmp.eq.s32.totalorder %v644, %v19
  %vm3227 = vcmp.eq.s32.totalorder %v650, %v19
  %vm3228 = vcmp.eq.s32.totalorder %v656, %v19
  %vm3229 = vcmp.eq.s32.totalorder %v662, %v19
  %vm3230 = vcmp.eq.s32.totalorder %v668, %v19
  %vm3231 = vcmp.eq.s32.totalorder %v674, %v19
  %vm3232 = vcmp.eq.s32.totalorder %v680, %v19
  %vm3233 = vcmp.eq.s32.totalorder %v686, %v19
  %vm3234 = vcmp.eq.s32.totalorder %v692, %v19
  %vm3235 = vcmp.eq.s32.totalorder %v698, %v19
  %vm3236 = vcmp.eq.s32.totalorder %v705, %v19
  %vm3237 = vcmp.eq.s32.totalorder %v711, %v19
  %vm3238 = vcmp.eq.s32.totalorder %v717, %v19
  %vm3239 = vcmp.eq.s32.totalorder %v723, %v19
  %vm3240 = vcmp.eq.s32.totalorder %v729, %v19
  %vm3241 = vcmp.eq.s32.totalorder %v735, %v19
  %vm3242 = vcmp.eq.s32.totalorder %v741, %v19
  %vm3243 = vcmp.eq.s32.totalorder %v747, %v19
  %vm3244 = vcmp.eq.s32.totalorder %v753, %v19
  %vm3245 = vcmp.eq.s32.totalorder %v759, %v19
  %vm3246 = vcmp.eq.s32.totalorder %v765, %v19
  %vm3247 = vcmp.eq.s32.totalorder %v771, %v19
  %vm3248 = vcmp.eq.s32.totalorder %v777, %v19
  %vm3249 = vcmp.eq.s32.totalorder %v783, %v19
  %vm3250 = vcmp.eq.s32.totalorder %v789, %v19
  %vm3251 = vcmp.eq.s32.totalorder %v795, %v19
  %vm3252 = vcmp.eq.s32.totalorder %v802, %v19
  %vm3253 = vcmp.eq.s32.totalorder %v808, %v19
  %vm3254 = vcmp.eq.s32.totalorder %v814, %v19
  %vm3255 = vcmp.eq.s32.totalorder %v820, %v19
  %vm3256 = vcmp.eq.s32.totalorder %v826, %v19
  %vm3257 = vcmp.eq.s32.totalorder %v832, %v19
  %vm3258 = vcmp.eq.s32.totalorder %v838, %v19
  %vm3259 = vcmp.eq.s32.totalorder %v844, %v19
  %vm3260 = vcmp.eq.s32.totalorder %v850, %v19
  %vm3261 = vcmp.eq.s32.totalorder %v856, %v19
  %vm3262 = vcmp.eq.s32.totalorder %v862, %v19
  %vm3263 = vcmp.eq.s32.totalorder %v868, %v19
  %vm3264 = vcmp.eq.s32.totalorder %v874, %v19
  %vm3265 = vcmp.eq.s32.totalorder %v880, %v19
  %vm3266 = vcmp.eq.s32.totalorder %v886, %v19
  %vm3267 = vcmp.eq.s32.totalorder %v892, %v19
  %vm3268 = vcmp.eq.s32.totalorder %v899, %v19
  %vm3269 = vcmp.eq.s32.totalorder %v905, %v19
  %vm3270 = vcmp.eq.s32.totalorder %v911, %v19
  %vm3271 = vcmp.eq.s32.totalorder %v917, %v19
  %vm3272 = vcmp.eq.s32.totalorder %v923, %v19
  %vm3273 = vcmp.eq.s32.totalorder %v929, %v19
  %vm3274 = vcmp.eq.s32.totalorder %v935, %v19
  %vm3275 = vcmp.eq.s32.totalorder %v941, %v19
  %vm3276 = vcmp.eq.s32.totalorder %v947, %v19
  %vm3277 = vcmp.eq.s32.totalorder %v953, %v19
  %vm3278 = vcmp.eq.s32.totalorder %v959, %v19
  %vm3279 = vcmp.eq.s32.totalorder %v965, %v19
  %vm3280 = vcmp.eq.s32.totalorder %v971, %v19
  %vm3281 = vcmp.eq.s32.totalorder %v977, %v19
  %vm3282 = vcmp.eq.s32.totalorder %v983, %v19
  %vm3283 = vcmp.eq.s32.totalorder %v989, %v19
  %vm3284 = vcmp.eq.s32.totalorder %v996, %v19
  %vm3285 = vcmp.eq.s32.totalorder %v1002, %v19
  %vm3286 = vcmp.eq.s32.totalorder %v1008, %v19
  %vm3287 = vcmp.eq.s32.totalorder %v1014, %v19
  %vm3288 = vcmp.eq.s32.totalorder %v1020, %v19
  %vm3289 = vcmp.eq.s32.totalorder %v1026, %v19
  %vm3290 = vcmp.eq.s32.totalorder %v1032, %v19
  %vm3291 = vcmp.eq.s32.totalorder %v1038, %v19
  %vm3292 = vcmp.eq.s32.totalorder %v1044, %v19
  %vm3293 = vcmp.eq.s32.totalorder %v1050, %v19
  %vm3294 = vcmp.eq.s32.totalorder %v1056, %v19
  %vm3295 = vcmp.eq.s32.totalorder %v1062, %v19
  %vm3296 = vcmp.eq.s32.totalorder %v1068, %v19
  %vm3297 = vcmp.eq.s32.totalorder %v1074, %v19
  %vm3298 = vcmp.eq.s32.totalorder %v1080, %v19
  %vm3299 = vcmp.eq.s32.totalorder %v1086, %v19
  %vm3300 = vcmp.eq.s32.totalorder %v1093, %v19
  %vm3301 = vcmp.eq.s32.totalorder %v1099, %v19
  %vm3302 = vcmp.eq.s32.totalorder %v1105, %v19
  %vm3303 = vcmp.eq.s32.totalorder %v1111, %v19
  %vm3304 = vcmp.eq.s32.totalorder %v1117, %v19
  %vm3305 = vcmp.eq.s32.totalorder %v1123, %v19
  %vm3306 = vcmp.eq.s32.totalorder %v1129, %v19
  %vm3307 = vcmp.eq.s32.totalorder %v1135, %v19
  %vm3308 = vcmp.eq.s32.totalorder %v1141, %v19
  %vm3309 = vcmp.eq.s32.totalorder %v1147, %v19
  %vm3310 = vcmp.eq.s32.totalorder %v1153, %v19
  %vm3311 = vcmp.eq.s32.totalorder %v1159, %v19
  %vm3312 = vcmp.eq.s32.totalorder %v1165, %v19
  %vm3313 = vcmp.eq.s32.totalorder %v1171, %v19
  %vm3314 = vcmp.eq.s32.totalorder %v1177, %v19
  %vm3315 = vcmp.eq.s32.totalorder %v1183, %v19
  %vm3316 = vcmp.eq.s32.totalorder %v1190, %v19
  %vm3317 = vcmp.eq.s32.totalorder %v1196, %v19
  %vm3318 = vcmp.eq.s32.totalorder %v1202, %v19
  %vm3319 = vcmp.eq.s32.totalorder %v1208, %v19
  %vm3320 = vcmp.eq.s32.totalorder %v1214, %v19
  %vm3321 = vcmp.eq.s32.totalorder %v1220, %v19
  %vm3322 = vcmp.eq.s32.totalorder %v1226, %v19
  %vm3323 = vcmp.eq.s32.totalorder %v1232, %v19
  %vm3324 = vcmp.eq.s32.totalorder %v1238, %v19
  %vm3325 = vcmp.eq.s32.totalorder %v1244, %v19
  %vm3326 = vcmp.eq.s32.totalorder %v1250, %v19
  %vm3327 = vcmp.eq.s32.totalorder %v1256, %v19
  %vm3328 = vcmp.eq.s32.totalorder %v1262, %v19
  %vm3329 = vcmp.eq.s32.totalorder %v1268, %v19
  %vm3330 = vcmp.eq.s32.totalorder %v1274, %v19
  %vm3331 = vcmp.eq.s32.totalorder %v1280, %v19
  %vm3332 = vcmp.eq.s32.totalorder %v1287, %v19
  %vm3333 = vcmp.eq.s32.totalorder %v1293, %v19
  %vm3334 = vcmp.eq.s32.totalorder %v1299, %v19
  %vm3335 = vcmp.eq.s32.totalorder %v1305, %v19
  %vm3336 = vcmp.eq.s32.totalorder %v1311, %v19
  %vm3337 = vcmp.eq.s32.totalorder %v1317, %v19
  %vm3338 = vcmp.eq.s32.totalorder %v1323, %v19
  %vm3339 = vcmp.eq.s32.totalorder %v1329, %v19
  %vm3340 = vcmp.eq.s32.totalorder %v1335, %v19
  %vm3341 = vcmp.eq.s32.totalorder %v1341, %v19
  %vm3342 = vcmp.eq.s32.totalorder %v1347, %v19
  %vm3343 = vcmp.eq.s32.totalorder %v1353, %v19
  %vm3344 = vcmp.eq.s32.totalorder %v1359, %v19
  %vm3345 = vcmp.eq.s32.totalorder %v1365, %v19
  %vm3346 = vcmp.eq.s32.totalorder %v1371, %v19
  %vm3347 = vcmp.eq.s32.totalorder %v1377, %v19
  %vm3348 = vcmp.eq.s32.totalorder %v1384, %v19
  %vm3349 = vcmp.eq.s32.totalorder %v1390, %v19
  %vm3350 = vcmp.eq.s32.totalorder %v1396, %v19
  %vm3351 = vcmp.eq.s32.totalorder %v1402, %v19
  %vm3352 = vcmp.eq.s32.totalorder %v1408, %v19
  %vm3353 = vcmp.eq.s32.totalorder %v1414, %v19
  %vm3354 = vcmp.eq.s32.totalorder %v1420, %v19
  %vm3355 = vcmp.eq.s32.totalorder %v1426, %v19
  %vm3356 = vcmp.eq.s32.totalorder %v1432, %v19
  %vm3357 = vcmp.eq.s32.totalorder %v1438, %v19
  %vm3358 = vcmp.eq.s32.totalorder %v1444, %v19
  %vm3359 = vcmp.eq.s32.totalorder %v1450, %v19
  %vm3360 = vcmp.eq.s32.totalorder %v1456, %v19
  %vm3361 = vcmp.eq.s32.totalorder %v1462, %v19
  %vm3362 = vcmp.eq.s32.totalorder %v1468, %v19
  %vm3363 = vcmp.eq.s32.totalorder %v1474, %v19
  %vm3364 = vcmp.eq.s32.totalorder %v1481, %v19
  %vm3365 = vcmp.eq.s32.totalorder %v1487, %v19
  %vm3366 = vcmp.eq.s32.totalorder %v1493, %v19
  %vm3367 = vcmp.eq.s32.totalorder %v1499, %v19
  %vm3368 = vcmp.eq.s32.totalorder %v1505, %v19
  %vm3369 = vcmp.eq.s32.totalorder %v1511, %v19
  %vm3370 = vcmp.eq.s32.totalorder %v1517, %v19
  %vm3371 = vcmp.eq.s32.totalorder %v1523, %v19
  %vm3372 = vcmp.eq.s32.totalorder %v1529, %v19
  %vm3373 = vcmp.eq.s32.totalorder %v1535, %v19
  %vm3374 = vcmp.eq.s32.totalorder %v1541, %v19
  %vm3375 = vcmp.eq.s32.totalorder %v1547, %v19
  %vm3376 = vcmp.eq.s32.totalorder %v1553, %v19
  %vm3377 = vcmp.eq.s32.totalorder %v1559, %v19
  %vm3378 = vcmp.eq.s32.totalorder %v1565, %v19
  %vm3379 = vcmp.eq.s32.totalorder %v1571, %v19
  %vm3380 = vcmp.eq.s32.totalorder %v1578, %v19
  %vm3381 = vcmp.eq.s32.totalorder %v1584, %v19
  %vm3382 = vcmp.eq.s32.totalorder %v1590, %v19
  %vm3383 = vcmp.eq.s32.totalorder %v1596, %v19
  %vm3384 = vcmp.eq.s32.totalorder %v1602, %v19
  %vm3385 = vcmp.eq.s32.totalorder %v1608, %v19
  %vm3386 = vcmp.eq.s32.totalorder %v1614, %v19
  %vm3387 = vcmp.eq.s32.totalorder %v1620, %v19
  %vm3388 = vcmp.eq.s32.totalorder %v1626, %v19
  %vm3389 = vcmp.eq.s32.totalorder %v1632, %v19
  %vm3390 = vcmp.eq.s32.totalorder %v1638, %v19
  %vm3391 = vcmp.eq.s32.totalorder %v1644, %v19
  %vm3392 = vcmp.eq.s32.totalorder %v1650, %v19
  %vm3393 = vcmp.eq.s32.totalorder %v1656, %v19
  %vm3394 = vcmp.eq.s32.totalorder %v1662, %v19
  %vm3395 = vcmp.eq.s32.totalorder %v1668, %v19
  %vm3396 = vcmp.eq.s32.totalorder %v1675, %v19
  %vm3397 = vcmp.eq.s32.totalorder %v1681, %v19
  %vm3398 = vcmp.eq.s32.totalorder %v1687, %v19
  %vm3399 = vcmp.eq.s32.totalorder %v1693, %v19
  %vm3400 = vcmp.eq.s32.totalorder %v1699, %v19
  %vm3401 = vcmp.eq.s32.totalorder %v1705, %v19
  %vm3402 = vcmp.eq.s32.totalorder %v1711, %v19
  %vm3403 = vcmp.eq.s32.totalorder %v1717, %v19
  %vm3404 = vcmp.eq.s32.totalorder %v1723, %v19
  %vm3405 = vcmp.eq.s32.totalorder %v1729, %v19
  %vm3406 = vcmp.eq.s32.totalorder %v1735, %v19
  %vm3407 = vcmp.eq.s32.totalorder %v1741, %v19
  %vm3408 = vcmp.eq.s32.totalorder %v1747, %v19
  %vm3409 = vcmp.eq.s32.totalorder %v1753, %v19
  %vm3410 = vcmp.eq.s32.totalorder %v1759, %v19
  %vm3411 = vcmp.eq.s32.totalorder %v1765, %v19
  %vm3412 = vcmp.eq.s32.totalorder %v1772, %v19
  %vm3413 = vcmp.eq.s32.totalorder %v1778, %v19
  %vm3414 = vcmp.eq.s32.totalorder %v1784, %v19
  %vm3415 = vcmp.eq.s32.totalorder %v1790, %v19
  %vm3416 = vcmp.eq.s32.totalorder %v1796, %v19
  %vm3417 = vcmp.eq.s32.totalorder %v1802, %v19
  %vm3418 = vcmp.eq.s32.totalorder %v1808, %v19
  %vm3419 = vcmp.eq.s32.totalorder %v1814, %v19
  %vm3420 = vcmp.eq.s32.totalorder %v1820, %v19
  %vm3421 = vcmp.eq.s32.totalorder %v1826, %v19
  %vm3422 = vcmp.eq.s32.totalorder %v1832, %v19
  %vm3423 = vcmp.eq.s32.totalorder %v1838, %v19
  %vm3424 = vcmp.eq.s32.totalorder %v1844, %v19
  %vm3425 = vcmp.eq.s32.totalorder %v1850, %v19
  %vm3426 = vcmp.eq.s32.totalorder %v1856, %v19
  %vm3427 = vcmp.eq.s32.totalorder %v1862, %v19
  %vm3428 = vcmp.eq.s32.totalorder %v1869, %v19
  %vm3429 = vcmp.eq.s32.totalorder %v1875, %v19
  %vm3430 = vcmp.eq.s32.totalorder %v1881, %v19
  %vm3431 = vcmp.eq.s32.totalorder %v1887, %v19
  %vm3432 = vcmp.eq.s32.totalorder %v1893, %v19
  %vm3433 = vcmp.eq.s32.totalorder %v1899, %v19
  %vm3434 = vcmp.eq.s32.totalorder %v1905, %v19
  %vm3435 = vcmp.eq.s32.totalorder %v1911, %v19
  %vm3436 = vcmp.eq.s32.totalorder %v1917, %v19
  %vm3437 = vcmp.eq.s32.totalorder %v1923, %v19
  %vm3438 = vcmp.eq.s32.totalorder %v1929, %v19
  %vm3439 = vcmp.eq.s32.totalorder %v1935, %v19
  %vm3440 = vcmp.eq.s32.totalorder %v1941, %v19
  %vm3441 = vcmp.eq.s32.totalorder %v1947, %v19
  %vm3442 = vcmp.eq.s32.totalorder %v1953, %v19
  %vm3443 = vcmp.eq.s32.totalorder %v1959, %v19
  %vm3444 = vcmp.eq.s32.totalorder %v1966, %v19
  %vm3445 = vcmp.eq.s32.totalorder %v1972, %v19
  %vm3446 = vcmp.eq.s32.totalorder %v1978, %v19
  %vm3447 = vcmp.eq.s32.totalorder %v1984, %v19
  %vm3448 = vcmp.eq.s32.totalorder %v1990, %v19
  %vm3449 = vcmp.eq.s32.totalorder %v1996, %v19
  %vm3450 = vcmp.eq.s32.totalorder %v2002, %v19
  %vm3451 = vcmp.eq.s32.totalorder %v2008, %v19
  %vm3452 = vcmp.eq.s32.totalorder %v2014, %v19
  %vm3453 = vcmp.eq.s32.totalorder %v2020, %v19
  %vm3454 = vcmp.eq.s32.totalorder %v2026, %v19
  %vm3455 = vcmp.eq.s32.totalorder %v2032, %v19
  %vm3456 = vcmp.eq.s32.totalorder %v2038, %v19
  %vm3457 = vcmp.eq.s32.totalorder %v2044, %v19
  %vm3458 = vcmp.eq.s32.totalorder %v2050, %v19
  %vm3459 = vcmp.eq.s32.totalorder %v2056, %v19
  %vm3460 = vcmp.eq.s32.totalorder %v2063, %v19
  %vm3461 = vcmp.eq.s32.totalorder %v2069, %v19
  %vm3462 = vcmp.eq.s32.totalorder %v2075, %v19
  %vm3463 = vcmp.eq.s32.totalorder %v2081, %v19
  %vm3464 = vcmp.eq.s32.totalorder %v2087, %v19
  %vm3465 = vcmp.eq.s32.totalorder %v2093, %v19
  %vm3466 = vcmp.eq.s32.totalorder %v2099, %v19
  %vm3467 = vcmp.eq.s32.totalorder %v2105, %v19
  %vm3468 = vcmp.eq.s32.totalorder %v2111, %v19
  %vm3469 = vcmp.eq.s32.totalorder %v2117, %v19
  %vm3470 = vcmp.eq.s32.totalorder %v2123, %v19
  %vm3471 = vcmp.eq.s32.totalorder %v2129, %v19
  %vm3472 = vcmp.eq.s32.totalorder %v2135, %v19
  %vm3473 = vcmp.eq.s32.totalorder %v2141, %v19
  %vm3474 = vcmp.eq.s32.totalorder %v2147, %v19
  %vm3475 = vcmp.eq.s32.totalorder %v2153, %v19
  %vm3476 = vcmp.eq.s32.totalorder %v2160, %v19
  %vm3477 = vcmp.eq.s32.totalorder %v2166, %v19
  %vm3478 = vcmp.eq.s32.totalorder %v2172, %v19
  %vm3479 = vcmp.eq.s32.totalorder %v2178, %v19
  %vm3480 = vcmp.eq.s32.totalorder %v2184, %v19
  %vm3481 = vcmp.eq.s32.totalorder %v2190, %v19
  %vm3482 = vcmp.eq.s32.totalorder %v2196, %v19
  %vm3483 = vcmp.eq.s32.totalorder %v2202, %v19
  %vm3484 = vcmp.eq.s32.totalorder %v2208, %v19
  %vm3485 = vcmp.eq.s32.totalorder %v2214, %v19
  %vm3486 = vcmp.eq.s32.totalorder %v2220, %v19
  %vm3487 = vcmp.eq.s32.totalorder %v2226, %v19
  %vm3488 = vcmp.eq.s32.totalorder %v2232, %v19
  %vm3489 = vcmp.eq.s32.totalorder %v2238, %v19
  %vm3490 = vcmp.eq.s32.totalorder %v2244, %v19
  %vm3491 = vcmp.eq.s32.totalorder %v2250, %v19
  %vm3492 = vcmp.eq.s32.totalorder %v2257, %v19
  %vm3493 = vcmp.eq.s32.totalorder %v2263, %v19
  %vm3494 = vcmp.eq.s32.totalorder %v2269, %v19
  %vm3495 = vcmp.eq.s32.totalorder %v2275, %v19
  %vm3496 = vcmp.eq.s32.totalorder %v2281, %v19
  %vm3497 = vcmp.eq.s32.totalorder %v2287, %v19
  %vm3498 = vcmp.eq.s32.totalorder %v2293, %v19
  %vm3499 = vcmp.eq.s32.totalorder %v2299, %v19
  %vm3500 = vcmp.eq.s32.totalorder %v2305, %v19
  %vm3501 = vcmp.eq.s32.totalorder %v2311, %v19
  %vm3502 = vcmp.eq.s32.totalorder %v2317, %v19
  %vm3503 = vcmp.eq.s32.totalorder %v2323, %v19
  %vm3504 = vcmp.eq.s32.totalorder %v2329, %v19
  %vm3505 = vcmp.eq.s32.totalorder %v2335, %v19
  %vm3506 = vcmp.eq.s32.totalorder %v2341, %v19
  %vm3507 = vcmp.eq.s32.totalorder %v2347, %v19
  %vm3508 = vcmp.eq.s32.totalorder %v2354, %v19
  %vm3509 = vcmp.eq.s32.totalorder %v2360, %v19
  %vm3510 = vcmp.eq.s32.totalorder %v2366, %v19
  %vm3511 = vcmp.eq.s32.totalorder %v2372, %v19
  %vm3512 = vcmp.eq.s32.totalorder %v2378, %v19
  %vm3513 = vcmp.eq.s32.totalorder %v2384, %v19
  %vm3514 = vcmp.eq.s32.totalorder %v2390, %v19
  %vm3515 = vcmp.eq.s32.totalorder %v2396, %v19
  %vm3516 = vcmp.eq.s32.totalorder %v2402, %v19
  %vm3517 = vcmp.eq.s32.totalorder %v2408, %v19
  %vm3518 = vcmp.eq.s32.totalorder %v2414, %v19
  %vm3519 = vcmp.eq.s32.totalorder %v2420, %v19
  %vm3520 = vcmp.eq.s32.totalorder %v2426, %v19
  %vm3521 = vcmp.eq.s32.totalorder %v2432, %v19
  %vm3522 = vcmp.eq.s32.totalorder %v2438, %v19
  %vm3523 = vcmp.eq.s32.totalorder %v2444, %v19
  %vm3524 = vcmp.eq.s32.totalorder %v2451, %v19
  %vm3525 = vcmp.eq.s32.totalorder %v2457, %v19
  %vm3526 = vcmp.eq.s32.totalorder %v2463, %v19
  %vm3527 = vcmp.eq.s32.totalorder %v2469, %v19
  %vm3528 = vcmp.eq.s32.totalorder %v2475, %v19
  %vm3529 = vcmp.eq.s32.totalorder %v2481, %v19
  %vm3530 = vcmp.eq.s32.totalorder %v2487, %v19
  %vm3531 = vcmp.eq.s32.totalorder %v2493, %v19
  %vm3532 = vcmp.eq.s32.totalorder %v2499, %v19
  %vm3533 = vcmp.eq.s32.totalorder %v2505, %v19
  %vm3534 = vcmp.eq.s32.totalorder %v2511, %v19
  %vm3535 = vcmp.eq.s32.totalorder %v2517, %v19
  %vm3536 = vcmp.eq.s32.totalorder %v2523, %v19
  %vm3537 = vcmp.eq.s32.totalorder %v2529, %v19
  %vm3538 = vcmp.eq.s32.totalorder %v2535, %v19
  %vm3539 = vcmp.eq.s32.totalorder %v2541, %v19
  %vm3540 = vcmp.eq.s32.totalorder %v2548, %v19
  %vm3541 = vcmp.eq.s32.totalorder %v2554, %v19
  %vm3542 = vcmp.eq.s32.totalorder %v2560, %v19
  %vm3543 = vcmp.eq.s32.totalorder %v2566, %v19
  %vm3544 = vcmp.eq.s32.totalorder %v2572, %v19
  %vm3545 = vcmp.eq.s32.totalorder %v2578, %v19
  %vm3546 = vcmp.eq.s32.totalorder %v2584, %v19
  %vm3547 = vcmp.eq.s32.totalorder %v2590, %v19
  %vm3548 = vcmp.eq.s32.totalorder %v2596, %v19
  %vm3549 = vcmp.eq.s32.totalorder %v2602, %v19
  %vm3550 = vcmp.eq.s32.totalorder %v2608, %v19
  %vm3551 = vcmp.eq.s32.totalorder %v2614, %v19
  %vm3552 = vcmp.eq.s32.totalorder %v2620, %v19
  %vm3553 = vcmp.eq.s32.totalorder %v2626, %v19
  %vm3554 = vcmp.eq.s32.totalorder %v2632, %v19
  %vm3555 = vcmp.eq.s32.totalorder %v2638, %v19
  %vm3556 = vcmp.eq.s32.totalorder %v2645, %v19
  %vm3557 = vcmp.eq.s32.totalorder %v2651, %v19
  %vm3558 = vcmp.eq.s32.totalorder %v2657, %v19
  %vm3559 = vcmp.eq.s32.totalorder %v2663, %v19
  %vm3560 = vcmp.eq.s32.totalorder %v2669, %v19
  %vm3561 = vcmp.eq.s32.totalorder %v2675, %v19
  %vm3562 = vcmp.eq.s32.totalorder %v2681, %v19
  %vm3563 = vcmp.eq.s32.totalorder %v2687, %v19
  %vm3564 = vcmp.eq.s32.totalorder %v2693, %v19
  %vm3565 = vcmp.eq.s32.totalorder %v2699, %v19
  %vm3566 = vcmp.eq.s32.totalorder %v2705, %v19
  %vm3567 = vcmp.eq.s32.totalorder %v2711, %v19
  %vm3568 = vcmp.eq.s32.totalorder %v2717, %v19
  %vm3569 = vcmp.eq.s32.totalorder %v2723, %v19
  %vm3570 = vcmp.eq.s32.totalorder %v2729, %v19
  %vm3571 = vcmp.eq.s32.totalorder %v2735, %v19
  %vm3572 = vcmp.eq.s32.totalorder %v2742, %v19
  %vm3573 = vcmp.eq.s32.totalorder %v2748, %v19
  %vm3574 = vcmp.eq.s32.totalorder %v2754, %v19
  %vm3575 = vcmp.eq.s32.totalorder %v2760, %v19
  %vm3576 = vcmp.eq.s32.totalorder %v2766, %v19
  %vm3577 = vcmp.eq.s32.totalorder %v2772, %v19
  %vm3578 = vcmp.eq.s32.totalorder %v2778, %v19
  %vm3579 = vcmp.eq.s32.totalorder %v2784, %v19
  %vm3580 = vcmp.eq.s32.totalorder %v2790, %v19
  %vm3581 = vcmp.eq.s32.totalorder %v2796, %v19
  %vm3582 = vcmp.eq.s32.totalorder %v2802, %v19
  %vm3583 = vcmp.eq.s32.totalorder %v2808, %v19
  %vm3584 = vcmp.eq.s32.totalorder %v2814, %v19
  %vm3585 = vcmp.eq.s32.totalorder %v2820, %v19
  %vm3586 = vcmp.eq.s32.totalorder %v2826, %v19
  %vm3587 = vcmp.eq.s32.totalorder %v2832, %v19
  %vm3588 = vcmp.eq.s32.totalorder %v2839, %v19
  %vm3589 = vcmp.eq.s32.totalorder %v2845, %v19
  %vm3590 = vcmp.eq.s32.totalorder %v2851, %v19
  %vm3591 = vcmp.eq.s32.totalorder %v2857, %v19
  %vm3592 = vcmp.eq.s32.totalorder %v2863, %v19
  %vm3593 = vcmp.eq.s32.totalorder %v2869, %v19
  %vm3594 = vcmp.eq.s32.totalorder %v2875, %v19
  %vm3595 = vcmp.eq.s32.totalorder %v2881, %v19
  %vm3596 = vcmp.eq.s32.totalorder %v2887, %v19
  %vm3597 = vcmp.eq.s32.totalorder %v2893, %v19
  %vm3598 = vcmp.eq.s32.totalorder %v2899, %v19
  %vm3599 = vcmp.eq.s32.totalorder %v2905, %v19
  %vm3600 = vcmp.eq.s32.totalorder %v2911, %v19
  %vm3601 = vcmp.eq.s32.totalorder %v2917, %v19
  %vm3602 = vcmp.eq.s32.totalorder %v2923, %v19
  %vm3603 = vcmp.eq.s32.totalorder %v2929, %v19
  %vm3604 = vcmp.eq.s32.totalorder %v2936, %v19
  %vm3605 = vcmp.eq.s32.totalorder %v2942, %v19
  %vm3606 = vcmp.eq.s32.totalorder %v2948, %v19
  %vm3607 = vcmp.eq.s32.totalorder %v2954, %v19
  %vm3608 = vcmp.eq.s32.totalorder %v2960, %v19
  %vm3609 = vcmp.eq.s32.totalorder %v2966, %v19
  %vm3610 = vcmp.eq.s32.totalorder %v2972, %v19
  %vm3611 = vcmp.eq.s32.totalorder %v2978, %v19
  %vm3612 = vcmp.eq.s32.totalorder %v2984, %v19
  %vm3613 = vcmp.eq.s32.totalorder %v2990, %v19
  %vm3614 = vcmp.eq.s32.totalorder %v2996, %v19
  %vm3615 = vcmp.eq.s32.totalorder %v3002, %v19
  %vm3616 = vcmp.eq.s32.totalorder %v3008, %v19
  %vm3617 = vcmp.eq.s32.totalorder %v3014, %v19
  %vm3618 = vcmp.eq.s32.totalorder %v3020, %v19
  %vm3619 = vcmp.eq.s32.totalorder %v3026, %v19
  %vm3620 = vcmp.eq.s32.totalorder %v3033, %v19
  %vm3621 = vcmp.eq.s32.totalorder %v3039, %v19
  %vm3622 = vcmp.eq.s32.totalorder %v3045, %v19
  %vm3623 = vcmp.eq.s32.totalorder %v3051, %v19
  %vm3624 = vcmp.eq.s32.totalorder %v3057, %v19
  %vm3625 = vcmp.eq.s32.totalorder %v3063, %v19
  %vm3626 = vcmp.eq.s32.totalorder %v3069, %v19
  %vm3627 = vcmp.eq.s32.totalorder %v3075, %v19
  %vm3628 = vcmp.eq.s32.totalorder %v3081, %v19
  %vm3629 = vcmp.eq.s32.totalorder %v3087, %v19
  %vm3630 = vcmp.eq.s32.totalorder %v3093, %v19
  %vm3631 = vcmp.eq.s32.totalorder %v3099, %v19
  %vm3632 = vcmp.eq.s32.totalorder %v3105, %v19
  %vm3633 = vcmp.eq.s32.totalorder %v3111, %v19
  %vm3634 = vcmp.eq.s32.totalorder %v3117, %v19
  %vm3635 = vcmp.eq.s32.totalorder %v3123, %v19
  %v3636 = vsel %vm3124, 1, 0
  %v3637 = vsel %vm3125, 1, 0
  %v3638 = vsel %vm3126, 1, 0
  %v3639 = vsel %vm3127, 1, 0
  %v3640 = vsel %vm3128, 1, 0
  %v3641 = vsel %vm3129, 1, 0
  %v3642 = vsel %vm3130, 1, 0
  %v3643 = vsel %vm3131, 1, 0
  %v3644 = vsel %vm3132, 1, 0
  %v3645 = vsel %vm3133, 1, 0
  %v3646 = vsel %vm3134, 1, 0
  %v3647 = vsel %vm3135, 1, 0
  %v3648 = vsel %vm3136, 1, 0
  %v3649 = vsel %vm3137, 1, 0
  %v3650 = vsel %vm3138, 1, 0
  %v3651 = vsel %vm3139, 1, 0
  %v3652 = vsel %vm3140, 1, 0
  %v3653 = vsel %vm3141, 1, 0
  %v3654 = vsel %vm3142, 1, 0
  %v3655 = vsel %vm3143, 1, 0
  %v3656 = vsel %vm3144, 1, 0
  %v3657 = vsel %vm3145, 1, 0
  %v3658 = vsel %vm3146, 1, 0
  %v3659 = vsel %vm3147, 1, 0
  %v3660 = vsel %vm3148, 1, 0
  %v3661 = vsel %vm3149, 1, 0
  %v3662 = vsel %vm3150, 1, 0
  %v3663 = vsel %vm3151, 1, 0
  %v3664 = vsel %vm3152, 1, 0
  %v3665 = vsel %vm3153, 1, 0
  %v3666 = vsel %vm3154, 1, 0
  %v3667 = vsel %vm3155, 1, 0
  %v3668 = vsel %vm3156, 1, 0
  %v3669 = vsel %vm3157, 1, 0
  %v3670 = vsel %vm3158, 1, 0
  %v3671 = vsel %vm3159, 1, 0
  %v3672 = vsel %vm3160, 1, 0
  %v3673 = vsel %vm3161, 1, 0
  %v3674 = vsel %vm3162, 1, 0
  %v3675 = vsel %vm3163, 1, 0
  %v3676 = vsel %vm3164, 1, 0
  %v3677 = vsel %vm3165, 1, 0
  %v3678 = vsel %vm3166, 1, 0
  %v3679 = vsel %vm3167, 1, 0
  %v3680 = vsel %vm3168, 1, 0
  %v3681 = vsel %vm3169, 1, 0
  %v3682 = vsel %vm3170, 1, 0
  %v3683 = vsel %vm3171, 1, 0
  %v3684 = vsel %vm3172, 1, 0
  %v3685 = vsel %vm3173, 1, 0
  %v3686 = vsel %vm3174, 1, 0
  %v3687 = vsel %vm3175, 1, 0
  %v3688 = vsel %vm3176, 1, 0
  %v3689 = vsel %vm3177, 1, 0
  %v3690 = vsel %vm3178, 1, 0
  %v3691 = vsel %vm3179, 1, 0
  %v3692 = vsel %vm3180, 1, 0
  %v3693 = vsel %vm3181, 1, 0
  %v3694 = vsel %vm3182, 1, 0
  %v3695 = vsel %vm3183, 1, 0
  %v3696 = vsel %vm3184, 1, 0
  %v3697 = vsel %vm3185, 1, 0
  %v3698 = vsel %vm3186, 1, 0
  %v3699 = vsel %vm3187, 1, 0
  %v3700 = vsel %vm3188, 1, 0
  %v3701 = vsel %vm3189, 1, 0
  %v3702 = vsel %vm3190, 1, 0
  %v3703 = vsel %vm3191, 1, 0
  %v3704 = vsel %vm3192, 1, 0
  %v3705 = vsel %vm3193, 1, 0
  %v3706 = vsel %vm3194, 1, 0
  %v3707 = vsel %vm3195, 1, 0
  %v3708 = vsel %vm3196, 1, 0
  %v3709 = vsel %vm3197, 1, 0
  %v3710 = vsel %vm3198, 1, 0
  %v3711 = vsel %vm3199, 1, 0
  %v3712 = vsel %vm3200, 1, 0
  %v3713 = vsel %vm3201, 1, 0
  %v3714 = vsel %vm3202, 1, 0
  %v3715 = vsel %vm3203, 1, 0
  %v3716 = vsel %vm3204, 1, 0
  %v3717 = vsel %vm3205, 1, 0
  %v3718 = vsel %vm3206, 1, 0
  %v3719 = vsel %vm3207, 1, 0
  %v3720 = vsel %vm3208, 1, 0
  %v3721 = vsel %vm3209, 1, 0
  %v3722 = vsel %vm3210, 1, 0
  %v3723 = vsel %vm3211, 1, 0
  %v3724 = vsel %vm3212, 1, 0
  %v3725 = vsel %vm3213, 1, 0
  %v3726 = vsel %vm3214, 1, 0
  %v3727 = vsel %vm3215, 1, 0
  %v3728 = vsel %vm3216, 1, 0
  %v3729 = vsel %vm3217, 1, 0
  %v3730 = vsel %vm3218, 1, 0
  %v3731 = vsel %vm3219, 1, 0
  %v3732 = vsel %vm3220, 1, 0
  %v3733 = vsel %vm3221, 1, 0
  %v3734 = vsel %vm3222, 1, 0
  %v3735 = vsel %vm3223, 1, 0
  %v3736 = vsel %vm3224, 1, 0
  %v3737 = vsel %vm3225, 1, 0
  %v3738 = vsel %vm3226, 1, 0
  %v3739 = vsel %vm3227, 1, 0
  %v3740 = vsel %vm3228, 1, 0
  %v3741 = vsel %vm3229, 1, 0
  %v3742 = vsel %vm3230, 1, 0
  %v3743 = vsel %vm3231, 1, 0
  %v3744 = vsel %vm3232, 1, 0
  %v3745 = vsel %vm3233, 1, 0
  %v3746 = vsel %vm3234, 1, 0
  %v3747 = vsel %vm3235, 1, 0
  %v3748 = vsel %vm3236, 1, 0
  %v3749 = vsel %vm3237, 1, 0
  %v3750 = vsel %vm3238, 1, 0
  %v3751 = vsel %vm3239, 1, 0
  %v3752 = vsel %vm3240, 1, 0
  %v3753 = vsel %vm3241, 1, 0
  %v3754 = vsel %vm3242, 1, 0
  %v3755 = vsel %vm3243, 1, 0
  %v3756 = vsel %vm3244, 1, 0
  %v3757 = vsel %vm3245, 1, 0
  %v3758 = vsel %vm3246, 1, 0
  %v3759 = vsel %vm3247, 1, 0
  %v3760 = vsel %vm3248, 1, 0
  %v3761 = vsel %vm3249, 1, 0
  %v3762 = vsel %vm3250, 1, 0
  %v3763 = vsel %vm3251, 1, 0
  %v3764 = vsel %vm3252, 1, 0
  %v3765 = vsel %vm3253, 1, 0
  %v3766 = vsel %vm3254, 1, 0
  %v3767 = vsel %vm3255, 1, 0
  %v3768 = vsel %vm3256, 1, 0
  %v3769 = vsel %vm3257, 1, 0
  %v3770 = vsel %vm3258, 1, 0
  %v3771 = vsel %vm3259, 1, 0
  %v3772 = vsel %vm3260, 1, 0
  %v3773 = vsel %vm3261, 1, 0
  %v3774 = vsel %vm3262, 1, 0
  %v3775 = vsel %vm3263, 1, 0
  %v3776 = vsel %vm3264, 1, 0
  %v3777 = vsel %vm3265, 1, 0
  %v3778 = vsel %vm3266, 1, 0
  %v3779 = vsel %vm3267, 1, 0
  %v3780 = vsel %vm3268, 1, 0
  %v3781 = vsel %vm3269, 1, 0
  %v3782 = vsel %vm3270, 1, 0
  %v3783 = vsel %vm3271, 1, 0
  %v3784 = vsel %vm3272, 1, 0
  %v3785 = vsel %vm3273, 1, 0
  %v3786 = vsel %vm3274, 1, 0
  %v3787 = vsel %vm3275, 1, 0
  %v3788 = vsel %vm3276, 1, 0
  %v3789 = vsel %vm3277, 1, 0
  %v3790 = vsel %vm3278, 1, 0
  %v3791 = vsel %vm3279, 1, 0
  %v3792 = vsel %vm3280, 1, 0
  %v3793 = vsel %vm3281, 1, 0
  %v3794 = vsel %vm3282, 1, 0
  %v3795 = vsel %vm3283, 1, 0
  %v3796 = vsel %vm3284, 1, 0
  %v3797 = vsel %vm3285, 1, 0
  %v3798 = vsel %vm3286, 1, 0
  %v3799 = vsel %vm3287, 1, 0
  %v3800 = vsel %vm3288, 1, 0
  %v3801 = vsel %vm3289, 1, 0
  %v3802 = vsel %vm3290, 1, 0
  %v3803 = vsel %vm3291, 1, 0
  %v3804 = vsel %vm3292, 1, 0
  %v3805 = vsel %vm3293, 1, 0
  %v3806 = vsel %vm3294, 1, 0
  %v3807 = vsel %vm3295, 1, 0
  %v3808 = vsel %vm3296, 1, 0
  %v3809 = vsel %vm3297, 1, 0
  %v3810 = vsel %vm3298, 1, 0
  %v3811 = vsel %vm3299, 1, 0
  %v3812 = vsel %vm3300, 1, 0
  %v3813 = vsel %vm3301, 1, 0
  %v3814 = vsel %vm3302, 1, 0
  %v3815 = vsel %vm3303, 1, 0
  %v3816 = vsel %vm3304, 1, 0
  %v3817 = vsel %vm3305, 1, 0
  %v3818 = vsel %vm3306, 1, 0
  %v3819 = vsel %vm3307, 1, 0
  %v3820 = vsel %vm3308, 1, 0
  %v3821 = vsel %vm3309, 1, 0
  %v3822 = vsel %vm3310, 1, 0
  %v3823 = vsel %vm3311, 1, 0
  %v3824 = vsel %vm3312, 1, 0
  %v3825 = vsel %vm3313, 1, 0
  %v3826 = vsel %vm3314, 1, 0
  %v3827 = vsel %vm3315, 1, 0
  %v3828 = vsel %vm3316, 1, 0
  %v3829 = vsel %vm3317, 1, 0
  %v3830 = vsel %vm3318, 1, 0
  %v3831 = vsel %vm3319, 1, 0
  %v3832 = vsel %vm3320, 1, 0
  %v3833 = vsel %vm3321, 1, 0
  %v3834 = vsel %vm3322, 1, 0
  %v3835 = vsel %vm3323, 1, 0
  %v3836 = vsel %vm3324, 1, 0
  %v3837 = vsel %vm3325, 1, 0
  %v3838 = vsel %vm3326, 1, 0
  %v3839 = vsel %vm3327, 1, 0
  %v3840 = vsel %vm3328, 1, 0
  %v3841 = vsel %vm3329, 1, 0
  %v3842 = vsel %vm3330, 1, 0
  %v3843 = vsel %vm3331, 1, 0
  %v3844 = vsel %vm3332, 1, 0
  %v3845 = vsel %vm3333, 1, 0
  %v3846 = vsel %vm3334, 1, 0
  %v3847 = vsel %vm3335, 1, 0
  %v3848 = vsel %vm3336, 1, 0
  %v3849 = vsel %vm3337, 1, 0
  %v3850 = vsel %vm3338, 1, 0
  %v3851 = vsel %vm3339, 1, 0
  %v3852 = vsel %vm3340, 1, 0
  %v3853 = vsel %vm3341, 1, 0
  %v3854 = vsel %vm3342, 1, 0
  %v3855 = vsel %vm3343, 1, 0
  %v3856 = vsel %vm3344, 1, 0
  %v3857 = vsel %vm3345, 1, 0
  %v3858 = vsel %vm3346, 1, 0
  %v3859 = vsel %vm3347, 1, 0
  %v3860 = vsel %vm3348, 1, 0
  %v3861 = vsel %vm3349, 1, 0
  %v3862 = vsel %vm3350, 1, 0
  %v3863 = vsel %vm3351, 1, 0
  %v3864 = vsel %vm3352, 1, 0
  %v3865 = vsel %vm3353, 1, 0
  %v3866 = vsel %vm3354, 1, 0
  %v3867 = vsel %vm3355, 1, 0
  %v3868 = vsel %vm3356, 1, 0
  %v3869 = vsel %vm3357, 1, 0
  %v3870 = vsel %vm3358, 1, 0
  %v3871 = vsel %vm3359, 1, 0
  %v3872 = vsel %vm3360, 1, 0
  %v3873 = vsel %vm3361, 1, 0
  %v3874 = vsel %vm3362, 1, 0
  %v3875 = vsel %vm3363, 1, 0
  %v3876 = vsel %vm3364, 1, 0
  %v3877 = vsel %vm3365, 1, 0
  %v3878 = vsel %vm3366, 1, 0
  %v3879 = vsel %vm3367, 1, 0
  %v3880 = vsel %vm3368, 1, 0
  %v3881 = vsel %vm3369, 1, 0
  %v3882 = vsel %vm3370, 1, 0
  %v3883 = vsel %vm3371, 1, 0
  %v3884 = vsel %vm3372, 1, 0
  %v3885 = vsel %vm3373, 1, 0
  %v3886 = vsel %vm3374, 1, 0
  %v3887 = vsel %vm3375, 1, 0
  %v3888 = vsel %vm3376, 1, 0
  %v3889 = vsel %vm3377, 1, 0
  %v3890 = vsel %vm3378, 1, 0
  %v3891 = vsel %vm3379, 1, 0
  %v3892 = vsel %vm3380, 1, 0
  %v3893 = vsel %vm3381, 1, 0
  %v3894 = vsel %vm3382, 1, 0
  %v3895 = vsel %vm3383, 1, 0
  %v3896 = vsel %vm3384, 1, 0
  %v3897 = vsel %vm3385, 1, 0
  %v3898 = vsel %vm3386, 1, 0
  %v3899 = vsel %vm3387, 1, 0
  %v3900 = vsel %vm3388, 1, 0
  %v3901 = vsel %vm3389, 1, 0
  %v3902 = vsel %vm3390, 1, 0
  %v3903 = vsel %vm3391, 1, 0
  %v3904 = vsel %vm3392, 1, 0
  %v3905 = vsel %vm3393, 1, 0
  %v3906 = vsel %vm3394, 1, 0
  %v3907 = vsel %vm3395, 1, 0
  %v3908 = vsel %vm3396, 1, 0
  %v3909 = vsel %vm3397, 1, 0
  %v3910 = vsel %vm3398, 1, 0
  %v3911 = vsel %vm3399, 1, 0
  %v3912 = vsel %vm3400, 1, 0
  %v3913 = vsel %vm3401, 1, 0
  %v3914 = vsel %vm3402, 1, 0
  %v3915 = vsel %vm3403, 1, 0
  %v3916 = vsel %vm3404, 1, 0
  %v3917 = vsel %vm3405, 1, 0
  %v3918 = vsel %vm3406, 1, 0
  %v3919 = vsel %vm3407, 1, 0
  %v3920 = vsel %vm3408, 1, 0
  %v3921 = vsel %vm3409, 1, 0
  %v3922 = vsel %vm3410, 1, 0
  %v3923 = vsel %vm3411, 1, 0
  %v3924 = vsel %vm3412, 1, 0
  %v3925 = vsel %vm3413, 1, 0
  %v3926 = vsel %vm3414, 1, 0
  %v3927 = vsel %vm3415, 1, 0
  %v3928 = vsel %vm3416, 1, 0
  %v3929 = vsel %vm3417, 1, 0
  %v3930 = vsel %vm3418, 1, 0
  %v3931 = vsel %vm3419, 1, 0
  %v3932 = vsel %vm3420, 1, 0
  %v3933 = vsel %vm3421, 1, 0
  %v3934 = vsel %vm3422, 1, 0
  %v3935 = vsel %vm3423, 1, 0
  %v3936 = vsel %vm3424, 1, 0
  %v3937 = vsel %vm3425, 1, 0
  %v3938 = vsel %vm3426, 1, 0
  %v3939 = vsel %vm3427, 1, 0
  %v3940 = vsel %vm3428, 1, 0
  %v3941 = vsel %vm3429, 1, 0
  %v3942 = vsel %vm3430, 1, 0
  %v3943 = vsel %vm3431, 1, 0
  %v3944 = vsel %vm3432, 1, 0
  %v3945 = vsel %vm3433, 1, 0
  %v3946 = vsel %vm3434, 1, 0
  %v3947 = vsel %vm3435, 1, 0
  %v3948 = vsel %vm3436, 1, 0
  %v3949 = vsel %vm3437, 1, 0
  %v3950 = vsel %vm3438, 1, 0
  %v3951 = vsel %vm3439, 1, 0
  %v3952 = vsel %vm3440, 1, 0
  %v3953 = vsel %vm3441, 1, 0
  %v3954 = vsel %vm3442, 1, 0
  %v3955 = vsel %vm3443, 1, 0
  %v3956 = vsel %vm3444, 1, 0
  %v3957 = vsel %vm3445, 1, 0
  %v3958 = vsel %vm3446, 1, 0
  %v3959 = vsel %vm3447, 1, 0
  %v3960 = vsel %vm3448, 1, 0
  %v3961 = vsel %vm3449, 1, 0
  %v3962 = vsel %vm3450, 1, 0
  %v3963 = vsel %vm3451, 1, 0
  %v3964 = vsel %vm3452, 1, 0
  %v3965 = vsel %vm3453, 1, 0
  %v3966 = vsel %vm3454, 1, 0
  %v3967 = vsel %vm3455, 1, 0
  %v3968 = vsel %vm3456, 1, 0
  %v3969 = vsel %vm3457, 1, 0
  %v3970 = vsel %vm3458, 1, 0
  %v3971 = vsel %vm3459, 1, 0
  %v3972 = vsel %vm3460, 1, 0
  %v3973 = vsel %vm3461, 1, 0
  %v3974 = vsel %vm3462, 1, 0
  %v3975 = vsel %vm3463, 1, 0
  %v3976 = vsel %vm3464, 1, 0
  %v3977 = vsel %vm3465, 1, 0
  %v3978 = vsel %vm3466, 1, 0
  %v3979 = vsel %vm3467, 1, 0
  %v3980 = vsel %vm3468, 1, 0
  %v3981 = vsel %vm3469, 1, 0
  %v3982 = vsel %vm3470, 1, 0
  %v3983 = vsel %vm3471, 1, 0
  %v3984 = vsel %vm3472, 1, 0
  %v3985 = vsel %vm3473, 1, 0
  %v3986 = vsel %vm3474, 1, 0
  %v3987 = vsel %vm3475, 1, 0
  %v3988 = vsel %vm3476, 1, 0
  %v3989 = vsel %vm3477, 1, 0
  %v3990 = vsel %vm3478, 1, 0
  %v3991 = vsel %vm3479, 1, 0
  %v3992 = vsel %vm3480, 1, 0
  %v3993 = vsel %vm3481, 1, 0
  %v3994 = vsel %vm3482, 1, 0
  %v3995 = vsel %vm3483, 1, 0
  %v3996 = vsel %vm3484, 1, 0
  %v3997 = vsel %vm3485, 1, 0
  %v3998 = vsel %vm3486, 1, 0
  %v3999 = vsel %vm3487, 1, 0
  %v4000 = vsel %vm3488, 1, 0
  %v4001 = vsel %vm3489, 1, 0
  %v4002 = vsel %vm3490, 1, 0
  %v4003 = vsel %vm3491, 1, 0
  %v4004 = vsel %vm3492, 1, 0
  %v4005 = vsel %vm3493, 1, 0
  %v4006 = vsel %vm3494, 1, 0
  %v4007 = vsel %vm3495, 1, 0
  %v4008 = vsel %vm3496, 1, 0
  %v4009 = vsel %vm3497, 1, 0
  %v4010 = vsel %vm3498, 1, 0
  %v4011 = vsel %vm3499, 1, 0
  %v4012 = vsel %vm3500, 1, 0
  %v4013 = vsel %vm3501, 1, 0
  %v4014 = vsel %vm3502, 1, 0
  %v4015 = vsel %vm3503, 1, 0
  %v4016 = vsel %vm3504, 1, 0
  %v4017 = vsel %vm3505, 1, 0
  %v4018 = vsel %vm3506, 1, 0
  %v4019 = vsel %vm3507, 1, 0
  %v4020 = vsel %vm3508, 1, 0
  %v4021 = vsel %vm3509, 1, 0
  %v4022 = vsel %vm3510, 1, 0
  %v4023 = vsel %vm3511, 1, 0
  %v4024 = vsel %vm3512, 1, 0
  %v4025 = vsel %vm3513, 1, 0
  %v4026 = vsel %vm3514, 1, 0
  %v4027 = vsel %vm3515, 1, 0
  %v4028 = vsel %vm3516, 1, 0
  %v4029 = vsel %vm3517, 1, 0
  %v4030 = vsel %vm3518, 1, 0
  %v4031 = vsel %vm3519, 1, 0
  %v4032 = vsel %vm3520, 1, 0
  %v4033 = vsel %vm3521, 1, 0
  %v4034 = vsel %vm3522, 1, 0
  %v4035 = vsel %vm3523, 1, 0
  %v4036 = vsel %vm3524, 1, 0
  %v4037 = vsel %vm3525, 1, 0
  %v4038 = vsel %vm3526, 1, 0
  %v4039 = vsel %vm3527, 1, 0
  %v4040 = vsel %vm3528, 1, 0
  %v4041 = vsel %vm3529, 1, 0
  %v4042 = vsel %vm3530, 1, 0
  %v4043 = vsel %vm3531, 1, 0
  %v4044 = vsel %vm3532, 1, 0
  %v4045 = vsel %vm3533, 1, 0
  %v4046 = vsel %vm3534, 1, 0
  %v4047 = vsel %vm3535, 1, 0
  %v4048 = vsel %vm3536, 1, 0
  %v4049 = vsel %vm3537, 1, 0
  %v4050 = vsel %vm3538, 1, 0
  %v4051 = vsel %vm3539, 1, 0
  %v4052 = vsel %vm3540, 1, 0
  %v4053 = vsel %vm3541, 1, 0
  %v4054 = vsel %vm3542, 1, 0
  %v4055 = vsel %vm3543, 1, 0
  %v4056 = vsel %vm3544, 1, 0
  %v4057 = vsel %vm3545, 1, 0
  %v4058 = vsel %vm3546, 1, 0
  %v4059 = vsel %vm3547, 1, 0
  %v4060 = vsel %vm3548, 1, 0
  %v4061 = vsel %vm3549, 1, 0
  %v4062 = vsel %vm3550, 1, 0
  %v4063 = vsel %vm3551, 1, 0
  %v4064 = vsel %vm3552, 1, 0
  %v4065 = vsel %vm3553, 1, 0
  %v4066 = vsel %vm3554, 1, 0
  %v4067 = vsel %vm3555, 1, 0
  %v4068 = vsel %vm3556, 1, 0
  %v4069 = vsel %vm3557, 1, 0
  %v4070 = vsel %vm3558, 1, 0
  %v4071 = vsel %vm3559, 1, 0
  %v4072 = vsel %vm3560, 1, 0
  %v4073 = vsel %vm3561, 1, 0
  %v4074 = vsel %vm3562, 1, 0
  %v4075 = vsel %vm3563, 1, 0
  %v4076 = vsel %vm3564, 1, 0
  %v4077 = vsel %vm3565, 1, 0
  %v4078 = vsel %vm3566, 1, 0
  %v4079 = vsel %vm3567, 1, 0
  %v4080 = vsel %vm3568, 1, 0
  %v4081 = vsel %vm3569, 1, 0
  %v4082 = vsel %vm3570, 1, 0
  %v4083 = vsel %vm3571, 1, 0
  %v4084 = vsel %vm3572, 1, 0
  %v4085 = vsel %vm3573, 1, 0
  %v4086 = vsel %vm3574, 1, 0
  %v4087 = vsel %vm3575, 1, 0
  %v4088 = vsel %vm3576, 1, 0
  %v4089 = vsel %vm3577, 1, 0
  %v4090 = vsel %vm3578, 1, 0
  %v4091 = vsel %vm3579, 1, 0
  %v4092 = vsel %vm3580, 1, 0
  %v4093 = vsel %vm3581, 1, 0
  %v4094 = vsel %vm3582, 1, 0
  %v4095 = vsel %vm3583, 1, 0
  %v4096 = vsel %vm3584, 1, 0
  %v4097 = vsel %vm3585, 1, 0
  %v4098 = vsel %vm3586, 1, 0
  %v4099 = vsel %vm3587, 1, 0
  %v4100 = vsel %vm3588, 1, 0
  %v4101 = vsel %vm3589, 1, 0
  %v4102 = vsel %vm3590, 1, 0
  %v4103 = vsel %vm3591, 1, 0
  %v4104 = vsel %vm3592, 1, 0
  %v4105 = vsel %vm3593, 1, 0
  %v4106 = vsel %vm3594, 1, 0
  %v4107 = vsel %vm3595, 1, 0
  %v4108 = vsel %vm3596, 1, 0
  %v4109 = vsel %vm3597, 1, 0
  %v4110 = vsel %vm3598, 1, 0
  %v4111 = vsel %vm3599, 1, 0
  %v4112 = vsel %vm3600, 1, 0
  %v4113 = vsel %vm3601, 1, 0
  %v4114 = vsel %vm3602, 1, 0
  %v4115 = vsel %vm3603, 1, 0
  %v4116 = vsel %vm3604, 1, 0
  %v4117 = vsel %vm3605, 1, 0
  %v4118 = vsel %vm3606, 1, 0
  %v4119 = vsel %vm3607, 1, 0
  %v4120 = vsel %vm3608, 1, 0
  %v4121 = vsel %vm3609, 1, 0
  %v4122 = vsel %vm3610, 1, 0
  %v4123 = vsel %vm3611, 1, 0
  %v4124 = vsel %vm3612, 1, 0
  %v4125 = vsel %vm3613, 1, 0
  %v4126 = vsel %vm3614, 1, 0
  %v4127 = vsel %vm3615, 1, 0
  %v4128 = vsel %vm3616, 1, 0
  %v4129 = vsel %vm3617, 1, 0
  %v4130 = vsel %vm3618, 1, 0
  %v4131 = vsel %vm3619, 1, 0
  %v4132 = vsel %vm3620, 1, 0
  %v4133 = vsel %vm3621, 1, 0
  %v4134 = vsel %vm3622, 1, 0
  %v4135 = vsel %vm3623, 1, 0
  %v4136 = vsel %vm3624, 1, 0
  %v4137 = vsel %vm3625, 1, 0
  %v4138 = vsel %vm3626, 1, 0
  %v4139 = vsel %vm3627, 1, 0
  %v4140 = vsel %vm3628, 1, 0
  %v4141 = vsel %vm3629, 1, 0
  %v4142 = vsel %vm3630, 1, 0
  %v4143 = vsel %vm3631, 1, 0
  %v4144 = vsel %vm3632, 1, 0
  %v4145 = vsel %vm3633, 1, 0
  %v4146 = vsel %vm3634, 1, 0
  %v4147 = vsel %vm3635, 1, 0
  %v4148 = vcvt.s32.f32 %v3636
  %v4149 = vcvt.s32.f32 %v3637
  %v4150 = vcvt.s32.f32 %v3638
  %v4151 = vcvt.s32.f32 %v3639
  %v4152 = vcvt.s32.f32 %v3640
  %v4153 = vcvt.s32.f32 %v3641
  %v4154 = vcvt.s32.f32 %v3642
  %v4155 = vcvt.s32.f32 %v3643
  %v4156 = vcvt.s32.f32 %v3644
  %v4157 = vcvt.s32.f32 %v3645
  %v4158 = vcvt.s32.f32 %v3646
  %v4159 = vcvt.s32.f32 %v3647
  %v4160 = vcvt.s32.f32 %v3648
  %v4161 = vcvt.s32.f32 %v3649
  %v4162 = vcvt.s32.f32 %v3650
  %v4163 = vcvt.s32.f32 %v3651
  %v4164 = vcvt.s32.f32 %v3652
  %v4165 = vcvt.s32.f32 %v3653
  %v4166 = vcvt.s32.f32 %v3654
  %v4167 = vcvt.s32.f32 %v3655
  %v4168 = vcvt.s32.f32 %v3656
  %v4169 = vcvt.s32.f32 %v3657
  %v4170 = vcvt.s32.f32 %v3658
  %v4171 = vcvt.s32.f32 %v3659
  %v4172 = vcvt.s32.f32 %v3660
  %v4173 = vcvt.s32.f32 %v3661
  %v4174 = vcvt.s32.f32 %v3662
  %v4175 = vcvt.s32.f32 %v3663
  %v4176 = vcvt.s32.f32 %v3664
  %v4177 = vcvt.s32.f32 %v3665
  %v4178 = vcvt.s32.f32 %v3666
  %v4179 = vcvt.s32.f32 %v3667
  %v4180 = vcvt.s32.f32 %v3668
  %v4181 = vcvt.s32.f32 %v3669
  %v4182 = vcvt.s32.f32 %v3670
  %v4183 = vcvt.s32.f32 %v3671
  %v4184 = vcvt.s32.f32 %v3672
  %v4185 = vcvt.s32.f32 %v3673
  %v4186 = vcvt.s32.f32 %v3674
  %v4187 = vcvt.s32.f32 %v3675
  %v4188 = vcvt.s32.f32 %v3676
  %v4189 = vcvt.s32.f32 %v3677
  %v4190 = vcvt.s32.f32 %v3678
  %v4191 = vcvt.s32.f32 %v3679
  %v4192 = vcvt.s32.f32 %v3680
  %v4193 = vcvt.s32.f32 %v3681
  %v4194 = vcvt.s32.f32 %v3682
  %v4195 = vcvt.s32.f32 %v3683
  %v4196 = vcvt.s32.f32 %v3684
  %v4197 = vcvt.s32.f32 %v3685
  %v4198 = vcvt.s32.f32 %v3686
  %v4199 = vcvt.s32.f32 %v3687
  %v4200 = vcvt.s32.f32 %v3688
  %v4201 = vcvt.s32.f32 %v3689
  %v4202 = vcvt.s32.f32 %v3690
  %v4203 = vcvt.s32.f32 %v3691
  %v4204 = vcvt.s32.f32 %v3692
  %v4205 = vcvt.s32.f32 %v3693
  %v4206 = vcvt.s32.f32 %v3694
  %v4207 = vcvt.s32.f32 %v3695
  %v4208 = vcvt.s32.f32 %v3696
  %v4209 = vcvt.s32.f32 %v3697
  %v4210 = vcvt.s32.f32 %v3698
  %v4211 = vcvt.s32.f32 %v3699
  %v4212 = vcvt.s32.f32 %v3700
  %v4213 = vcvt.s32.f32 %v3701
  %v4214 = vcvt.s32.f32 %v3702
  %v4215 = vcvt.s32.f32 %v3703
  %v4216 = vcvt.s32.f32 %v3704
  %v4217 = vcvt.s32.f32 %v3705
  %v4218 = vcvt.s32.f32 %v3706
  %v4219 = vcvt.s32.f32 %v3707
  %v4220 = vcvt.s32.f32 %v3708
  %v4221 = vcvt.s32.f32 %v3709
  %v4222 = vcvt.s32.f32 %v3710
  %v4223 = vcvt.s32.f32 %v3711
  %v4224 = vcvt.s32.f32 %v3712
  %v4225 = vcvt.s32.f32 %v3713
  %v4226 = vcvt.s32.f32 %v3714
  %v4227 = vcvt.s32.f32 %v3715
  %v4228 = vcvt.s32.f32 %v3716
  %v4229 = vcvt.s32.f32 %v3717
  %v4230 = vcvt.s32.f32 %v3718
  %v4231 = vcvt.s32.f32 %v3719
  %v4232 = vcvt.s32.f32 %v3720
  %v4233 = vcvt.s32.f32 %v3721
  %v4234 = vcvt.s32.f32 %v3722
  %v4235 = vcvt.s32.f32 %v3723
  %v4236 = vcvt.s32.f32 %v3724
  %v4237 = vcvt.s32.f32 %v3725
  %v4238 = vcvt.s32.f32 %v3726
  %v4239 = vcvt.s32.f32 %v3727
  %v4240 = vcvt.s32.f32 %v3728
  %v4241 = vcvt.s32.f32 %v3729
  %v4242 = vcvt.s32.f32 %v3730
  %v4243 = vcvt.s32.f32 %v3731
  %v4244 = vcvt.s32.f32 %v3732
  %v4245 = vcvt.s32.f32 %v3733
  %v4246 = vcvt.s32.f32 %v3734
  %v4247 = vcvt.s32.f32 %v3735
  %v4248 = vcvt.s32.f32 %v3736
  %v4249 = vcvt.s32.f32 %v3737
  %v4250 = vcvt.s32.f32 %v3738
  %v4251 = vcvt.s32.f32 %v3739
  %v4252 = vcvt.s32.f32 %v3740
  %v4253 = vcvt.s32.f32 %v3741
  %v4254 = vcvt.s32.f32 %v3742
  %v4255 = vcvt.s32.f32 %v3743
  %v4256 = vcvt.s32.f32 %v3744
  %v4257 = vcvt.s32.f32 %v3745
  %v4258 = vcvt.s32.f32 %v3746
  %v4259 = vcvt.s32.f32 %v3747
  %v4260 = vcvt.s32.f32 %v3748
  %v4261 = vcvt.s32.f32 %v3749
  %v4262 = vcvt.s32.f32 %v3750
  %v4263 = vcvt.s32.f32 %v3751
  %v4264 = vcvt.s32.f32 %v3752
  %v4265 = vcvt.s32.f32 %v3753
  %v4266 = vcvt.s32.f32 %v3754
  %v4267 = vcvt.s32.f32 %v3755
  %v4268 = vcvt.s32.f32 %v3756
  %v4269 = vcvt.s32.f32 %v3757
  %v4270 = vcvt.s32.f32 %v3758
  %v4271 = vcvt.s32.f32 %v3759
  %v4272 = vcvt.s32.f32 %v3760
  %v4273 = vcvt.s32.f32 %v3761
  %v4274 = vcvt.s32.f32 %v3762
  %v4275 = vcvt.s32.f32 %v3763
  %v4276 = vcvt.s32.f32 %v3764
  %v4277 = vcvt.s32.f32 %v3765
  %v4278 = vcvt.s32.f32 %v3766
  %v4279 = vcvt.s32.f32 %v3767
  %v4280 = vcvt.s32.f32 %v3768
  %v4281 = vcvt.s32.f32 %v3769
  %v4282 = vcvt.s32.f32 %v3770
  %v4283 = vcvt.s32.f32 %v3771
  %v4284 = vcvt.s32.f32 %v3772
  %v4285 = vcvt.s32.f32 %v3773
  %v4286 = vcvt.s32.f32 %v3774
  %v4287 = vcvt.s32.f32 %v3775
  %v4288 = vcvt.s32.f32 %v3776
  %v4289 = vcvt.s32.f32 %v3777
  %v4290 = vcvt.s32.f32 %v3778
  %v4291 = vcvt.s32.f32 %v3779
  %v4292 = vcvt.s32.f32 %v3780
  %v4293 = vcvt.s32.f32 %v3781
  %v4294 = vcvt.s32.f32 %v3782
  %v4295 = vcvt.s32.f32 %v3783
  %v4296 = vcvt.s32.f32 %v3784
  %v4297 = vcvt.s32.f32 %v3785
  %v4298 = vcvt.s32.f32 %v3786
  %v4299 = vcvt.s32.f32 %v3787
  %v4300 = vcvt.s32.f32 %v3788
  %v4301 = vcvt.s32.f32 %v3789
  %v4302 = vcvt.s32.f32 %v3790
  %v4303 = vcvt.s32.f32 %v3791
  %v4304 = vcvt.s32.f32 %v3792
  %v4305 = vcvt.s32.f32 %v3793
  %v4306 = vcvt.s32.f32 %v3794
  %v4307 = vcvt.s32.f32 %v3795
  %v4308 = vcvt.s32.f32 %v3796
  %v4309 = vcvt.s32.f32 %v3797
  %v4310 = vcvt.s32.f32 %v3798
  %v4311 = vcvt.s32.f32 %v3799
  %v4312 = vcvt.s32.f32 %v3800
  %v4313 = vcvt.s32.f32 %v3801
  %v4314 = vcvt.s32.f32 %v3802
  %v4315 = vcvt.s32.f32 %v3803
  %v4316 = vcvt.s32.f32 %v3804
  %v4317 = vcvt.s32.f32 %v3805
  %v4318 = vcvt.s32.f32 %v3806
  %v4319 = vcvt.s32.f32 %v3807
  %v4320 = vcvt.s32.f32 %v3808
  %v4321 = vcvt.s32.f32 %v3809
  %v4322 = vcvt.s32.f32 %v3810
  %v4323 = vcvt.s32.f32 %v3811
  %v4324 = vcvt.s32.f32 %v3812
  %v4325 = vcvt.s32.f32 %v3813
  %v4326 = vcvt.s32.f32 %v3814
  %v4327 = vcvt.s32.f32 %v3815
  %v4328 = vcvt.s32.f32 %v3816
  %v4329 = vcvt.s32.f32 %v3817
  %v4330 = vcvt.s32.f32 %v3818
  %v4331 = vcvt.s32.f32 %v3819
  %v4332 = vcvt.s32.f32 %v3820
  %v4333 = vcvt.s32.f32 %v3821
  %v4334 = vcvt.s32.f32 %v3822
  %v4335 = vcvt.s32.f32 %v3823
  %v4336 = vcvt.s32.f32 %v3824
  %v4337 = vcvt.s32.f32 %v3825
  %v4338 = vcvt.s32.f32 %v3826
  %v4339 = vcvt.s32.f32 %v3827
  %v4340 = vcvt.s32.f32 %v3828
  %v4341 = vcvt.s32.f32 %v3829
  %v4342 = vcvt.s32.f32 %v3830
  %v4343 = vcvt.s32.f32 %v3831
  %v4344 = vcvt.s32.f32 %v3832
  %v4345 = vcvt.s32.f32 %v3833
  %v4346 = vcvt.s32.f32 %v3834
  %v4347 = vcvt.s32.f32 %v3835
  %v4348 = vcvt.s32.f32 %v3836
  %v4349 = vcvt.s32.f32 %v3837
  %v4350 = vcvt.s32.f32 %v3838
  %v4351 = vcvt.s32.f32 %v3839
  %v4352 = vcvt.s32.f32 %v3840
  %v4353 = vcvt.s32.f32 %v3841
  %v4354 = vcvt.s32.f32 %v3842
  %v4355 = vcvt.s32.f32 %v3843
  %v4356 = vcvt.s32.f32 %v3844
  %v4357 = vcvt.s32.f32 %v3845
  %v4358 = vcvt.s32.f32 %v3846
  %v4359 = vcvt.s32.f32 %v3847
  %v4360 = vcvt.s32.f32 %v3848
  %v4361 = vcvt.s32.f32 %v3849
  %v4362 = vcvt.s32.f32 %v3850
  %v4363 = vcvt.s32.f32 %v3851
  %v4364 = vcvt.s32.f32 %v3852
  %v4365 = vcvt.s32.f32 %v3853
  %v4366 = vcvt.s32.f32 %v3854
  %v4367 = vcvt.s32.f32 %v3855
  %v4368 = vcvt.s32.f32 %v3856
  %v4369 = vcvt.s32.f32 %v3857
  %v4370 = vcvt.s32.f32 %v3858
  %v4371 = vcvt.s32.f32 %v3859
  %v4372 = vcvt.s32.f32 %v3860
  %v4373 = vcvt.s32.f32 %v3861
  %v4374 = vcvt.s32.f32 %v3862
  %v4375 = vcvt.s32.f32 %v3863
  %v4376 = vcvt.s32.f32 %v3864
  %v4377 = vcvt.s32.f32 %v3865
  %v4378 = vcvt.s32.f32 %v3866
  %v4379 = vcvt.s32.f32 %v3867
  %v4380 = vcvt.s32.f32 %v3868
  %v4381 = vcvt.s32.f32 %v3869
  %v4382 = vcvt.s32.f32 %v3870
  %v4383 = vcvt.s32.f32 %v3871
  %v4384 = vcvt.s32.f32 %v3872
  %v4385 = vcvt.s32.f32 %v3873
  %v4386 = vcvt.s32.f32 %v3874
  %v4387 = vcvt.s32.f32 %v3875
  %v4388 = vcvt.s32.f32 %v3876
  %v4389 = vcvt.s32.f32 %v3877
  %v4390 = vcvt.s32.f32 %v3878
  %v4391 = vcvt.s32.f32 %v3879
  %v4392 = vcvt.s32.f32 %v3880
  %v4393 = vcvt.s32.f32 %v3881
  %v4394 = vcvt.s32.f32 %v3882
  %v4395 = vcvt.s32.f32 %v3883
  %v4396 = vcvt.s32.f32 %v3884
  %v4397 = vcvt.s32.f32 %v3885
  %v4398 = vcvt.s32.f32 %v3886
  %v4399 = vcvt.s32.f32 %v3887
  %v4400 = vcvt.s32.f32 %v3888
  %v4401 = vcvt.s32.f32 %v3889
  %v4402 = vcvt.s32.f32 %v3890
  %v4403 = vcvt.s32.f32 %v3891
  %v4404 = vcvt.s32.f32 %v3892
  %v4405 = vcvt.s32.f32 %v3893
  %v4406 = vcvt.s32.f32 %v3894
  %v4407 = vcvt.s32.f32 %v3895
  %v4408 = vcvt.s32.f32 %v3896
  %v4409 = vcvt.s32.f32 %v3897
  %v4410 = vcvt.s32.f32 %v3898
  %v4411 = vcvt.s32.f32 %v3899
  %v4412 = vcvt.s32.f32 %v3900
  %v4413 = vcvt.s32.f32 %v3901
  %v4414 = vcvt.s32.f32 %v3902
  %v4415 = vcvt.s32.f32 %v3903
  %v4416 = vcvt.s32.f32 %v3904
  %v4417 = vcvt.s32.f32 %v3905
  %v4418 = vcvt.s32.f32 %v3906
  %v4419 = vcvt.s32.f32 %v3907
  %v4420 = vcvt.s32.f32 %v3908
  %v4421 = vcvt.s32.f32 %v3909
  %v4422 = vcvt.s32.f32 %v3910
  %v4423 = vcvt.s32.f32 %v3911
  %v4424 = vcvt.s32.f32 %v3912
  %v4425 = vcvt.s32.f32 %v3913
  %v4426 = vcvt.s32.f32 %v3914
  %v4427 = vcvt.s32.f32 %v3915
  %v4428 = vcvt.s32.f32 %v3916
  %v4429 = vcvt.s32.f32 %v3917
  %v4430 = vcvt.s32.f32 %v3918
  %v4431 = vcvt.s32.f32 %v3919
  %v4432 = vcvt.s32.f32 %v3920
  %v4433 = vcvt.s32.f32 %v3921
  %v4434 = vcvt.s32.f32 %v3922
  %v4435 = vcvt.s32.f32 %v3923
  %v4436 = vcvt.s32.f32 %v3924
  %v4437 = vcvt.s32.f32 %v3925
  %v4438 = vcvt.s32.f32 %v3926
  %v4439 = vcvt.s32.f32 %v3927
  %v4440 = vcvt.s32.f32 %v3928
  %v4441 = vcvt.s32.f32 %v3929
  %v4442 = vcvt.s32.f32 %v3930
  %v4443 = vcvt.s32.f32 %v3931
  %v4444 = vcvt.s32.f32 %v3932
  %v4445 = vcvt.s32.f32 %v3933
  %v4446 = vcvt.s32.f32 %v3934
  %v4447 = vcvt.s32.f32 %v3935
  %v4448 = vcvt.s32.f32 %v3936
  %v4449 = vcvt.s32.f32 %v3937
  %v4450 = vcvt.s32.f32 %v3938
  %v4451 = vcvt.s32.f32 %v3939
  %v4452 = vcvt.s32.f32 %v3940
  %v4453 = vcvt.s32.f32 %v3941
  %v4454 = vcvt.s32.f32 %v3942
  %v4455 = vcvt.s32.f32 %v3943
  %v4456 = vcvt.s32.f32 %v3944
  %v4457 = vcvt.s32.f32 %v3945
  %v4458 = vcvt.s32.f32 %v3946
  %v4459 = vcvt.s32.f32 %v3947
  %v4460 = vcvt.s32.f32 %v3948
  %v4461 = vcvt.s32.f32 %v3949
  %v4462 = vcvt.s32.f32 %v3950
  %v4463 = vcvt.s32.f32 %v3951
  %v4464 = vcvt.s32.f32 %v3952
  %v4465 = vcvt.s32.f32 %v3953
  %v4466 = vcvt.s32.f32 %v3954
  %v4467 = vcvt.s32.f32 %v3955
  %v4468 = vcvt.s32.f32 %v3956
  %v4469 = vcvt.s32.f32 %v3957
  %v4470 = vcvt.s32.f32 %v3958
  %v4471 = vcvt.s32.f32 %v3959
  %v4472 = vcvt.s32.f32 %v3960
  %v4473 = vcvt.s32.f32 %v3961
  %v4474 = vcvt.s32.f32 %v3962
  %v4475 = vcvt.s32.f32 %v3963
  %v4476 = vcvt.s32.f32 %v3964
  %v4477 = vcvt.s32.f32 %v3965
  %v4478 = vcvt.s32.f32 %v3966
  %v4479 = vcvt.s32.f32 %v3967
  %v4480 = vcvt.s32.f32 %v3968
  %v4481 = vcvt.s32.f32 %v3969
  %v4482 = vcvt.s32.f32 %v3970
  %v4483 = vcvt.s32.f32 %v3971
  %v4484 = vcvt.s32.f32 %v3972
  %v4485 = vcvt.s32.f32 %v3973
  %v4486 = vcvt.s32.f32 %v3974
  %v4487 = vcvt.s32.f32 %v3975
  %v4488 = vcvt.s32.f32 %v3976
  %v4489 = vcvt.s32.f32 %v3977
  %v4490 = vcvt.s32.f32 %v3978
  %v4491 = vcvt.s32.f32 %v3979
  %v4492 = vcvt.s32.f32 %v3980
  %v4493 = vcvt.s32.f32 %v3981
  %v4494 = vcvt.s32.f32 %v3982
  %v4495 = vcvt.s32.f32 %v3983
  %v4496 = vcvt.s32.f32 %v3984
  %v4497 = vcvt.s32.f32 %v3985
  %v4498 = vcvt.s32.f32 %v3986
  %v4499 = vcvt.s32.f32 %v3987
  %v4500 = vcvt.s32.f32 %v3988
  %v4501 = vcvt.s32.f32 %v3989
  %v4502 = vcvt.s32.f32 %v3990
  %v4503 = vcvt.s32.f32 %v3991
  %v4504 = vcvt.s32.f32 %v3992
  %v4505 = vcvt.s32.f32 %v3993
  %v4506 = vcvt.s32.f32 %v3994
  %v4507 = vcvt.s32.f32 %v3995
  %v4508 = vcvt.s32.f32 %v3996
  %v4509 = vcvt.s32.f32 %v3997
  %v4510 = vcvt.s32.f32 %v3998
  %v4511 = vcvt.s32.f32 %v3999
  %v4512 = vcvt.s32.f32 %v4000
  %v4513 = vcvt.s32.f32 %v4001
  %v4514 = vcvt.s32.f32 %v4002
  %v4515 = vcvt.s32.f32 %v4003
  %v4516 = vcvt.s32.f32 %v4004
  %v4517 = vcvt.s32.f32 %v4005
  %v4518 = vcvt.s32.f32 %v4006
  %v4519 = vcvt.s32.f32 %v4007
  %v4520 = vcvt.s32.f32 %v4008
  %v4521 = vcvt.s32.f32 %v4009
  %v4522 = vcvt.s32.f32 %v4010
  %v4523 = vcvt.s32.f32 %v4011
  %v4524 = vcvt.s32.f32 %v4012
  %v4525 = vcvt.s32.f32 %v4013
  %v4526 = vcvt.s32.f32 %v4014
  %v4527 = vcvt.s32.f32 %v4015
  %v4528 = vcvt.s32.f32 %v4016
  %v4529 = vcvt.s32.f32 %v4017
  %v4530 = vcvt.s32.f32 %v4018
  %v4531 = vcvt.s32.f32 %v4019
  %v4532 = vcvt.s32.f32 %v4020
  %v4533 = vcvt.s32.f32 %v4021
  %v4534 = vcvt.s32.f32 %v4022
  %v4535 = vcvt.s32.f32 %v4023
  %v4536 = vcvt.s32.f32 %v4024
  %v4537 = vcvt.s32.f32 %v4025
  %v4538 = vcvt.s32.f32 %v4026
  %v4539 = vcvt.s32.f32 %v4027
  %v4540 = vcvt.s32.f32 %v4028
  %v4541 = vcvt.s32.f32 %v4029
  %v4542 = vcvt.s32.f32 %v4030
  %v4543 = vcvt.s32.f32 %v4031
  %v4544 = vcvt.s32.f32 %v4032
  %v4545 = vcvt.s32.f32 %v4033
  %v4546 = vcvt.s32.f32 %v4034
  %v4547 = vcvt.s32.f32 %v4035
  %v4548 = vcvt.s32.f32 %v4036
  %v4549 = vcvt.s32.f32 %v4037
  %v4550 = vcvt.s32.f32 %v4038
  %v4551 = vcvt.s32.f32 %v4039
  %v4552 = vcvt.s32.f32 %v4040
  %v4553 = vcvt.s32.f32 %v4041
  %v4554 = vcvt.s32.f32 %v4042
  %v4555 = vcvt.s32.f32 %v4043
  %v4556 = vcvt.s32.f32 %v4044
  %v4557 = vcvt.s32.f32 %v4045
  %v4558 = vcvt.s32.f32 %v4046
  %v4559 = vcvt.s32.f32 %v4047
  %v4560 = vcvt.s32.f32 %v4048
  %v4561 = vcvt.s32.f32 %v4049
  %v4562 = vcvt.s32.f32 %v4050
  %v4563 = vcvt.s32.f32 %v4051
  %v4564 = vcvt.s32.f32 %v4052
  %v4565 = vcvt.s32.f32 %v4053
  %v4566 = vcvt.s32.f32 %v4054
  %v4567 = vcvt.s32.f32 %v4055
  %v4568 = vcvt.s32.f32 %v4056
  %v4569 = vcvt.s32.f32 %v4057
  %v4570 = vcvt.s32.f32 %v4058
  %v4571 = vcvt.s32.f32 %v4059
  %v4572 = vcvt.s32.f32 %v4060
  %v4573 = vcvt.s32.f32 %v4061
  %v4574 = vcvt.s32.f32 %v4062
  %v4575 = vcvt.s32.f32 %v4063
  %v4576 = vcvt.s32.f32 %v4064
  %v4577 = vcvt.s32.f32 %v4065
  %v4578 = vcvt.s32.f32 %v4066
  %v4579 = vcvt.s32.f32 %v4067
  %v4580 = vcvt.s32.f32 %v4068
  %v4581 = vcvt.s32.f32 %v4069
  %v4582 = vcvt.s32.f32 %v4070
  %v4583 = vcvt.s32.f32 %v4071
  %v4584 = vcvt.s32.f32 %v4072
  %v4585 = vcvt.s32.f32 %v4073
  %v4586 = vcvt.s32.f32 %v4074
  %v4587 = vcvt.s32.f32 %v4075
  %v4588 = vcvt.s32.f32 %v4076
  %v4589 = vcvt.s32.f32 %v4077
  %v4590 = vcvt.s32.f32 %v4078
  %v4591 = vcvt.s32.f32 %v4079
  %v4592 = vcvt.s32.f32 %v4080
  %v4593 = vcvt.s32.f32 %v4081
  %v4594 = vcvt.s32.f32 %v4082
  %v4595 = vcvt.s32.f32 %v4083
  %v4596 = vcvt.s32.f32 %v4084
  %v4597 = vcvt.s32.f32 %v4085
  %v4598 = vcvt.s32.f32 %v4086
  %v4599 = vcvt.s32.f32 %v4087
  %v4600 = vcvt.s32.f32 %v4088
  %v4601 = vcvt.s32.f32 %v4089
  %v4602 = vcvt.s32.f32 %v4090
  %v4603 = vcvt.s32.f32 %v4091
  %v4604 = vcvt.s32.f32 %v4092
  %v4605 = vcvt.s32.f32 %v4093
  %v4606 = vcvt.s32.f32 %v4094
  %v4607 = vcvt.s32.f32 %v4095
  %v4608 = vcvt.s32.f32 %v4096
  %v4609 = vcvt.s32.f32 %v4097
  %v4610 = vcvt.s32.f32 %v4098
  %v4611 = vcvt.s32.f32 %v4099
  %v4612 = vcvt.s32.f32 %v4100
  %v4613 = vcvt.s32.f32 %v4101
  %v4614 = vcvt.s32.f32 %v4102
  %v4615 = vcvt.s32.f32 %v4103
  %v4616 = vcvt.s32.f32 %v4104
  %v4617 = vcvt.s32.f32 %v4105
  %v4618 = vcvt.s32.f32 %v4106
  %v4619 = vcvt.s32.f32 %v4107
  %v4620 = vcvt.s32.f32 %v4108
  %v4621 = vcvt.s32.f32 %v4109
  %v4622 = vcvt.s32.f32 %v4110
  %v4623 = vcvt.s32.f32 %v4111
  %v4624 = vcvt.s32.f32 %v4112
  %v4625 = vcvt.s32.f32 %v4113
  %v4626 = vcvt.s32.f32 %v4114
  %v4627 = vcvt.s32.f32 %v4115
  %v4628 = vcvt.s32.f32 %v4116
  %v4629 = vcvt.s32.f32 %v4117
  %v4630 = vcvt.s32.f32 %v4118
  %v4631 = vcvt.s32.f32 %v4119
  %v4632 = vcvt.s32.f32 %v4120
  %v4633 = vcvt.s32.f32 %v4121
  %v4634 = vcvt.s32.f32 %v4122
  %v4635 = vcvt.s32.f32 %v4123
  %v4636 = vcvt.s32.f32 %v4124
  %v4637 = vcvt.s32.f32 %v4125
  %v4638 = vcvt.s32.f32 %v4126
  %v4639 = vcvt.s32.f32 %v4127
  %v4640 = vcvt.s32.f32 %v4128
  %v4641 = vcvt.s32.f32 %v4129
  %v4642 = vcvt.s32.f32 %v4130
  %v4643 = vcvt.s32.f32 %v4131
  %v4644 = vcvt.s32.f32 %v4132
  %v4645 = vcvt.s32.f32 %v4133
  %v4646 = vcvt.s32.f32 %v4134
  %v4647 = vcvt.s32.f32 %v4135
  %v4648 = vcvt.s32.f32 %v4136
  %v4649 = vcvt.s32.f32 %v4137
  %v4650 = vcvt.s32.f32 %v4138
  %v4651 = vcvt.s32.f32 %v4139
  %v4652 = vcvt.s32.f32 %v4140
  %v4653 = vcvt.s32.f32 %v4141
  %v4654 = vcvt.s32.f32 %v4142
  %v4655 = vcvt.s32.f32 %v4143
  %v4656 = vcvt.s32.f32 %v4144
  %v4657 = vcvt.s32.f32 %v4145
  %v4658 = vcvt.s32.f32 %v4146
  %v4659 = vcvt.s32.f32 %v4147
  %v4660 = vadd.f32 %v4148, %v4149
  %v4661 = vadd.f32 %v4660, %v4150
  %v4662 = vadd.f32 %v4661, %v4151
  %v4663 = vadd.f32 %v4662, %v4152
  %v4664 = vadd.f32 %v4663, %v4153
  %v4665 = vadd.f32 %v4664, %v4154
  %v4666 = vadd.f32 %v4665, %v4155
  %v4667 = vadd.f32 %v4666, %v4156
  %v4668 = vadd.f32 %v4667, %v4157
  %v4669 = vadd.f32 %v4668, %v4158
  %v4670 = vadd.f32 %v4669, %v4159
  %v4671 = vadd.f32 %v4670, %v4160
  %v4672 = vadd.f32 %v4671, %v4161
  %v4673 = vadd.f32 %v4672, %v4162
  %v4674 = vadd.f32 %v4673, %v4163
  %v4675 = vadd.f32 %v4674, %v4164
  %v4676 = vadd.f32 %v4675, %v4165
  %v4677 = vadd.f32 %v4676, %v4166
  %v4678 = vadd.f32 %v4677, %v4167
  %v4679 = vadd.f32 %v4678, %v4168
  %v4680 = vadd.f32 %v4679, %v4169
  %v4681 = vadd.f32 %v4680, %v4170
  %v4682 = vadd.f32 %v4681, %v4171
  %v4683 = vadd.f32 %v4682, %v4172
  %v4684 = vadd.f32 %v4683, %v4173
  %v4685 = vadd.f32 %v4684, %v4174
  %v4686 = vadd.f32 %v4685, %v4175
  %v4687 = vadd.f32 %v4686, %v4176
  %v4688 = vadd.f32 %v4687, %v4177
  %v4689 = vadd.f32 %v4688, %v4178
  %v4690 = vadd.f32 %v4689, %v4179
  %v4691 = vrot.slane %v4690, 4
  %v4692 = vadd.f32 %v4690, %v4691
  %v4693 = vrot.slane %v4692, 2
  %v4694 = vadd.f32 %v4692, %v4693
  %v4695 = vrot.slane %v4694, 1
  %v4696 = vadd.f32 %v4694, %v4695
  %v4697 = vadd.f32 %v4180, %v4181
  %v4698 = vadd.f32 %v4697, %v4182
  %v4699 = vadd.f32 %v4698, %v4183
  %v4700 = vadd.f32 %v4699, %v4184
  %v4701 = vadd.f32 %v4700, %v4185
  %v4702 = vadd.f32 %v4701, %v4186
  %v4703 = vadd.f32 %v4702, %v4187
  %v4704 = vadd.f32 %v4703, %v4188
  %v4705 = vadd.f32 %v4704, %v4189
  %v4706 = vadd.f32 %v4705, %v4190
  %v4707 = vadd.f32 %v4706, %v4191
  %v4708 = vadd.f32 %v4707, %v4192
  %v4709 = vadd.f32 %v4708, %v4193
  %v4710 = vadd.f32 %v4709, %v4194
  %v4711 = vadd.f32 %v4710, %v4195
  %v4712 = vadd.f32 %v4711, %v4196
  %v4713 = vadd.f32 %v4712, %v4197
  %v4714 = vadd.f32 %v4713, %v4198
  %v4715 = vadd.f32 %v4714, %v4199
  %v4716 = vadd.f32 %v4715, %v4200
  %v4717 = vadd.f32 %v4716, %v4201
  %v4718 = vadd.f32 %v4717, %v4202
  %v4719 = vadd.f32 %v4718, %v4203
  %v4720 = vadd.f32 %v4719, %v4204
  %v4721 = vadd.f32 %v4720, %v4205
  %v4722 = vadd.f32 %v4721, %v4206
  %v4723 = vadd.f32 %v4722, %v4207
  %v4724 = vadd.f32 %v4723, %v4208
  %v4725 = vadd.f32 %v4724, %v4209
  %v4726 = vadd.f32 %v4725, %v4210
  %v4727 = vadd.f32 %v4726, %v4211
  %v4728 = vrot.slane %v4727, 4
  %v4729 = vadd.f32 %v4727, %v4728
  %v4730 = vrot.slane %v4729, 2
  %v4731 = vadd.f32 %v4729, %v4730
  %v4732 = vrot.slane %v4731, 1
  %v4733 = vadd.f32 %v4731, %v4732
  %v4734 = vadd.f32 %v4212, %v4213
  %v4735 = vadd.f32 %v4734, %v4214
  %v4736 = vadd.f32 %v4735, %v4215
  %v4737 = vadd.f32 %v4736, %v4216
  %v4738 = vadd.f32 %v4737, %v4217
  %v4739 = vadd.f32 %v4738, %v4218
  %v4740 = vadd.f32 %v4739, %v4219
  %v4741 = vadd.f32 %v4740, %v4220
  %v4742 = vadd.f32 %v4741, %v4221
  %v4743 = vadd.f32 %v4742, %v4222
  %v4744 = vadd.f32 %v4743, %v4223
  %v4745 = vadd.f32 %v4744, %v4224
  %v4746 = vadd.f32 %v4745, %v4225
  %v4747 = vadd.f32 %v4746, %v4226
  %v4748 = vadd.f32 %v4747, %v4227
  %v4749 = vadd.f32 %v4748, %v4228
  %v4750 = vadd.f32 %v4749, %v4229
  %v4751 = vadd.f32 %v4750, %v4230
  %v4752 = vadd.f32 %v4751, %v4231
  %v4753 = vadd.f32 %v4752, %v4232
  %v4754 = vadd.f32 %v4753, %v4233
  %v4755 = vadd.f32 %v4754, %v4234
  %v4756 = vadd.f32 %v4755, %v4235
  %v4757 = vadd.f32 %v4756, %v4236
  %v4758 = vadd.f32 %v4757, %v4237
  %v4759 = vadd.f32 %v4758, %v4238
  %v4760 = vadd.f32 %v4759, %v4239
  %v4761 = vadd.f32 %v4760, %v4240
  %v4762 = vadd.f32 %v4761, %v4241
  %v4763 = vadd.f32 %v4762, %v4242
  %v4764 = vadd.f32 %v4763, %v4243
  %v4765 = vrot.slane %v4764, 4
  %v4766 = vadd.f32 %v4764, %v4765
  %v4767 = vrot.slane %v4766, 2
  %v4768 = vadd.f32 %v4766, %v4767
  %v4769 = vrot.slane %v4768, 1
  %v4770 = vadd.f32 %v4768, %v4769
  %v4771 = vadd.f32 %v4244, %v4245
  %v4772 = vadd.f32 %v4771, %v4246
  %v4773 = vadd.f32 %v4772, %v4247
  %v4774 = vadd.f32 %v4773, %v4248
  %v4775 = vadd.f32 %v4774, %v4249
  %v4776 = vadd.f32 %v4775, %v4250
  %v4777 = vadd.f32 %v4776, %v4251
  %v4778 = vadd.f32 %v4777, %v4252
  %v4779 = vadd.f32 %v4778, %v4253
  %v4780 = vadd.f32 %v4779, %v4254
  %v4781 = vadd.f32 %v4780, %v4255
  %v4782 = vadd.f32 %v4781, %v4256
  %v4783 = vadd.f32 %v4782, %v4257
  %v4784 = vadd.f32 %v4783, %v4258
  %v4785 = vadd.f32 %v4784, %v4259
  %v4786 = vadd.f32 %v4785, %v4260
  %v4787 = vadd.f32 %v4786, %v4261
  %v4788 = vadd.f32 %v4787, %v4262
  %v4789 = vadd.f32 %v4788, %v4263
  %v4790 = vadd.f32 %v4789, %v4264
  %v4791 = vadd.f32 %v4790, %v4265
  %v4792 = vadd.f32 %v4791, %v4266
  %v4793 = vadd.f32 %v4792, %v4267
  %v4794 = vadd.f32 %v4793, %v4268
  %v4795 = vadd.f32 %v4794, %v4269
  %v4796 = vadd.f32 %v4795, %v4270
  %v4797 = vadd.f32 %v4796, %v4271
  %v4798 = vadd.f32 %v4797, %v4272
  %v4799 = vadd.f32 %v4798, %v4273
  %v4800 = vadd.f32 %v4799, %v4274
  %v4801 = vadd.f32 %v4800, %v4275
  %v4802 = vrot.slane %v4801, 4
  %v4803 = vadd.f32 %v4801, %v4802
  %v4804 = vrot.slane %v4803, 2
  %v4805 = vadd.f32 %v4803, %v4804
  %v4806 = vrot.slane %v4805, 1
  %v4807 = vadd.f32 %v4805, %v4806
  %v4808 = vadd.f32 %v4276, %v4277
  %v4809 = vadd.f32 %v4808, %v4278
  %v4810 = vadd.f32 %v4809, %v4279
  %v4811 = vadd.f32 %v4810, %v4280
  %v4812 = vadd.f32 %v4811, %v4281
  %v4813 = vadd.f32 %v4812, %v4282
  %v4814 = vadd.f32 %v4813, %v4283
  %v4815 = vadd.f32 %v4814, %v4284
  %v4816 = vadd.f32 %v4815, %v4285
  %v4817 = vadd.f32 %v4816, %v4286
  %v4818 = vadd.f32 %v4817, %v4287
  %v4819 = vadd.f32 %v4818, %v4288
  %v4820 = vadd.f32 %v4819, %v4289
  %v4821 = vadd.f32 %v4820, %v4290
  %v4822 = vadd.f32 %v4821, %v4291
  %v4823 = vadd.f32 %v4822, %v4292
  %v4824 = vadd.f32 %v4823, %v4293
  %v4825 = vadd.f32 %v4824, %v4294
  %v4826 = vadd.f32 %v4825, %v4295
  %v4827 = vadd.f32 %v4826, %v4296
  %v4828 = vadd.f32 %v4827, %v4297
  %v4829 = vadd.f32 %v4828, %v4298
  %v4830 = vadd.f32 %v4829, %v4299
  %v4831 = vadd.f32 %v4830, %v4300
  %v4832 = vadd.f32 %v4831, %v4301
  %v4833 = vadd.f32 %v4832, %v4302
  %v4834 = vadd.f32 %v4833, %v4303
  %v4835 = vadd.f32 %v4834, %v4304
  %v4836 = vadd.f32 %v4835, %v4305
  %v4837 = vadd.f32 %v4836, %v4306
  %v4838 = vadd.f32 %v4837, %v4307
  %v4839 = vrot.slane %v4838, 4
  %v4840 = vadd.f32 %v4838, %v4839
  %v4841 = vrot.slane %v4840, 2
  %v4842 = vadd.f32 %v4840, %v4841
  %v4843 = vrot.slane %v4842, 1
  %v4844 = vadd.f32 %v4842, %v4843
  %v4845 = vadd.f32 %v4308, %v4309
  %v4846 = vadd.f32 %v4845, %v4310
  %v4847 = vadd.f32 %v4846, %v4311
  %v4848 = vadd.f32 %v4847, %v4312
  %v4849 = vadd.f32 %v4848, %v4313
  %v4850 = vadd.f32 %v4849, %v4314
  %v4851 = vadd.f32 %v4850, %v4315
  %v4852 = vadd.f32 %v4851, %v4316
  %v4853 = vadd.f32 %v4852, %v4317
  %v4854 = vadd.f32 %v4853, %v4318
  %v4855 = vadd.f32 %v4854, %v4319
  %v4856 = vadd.f32 %v4855, %v4320
  %v4857 = vadd.f32 %v4856, %v4321
  %v4858 = vadd.f32 %v4857, %v4322
  %v4859 = vadd.f32 %v4858, %v4323
  %v4860 = vadd.f32 %v4859, %v4324
  %v4861 = vadd.f32 %v4860, %v4325
  %v4862 = vadd.f32 %v4861, %v4326
  %v4863 = vadd.f32 %v4862, %v4327
  %v4864 = vadd.f32 %v4863, %v4328
  %v4865 = vadd.f32 %v4864, %v4329
  %v4866 = vadd.f32 %v4865, %v4330
  %v4867 = vadd.f32 %v4866, %v4331
  %v4868 = vadd.f32 %v4867, %v4332
  %v4869 = vadd.f32 %v4868, %v4333
  %v4870 = vadd.f32 %v4869, %v4334
  %v4871 = vadd.f32 %v4870, %v4335
  %v4872 = vadd.f32 %v4871, %v4336
  %v4873 = vadd.f32 %v4872, %v4337
  %v4874 = vadd.f32 %v4873, %v4338
  %v4875 = vadd.f32 %v4874, %v4339
  %v4876 = vrot.slane %v4875, 4
  %v4877 = vadd.f32 %v4875, %v4876
  %v4878 = vrot.slane %v4877, 2
  %v4879 = vadd.f32 %v4877, %v4878
  %v4880 = vrot.slane %v4879, 1
  %v4881 = vadd.f32 %v4879, %v4880
  %v4882 = vadd.f32 %v4340, %v4341
  %v4883 = vadd.f32 %v4882, %v4342
  %v4884 = vadd.f32 %v4883, %v4343
  %v4885 = vadd.f32 %v4884, %v4344
  %v4886 = vadd.f32 %v4885, %v4345
  %v4887 = vadd.f32 %v4886, %v4346
  %v4888 = vadd.f32 %v4887, %v4347
  %v4889 = vadd.f32 %v4888, %v4348
  %v4890 = vadd.f32 %v4889, %v4349
  %v4891 = vadd.f32 %v4890, %v4350
  %v4892 = vadd.f32 %v4891, %v4351
  %v4893 = vadd.f32 %v4892, %v4352
  %v4894 = vadd.f32 %v4893, %v4353
  %v4895 = vadd.f32 %v4894, %v4354
  %v4896 = vadd.f32 %v4895, %v4355
  %v4897 = vadd.f32 %v4896, %v4356
  %v4898 = vadd.f32 %v4897, %v4357
  %v4899 = vadd.f32 %v4898, %v4358
  %v4900 = vadd.f32 %v4899, %v4359
  %v4901 = vadd.f32 %v4900, %v4360
  %v4902 = vadd.f32 %v4901, %v4361
  %v4903 = vadd.f32 %v4902, %v4362
  %v4904 = vadd.f32 %v4903, %v4363
  %v4905 = vadd.f32 %v4904, %v4364
  %v4906 = vadd.f32 %v4905, %v4365
  %v4907 = vadd.f32 %v4906, %v4366
  %v4908 = vadd.f32 %v4907, %v4367
  %v4909 = vadd.f32 %v4908, %v4368
  %v4910 = vadd.f32 %v4909, %v4369
  %v4911 = vadd.f32 %v4910, %v4370
  %v4912 = vadd.f32 %v4911, %v4371
  %v4913 = vrot.slane %v4912, 4
  %v4914 = vadd.f32 %v4912, %v4913
  %v4915 = vrot.slane %v4914, 2
  %v4916 = vadd.f32 %v4914, %v4915
  %v4917 = vrot.slane %v4916, 1
  %v4918 = vadd.f32 %v4916, %v4917
  %v4919 = vadd.f32 %v4372, %v4373
  %v4920 = vadd.f32 %v4919, %v4374
  %v4921 = vadd.f32 %v4920, %v4375
  %v4922 = vadd.f32 %v4921, %v4376
  %v4923 = vadd.f32 %v4922, %v4377
  %v4924 = vadd.f32 %v4923, %v4378
  %v4925 = vadd.f32 %v4924, %v4379
  %v4926 = vadd.f32 %v4925, %v4380
  %v4927 = vadd.f32 %v4926, %v4381
  %v4928 = vadd.f32 %v4927, %v4382
  %v4929 = vadd.f32 %v4928, %v4383
  %v4930 = vadd.f32 %v4929, %v4384
  %v4931 = vadd.f32 %v4930, %v4385
  %v4932 = vadd.f32 %v4931, %v4386
  %v4933 = vadd.f32 %v4932, %v4387
  %v4934 = vadd.f32 %v4933, %v4388
  %v4935 = vadd.f32 %v4934, %v4389
  %v4936 = vadd.f32 %v4935, %v4390
  %v4937 = vadd.f32 %v4936, %v4391
  %v4938 = vadd.f32 %v4937, %v4392
  %v4939 = vadd.f32 %v4938, %v4393
  %v4940 = vadd.f32 %v4939, %v4394
  %v4941 = vadd.f32 %v4940, %v4395
  %v4942 = vadd.f32 %v4941, %v4396
  %v4943 = vadd.f32 %v4942, %v4397
  %v4944 = vadd.f32 %v4943, %v4398
  %v4945 = vadd.f32 %v4944, %v4399
  %v4946 = vadd.f32 %v4945, %v4400
  %v4947 = vadd.f32 %v4946, %v4401
  %v4948 = vadd.f32 %v4947, %v4402
  %v4949 = vadd.f32 %v4948, %v4403
  %v4950 = vrot.slane %v4949, 4
  %v4951 = vadd.f32 %v4949, %v4950
  %v4952 = vrot.slane %v4951, 2
  %v4953 = vadd.f32 %v4951, %v4952
  %v4954 = vrot.slane %v4953, 1
  %v4955 = vadd.f32 %v4953, %v4954
  %v4956 = vadd.f32 %v4404, %v4405
  %v4957 = vadd.f32 %v4956, %v4406
  %v4958 = vadd.f32 %v4957, %v4407
  %v4959 = vadd.f32 %v4958, %v4408
  %v4960 = vadd.f32 %v4959, %v4409
  %v4961 = vadd.f32 %v4960, %v4410
  %v4962 = vadd.f32 %v4961, %v4411
  %v4963 = vadd.f32 %v4962, %v4412
  %v4964 = vadd.f32 %v4963, %v4413
  %v4965 = vadd.f32 %v4964, %v4414
  %v4966 = vadd.f32 %v4965, %v4415
  %v4967 = vadd.f32 %v4966, %v4416
  %v4968 = vadd.f32 %v4967, %v4417
  %v4969 = vadd.f32 %v4968, %v4418
  %v4970 = vadd.f32 %v4969, %v4419
  %v4971 = vadd.f32 %v4970, %v4420
  %v4972 = vadd.f32 %v4971, %v4421
  %v4973 = vadd.f32 %v4972, %v4422
  %v4974 = vadd.f32 %v4973, %v4423
  %v4975 = vadd.f32 %v4974, %v4424
  %v4976 = vadd.f32 %v4975, %v4425
  %v4977 = vadd.f32 %v4976, %v4426
  %v4978 = vadd.f32 %v4977, %v4427
  %v4979 = vadd.f32 %v4978, %v4428
  %v4980 = vadd.f32 %v4979, %v4429
  %v4981 = vadd.f32 %v4980, %v4430
  %v4982 = vadd.f32 %v4981, %v4431
  %v4983 = vadd.f32 %v4982, %v4432
  %v4984 = vadd.f32 %v4983, %v4433
  %v4985 = vadd.f32 %v4984, %v4434
  %v4986 = vadd.f32 %v4985, %v4435
  %v4987 = vrot.slane %v4986, 4
  %v4988 = vadd.f32 %v4986, %v4987
  %v4989 = vrot.slane %v4988, 2
  %v4990 = vadd.f32 %v4988, %v4989
  %v4991 = vrot.slane %v4990, 1
  %v4992 = vadd.f32 %v4990, %v4991
  %v4993 = vadd.f32 %v4436, %v4437
  %v4994 = vadd.f32 %v4993, %v4438
  %v4995 = vadd.f32 %v4994, %v4439
  %v4996 = vadd.f32 %v4995, %v4440
  %v4997 = vadd.f32 %v4996, %v4441
  %v4998 = vadd.f32 %v4997, %v4442
  %v4999 = vadd.f32 %v4998, %v4443
  %v5000 = vadd.f32 %v4999, %v4444
  %v5001 = vadd.f32 %v5000, %v4445
  %v5002 = vadd.f32 %v5001, %v4446
  %v5003 = vadd.f32 %v5002, %v4447
  %v5004 = vadd.f32 %v5003, %v4448
  %v5005 = vadd.f32 %v5004, %v4449
  %v5006 = vadd.f32 %v5005, %v4450
  %v5007 = vadd.f32 %v5006, %v4451
  %v5008 = vadd.f32 %v5007, %v4452
  %v5009 = vadd.f32 %v5008, %v4453
  %v5010 = vadd.f32 %v5009, %v4454
  %v5011 = vadd.f32 %v5010, %v4455
  %v5012 = vadd.f32 %v5011, %v4456
  %v5013 = vadd.f32 %v5012, %v4457
  %v5014 = vadd.f32 %v5013, %v4458
  %v5015 = vadd.f32 %v5014, %v4459
  %v5016 = vadd.f32 %v5015, %v4460
  %v5017 = vadd.f32 %v5016, %v4461
  %v5018 = vadd.f32 %v5017, %v4462
  %v5019 = vadd.f32 %v5018, %v4463
  %v5020 = vadd.f32 %v5019, %v4464
  %v5021 = vadd.f32 %v5020, %v4465
  %v5022 = vadd.f32 %v5021, %v4466
  %v5023 = vadd.f32 %v5022, %v4467
  %v5024 = vrot.slane %v5023, 4
  %v5025 = vadd.f32 %v5023, %v5024
  %v5026 = vrot.slane %v5025, 2
  %v5027 = vadd.f32 %v5025, %v5026
  %v5028 = vrot.slane %v5027, 1
  %v5029 = vadd.f32 %v5027, %v5028
  %v5030 = vadd.f32 %v4468, %v4469
  %v5031 = vadd.f32 %v5030, %v4470
  %v5032 = vadd.f32 %v5031, %v4471
  %v5033 = vadd.f32 %v5032, %v4472
  %v5034 = vadd.f32 %v5033, %v4473
  %v5035 = vadd.f32 %v5034, %v4474
  %v5036 = vadd.f32 %v5035, %v4475
  %v5037 = vadd.f32 %v5036, %v4476
  %v5038 = vadd.f32 %v5037, %v4477
  %v5039 = vadd.f32 %v5038, %v4478
  %v5040 = vadd.f32 %v5039, %v4479
  %v5041 = vadd.f32 %v5040, %v4480
  %v5042 = vadd.f32 %v5041, %v4481
  %v5043 = vadd.f32 %v5042, %v4482
  %v5044 = vadd.f32 %v5043, %v4483
  %v5045 = vadd.f32 %v5044, %v4484
  %v5046 = vadd.f32 %v5045, %v4485
  %v5047 = vadd.f32 %v5046, %v4486
  %v5048 = vadd.f32 %v5047, %v4487
  %v5049 = vadd.f32 %v5048, %v4488
  %v5050 = vadd.f32 %v5049, %v4489
  %v5051 = vadd.f32 %v5050, %v4490
  %v5052 = vadd.f32 %v5051, %v4491
  %v5053 = vadd.f32 %v5052, %v4492
  %v5054 = vadd.f32 %v5053, %v4493
  %v5055 = vadd.f32 %v5054, %v4494
  %v5056 = vadd.f32 %v5055, %v4495
  %v5057 = vadd.f32 %v5056, %v4496
  %v5058 = vadd.f32 %v5057, %v4497
  %v5059 = vadd.f32 %v5058, %v4498
  %v5060 = vadd.f32 %v5059, %v4499
  %v5061 = vrot.slane %v5060, 4
  %v5062 = vadd.f32 %v5060, %v5061
  %v5063 = vrot.slane %v5062, 2
  %v5064 = vadd.f32 %v5062, %v5063
  %v5065 = vrot.slane %v5064, 1
  %v5066 = vadd.f32 %v5064, %v5065
  %v5067 = vadd.f32 %v4500, %v4501
  %v5068 = vadd.f32 %v5067, %v4502
  %v5069 = vadd.f32 %v5068, %v4503
  %v5070 = vadd.f32 %v5069, %v4504
  %v5071 = vadd.f32 %v5070, %v4505
  %v5072 = vadd.f32 %v5071, %v4506
  %v5073 = vadd.f32 %v5072, %v4507
  %v5074 = vadd.f32 %v5073, %v4508
  %v5075 = vadd.f32 %v5074, %v4509
  %v5076 = vadd.f32 %v5075, %v4510
  %v5077 = vadd.f32 %v5076, %v4511
  %v5078 = vadd.f32 %v5077, %v4512
  %v5079 = vadd.f32 %v5078, %v4513
  %v5080 = vadd.f32 %v5079, %v4514
  %v5081 = vadd.f32 %v5080, %v4515
  %v5082 = vadd.f32 %v5081, %v4516
  %v5083 = vadd.f32 %v5082, %v4517
  %v5084 = vadd.f32 %v5083, %v4518
  %v5085 = vadd.f32 %v5084, %v4519
  %v5086 = vadd.f32 %v5085, %v4520
  %v5087 = vadd.f32 %v5086, %v4521
  %v5088 = vadd.f32 %v5087, %v4522
  %v5089 = vadd.f32 %v5088, %v4523
  %v5090 = vadd.f32 %v5089, %v4524
  %v5091 = vadd.f32 %v5090, %v4525
  %v5092 = vadd.f32 %v5091, %v4526
  %v5093 = vadd.f32 %v5092, %v4527
  %v5094 = vadd.f32 %v5093, %v4528
  %v5095 = vadd.f32 %v5094, %v4529
  %v5096 = vadd.f32 %v5095, %v4530
  %v5097 = vadd.f32 %v5096, %v4531
  %v5098 = vrot.slane %v5097, 4
  %v5099 = vadd.f32 %v5097, %v5098
  %v5100 = vrot.slane %v5099, 2
  %v5101 = vadd.f32 %v5099, %v5100
  %v5102 = vrot.slane %v5101, 1
  %v5103 = vadd.f32 %v5101, %v5102
  %v5104 = vadd.f32 %v4532, %v4533
  %v5105 = vadd.f32 %v5104, %v4534
  %v5106 = vadd.f32 %v5105, %v4535
  %v5107 = vadd.f32 %v5106, %v4536
  %v5108 = vadd.f32 %v5107, %v4537
  %v5109 = vadd.f32 %v5108, %v4538
  %v5110 = vadd.f32 %v5109, %v4539
  %v5111 = vadd.f32 %v5110, %v4540
  %v5112 = vadd.f32 %v5111, %v4541
  %v5113 = vadd.f32 %v5112, %v4542
  %v5114 = vadd.f32 %v5113, %v4543
  %v5115 = vadd.f32 %v5114, %v4544
  %v5116 = vadd.f32 %v5115, %v4545
  %v5117 = vadd.f32 %v5116, %v4546
  %v5118 = vadd.f32 %v5117, %v4547
  %v5119 = vadd.f32 %v5118, %v4548
  %v5120 = vadd.f32 %v5119, %v4549
  %v5121 = vadd.f32 %v5120, %v4550
  %v5122 = vadd.f32 %v5121, %v4551
  %v5123 = vadd.f32 %v5122, %v4552
  %v5124 = vadd.f32 %v5123, %v4553
  %v5125 = vadd.f32 %v5124, %v4554
  %v5126 = vadd.f32 %v5125, %v4555
  %v5127 = vadd.f32 %v5126, %v4556
  %v5128 = vadd.f32 %v5127, %v4557
  %v5129 = vadd.f32 %v5128, %v4558
  %v5130 = vadd.f32 %v5129, %v4559
  %v5131 = vadd.f32 %v5130, %v4560
  %v5132 = vadd.f32 %v5131, %v4561
  %v5133 = vadd.f32 %v5132, %v4562
  %v5134 = vadd.f32 %v5133, %v4563
  %v5135 = vrot.slane %v5134, 4
  %v5136 = vadd.f32 %v5134, %v5135
  %v5137 = vrot.slane %v5136, 2
  %v5138 = vadd.f32 %v5136, %v5137
  %v5139 = vrot.slane %v5138, 1
  %v5140 = vadd.f32 %v5138, %v5139
  %v5141 = vadd.f32 %v4564, %v4565
  %v5142 = vadd.f32 %v5141, %v4566
  %v5143 = vadd.f32 %v5142, %v4567
  %v5144 = vadd.f32 %v5143, %v4568
  %v5145 = vadd.f32 %v5144, %v4569
  %v5146 = vadd.f32 %v5145, %v4570
  %v5147 = vadd.f32 %v5146, %v4571
  %v5148 = vadd.f32 %v5147, %v4572
  %v5149 = vadd.f32 %v5148, %v4573
  %v5150 = vadd.f32 %v5149, %v4574
  %v5151 = vadd.f32 %v5150, %v4575
  %v5152 = vadd.f32 %v5151, %v4576
  %v5153 = vadd.f32 %v5152, %v4577
  %v5154 = vadd.f32 %v5153, %v4578
  %v5155 = vadd.f32 %v5154, %v4579
  %v5156 = vadd.f32 %v5155, %v4580
  %v5157 = vadd.f32 %v5156, %v4581
  %v5158 = vadd.f32 %v5157, %v4582
  %v5159 = vadd.f32 %v5158, %v4583
  %v5160 = vadd.f32 %v5159, %v4584
  %v5161 = vadd.f32 %v5160, %v4585
  %v5162 = vadd.f32 %v5161, %v4586
  %v5163 = vadd.f32 %v5162, %v4587
  %v5164 = vadd.f32 %v5163, %v4588
  %v5165 = vadd.f32 %v5164, %v4589
  %v5166 = vadd.f32 %v5165, %v4590
  %v5167 = vadd.f32 %v5166, %v4591
  %v5168 = vadd.f32 %v5167, %v4592
  %v5169 = vadd.f32 %v5168, %v4593
  %v5170 = vadd.f32 %v5169, %v4594
  %v5171 = vadd.f32 %v5170, %v4595
  %v5172 = vrot.slane %v5171, 4
  %v5173 = vadd.f32 %v5171, %v5172
  %v5174 = vrot.slane %v5173, 2
  %v5175 = vadd.f32 %v5173, %v5174
  %v5176 = vrot.slane %v5175, 1
  %v5177 = vadd.f32 %v5175, %v5176
  %v5178 = vadd.f32 %v4596, %v4597
  %v5179 = vadd.f32 %v5178, %v4598
  %v5180 = vadd.f32 %v5179, %v4599
  %v5181 = vadd.f32 %v5180, %v4600
  %v5182 = vadd.f32 %v5181, %v4601
  %v5183 = vadd.f32 %v5182, %v4602
  %v5184 = vadd.f32 %v5183, %v4603
  %v5185 = vadd.f32 %v5184, %v4604
  %v5186 = vadd.f32 %v5185, %v4605
  %v5187 = vadd.f32 %v5186, %v4606
  %v5188 = vadd.f32 %v5187, %v4607
  %v5189 = vadd.f32 %v5188, %v4608
  %v5190 = vadd.f32 %v5189, %v4609
  %v5191 = vadd.f32 %v5190, %v4610
  %v5192 = vadd.f32 %v5191, %v4611
  %v5193 = vadd.f32 %v5192, %v4612
  %v5194 = vadd.f32 %v5193, %v4613
  %v5195 = vadd.f32 %v5194, %v4614
  %v5196 = vadd.f32 %v5195, %v4615
  %v5197 = vadd.f32 %v5196, %v4616
  %v5198 = vadd.f32 %v5197, %v4617
  %v5199 = vadd.f32 %v5198, %v4618
  %v5200 = vadd.f32 %v5199, %v4619
  %v5201 = vadd.f32 %v5200, %v4620
  %v5202 = vadd.f32 %v5201, %v4621
  %v5203 = vadd.f32 %v5202, %v4622
  %v5204 = vadd.f32 %v5203, %v4623
  %v5205 = vadd.f32 %v5204, %v4624
  %v5206 = vadd.f32 %v5205, %v4625
  %v5207 = vadd.f32 %v5206, %v4626
  %v5208 = vadd.f32 %v5207, %v4627
  %v5209 = vrot.slane %v5208, 4
  %v5210 = vadd.f32 %v5208, %v5209
  %v5211 = vrot.slane %v5210, 2
  %v5212 = vadd.f32 %v5210, %v5211
  %v5213 = vrot.slane %v5212, 1
  %v5214 = vadd.f32 %v5212, %v5213
  %v5215 = vadd.f32 %v4628, %v4629
  %v5216 = vadd.f32 %v5215, %v4630
  %v5217 = vadd.f32 %v5216, %v4631
  %v5218 = vadd.f32 %v5217, %v4632
  %v5219 = vadd.f32 %v5218, %v4633
  %v5220 = vadd.f32 %v5219, %v4634
  %v5221 = vadd.f32 %v5220, %v4635
  %v5222 = vadd.f32 %v5221, %v4636
  %v5223 = vadd.f32 %v5222, %v4637
  %v5224 = vadd.f32 %v5223, %v4638
  %v5225 = vadd.f32 %v5224, %v4639
  %v5226 = vadd.f32 %v5225, %v4640
  %v5227 = vadd.f32 %v5226, %v4641
  %v5228 = vadd.f32 %v5227, %v4642
  %v5229 = vadd.f32 %v5228, %v4643
  %v5230 = vadd.f32 %v5229, %v4644
  %v5231 = vadd.f32 %v5230, %v4645
  %v5232 = vadd.f32 %v5231, %v4646
  %v5233 = vadd.f32 %v5232, %v4647
  %v5234 = vadd.f32 %v5233, %v4648
  %v5235 = vadd.f32 %v5234, %v4649
  %v5236 = vadd.f32 %v5235, %v4650
  %v5237 = vadd.f32 %v5236, %v4651
  %v5238 = vadd.f32 %v5237, %v4652
  %v5239 = vadd.f32 %v5238, %v4653
  %v5240 = vadd.f32 %v5239, %v4654
  %v5241 = vadd.f32 %v5240, %v4655
  %v5242 = vadd.f32 %v5241, %v4656
  %v5243 = vadd.f32 %v5242, %v4657
  %v5244 = vadd.f32 %v5243, %v4658
  %v5245 = vadd.f32 %v5244, %v4659
  %v5246 = vrot.slane %v5245, 4
  %v5247 = vadd.f32 %v5245, %v5246
  %v5248 = vrot.slane %v5247, 2
  %v5249 = vadd.f32 %v5247, %v5248
  %v5250 = vrot.slane %v5249, 1
  %v5251 = vadd.f32 %v5249, %v5250
  %v5252 = vmul.f32 %v4696, 0.00390625
  %v5253 = vmul.f32 %v4733, 0.00390625
  %v5254 = vmul.f32 %v4770, 0.00390625
  %v5255 = vmul.f32 %v4807, 0.00390625
  %v5256 = vmul.f32 %v4844, 0.00390625
  %v5257 = vmul.f32 %v4881, 0.00390625
  %v5258 = vmul.f32 %v4918, 0.00390625
  %v5259 = vmul.f32 %v4955, 0.00390625
  %v5260 = vmul.f32 %v4992, 0.00390625
  %v5261 = vmul.f32 %v5029, 0.00390625
  %v5262 = vmul.f32 %v5066, 0.00390625
  %v5263 = vmul.f32 %v5103, 0.00390625
  %v5264 = vmul.f32 %v5140, 0.00390625
  %v5265 = vmul.f32 %v5177, 0.00390625
  %v5266 = vmul.f32 %v5214, 0.00390625
  %v5267 = vmul.f32 %v5251, 0.00390625
  %v5268 = vld [vmem:[%s1] sm:$0xff]
  %v5269 = vld [vmem:[%s1 + $0x8] sm:$0xff]
  %v5270 = vld [vmem:[%s1 + $0x10] sm:$0xff]
  %v5271 = vld [vmem:[%s1 + $0x18] sm:$0xff]
  %v5272 = vld [vmem:[%s1 + $0x20] sm:$0xff]
  %v5273 = vld [vmem:[%s1 + $0x28] sm:$0xff]
  %v5274 = vld [vmem:[%s1 + $0x30] sm:$0xff]
  %v5275 = vld [vmem:[%s1 + $0x38] sm:$0xff]
  %v5276 = vld [vmem:[%s1 + $0x40] sm:$0xff]
  %v5277 = vld [vmem:[%s1 + $0x48] sm:$0xff]
  %v5278 = vld [vmem:[%s1 + $0x50] sm:$0xff]
  %v5279 = vld [vmem:[%s1 + $0x58] sm:$0xff]
  %v5280 = vld [vmem:[%s1 + $0x60] sm:$0xff]
  %v5281 = vld [vmem:[%s1 + $0x68] sm:$0xff]
  %v5282 = vld [vmem:[%s1 + $0x70] sm:$0xff]
  %v5283 = vld [vmem:[%s1 + $0x78] sm:$0xff]
  %v5284 = vld [vmem:[%s2] sm:$0x1]
  %v5286 = vperm.slane %v5284, 0
  %vm5304 = vcmask 1041409
  %v5305 = vsel %vm5304, %v5253, %v5252
  %vm5306 = vcmask 1042434
  %v5307 = vsel %vm5306, %v5254, %v5305
  %vm5308 = vcmask 1043459
  %v5309 = vsel %vm5308, %v5255, %v5307
  %vm5310 = vcmask 1044484
  %v5311 = vsel %vm5310, %v5256, %v5309
  %vm5312 = vcmask 1045509
  %v5313 = vsel %vm5312, %v5257, %v5311
  %vm5314 = vcmask 1046534
  %v5315 = vsel %vm5314, %v5258, %v5313
  %vm5316 = vcmask 1047559
  %v5317 = vsel %vm5316, %v5259, %v5315
  %v5318 = vsel %vm5304, %v5261, %v5260
  %v5319 = vsel %vm5306, %v5262, %v5318
  %v5320 = vsel %vm5308, %v5263, %v5319
  %v5321 = vsel %vm5310, %v5264, %v5320
  %v5322 = vsel %vm5312, %v5265, %v5321
  %v5323 = vsel %vm5314, %v5266, %v5322
  %v5324 = vsel %vm5316, %v5267, %v5323
  %5327 = vmatpush.msra.mxu0 %v5283
  %5328 = vmatpush.msra.mxu0 %v5282
  %5329 = vmatpush.msra.mxu0 %v5281
  %5330 = vmatpush.msra.mxu0 %v5280
  %5331 = vmatpush.msra.mxu0 %v5279
  %5332 = vmatpush.msra.mxu0 %v5278
  %5333 = vmatpush.msra.mxu0 %v5277
  %5334 = vmatpush.msra.mxu0 %v5276
  %5335 = vmatpush.msra.mxu0 %v5275
  %5336 = vmatpush.msra.mxu0 %v5274
  %5337 = vmatpush.msra.mxu0 %v5273
  %5338 = vmatpush.msra.mxu0 %v5272
  %5339 = vmatpush.msra.mxu0 %v5271
  %5340 = vmatpush.msra.mxu0 %v5270
  %5341 = vmatpush.msra.mxu0 %v5269
  %5342 = vmatpush.msra.mxu0 %v5268
  %5343 = vmatmul.f32.gmra.mxu0 %v5317
  %v5344 = vpop.f32.mrf.mxu0
  %v5345 = vadd.f32 %v5286, %v5344
  %5346 = vmatmul.f32.gmra.mxu0 %v5324
  %v5347 = vpop.f32.mrf.mxu0
  %v5348 = vadd.f32 %v5286, %v5347
  %5349 = vdwg.mxu0
  %5350 = vst [vmem:[%s3] sm:$0xff] %v5345
  %5351 = vst [vmem:[%s3 + $0x8] sm:$0xff] %v5348
  // Predicated region
  $region14: #{proportions_lstm_forward.2} parent=0 // pred_check
    _
  $region15: #{proportions_lstm_forward.2} parent=0 // pred_check_branch
    %5353 = sbr.rel (0) target = $region17
  $region16: #{proportions_lstm_forward.2} parent=0 // pred_region
    _
  $region17: #{proportions_lstm_forward.2} parent=0 // pred_fallthru
    _
  // Predicated region
  $region18: #{proportions_lstm_forward.2} parent=0 // pred_check
    _
  $region19: #{proportions_lstm_forward.2} parent=0 // pred_check_branch
    %5355 = sbr.rel (0) target = $region21
  $region20: #{proportions_lstm_forward.2} parent=0 // pred_region
    _
  $region21: #{proportions_lstm_forward.2} parent=0 // pred_fallthru
    _

</llo_original>
